<compile_context>
chip_gen: v7x
topology: tpu7x:2x2x1
jax: 0.10.0
libtpu: 0.0.40
codegen_flags: <defaults>
</compile_context>

<pallas_src>
import math

import jax
import jax.numpy as jnp
from jax.experimental import pallas as pl
from jax.experimental.pallas import tpu as pltpu

_LANE = 128
_SUBLANE = 8


# ----------------------------------------------------------------------------
# Fused kernel: 10 x (matmul + bias + activation), activations stay on-chip.
# refs = (x, w0, b0, w1, b1, ..., w9, b9, o)
# ----------------------------------------------------------------------------
def _tonenet_fused_kernel(*refs):
    x_ref = refs[0]
    o_ref = refs[-1]
    wb = refs[1:-1]
    n_layers = len(wb) // 2  # 10

    h = x_ref[...]                                           # (M, 128) bf16
    for i in range(n_layers):
        w_ref, b_ref = wb[2 * i], wb[2 * i + 1]
        y = jnp.dot(h, w_ref[...], preferred_element_type=jnp.float32)
        y = y + b_ref[...]                                   # (1, N) f32 broadcast
        if i + 1 < n_layers:
            h = jnp.maximum(y, 0.0).astype(jnp.bfloat16)     # ReLU, back to MXU dtype
        else:
            o_ref[...] = jnp.tanh(y)                         # fc_output: tanh, f32


# ----------------------------------------------------------------------------
# Parameter construction (deterministic, PyTorch-style uniform bounds).
# Conv weights stored PyTorch-layout (C_out, C_in, 3); Linear weights stored
# directly as (d_in, d_out) (equivalent under random init).
# ----------------------------------------------------------------------------
def _uniform(key, shape, bound):
    return jax.random.uniform(key, shape, jnp.float32, -bound, bound)


def init_params(key):
    ks = jax.random.split(key, 20)
    p = {}

    def conv(i, c_in, c_out, ksz=3):
        bound = 1.0 / math.sqrt(c_in * ksz)
        return (_uniform(ks[2 * i], (c_out, c_in, ksz), bound),
                _uniform(ks[2 * i + 1], (c_out,), bound))

    def lin(i, d_in, d_out):
        bound = 1.0 / math.sqrt(d_in)
        return (_uniform(ks[2 * i], (d_in, d_out), bound),
                _uniform(ks[2 * i + 1], (d_out,), bound))

    p["fc_input"] = conv(0, 1, 128)
    p["fc_conv1"] = conv(1, 128, 512)
    p["fc_conv2"] = conv(2, 512, 1024)
    p["fc1"] = lin(3, 1024, 1024)
    p["fc2"] = lin(4, 1024, 512)
    p["fc3"] = lin(5, 512, 512)
    p["fc31"] = lin(6, 512, 512)
    p["fc32"] = lin(7, 512, 512)
    p["fc4"] = lin(8, 512, 32)
    p["fc_output"] = lin(9, 32, 1)
    return p


# ----------------------------------------------------------------------------
# One-time packing into the fused kernel's layout:
#   * conv layers -> centre-tap (C_in, C_out) matmul (valid because L == 1)
#   * weights cast to bf16, biases stay f32 and pre-shaped (1, N)
#   * narrow K/N dims zero-padded to 128 for (8,128) alignment.
# ----------------------------------------------------------------------------
def _rup128(n):
    return ((max(n, 1) + _LANE - 1) // _LANE) * _LANE


def _pad2d(a, rows, cols):
    return jnp.pad(a, ((0, rows - a.shape[0]), (0, cols - a.shape[1])))


def pack_params(p):
    def conv_mat(w, b):
        return w[:, :, 1].T, b            # centre tap: (C_in, C_out)

    layers = [
        conv_mat(*p["fc_input"]),          # (1, 128)
        conv_mat(*p["fc_conv1"]),          # (128, 512)
        conv_mat(*p["fc_conv2"]),          # (512, 1024)
        p["fc1"], p["fc2"], p["fc3"], p["fc31"], p["fc32"],
        p["fc4"],                          # (512, 32)
        p["fc_output"],                    # (32, 1)
    ]

    packed = []
    for w, b in layers:
        k, n = w.shape
        k_pad, n_pad = _rup128(k), _rup128(n)
        w_p = _pad2d(w, k_pad, n_pad).astype(jnp.bfloat16)
        b_p = jnp.pad(b, (0, n_pad - n)).reshape(1, n_pad).astype(jnp.float32)
        packed.append((w_p, b_p))
    return packed


# ----------------------------------------------------------------------------
# Forward pass (mirrors ToneNet.forward, inference mode).
# ----------------------------------------------------------------------------
def tonenet_forward(packed, x):
    """x: (B, 1, L) NCW float32.  L must be 1 (implied by fc1=Linear(1024,1024))."""
    B, C_in, L = x.shape
    assert C_in == 1 and L == 1, "ToneNet's fc1=Linear(1024,1024) implies C_in=1, L=1"
    # TODO(synk): nn.Dropout(p=0.2) is identity at inference; training-mode
    # masking (pltpu.prng_*) intentionally omitted.

    M = B * L
    M_pad = max(_SUBLANE, ((M + _SUBLANE - 1) // _SUBLANE) * _SUBLANE)

    # Lane-dense, sublane-padded input slab: column 0 carries the scalar input.
    # Built directly in bf16 (the MXU operand dtype) so there is no in-kernel
    # cast and the input DMA is half-width.
    x_slab = jnp.zeros((M_pad, _LANE), jnp.bfloat16)
    x_slab = x_slab.at[:M, 0].set(x.reshape(M).astype(jnp.bfloat16))

    flat = [x_slab]
    for w, b in packed:
        flat.append(w)
        flat.append(b)

    # Advisory cost estimate for the XLA scheduler.
    flops = 2 * M_pad * sum(int(w.shape[0]) * int(w.shape[1]) for w, _ in packed)
    bytes_accessed = sum(int(a.size) * a.dtype.itemsize for a in flat)
    bytes_accessed += M_pad * _LANE * 4
    cost = pl.CostEstimate(flops=int(flops),
                           transcendentals=int(M_pad * _LANE),
                           bytes_accessed=int(bytes_accessed))

    # No grid: single invocation, whole arrays resident in VMEM.  This avoids
    # the 2x double-buffering the pipelined grid=(1,) variant allocated for
    # every weight (there is nothing to overlap with a single grid step), so
    # peak scoped VMEM is ~6 MiB instead of ~12 MiB.
    out = pl.pallas_call(
        _tonenet_fused_kernel,
        out_shape=jax.ShapeDtypeStruct((M_pad, _LANE), jnp.float32),
        compiler_params=pltpu.CompilerParams(
            vmem_limit_bytes=32 * 1024 * 1024,   # explicit: fits v5e/v6e/v7x
        ),
        cost_estimate=cost,
    )(*flat)

    return out[:B, :1]    # only column 0 of the lane-padded slab is real


if __name__ == "__main__":
    key = jax.random.PRNGKey(0)
    pkey, xkey = jax.random.split(key)
    params = init_params(pkey)
    packed = pack_params(params)   # one-time: centre-tap, bf16 cast, padding

    B, L = 2, 1                    # L == 1 is implied by fc1 = Linear(1024, 1024)
    x = jax.random.normal(xkey, (B, 1, L), dtype=jnp.float32)

    fwd = jax.jit(tonenet_forward)     # fuse pad/slice plumbing around the kernel
    out = fwd(packed, x)
    out = jax.block_until_ready(out)
    assert out.shape == (B, 1) and out.dtype == jnp.float32
    assert bool(jnp.all(jnp.isfinite(out)))
    print("KERNEL_OK")
</pallas_src>

<mosaic_0001>
module attributes {stable_mosaic.version = 11 : i64} {
  func.func @_tonenet_fused_kernel(%arg0: memref<8x128xbf16, #tpu.memory_space<vmem>>, %arg1: memref<128x128xbf16, #tpu.memory_space<vmem>>, %arg2: memref<1x128xf32, #tpu.memory_space<vmem>>, %arg3: memref<128x512xbf16, #tpu.memory_space<vmem>>, %arg4: memref<1x512xf32, #tpu.memory_space<vmem>>, %arg5: memref<512x1024xbf16, #tpu.memory_space<vmem>>, %arg6: memref<1x1024xf32, #tpu.memory_space<vmem>>, %arg7: memref<1024x1024xbf16, #tpu.memory_space<vmem>>, %arg8: memref<1x1024xf32, #tpu.memory_space<vmem>>, %arg9: memref<1024x512xbf16, #tpu.memory_space<vmem>>, %arg10: memref<1x512xf32, #tpu.memory_space<vmem>>, %arg11: memref<512x512xbf16, #tpu.memory_space<vmem>>, %arg12: memref<1x512xf32, #tpu.memory_space<vmem>>, %arg13: memref<512x512xbf16, #tpu.memory_space<vmem>>, %arg14: memref<1x512xf32, #tpu.memory_space<vmem>>, %arg15: memref<512x512xbf16, #tpu.memory_space<vmem>>, %arg16: memref<1x512xf32, #tpu.memory_space<vmem>>, %arg17: memref<512x128xbf16, #tpu.memory_space<vmem>>, %arg18: memref<1x128xf32, #tpu.memory_space<vmem>>, %arg19: memref<128x128xbf16, #tpu.memory_space<vmem>>, %arg20: memref<1x128xf32, #tpu.memory_space<vmem>>, %arg21: memref<8x128xf32, #tpu.memory_space<vmem>>) attributes {dimension_semantics = [], scalar_prefetch = 0 : i64, scratch_operands = 0 : i64, tpu.core_type = #tpu.core_type<tc>} {
    %c0 = arith.constant 0 : index
    %c0_0 = arith.constant 0 : index
    %0 = vector.load %arg0[%c0, %c0_0] : memref<8x128xbf16, #tpu.memory_space<vmem>>, vector<8x128xbf16>
    %c0_1 = arith.constant 0 : index
    %c0_2 = arith.constant 0 : index
    %1 = vector.load %arg1[%c0_1, %c0_2] : memref<128x128xbf16, #tpu.memory_space<vmem>>, vector<128x128xbf16>
    %cst = arith.constant dense<0.000000e+00> : vector<8x128xf32>
    %2 = tpu.matmul %0, %1, %cst {dimension_numbers = #tpu.dot_dimension_numbers<[1], [0], [0], [1], [0, 0, 1, 1], [], []>} : vector<8x128xbf16>, vector<128x128xbf16>, vector<8x128xf32> -> vector<8x128xf32>
    %c0_3 = arith.constant 0 : index
    %c0_4 = arith.constant 0 : index
    %3 = vector.load %arg2[%c0_3, %c0_4] : memref<1x128xf32, #tpu.memory_space<vmem>>, vector<1x128xf32>
    %4 = vector.broadcast %3 : vector<1x128xf32> to vector<8x128xf32>
    %5 = arith.addf %2, %4 : vector<8x128xf32>
    %cst_5 = arith.constant 0.000000e+00 : f32
    %6 = vector.broadcast %cst_5 : f32 to vector<8x128xf32>
    %7 = arith.maximumf %5, %6 : vector<8x128xf32>
    %8 = arith.truncf %7 : vector<8x128xf32> to vector<8x128xbf16>
    %c0_6 = arith.constant 0 : index
    %c0_7 = arith.constant 0 : index
    %9 = vector.load %arg3[%c0_6, %c0_7] : memref<128x512xbf16, #tpu.memory_space<vmem>>, vector<128x512xbf16>
    %cst_8 = arith.constant dense<0.000000e+00> : vector<8x512xf32>
    %10 = tpu.matmul %8, %9, %cst_8 {dimension_numbers = #tpu.dot_dimension_numbers<[1], [0], [0], [1], [0, 0, 1, 1], [], []>} : vector<8x128xbf16>, vector<128x512xbf16>, vector<8x512xf32> -> vector<8x512xf32>
    %c0_9 = arith.constant 0 : index
    %c0_10 = arith.constant 0 : index
    %11 = vector.load %arg4[%c0_9, %c0_10] : memref<1x512xf32, #tpu.memory_space<vmem>>, vector<1x512xf32>
    %12 = vector.broadcast %11 : vector<1x512xf32> to vector<8x512xf32>
    %13 = arith.addf %10, %12 : vector<8x512xf32>
    %cst_11 = arith.constant 0.000000e+00 : f32
    %14 = vector.broadcast %cst_11 : f32 to vector<8x512xf32>
    %15 = arith.maximumf %13, %14 : vector<8x512xf32>
    %16 = arith.truncf %15 : vector<8x512xf32> to vector<8x512xbf16>
    %c0_12 = arith.constant 0 : index
    %c0_13 = arith.constant 0 : index
    %17 = vector.load %arg5[%c0_12, %c0_13] : memref<512x1024xbf16, #tpu.memory_space<vmem>>, vector<512x1024xbf16>
    %cst_14 = arith.constant dense<0.000000e+00> : vector<8x1024xf32>
    %18 = tpu.matmul %16, %17, %cst_14 {dimension_numbers = #tpu.dot_dimension_numbers<[1], [0], [0], [1], [0, 0, 1, 1], [], []>} : vector<8x512xbf16>, vector<512x1024xbf16>, vector<8x1024xf32> -> vector<8x1024xf32>
    %c0_15 = arith.constant 0 : index
    %c0_16 = arith.constant 0 : index
    %19 = vector.load %arg6[%c0_15, %c0_16] : memref<1x1024xf32, #tpu.memory_space<vmem>>, vector<1x1024xf32>
    %20 = vector.broadcast %19 : vector<1x1024xf32> to vector<8x1024xf32>
    %21 = arith.addf %18, %20 : vector<8x1024xf32>
    %cst_17 = arith.constant 0.000000e+00 : f32
    %22 = vector.broadcast %cst_17 : f32 to vector<8x1024xf32>
    %23 = arith.maximumf %21, %22 : vector<8x1024xf32>
    %24 = arith.truncf %23 : vector<8x1024xf32> to vector<8x1024xbf16>
    %c0_18 = arith.constant 0 : index
    %c0_19 = arith.constant 0 : index
    %25 = vector.load %arg7[%c0_18, %c0_19] : memref<1024x1024xbf16, #tpu.memory_space<vmem>>, vector<1024x1024xbf16>
    %cst_20 = arith.constant dense<0.000000e+00> : vector<8x1024xf32>
    %26 = tpu.matmul %24, %25, %cst_20 {dimension_numbers = #tpu.dot_dimension_numbers<[1], [0], [0], [1], [0, 0, 1, 1], [], []>} : vector<8x1024xbf16>, vector<1024x1024xbf16>, vector<8x1024xf32> -> vector<8x1024xf32>
    %c0_21 = arith.constant 0 : index
    %c0_22 = arith.constant 0 : index
    %27 = vector.load %arg8[%c0_21, %c0_22] : memref<1x1024xf32, #tpu.memory_space<vmem>>, vector<1x1024xf32>
    %28 = vector.broadcast %27 : vector<1x1024xf32> to vector<8x1024xf32>
    %29 = arith.addf %26, %28 : vector<8x1024xf32>
    %cst_23 = arith.constant 0.000000e+00 : f32
    %30 = vector.broadcast %cst_23 : f32 to vector<8x1024xf32>
    %31 = arith.maximumf %29, %30 : vector<8x1024xf32>
    %32 = arith.truncf %31 : vector<8x1024xf32> to vector<8x1024xbf16>
    %c0_24 = arith.constant 0 : index
    %c0_25 = arith.constant 0 : index
    %33 = vector.load %arg9[%c0_24, %c0_25] : memref<1024x512xbf16, #tpu.memory_space<vmem>>, vector<1024x512xbf16>
    %cst_26 = arith.constant dense<0.000000e+00> : vector<8x512xf32>
    %34 = tpu.matmul %32, %33, %cst_26 {dimension_numbers = #tpu.dot_dimension_numbers<[1], [0], [0], [1], [0, 0, 1, 1], [], []>} : vector<8x1024xbf16>, vector<1024x512xbf16>, vector<8x512xf32> -> vector<8x512xf32>
    %c0_27 = arith.constant 0 : index
    %c0_28 = arith.constant 0 : index
    %35 = vector.load %arg10[%c0_27, %c0_28] : memref<1x512xf32, #tpu.memory_space<vmem>>, vector<1x512xf32>
    %36 = vector.broadcast %35 : vector<1x512xf32> to vector<8x512xf32>
    %37 = arith.addf %34, %36 : vector<8x512xf32>
    %cst_29 = arith.constant 0.000000e+00 : f32
    %38 = vector.broadcast %cst_29 : f32 to vector<8x512xf32>
    %39 = arith.maximumf %37, %38 : vector<8x512xf32>
    %40 = arith.truncf %39 : vector<8x512xf32> to vector<8x512xbf16>
    %c0_30 = arith.constant 0 : index
    %c0_31 = arith.constant 0 : index
    %41 = vector.load %arg11[%c0_30, %c0_31] : memref<512x512xbf16, #tpu.memory_space<vmem>>, vector<512x512xbf16>
    %cst_32 = arith.constant dense<0.000000e+00> : vector<8x512xf32>
    %42 = tpu.matmul %40, %41, %cst_32 {dimension_numbers = #tpu.dot_dimension_numbers<[1], [0], [0], [1], [0, 0, 1, 1], [], []>} : vector<8x512xbf16>, vector<512x512xbf16>, vector<8x512xf32> -> vector<8x512xf32>
    %c0_33 = arith.constant 0 : index
    %c0_34 = arith.constant 0 : index
    %43 = vector.load %arg12[%c0_33, %c0_34] : memref<1x512xf32, #tpu.memory_space<vmem>>, vector<1x512xf32>
    %44 = vector.broadcast %43 : vector<1x512xf32> to vector<8x512xf32>
    %45 = arith.addf %42, %44 : vector<8x512xf32>
    %cst_35 = arith.constant 0.000000e+00 : f32
    %46 = vector.broadcast %cst_35 : f32 to vector<8x512xf32>
    %47 = arith.maximumf %45, %46 : vector<8x512xf32>
    %48 = arith.truncf %47 : vector<8x512xf32> to vector<8x512xbf16>
    %c0_36 = arith.constant 0 : index
    %c0_37 = arith.constant 0 : index
    %49 = vector.load %arg13[%c0_36, %c0_37] : memref<512x512xbf16, #tpu.memory_space<vmem>>, vector<512x512xbf16>
    %cst_38 = arith.constant dense<0.000000e+00> : vector<8x512xf32>
    %50 = tpu.matmul %48, %49, %cst_38 {dimension_numbers = #tpu.dot_dimension_numbers<[1], [0], [0], [1], [0, 0, 1, 1], [], []>} : vector<8x512xbf16>, vector<512x512xbf16>, vector<8x512xf32> -> vector<8x512xf32>
    %c0_39 = arith.constant 0 : index
    %c0_40 = arith.constant 0 : index
    %51 = vector.load %arg14[%c0_39, %c0_40] : memref<1x512xf32, #tpu.memory_space<vmem>>, vector<1x512xf32>
    %52 = vector.broadcast %51 : vector<1x512xf32> to vector<8x512xf32>
    %53 = arith.addf %50, %52 : vector<8x512xf32>
    %cst_41 = arith.constant 0.000000e+00 : f32
    %54 = vector.broadcast %cst_41 : f32 to vector<8x512xf32>
    %55 = arith.maximumf %53, %54 : vector<8x512xf32>
    %56 = arith.truncf %55 : vector<8x512xf32> to vector<8x512xbf16>
    %c0_42 = arith.constant 0 : index
    %c0_43 = arith.constant 0 : index
    %57 = vector.load %arg15[%c0_42, %c0_43] : memref<512x512xbf16, #tpu.memory_space<vmem>>, vector<512x512xbf16>
    %cst_44 = arith.constant dense<0.000000e+00> : vector<8x512xf32>
    %58 = tpu.matmul %56, %57, %cst_44 {dimension_numbers = #tpu.dot_dimension_numbers<[1], [0], [0], [1], [0, 0, 1, 1], [], []>} : vector<8x512xbf16>, vector<512x512xbf16>, vector<8x512xf32> -> vector<8x512xf32>
    %c0_45 = arith.constant 0 : index
    %c0_46 = arith.constant 0 : index
    %59 = vector.load %arg16[%c0_45, %c0_46] : memref<1x512xf32, #tpu.memory_space<vmem>>, vector<1x512xf32>
    %60 = vector.broadcast %59 : vector<1x512xf32> to vector<8x512xf32>
    %61 = arith.addf %58, %60 : vector<8x512xf32>
    %cst_47 = arith.constant 0.000000e+00 : f32
    %62 = vector.broadcast %cst_47 : f32 to vector<8x512xf32>
    %63 = arith.maximumf %61, %62 : vector<8x512xf32>
    %64 = arith.truncf %63 : vector<8x512xf32> to vector<8x512xbf16>
    %c0_48 = arith.constant 0 : index
    %c0_49 = arith.constant 0 : index
    %65 = vector.load %arg17[%c0_48, %c0_49] : memref<512x128xbf16, #tpu.memory_space<vmem>>, vector<512x128xbf16>
    %cst_50 = arith.constant dense<0.000000e+00> : vector<8x128xf32>
    %66 = tpu.matmul %64, %65, %cst_50 {dimension_numbers = #tpu.dot_dimension_numbers<[1], [0], [0], [1], [0, 0, 1, 1], [], []>} : vector<8x512xbf16>, vector<512x128xbf16>, vector<8x128xf32> -> vector<8x128xf32>
    %c0_51 = arith.constant 0 : index
    %c0_52 = arith.constant 0 : index
    %67 = vector.load %arg18[%c0_51, %c0_52] : memref<1x128xf32, #tpu.memory_space<vmem>>, vector<1x128xf32>
    %68 = vector.broadcast %67 : vector<1x128xf32> to vector<8x128xf32>
    %69 = arith.addf %66, %68 : vector<8x128xf32>
    %cst_53 = arith.constant 0.000000e+00 : f32
    %70 = vector.broadcast %cst_53 : f32 to vector<8x128xf32>
    %71 = arith.maximumf %69, %70 : vector<8x128xf32>
    %72 = arith.truncf %71 : vector<8x128xf32> to vector<8x128xbf16>
    %c0_54 = arith.constant 0 : index
    %c0_55 = arith.constant 0 : index
    %73 = vector.load %arg19[%c0_54, %c0_55] : memref<128x128xbf16, #tpu.memory_space<vmem>>, vector<128x128xbf16>
    %cst_56 = arith.constant dense<0.000000e+00> : vector<8x128xf32>
    %74 = tpu.matmul %72, %73, %cst_56 {dimension_numbers = #tpu.dot_dimension_numbers<[1], [0], [0], [1], [0, 0, 1, 1], [], []>} : vector<8x128xbf16>, vector<128x128xbf16>, vector<8x128xf32> -> vector<8x128xf32>
    %c0_57 = arith.constant 0 : index
    %c0_58 = arith.constant 0 : index
    %75 = vector.load %arg20[%c0_57, %c0_58] : memref<1x128xf32, #tpu.memory_space<vmem>>, vector<1x128xf32>
    %76 = vector.broadcast %75 : vector<1x128xf32> to vector<8x128xf32>
    %77 = arith.addf %74, %76 : vector<8x128xf32>
    %78 = math.tanh %77 : vector<8x128xf32>
    %c0_59 = arith.constant 0 : index
    %c0_60 = arith.constant 0 : index
    %79 = vector.load %arg21[%c0_59, %c0_60] : memref<8x128xf32, #tpu.memory_space<vmem>>, vector<8x128xf32>
    tpu.vector_store %arg21[%c0_59, %c0_60], %78 {strides = array<i32>} : memref<8x128xf32, #tpu.memory_space<vmem>>, vector<8x128xf32>,
    return
  }
}

</mosaic_0001>

<llo_original>
// kernel: tonenet_forward.1
$region0: #{tonenet_forward.1}
  #allocation0 [shape = 'u32[]', space=smem, size = 0x4, offset = 0x4, fixed_abs, tag = 'smem constant byte address 0x4 - core index']
  #allocation1 [shape = 'u32[144,128]{1,0:T(1,128)}', space=vmem, size = 0x12000, scoped, tag = 'internal scratch']
  %s0 = inlined_call_operand.vmem [shape: bf16[8,128], index: 0, kind: input, shape index: {}]
  %s1 = inlined_call_operand.hbm [shape: bf16[128,128], index: 1, kind: input, shape index: {}]
  %s2 = inlined_call_operand.hbm [shape: f32[1,128], index: 2, kind: input, shape index: {}]
  %s3 = inlined_call_operand.hbm [shape: bf16[128,512], index: 3, kind: input, shape index: {}]
  %s4 = inlined_call_operand.hbm [shape: f32[1,512], index: 4, kind: input, shape index: {}]
  %s5 = inlined_call_operand.hbm [shape: bf16[512,1024], index: 5, kind: input, shape index: {}]
  %s6 = inlined_call_operand.hbm [shape: f32[1,1024], index: 6, kind: input, shape index: {}]
  %s7 = inlined_call_operand.hbm [shape: bf16[1024,1024], index: 7, kind: input, shape index: {}]
  %s8 = inlined_call_operand.hbm [shape: f32[1,1024], index: 8, kind: input, shape index: {}]
  %s9 = inlined_call_operand.hbm [shape: bf16[1024,512], index: 9, kind: input, shape index: {}]
  %s10 = inlined_call_operand.hbm [shape: f32[1,512], index: 10, kind: input, shape index: {}]
  %s11 = inlined_call_operand.hbm [shape: bf16[512,512], index: 11, kind: input, shape index: {}]
  %s12 = inlined_call_operand.hbm [shape: f32[1,512], index: 12, kind: input, shape index: {}]
  %s13 = inlined_call_operand.hbm [shape: bf16[512,512], index: 13, kind: input, shape index: {}]
  %s14 = inlined_call_operand.hbm [shape: f32[1,512], index: 14, kind: input, shape index: {}]
  %s15 = inlined_call_operand.hbm [shape: bf16[512,512], index: 15, kind: input, shape index: {}]
  %s16 = inlined_call_operand.hbm [shape: f32[1,512], index: 16, kind: input, shape index: {}]
  %s17 = inlined_call_operand.hbm [shape: bf16[512,128], index: 17, kind: input, shape index: {}]
  %s18 = inlined_call_operand.hbm [shape: f32[1,128], index: 18, kind: input, shape index: {}]
  %s19 = inlined_call_operand.hbm [shape: bf16[128,128], index: 19, kind: input, shape index: {}]
  %s20 = inlined_call_operand.hbm [shape: f32[1,128], index: 20, kind: input, shape index: {}]
  %s21 = inlined_call_operand.vmem [shape: f32[8,128], index: 21, kind: output, shape index: {}]
  %s22 = sld [smem:[#allocation0]]
  $region174: #{tonenet_forward.1} parent=0
    _
  %s24 = ssub.s32 1, %s22
  %s25 = scalar_select 0, %s24, %s22
  $region1: #{tonenet_forward.1} parent=0
    #allocation2 [shape = 'u8[32768]{0}', space=vmem, size = 0x8000, scoped, tag = 'input window, operand 1, single buffered']
    #allocation3 [shape = 's32[1]{0}', space=sflag, size = 0x4, scoped, tag = 'scoped memory for tonenet_forward.1']
    #allocation4 [shape = 'u8[512]{0}', space=vmem, size = 0x400, scoped, tag = 'input window, operand 2, single buffered']
    #allocation5 [shape = 's32[1]{0}', space=sflag, size = 0x4, scoped, tag = 'scoped memory for tonenet_forward.1']
    #allocation6 [shape = 'u8[131072]{0}', space=vmem, size = 0x20000, scoped, tag = 'input window, operand 3, single buffered']
    #allocation7 [shape = 'u8[2048]{0}', space=vmem, size = 0x800, scoped, tag = 'input window, operand 4, single buffered']
    #allocation8 [shape = 's32[1]{0}', space=sflag, size = 0x4, scoped, tag = 'scoped memory for tonenet_forward.1']
    #allocation9 [shape = 'u8[1048576]{0}', space=vmem, size = 0x100000, scoped, tag = 'input window, operand 5, single buffered']
    #allocation10 [shape = 'u8[4096]{0}', space=vmem, size = 0x1000, scoped, tag = 'input window, operand 6, single buffered']
    #allocation11 [shape = 's32[1]{0}', space=sflag, size = 0x4, scoped, tag = 'scoped memory for tonenet_forward.1']
    #allocation12 [shape = 'u8[2097152]{0}', space=vmem, size = 0x200000, scoped, tag = 'input window, operand 7, single buffered']
    #allocation13 [shape = 'u8[4096]{0}', space=vmem, size = 0x1000, scoped, tag = 'input window, operand 8, single buffered']
    #allocation14 [shape = 's32[1]{0}', space=sflag, size = 0x4, scoped, tag = 'scoped memory for tonenet_forward.1']
    #allocation15 [shape = 'u8[1048576]{0}', space=vmem, size = 0x100000, scoped, tag = 'input window, operand 9, single buffered']
    #allocation16 [shape = 'u8[2048]{0}', space=vmem, size = 0x800, scoped, tag = 'input window, operand 10, single buffered']
    #allocation17 [shape = 's32[1]{0}', space=sflag, size = 0x4, scoped, tag = 'scoped memory for tonenet_forward.1']
    #allocation18 [shape = 'u8[524288]{0}', space=vmem, size = 0x80000, scoped, tag = 'input window, operand 11, single buffered']
    #allocation19 [shape = 'u8[2048]{0}', space=vmem, size = 0x800, scoped, tag = 'input window, operand 12, single buffered']
    #allocation20 [shape = 's32[1]{0}', space=sflag, size = 0x4, scoped, tag = 'scoped memory for tonenet_forward.1']
    #allocation21 [shape = 'u8[524288]{0}', space=vmem, size = 0x80000, scoped, tag = 'input window, operand 13, single buffered']
    #allocation22 [shape = 'u8[2048]{0}', space=vmem, size = 0x800, scoped, tag = 'input window, operand 14, single buffered']
    #allocation23 [shape = 's32[1]{0}', space=sflag, size = 0x4, scoped, tag = 'scoped memory for tonenet_forward.1']
    #allocation24 [shape = 'u8[524288]{0}', space=vmem, size = 0x80000, scoped, tag = 'input window, operand 15, single buffered']
    #allocation25 [shape = 'u8[2048]{0}', space=vmem, size = 0x800, scoped, tag = 'input window, operand 16, single buffered']
    #allocation26 [shape = 's32[1]{0}', space=sflag, size = 0x4, scoped, tag = 'scoped memory for tonenet_forward.1']
    #allocation27 [shape = 'u8[131072]{0}', space=vmem, size = 0x20000, scoped, tag = 'input window, operand 17, single buffered']
    #allocation28 [shape = 'u8[512]{0}', space=vmem, size = 0x400, scoped, tag = 'input window, operand 18, single buffered']
    #allocation29 [shape = 's32[1]{0}', space=sflag, size = 0x4, scoped, tag = 'scoped memory for tonenet_forward.1']
    #allocation30 [shape = 'u8[32768]{0}', space=vmem, size = 0x8000, scoped, tag = 'input window, operand 19, single buffered']
    #allocation31 [shape = 'u8[512]{0}', space=vmem, size = 0x400, scoped, tag = 'input window, operand 20, single buffered']
    #allocation32 [shape = 's32[1]{0}', space=sflag, size = 0x4, scoped, tag = 'scoped memory for tonenet_forward.1']
    %26 = vsyncpa [#allocation3], 0
    %27 = vsyncpa [#allocation5], 0
    %28 = vsyncpa [#allocation8], 0
    %29 = vsyncpa [#allocation11], 0
    %30 = vsyncpa [#allocation14], 0
    %31 = vsyncpa [#allocation17], 0
    %32 = vsyncpa [#allocation20], 0
    %33 = vsyncpa [#allocation23], 0
    %34 = vsyncpa [#allocation26], 0
    %35 = vsyncpa [#allocation29], 0
    %36 = vsyncpa [#allocation32], 0
    // Predicated region
    $region2: #{tonenet_forward.1} parent=1 // pred_check
      _
    $region3: #{tonenet_forward.1} parent=1 // pred_check_branch
      %38 = sbr.rel (0) target = $region5
    $region4: #{tonenet_forward.1} parent=1 // pred_region
      _
    $region5: #{tonenet_forward.1} parent=1 // pred_fallthru
      _
    // Predicated region
    $region6: #{tonenet_forward.1} parent=1 // pred_check
      _
    $region7: #{tonenet_forward.1} parent=1 // pred_check_branch
      %40 = sbr.rel (0) target = $region9
    $region8: #{tonenet_forward.1} parent=1 // pred_region
      %s42 = ssub.s32 1024, 1024
      %43 = vsyncadd [#allocation3], %s42
      %s44 = sshll.u32 [#allocation2], 4
      %s45 = int_to_ptr.vmem [resolvable:$true] %s44
      %50 = dma.hbm_to_vmem [thread:$0]  %s1, 1024, %s45, [#allocation3], 64, 64, 4
    $region9: #{tonenet_forward.1} parent=1 // pred_fallthru
      _
    // Predicated region
    $region10: #{tonenet_forward.1} parent=1 // pred_check
      _
    $region11: #{tonenet_forward.1} parent=1 // pred_check_branch
      %52 = sbr.rel (0) target = $region13
    $region12: #{tonenet_forward.1} parent=1 // pred_region
      %s54 = ssub.s32 16, 16
      %55 = vsyncadd [#allocation5], %s54
      %s57 = sshll.u32 [#allocation4], 4
      %s58 = int_to_ptr.vmem [resolvable:$true] %s57
      %60 = dma.hbm_to_vmem [thread:$0]  %s2, 16, %s58, [#allocation5]
    $region13: #{tonenet_forward.1} parent=1 // pred_fallthru
      _
    // Predicated region
    $region14: #{tonenet_forward.1} parent=1 // pred_check
      _
    $region15: #{tonenet_forward.1} parent=1 // pred_check_branch
      %62 = sbr.rel (0) target = $region17
    $region16: #{tonenet_forward.1} parent=1 // pred_region
      %s64 = ssub.s32 4096, 4096
      %65 = vsyncadd [#allocation5], %s64
      %s66 = sshll.u32 [#allocation6], 4
      %s67 = int_to_ptr.vmem [resolvable:$true] %s66
      %72 = dma.hbm_to_vmem [thread:$0]  %s3, 4096, %s67, [#allocation5], 256, 256, 16
    $region17: #{tonenet_forward.1} parent=1 // pred_fallthru
      _
    // Predicated region
    $region18: #{tonenet_forward.1} parent=1 // pred_check
      _
    $region19: #{tonenet_forward.1} parent=1 // pred_check_branch
      %74 = sbr.rel (0) target = $region21
    $region20: #{tonenet_forward.1} parent=1 // pred_region
      %s76 = ssub.s32 64, 64
      %77 = vsyncadd [#allocation8], %s76
      %s79 = sshll.u32 [#allocation7], 4
      %s80 = int_to_ptr.vmem [resolvable:$true] %s79
      %82 = dma.hbm_to_vmem [thread:$0]  %s4, 64, %s80, [#allocation8]
    $region21: #{tonenet_forward.1} parent=1 // pred_fallthru
      _
    // Predicated region
    $region22: #{tonenet_forward.1} parent=1 // pred_check
      _
    $region23: #{tonenet_forward.1} parent=1 // pred_check_branch
      %84 = sbr.rel (0) target = $region25
    $region24: #{tonenet_forward.1} parent=1 // pred_region
      %s86 = ssub.s32 32768, 32768
      %87 = vsyncadd [#allocation8], %s86
      %s88 = sshll.u32 [#allocation9], 4
      %s89 = int_to_ptr.vmem [resolvable:$true] %s88
      %94 = dma.hbm_to_vmem [thread:$0]  %s5, 32768, %s89, [#allocation8], 512, 512, 32
    $region25: #{tonenet_forward.1} parent=1 // pred_fallthru
      _
    // Predicated region
    $region26: #{tonenet_forward.1} parent=1 // pred_check
      _
    $region27: #{tonenet_forward.1} parent=1 // pred_check_branch
      %96 = sbr.rel (0) target = $region29
    $region28: #{tonenet_forward.1} parent=1 // pred_region
      %s98 = ssub.s32 128, 128
      %99 = vsyncadd [#allocation11], %s98
      %s101 = sshll.u32 [#allocation10], 4
      %s102 = int_to_ptr.vmem [resolvable:$true] %s101
      %104 = dma.hbm_to_vmem [thread:$0]  %s6, 128, %s102, [#allocation11]
    $region29: #{tonenet_forward.1} parent=1 // pred_fallthru
      _
    // Predicated region
    $region30: #{tonenet_forward.1} parent=1 // pred_check
      _
    $region31: #{tonenet_forward.1} parent=1 // pred_check_branch
      %106 = sbr.rel (0) target = $region33
    $region32: #{tonenet_forward.1} parent=1 // pred_region
      %s108 = ssub.s32 65536, 65536
      %109 = vsyncadd [#allocation11], %s108
      %s110 = sshll.u32 [#allocation12], 4
      %s111 = int_to_ptr.vmem [resolvable:$true] %s110
      %116 = dma.hbm_to_vmem [thread:$0]  %s7, 65536, %s111, [#allocation11], 512, 512, 32
    $region33: #{tonenet_forward.1} parent=1 // pred_fallthru
      _
    // Predicated region
    $region34: #{tonenet_forward.1} parent=1 // pred_check
      _
    $region35: #{tonenet_forward.1} parent=1 // pred_check_branch
      %118 = sbr.rel (0) target = $region37
    $region36: #{tonenet_forward.1} parent=1 // pred_region
      %s120 = ssub.s32 128, 128
      %121 = vsyncadd [#allocation14], %s120
      %s123 = sshll.u32 [#allocation13], 4
      %s124 = int_to_ptr.vmem [resolvable:$true] %s123
      %126 = dma.hbm_to_vmem [thread:$0]  %s8, 128, %s124, [#allocation14]
    $region37: #{tonenet_forward.1} parent=1 // pred_fallthru
      _
    // Predicated region
    $region38: #{tonenet_forward.1} parent=1 // pred_check
      _
    $region39: #{tonenet_forward.1} parent=1 // pred_check_branch
      %128 = sbr.rel (0) target = $region41
    $region40: #{tonenet_forward.1} parent=1 // pred_region
      %s130 = ssub.s32 32768, 32768
      %131 = vsyncadd [#allocation14], %s130
      %s132 = sshll.u32 [#allocation15], 4
      %s133 = int_to_ptr.vmem [resolvable:$true] %s132
      %138 = dma.hbm_to_vmem [thread:$0]  %s9, 32768, %s133, [#allocation14], 256, 256, 16
    $region41: #{tonenet_forward.1} parent=1 // pred_fallthru
      _
    // Predicated region
    $region42: #{tonenet_forward.1} parent=1 // pred_check
      _
    $region43: #{tonenet_forward.1} parent=1 // pred_check_branch
      %140 = sbr.rel (0) target = $region45
    $region44: #{tonenet_forward.1} parent=1 // pred_region
      %s142 = ssub.s32 64, 64
      %143 = vsyncadd [#allocation17], %s142
      %s145 = sshll.u32 [#allocation16], 4
      %s146 = int_to_ptr.vmem [resolvable:$true] %s145
      %148 = dma.hbm_to_vmem [thread:$0]  %s10, 64, %s146, [#allocation17]
    $region45: #{tonenet_forward.1} parent=1 // pred_fallthru
      _
    // Predicated region
    $region46: #{tonenet_forward.1} parent=1 // pred_check
      _
    $region47: #{tonenet_forward.1} parent=1 // pred_check_branch
      %150 = sbr.rel (0) target = $region49
    $region48: #{tonenet_forward.1} parent=1 // pred_region
      %s152 = ssub.s32 16384, 16384
      %153 = vsyncadd [#allocation17], %s152
      %s154 = sshll.u32 [#allocation18], 4
      %s155 = int_to_ptr.vmem [resolvable:$true] %s154
      %160 = dma.hbm_to_vmem [thread:$0]  %s11, 16384, %s155, [#allocation17], 256, 256, 16
    $region49: #{tonenet_forward.1} parent=1 // pred_fallthru
      _
    // Predicated region
    $region50: #{tonenet_forward.1} parent=1 // pred_check
      _
    $region51: #{tonenet_forward.1} parent=1 // pred_check_branch
      %162 = sbr.rel (0) target = $region53
    $region52: #{tonenet_forward.1} parent=1 // pred_region
      %s164 = ssub.s32 64, 64
      %165 = vsyncadd [#allocation20], %s164
      %s167 = sshll.u32 [#allocation19], 4
      %s168 = int_to_ptr.vmem [resolvable:$true] %s167
      %170 = dma.hbm_to_vmem [thread:$0]  %s12, 64, %s168, [#allocation20]
    $region53: #{tonenet_forward.1} parent=1 // pred_fallthru
      _
    // Predicated region
    $region54: #{tonenet_forward.1} parent=1 // pred_check
      _
    $region55: #{tonenet_forward.1} parent=1 // pred_check_branch
      %172 = sbr.rel (0) target = $region57
    $region56: #{tonenet_forward.1} parent=1 // pred_region
      %s174 = ssub.s32 16384, 16384
      %175 = vsyncadd [#allocation20], %s174
      %s176 = sshll.u32 [#allocation21], 4
      %s177 = int_to_ptr.vmem [resolvable:$true] %s176
      %182 = dma.hbm_to_vmem [thread:$0]  %s13, 16384, %s177, [#allocation20], 256, 256, 16
    $region57: #{tonenet_forward.1} parent=1 // pred_fallthru
      _
    // Predicated region
    $region58: #{tonenet_forward.1} parent=1 // pred_check
      _
    $region59: #{tonenet_forward.1} parent=1 // pred_check_branch
      %184 = sbr.rel (0) target = $region61
    $region60: #{tonenet_forward.1} parent=1 // pred_region
      %s186 = ssub.s32 64, 64
      %187 = vsyncadd [#allocation23], %s186
      %s189 = sshll.u32 [#allocation22], 4
      %s190 = int_to_ptr.vmem [resolvable:$true] %s189
      %192 = dma.hbm_to_vmem [thread:$0]  %s14, 64, %s190, [#allocation23]
    $region61: #{tonenet_forward.1} parent=1 // pred_fallthru
      _
    // Predicated region
    $region62: #{tonenet_forward.1} parent=1 // pred_check
      _
    $region63: #{tonenet_forward.1} parent=1 // pred_check_branch
      %194 = sbr.rel (0) target = $region65
    $region64: #{tonenet_forward.1} parent=1 // pred_region
      %s196 = ssub.s32 16384, 16384
      %197 = vsyncadd [#allocation23], %s196
      %s198 = sshll.u32 [#allocation24], 4
      %s199 = int_to_ptr.vmem [resolvable:$true] %s198
      %204 = dma.hbm_to_vmem [thread:$0]  %s15, 16384, %s199, [#allocation23], 256, 256, 16
    $region65: #{tonenet_forward.1} parent=1 // pred_fallthru
      _
    // Predicated region
    $region66: #{tonenet_forward.1} parent=1 // pred_check
      _
    $region67: #{tonenet_forward.1} parent=1 // pred_check_branch
      %206 = sbr.rel (0) target = $region69
    $region68: #{tonenet_forward.1} parent=1 // pred_region
      %s208 = ssub.s32 64, 64
      %209 = vsyncadd [#allocation26], %s208
      %s211 = sshll.u32 [#allocation25], 4
      %s212 = int_to_ptr.vmem [resolvable:$true] %s211
      %214 = dma.hbm_to_vmem [thread:$0]  %s16, 64, %s212, [#allocation26]
    $region69: #{tonenet_forward.1} parent=1 // pred_fallthru
      _
    // Predicated region
    $region70: #{tonenet_forward.1} parent=1 // pred_check
      _
    $region71: #{tonenet_forward.1} parent=1 // pred_check_branch
      %216 = sbr.rel (0) target = $region73
    $region72: #{tonenet_forward.1} parent=1 // pred_region
      %s218 = ssub.s32 4096, 4096
      %219 = vsyncadd [#allocation26], %s218
      %s220 = sshll.u32 [#allocation27], 4
      %s221 = int_to_ptr.vmem [resolvable:$true] %s220
      %226 = dma.hbm_to_vmem [thread:$0]  %s17, 4096, %s221, [#allocation26], 64, 64, 4
    $region73: #{tonenet_forward.1} parent=1 // pred_fallthru
      _
    // Predicated region
    $region74: #{tonenet_forward.1} parent=1 // pred_check
      _
    $region75: #{tonenet_forward.1} parent=1 // pred_check_branch
      %228 = sbr.rel (0) target = $region77
    $region76: #{tonenet_forward.1} parent=1 // pred_region
      %s230 = ssub.s32 16, 16
      %231 = vsyncadd [#allocation29], %s230
      %s233 = sshll.u32 [#allocation28], 4
      %s234 = int_to_ptr.vmem [resolvable:$true] %s233
      %236 = dma.hbm_to_vmem [thread:$0]  %s18, 16, %s234, [#allocation29]
    $region77: #{tonenet_forward.1} parent=1 // pred_fallthru
      _
    // Predicated region
    $region78: #{tonenet_forward.1} parent=1 // pred_check
      _
    $region79: #{tonenet_forward.1} parent=1 // pred_check_branch
      %238 = sbr.rel (0) target = $region81
    $region80: #{tonenet_forward.1} parent=1 // pred_region
      %s240 = ssub.s32 1024, 1024
      %241 = vsyncadd [#allocation29], %s240
      %s242 = sshll.u32 [#allocation30], 4
      %s243 = int_to_ptr.vmem [resolvable:$true] %s242
      %248 = dma.hbm_to_vmem [thread:$0]  %s19, 1024, %s243, [#allocation29], 64, 64, 4
    $region81: #{tonenet_forward.1} parent=1 // pred_fallthru
      _
    // Predicated region
    $region82: #{tonenet_forward.1} parent=1 // pred_check
      _
    $region83: #{tonenet_forward.1} parent=1 // pred_check_branch
      %250 = sbr.rel (0) target = $region85
    $region84: #{tonenet_forward.1} parent=1 // pred_region
      %s252 = ssub.s32 16, 16
      %253 = vsyncadd [#allocation32], %s252
      %s255 = sshll.u32 [#allocation31], 4
      %s256 = int_to_ptr.vmem [resolvable:$true] %s255
      %258 = dma.hbm_to_vmem [thread:$0]  %s20, 16, %s256, [#allocation32]
    $region85: #{tonenet_forward.1} parent=1 // pred_fallthru
      _
    // Predicated region
    $region86: #{tonenet_forward.1} parent=1 // pred_check
      _
    $region87: #{tonenet_forward.1} parent=1 // pred_check_branch
      %260 = sbr.rel (0) target = $region89
    $region88: #{tonenet_forward.1} parent=1 // pred_region
      %261 = dma.done [#allocation3], 1024
    $region89: #{tonenet_forward.1} parent=1 // pred_fallthru
      _
    // Predicated region
    $region90: #{tonenet_forward.1} parent=1 // pred_check
      _
    $region91: #{tonenet_forward.1} parent=1 // pred_check_branch
      %263 = sbr.rel (0) target = $region93
    $region92: #{tonenet_forward.1} parent=1 // pred_region
      %264 = dma.done [#allocation5], 16
    $region93: #{tonenet_forward.1} parent=1 // pred_fallthru
      _
    // Predicated region
    $region94: #{tonenet_forward.1} parent=1 // pred_check
      _
    $region95: #{tonenet_forward.1} parent=1 // pred_check_branch
      %266 = sbr.rel (0) target = $region97
    $region96: #{tonenet_forward.1} parent=1 // pred_region
      %267 = dma.done [#allocation5], 4096
    $region97: #{tonenet_forward.1} parent=1 // pred_fallthru
      _
    // Predicated region
    $region98: #{tonenet_forward.1} parent=1 // pred_check
      _
    $region99: #{tonenet_forward.1} parent=1 // pred_check_branch
      %269 = sbr.rel (0) target = $region101
    $region100: #{tonenet_forward.1} parent=1 // pred_region
      %270 = dma.done [#allocation8], 64
    $region101: #{tonenet_forward.1} parent=1 // pred_fallthru
      _
    // Predicated region
    $region102: #{tonenet_forward.1} parent=1 // pred_check
      _
    $region103: #{tonenet_forward.1} parent=1 // pred_check_branch
      %272 = sbr.rel (0) target = $region105
    $region104: #{tonenet_forward.1} parent=1 // pred_region
      %273 = dma.done [#allocation8], 32768
    $region105: #{tonenet_forward.1} parent=1 // pred_fallthru
      _
    // Predicated region
    $region106: #{tonenet_forward.1} parent=1 // pred_check
      _
    $region107: #{tonenet_forward.1} parent=1 // pred_check_branch
      %275 = sbr.rel (0) target = $region109
    $region108: #{tonenet_forward.1} parent=1 // pred_region
      %276 = dma.done [#allocation11], 128
    $region109: #{tonenet_forward.1} parent=1 // pred_fallthru
      _
    // Predicated region
    $region110: #{tonenet_forward.1} parent=1 // pred_check
      _
    $region111: #{tonenet_forward.1} parent=1 // pred_check_branch
      %278 = sbr.rel (0) target = $region113
    $region112: #{tonenet_forward.1} parent=1 // pred_region
      %279 = dma.done [#allocation11], 65536
    $region113: #{tonenet_forward.1} parent=1 // pred_fallthru
      _
    // Predicated region
    $region114: #{tonenet_forward.1} parent=1 // pred_check
      _
    $region115: #{tonenet_forward.1} parent=1 // pred_check_branch
      %281 = sbr.rel (0) target = $region117
    $region116: #{tonenet_forward.1} parent=1 // pred_region
      %282 = dma.done [#allocation14], 128
    $region117: #{tonenet_forward.1} parent=1 // pred_fallthru
      _
    // Predicated region
    $region118: #{tonenet_forward.1} parent=1 // pred_check
      _
    $region119: #{tonenet_forward.1} parent=1 // pred_check_branch
      %284 = sbr.rel (0) target = $region121
    $region120: #{tonenet_forward.1} parent=1 // pred_region
      %285 = dma.done [#allocation14], 32768
    $region121: #{tonenet_forward.1} parent=1 // pred_fallthru
      _
    // Predicated region
    $region122: #{tonenet_forward.1} parent=1 // pred_check
      _
    $region123: #{tonenet_forward.1} parent=1 // pred_check_branch
      %287 = sbr.rel (0) target = $region125
    $region124: #{tonenet_forward.1} parent=1 // pred_region
      %288 = dma.done [#allocation17], 64
    $region125: #{tonenet_forward.1} parent=1 // pred_fallthru
      _
    // Predicated region
    $region126: #{tonenet_forward.1} parent=1 // pred_check
      _
    $region127: #{tonenet_forward.1} parent=1 // pred_check_branch
      %290 = sbr.rel (0) target = $region129
    $region128: #{tonenet_forward.1} parent=1 // pred_region
      %291 = dma.done [#allocation17], 16384
    $region129: #{tonenet_forward.1} parent=1 // pred_fallthru
      _
    // Predicated region
    $region130: #{tonenet_forward.1} parent=1 // pred_check
      _
    $region131: #{tonenet_forward.1} parent=1 // pred_check_branch
      %293 = sbr.rel (0) target = $region133
    $region132: #{tonenet_forward.1} parent=1 // pred_region
      %294 = dma.done [#allocation20], 64
    $region133: #{tonenet_forward.1} parent=1 // pred_fallthru
      _
    // Predicated region
    $region134: #{tonenet_forward.1} parent=1 // pred_check
      _
    $region135: #{tonenet_forward.1} parent=1 // pred_check_branch
      %296 = sbr.rel (0) target = $region137
    $region136: #{tonenet_forward.1} parent=1 // pred_region
      %297 = dma.done [#allocation20], 16384
    $region137: #{tonenet_forward.1} parent=1 // pred_fallthru
      _
    // Predicated region
    $region138: #{tonenet_forward.1} parent=1 // pred_check
      _
    $region139: #{tonenet_forward.1} parent=1 // pred_check_branch
      %299 = sbr.rel (0) target = $region141
    $region140: #{tonenet_forward.1} parent=1 // pred_region
      %300 = dma.done [#allocation23], 64
    $region141: #{tonenet_forward.1} parent=1 // pred_fallthru
      _
    // Predicated region
    $region142: #{tonenet_forward.1} parent=1 // pred_check
      _
    $region143: #{tonenet_forward.1} parent=1 // pred_check_branch
      %302 = sbr.rel (0) target = $region145
    $region144: #{tonenet_forward.1} parent=1 // pred_region
      %303 = dma.done [#allocation23], 16384
    $region145: #{tonenet_forward.1} parent=1 // pred_fallthru
      _
    // Predicated region
    $region146: #{tonenet_forward.1} parent=1 // pred_check
      _
    $region147: #{tonenet_forward.1} parent=1 // pred_check_branch
      %305 = sbr.rel (0) target = $region149
    $region148: #{tonenet_forward.1} parent=1 // pred_region
      %306 = dma.done [#allocation26], 64
    $region149: #{tonenet_forward.1} parent=1 // pred_fallthru
      _
    // Predicated region
    $region150: #{tonenet_forward.1} parent=1 // pred_check
      _
    $region151: #{tonenet_forward.1} parent=1 // pred_check_branch
      %308 = sbr.rel (0) target = $region153
    $region152: #{tonenet_forward.1} parent=1 // pred_region
      %309 = dma.done [#allocation26], 4096
    $region153: #{tonenet_forward.1} parent=1 // pred_fallthru
      _
    // Predicated region
    $region154: #{tonenet_forward.1} parent=1 // pred_check
      _
    $region155: #{tonenet_forward.1} parent=1 // pred_check_branch
      %311 = sbr.rel (0) target = $region157
    $region156: #{tonenet_forward.1} parent=1 // pred_region
      %312 = dma.done [#allocation29], 16
    $region157: #{tonenet_forward.1} parent=1 // pred_fallthru
      _
    // Predicated region
    $region158: #{tonenet_forward.1} parent=1 // pred_check
      _
    $region159: #{tonenet_forward.1} parent=1 // pred_check_branch
      %314 = sbr.rel (0) target = $region161
    $region160: #{tonenet_forward.1} parent=1 // pred_region
      %315 = dma.done [#allocation29], 1024
    $region161: #{tonenet_forward.1} parent=1 // pred_fallthru
      _
    // Predicated region
    $region162: #{tonenet_forward.1} parent=1 // pred_check
      _
    $region163: #{tonenet_forward.1} parent=1 // pred_check_branch
      %317 = sbr.rel (0) target = $region165
    $region164: #{tonenet_forward.1} parent=1 // pred_region
      %318 = dma.done [#allocation32], 16
    $region165: #{tonenet_forward.1} parent=1 // pred_fallthru
      _
    %v320 = vld [vmem:[%s0] sm:$0xf]
    %v321 = vld [vmem:[#allocation2] sm:$0xf]
    %v322 = vld [vmem:[#allocation2 + $0x4] sm:$0xf]
    %v323 = vld [vmem:[#allocation2 + $0x8] sm:$0xf]
    %v324 = vld [vmem:[#allocation2 + $0xc] sm:$0xf]
    %v325 = vld [vmem:[#allocation2 + $0x10] sm:$0xf]
    %v326 = vld [vmem:[#allocation2 + $0x14] sm:$0xf]
    %v327 = vld [vmem:[#allocation2 + $0x18] sm:$0xf]
    %v328 = vld [vmem:[#allocation2 + $0x1c] sm:$0xf]
    %v329 = vld [vmem:[#allocation2 + $0x20] sm:$0xf]
    %v330 = vld [vmem:[#allocation2 + $0x24] sm:$0xf]
    %v331 = vld [vmem:[#allocation2 + $0x28] sm:$0xf]
    %v332 = vld [vmem:[#allocation2 + $0x2c] sm:$0xf]
    %v333 = vld [vmem:[#allocation2 + $0x30] sm:$0xf]
    %v334 = vld [vmem:[#allocation2 + $0x34] sm:$0xf]
    %v335 = vld [vmem:[#allocation2 + $0x38] sm:$0xf]
    %v336 = vld [vmem:[#allocation2 + $0x3c] sm:$0xf]
    %v337 = vld [vmem:[#allocation4] sm:$0x1]
    %v339 = vlaneseq
    %v340 = vshrl.u32 %v339, 7
    %v341 = vsub.s32 0, %v340
    %v342 = vrot.slane %v337, %v341
    %v360 = vunpack.c.l.b16 %v321
    %v361 = vunpack.c.l.b16 %v322
    %v362 = vunpack.c.l.b16 %v323
    %v363 = vunpack.c.l.b16 %v324
    %v364 = vunpack.c.l.b16 %v325
    %v365 = vunpack.c.l.b16 %v326
    %v366 = vunpack.c.l.b16 %v327
    %v367 = vunpack.c.l.b16 %v328
    %v368 = vunpack.c.l.b16 %v329
    %v369 = vunpack.c.l.b16 %v330
    %v370 = vunpack.c.l.b16 %v331
    %v371 = vunpack.c.l.b16 %v332
    %v372 = vunpack.c.l.b16 %v333
    %v373 = vunpack.c.l.b16 %v334
    %v374 = vunpack.c.l.b16 %v335
    %v375 = vunpack.c.l.b16 %v336
    %v376 = vpack.c.b16 %v361, %v360
    %v377 = vpack.c.b16 %v363, %v362
    %v378 = vpack.c.b16 %v365, %v364
    %v379 = vpack.c.b16 %v367, %v366
    %v380 = vpack.c.b16 %v369, %v368
    %v381 = vpack.c.b16 %v371, %v370
    %v382 = vpack.c.b16 %v373, %v372
    %v383 = vpack.c.b16 %v375, %v374
    %392 = vmatprep.subr.bf16.mxu0 0
    %393 = vmatpush1.bf16.msra.mxu0 %v376
    %394 = vmatprep.subr.bf16.mxu0 0
    %395 = vmatpush1.bf16.msra.mxu0 %v377
    %396 = vmatprep.subr.bf16.mxu0 0
    %397 = vmatpush1.bf16.msra.mxu0 %v378
    %398 = vmatprep.subr.bf16.mxu0 0
    %399 = vmatpush1.bf16.msra.mxu0 %v379
    %400 = vmatprep.subr.bf16.mxu0 0
    %401 = vmatpush1.bf16.msra.mxu0 %v380
    %402 = vmatprep.subr.bf16.mxu0 0
    %403 = vmatpush1.bf16.msra.mxu0 %v381
    %404 = vmatprep.subr.bf16.mxu0 0
    %405 = vmatpush1.bf16.msra.mxu0 %v382
    %406 = vmatprep.subr.bf16.mxu0 0
    %407 = vmatpush1.bf16.msra.mxu0 %v383
    %408 = vmatprep.subr.bf16.mxu0 0
    %409 = vmatpush1.bf16.msra.mxu0 0
    %410 = vmatprep.subr.bf16.mxu0 0
    %411 = vmatpush1.bf16.msra.mxu0 0
    %412 = vmatprep.subr.bf16.mxu0 0
    %413 = vmatpush1.bf16.msra.mxu0 0
    %414 = vmatprep.subr.bf16.mxu0 0
    %415 = vmatpush1.bf16.msra.mxu0 0
    %416 = vmatprep.subr.bf16.mxu0 0
    %417 = vmatpush1.bf16.msra.mxu0 0
    %418 = vmatprep.subr.bf16.mxu0 0
    %419 = vmatpush1.bf16.msra.mxu0 0
    %420 = vmatprep.subr.bf16.mxu0 0
    %421 = vmatpush1.bf16.msra.mxu0 0
    %422 = vmatprep.subr.bf16.mxu0 0
    %423 = vmatpush1.bf16.msra.mxu0 0
    %424 = vmatprep.mubr.bf16.mxu0 0
    %425 = vmatmul.mubr.bf16.gmra.mrb[0].mxu0 %v320
    %v426 = vpop.f32.mrb[0].mxu0
    %v427 = vadd.f32 %v342, %v426
    %v428 = vpop.f32.mrb[0].mxu0
    %v429 = vpop.f32.mrb[0].mxu0
    %v430 = vpop.f32.mrb[0].mxu0
    %431 = vdwg.mxu0
    %v432 = vmax.f32 %v427, 0.0
    %v433 = vpack.c.bf16 %v432, %v432
    %v434 = vld [vmem:[#allocation6] sm:$0xff]
    %v435 = vld [vmem:[#allocation6 + $0x8] sm:$0xff]
    %v436 = vld [vmem:[#allocation6 + $0x10] sm:$0xff]
    %v437 = vld [vmem:[#allocation6 + $0x18] sm:$0xff]
    %v438 = vld [vmem:[#allocation6 + $0x20] sm:$0xff]
    %v439 = vld [vmem:[#allocation6 + $0x28] sm:$0xff]
    %v440 = vld [vmem:[#allocation6 + $0x30] sm:$0xff]
    %v441 = vld [vmem:[#allocation6 + $0x38] sm:$0xff]
    %v442 = vld [vmem:[#allocation6 + $0x40] sm:$0xff]
    %v443 = vld [vmem:[#allocation6 + $0x48] sm:$0xff]
    %v444 = vld [vmem:[#allocation6 + $0x50] sm:$0xff]
    %v445 = vld [vmem:[#allocation6 + $0x58] sm:$0xff]
    %v446 = vld [vmem:[#allocation6 + $0x60] sm:$0xff]
    %v447 = vld [vmem:[#allocation6 + $0x68] sm:$0xff]
    %v448 = vld [vmem:[#allocation6 + $0x70] sm:$0xff]
    %v449 = vld [vmem:[#allocation6 + $0x78] sm:$0xff]
    %v450 = vld [vmem:[#allocation6 + $0x80] sm:$0xff]
    %v451 = vld [vmem:[#allocation6 + $0x88] sm:$0xff]
    %v452 = vld [vmem:[#allocation6 + $0x90] sm:$0xff]
    %v453 = vld [vmem:[#allocation6 + $0x98] sm:$0xff]
    %v454 = vld [vmem:[#allocation6 + $0xa0] sm:$0xff]
    %v455 = vld [vmem:[#allocation6 + $0xa8] sm:$0xff]
    %v456 = vld [vmem:[#allocation6 + $0xb0] sm:$0xff]
    %v457 = vld [vmem:[#allocation6 + $0xb8] sm:$0xff]
    %v458 = vld [vmem:[#allocation6 + $0xc0] sm:$0xff]
    %v459 = vld [vmem:[#allocation6 + $0xc8] sm:$0xff]
    %v460 = vld [vmem:[#allocation6 + $0xd0] sm:$0xff]
    %v461 = vld [vmem:[#allocation6 + $0xd8] sm:$0xff]
    %v462 = vld [vmem:[#allocation6 + $0xe0] sm:$0xff]
    %v463 = vld [vmem:[#allocation6 + $0xe8] sm:$0xff]
    %v464 = vld [vmem:[#allocation6 + $0xf0] sm:$0xff]
    %v465 = vld [vmem:[#allocation6 + $0xf8] sm:$0xff]
    %v466 = vld [vmem:[#allocation7] sm:$0xf]
    %v468 = vlaneseq
    %v469 = vshrl.u32 %v468, 7
    %v470 = vsub.s32 0, %v469
    %v471 = vrot.slane %v466, %v470
    %v472 = vlaneseq
    %v473 = vshrl.u32 %v472, 7
    %v474 = vsub.s32 1, %v473
    %v475 = vrot.slane %v466, %v474
    %v476 = vlaneseq
    %v477 = vshrl.u32 %v476, 7
    %v478 = vsub.s32 2, %v477
    %v479 = vrot.slane %v466, %v478
    %v480 = vlaneseq
    %v481 = vshrl.u32 %v480, 7
    %v482 = vsub.s32 3, %v481
    %v483 = vrot.slane %v466, %v482
    %v520 = vunpack.c.l.b16 %v434
    %v521 = vunpack.c.h.b16 %v434
    %v522 = vunpack.c.l.b16 %v435
    %v523 = vunpack.c.h.b16 %v435
    %v524 = vunpack.c.l.b16 %v436
    %v525 = vunpack.c.h.b16 %v436
    %v526 = vunpack.c.l.b16 %v437
    %v527 = vunpack.c.h.b16 %v437
    %v528 = vunpack.c.l.b16 %v438
    %v529 = vunpack.c.h.b16 %v438
    %v530 = vunpack.c.l.b16 %v439
    %v531 = vunpack.c.h.b16 %v439
    %v532 = vunpack.c.l.b16 %v440
    %v533 = vunpack.c.h.b16 %v440
    %v534 = vunpack.c.l.b16 %v441
    %v535 = vunpack.c.h.b16 %v441
    %v536 = vunpack.c.l.b16 %v442
    %v537 = vunpack.c.h.b16 %v442
    %v538 = vunpack.c.l.b16 %v443
    %v539 = vunpack.c.h.b16 %v443
    %v540 = vunpack.c.l.b16 %v444
    %v541 = vunpack.c.h.b16 %v444
    %v542 = vunpack.c.l.b16 %v445
    %v543 = vunpack.c.h.b16 %v445
    %v544 = vunpack.c.l.b16 %v446
    %v545 = vunpack.c.h.b16 %v446
    %v546 = vunpack.c.l.b16 %v447
    %v547 = vunpack.c.h.b16 %v447
    %v548 = vunpack.c.l.b16 %v448
    %v549 = vunpack.c.h.b16 %v448
    %v550 = vunpack.c.l.b16 %v449
    %v551 = vunpack.c.h.b16 %v449
    %v552 = vunpack.c.l.b16 %v450
    %v553 = vunpack.c.h.b16 %v450
    %v554 = vunpack.c.l.b16 %v451
    %v555 = vunpack.c.h.b16 %v451
    %v556 = vunpack.c.l.b16 %v452
    %v557 = vunpack.c.h.b16 %v452
    %v558 = vunpack.c.l.b16 %v453
    %v559 = vunpack.c.h.b16 %v453
    %v560 = vunpack.c.l.b16 %v454
    %v561 = vunpack.c.h.b16 %v454
    %v562 = vunpack.c.l.b16 %v455
    %v563 = vunpack.c.h.b16 %v455
    %v564 = vunpack.c.l.b16 %v456
    %v565 = vunpack.c.h.b16 %v456
    %v566 = vunpack.c.l.b16 %v457
    %v567 = vunpack.c.h.b16 %v457
    %v568 = vunpack.c.l.b16 %v458
    %v569 = vunpack.c.h.b16 %v458
    %v570 = vunpack.c.l.b16 %v459
    %v571 = vunpack.c.h.b16 %v459
    %v572 = vunpack.c.l.b16 %v460
    %v573 = vunpack.c.h.b16 %v460
    %v574 = vunpack.c.l.b16 %v461
    %v575 = vunpack.c.h.b16 %v461
    %v576 = vunpack.c.l.b16 %v462
    %v577 = vunpack.c.h.b16 %v462
    %v578 = vunpack.c.l.b16 %v463
    %v579 = vunpack.c.h.b16 %v463
    %v580 = vunpack.c.l.b16 %v464
    %v581 = vunpack.c.h.b16 %v464
    %v582 = vunpack.c.l.b16 %v465
    %v583 = vunpack.c.h.b16 %v465
    %v584 = vpack.c.b16 %v524, %v520
    %v585 = vpack.c.b16 %v525, %v521
    %v586 = vpack.c.b16 %v526, %v522
    %v587 = vpack.c.b16 %v527, %v523
    %v588 = vpack.c.b16 %v532, %v528
    %v589 = vpack.c.b16 %v533, %v529
    %v590 = vpack.c.b16 %v534, %v530
    %v591 = vpack.c.b16 %v535, %v531
    %v592 = vpack.c.b16 %v540, %v536
    %v593 = vpack.c.b16 %v541, %v537
    %v594 = vpack.c.b16 %v542, %v538
    %v595 = vpack.c.b16 %v543, %v539
    %v596 = vpack.c.b16 %v548, %v544
    %v597 = vpack.c.b16 %v549, %v545
    %v598 = vpack.c.b16 %v550, %v546
    %v599 = vpack.c.b16 %v551, %v547
    %v600 = vpack.c.b16 %v556, %v552
    %v601 = vpack.c.b16 %v557, %v553
    %v602 = vpack.c.b16 %v558, %v554
    %v603 = vpack.c.b16 %v559, %v555
    %v604 = vpack.c.b16 %v564, %v560
    %v605 = vpack.c.b16 %v565, %v561
    %v606 = vpack.c.b16 %v566, %v562
    %v607 = vpack.c.b16 %v567, %v563
    %v608 = vpack.c.b16 %v572, %v568
    %v609 = vpack.c.b16 %v573, %v569
    %v610 = vpack.c.b16 %v574, %v570
    %v611 = vpack.c.b16 %v575, %v571
    %v612 = vpack.c.b16 %v580, %v576
    %v613 = vpack.c.b16 %v581, %v577
    %v614 = vpack.c.b16 %v582, %v578
    %v615 = vpack.c.b16 %v583, %v579
    %648 = vmatprep.subr.bf16.mxu0 %v585
    %649 = vmatpush1.bf16.msra.mxu0 %v584
    %650 = vmatprep.subr.bf16.mxu0 %v589
    %651 = vmatpush1.bf16.msra.mxu0 %v588
    %652 = vmatprep.subr.bf16.mxu0 %v593
    %653 = vmatpush1.bf16.msra.mxu0 %v592
    %654 = vmatprep.subr.bf16.mxu0 %v597
    %655 = vmatpush1.bf16.msra.mxu0 %v596
    %656 = vmatprep.subr.bf16.mxu0 %v601
    %657 = vmatpush1.bf16.msra.mxu0 %v600
    %658 = vmatprep.subr.bf16.mxu0 %v605
    %659 = vmatpush1.bf16.msra.mxu0 %v604
    %660 = vmatprep.subr.bf16.mxu0 %v609
    %661 = vmatpush1.bf16.msra.mxu0 %v608
    %662 = vmatprep.subr.bf16.mxu0 %v613
    %663 = vmatpush1.bf16.msra.mxu0 %v612
    %664 = vmatprep.subr.bf16.mxu0 0
    %665 = vmatpush1.bf16.msra.mxu0 0
    %666 = vmatprep.subr.bf16.mxu0 0
    %667 = vmatpush1.bf16.msra.mxu0 0
    %668 = vmatprep.subr.bf16.mxu0 0
    %669 = vmatpush1.bf16.msra.mxu0 0
    %670 = vmatprep.subr.bf16.mxu0 0
    %671 = vmatpush1.bf16.msra.mxu0 0
    %672 = vmatprep.subr.bf16.mxu0 0
    %673 = vmatpush1.bf16.msra.mxu0 0
    %674 = vmatprep.subr.bf16.mxu0 0
    %675 = vmatpush1.bf16.msra.mxu0 0
    %676 = vmatprep.subr.bf16.mxu0 0
    %677 = vmatpush1.bf16.msra.mxu0 0
    %678 = vmatprep.subr.bf16.mxu0 0
    %679 = vmatpush1.bf16.msra.mxu0 0
    %680 = vmatprep.mubr.bf16.mxu0 0
    %681 = vmatmul.mubr.bf16.gmra.mrb[0].mxu0 %v433
    %v682 = vpop.f32.mrb[0].mxu0
    %v683 = vadd.f32 %v471, %v682
    %v684 = vpop.f32.mrb[0].mxu0
    %v685 = vadd.f32 %v475, %v684
    %v686 = vpop.f32.mrb[0].mxu0
    %v687 = vpop.f32.mrb[0].mxu0
    %688 = vdwg.mxu0
    %689 = vmatprep.subr.bf16.mxu0 %v587
    %690 = vmatpush1.bf16.msra.mxu0 %v586
    %691 = vmatprep.subr.bf16.mxu0 %v591
    %692 = vmatpush1.bf16.msra.mxu0 %v590
    %693 = vmatprep.subr.bf16.mxu0 %v595
    %694 = vmatpush1.bf16.msra.mxu0 %v594
    %695 = vmatprep.subr.bf16.mxu0 %v599
    %696 = vmatpush1.bf16.msra.mxu0 %v598
    %697 = vmatprep.subr.bf16.mxu0 %v603
    %698 = vmatpush1.bf16.msra.mxu0 %v602
    %699 = vmatprep.subr.bf16.mxu0 %v607
    %700 = vmatpush1.bf16.msra.mxu0 %v606
    %701 = vmatprep.subr.bf16.mxu0 %v611
    %702 = vmatpush1.bf16.msra.mxu0 %v610
    %703 = vmatprep.subr.bf16.mxu0 %v615
    %704 = vmatpush1.bf16.msra.mxu0 %v614
    %705 = vmatprep.subr.bf16.mxu0 0
    %706 = vmatpush1.bf16.msra.mxu0 0
    %707 = vmatprep.subr.bf16.mxu0 0
    %708 = vmatpush1.bf16.msra.mxu0 0
    %709 = vmatprep.subr.bf16.mxu0 0
    %710 = vmatpush1.bf16.msra.mxu0 0
    %711 = vmatprep.subr.bf16.mxu0 0
    %712 = vmatpush1.bf16.msra.mxu0 0
    %713 = vmatprep.subr.bf16.mxu0 0
    %714 = vmatpush1.bf16.msra.mxu0 0
    %715 = vmatprep.subr.bf16.mxu0 0
    %716 = vmatpush1.bf16.msra.mxu0 0
    %717 = vmatprep.subr.bf16.mxu0 0
    %718 = vmatpush1.bf16.msra.mxu0 0
    %719 = vmatprep.subr.bf16.mxu0 0
    %720 = vmatpush1.bf16.msra.mxu0 0
    %721 = vmatprep.mubr.bf16.mxu0 0
    %722 = vmatmul.mubr.bf16.gmra.mrb[0].mxu0 %v433
    %v723 = vpop.f32.mrb[0].mxu0
    %v724 = vadd.f32 %v479, %v723
    %v725 = vpop.f32.mrb[0].mxu0
    %v726 = vadd.f32 %v483, %v725
    %v727 = vpop.f32.mrb[0].mxu0
    %v728 = vpop.f32.mrb[0].mxu0
    %729 = vdwg.mxu0
    %v730 = vmax.f32 %v683, 0.0
    %v731 = vmax.f32 %v685, 0.0
    %v732 = vmax.f32 %v724, 0.0
    %v733 = vmax.f32 %v726, 0.0
    %v734 = vpack.c.bf16 %v730, %v730
    %v735 = vpack.c.bf16 %v731, %v731
    %v736 = vpack.c.bf16 %v732, %v732
    %v737 = vpack.c.bf16 %v733, %v733
    %v738 = vld [vmem:[#allocation9] sm:$0xff]
    %v739 = vld [vmem:[#allocation9 + $0x8] sm:$0xff]
    %v740 = vld [vmem:[#allocation9 + $0x10] sm:$0xff]
    %v741 = vld [vmem:[#allocation9 + $0x18] sm:$0xff]
    %v742 = vld [vmem:[#allocation9 + $0x20] sm:$0xff]
    %v743 = vld [vmem:[#allocation9 + $0x28] sm:$0xff]
    %v744 = vld [vmem:[#allocation9 + $0x30] sm:$0xff]
    %v745 = vld [vmem:[#allocation9 + $0x38] sm:$0xff]
    %v746 = vld [vmem:[#allocation9 + $0x40] sm:$0xff]
    %v747 = vld [vmem:[#allocation9 + $0x48] sm:$0xff]
    %v748 = vld [vmem:[#allocation9 + $0x50] sm:$0xff]
    %v749 = vld [vmem:[#allocation9 + $0x58] sm:$0xff]
    %v750 = vld [vmem:[#allocation9 + $0x60] sm:$0xff]
    %v751 = vld [vmem:[#allocation9 + $0x68] sm:$0xff]
    %v752 = vld [vmem:[#allocation9 + $0x70] sm:$0xff]
    %v753 = vld [vmem:[#allocation9 + $0x78] sm:$0xff]
    %v754 = vld [vmem:[#allocation9 + $0x80] sm:$0xff]
    %v755 = vld [vmem:[#allocation9 + $0x88] sm:$0xff]
    %v756 = vld [vmem:[#allocation9 + $0x90] sm:$0xff]
    %v757 = vld [vmem:[#allocation9 + $0x98] sm:$0xff]
    %v758 = vld [vmem:[#allocation9 + $0xa0] sm:$0xff]
    %v759 = vld [vmem:[#allocation9 + $0xa8] sm:$0xff]
    %v760 = vld [vmem:[#allocation9 + $0xb0] sm:$0xff]
    %v761 = vld [vmem:[#allocation9 + $0xb8] sm:$0xff]
    %v762 = vld [vmem:[#allocation9 + $0xc0] sm:$0xff]
    %v763 = vld [vmem:[#allocation9 + $0xc8] sm:$0xff]
    %v764 = vld [vmem:[#allocation9 + $0xd0] sm:$0xff]
    %v765 = vld [vmem:[#allocation9 + $0xd8] sm:$0xff]
    %v766 = vld [vmem:[#allocation9 + $0xe0] sm:$0xff]
    %v767 = vld [vmem:[#allocation9 + $0xe8] sm:$0xff]
    %v768 = vld [vmem:[#allocation9 + $0xf0] sm:$0xff]
    %v769 = vld [vmem:[#allocation9 + $0xf8] sm:$0xff]
    %v770 = vld [vmem:[#allocation9 + $0x100] sm:$0xff]
    %v771 = vld [vmem:[#allocation9 + $0x108] sm:$0xff]
    %v772 = vld [vmem:[#allocation9 + $0x110] sm:$0xff]
    %v773 = vld [vmem:[#allocation9 + $0x118] sm:$0xff]
    %v774 = vld [vmem:[#allocation9 + $0x120] sm:$0xff]
    %v775 = vld [vmem:[#allocation9 + $0x128] sm:$0xff]
    %v776 = vld [vmem:[#allocation9 + $0x130] sm:$0xff]
    %v777 = vld [vmem:[#allocation9 + $0x138] sm:$0xff]
    %v778 = vld [vmem:[#allocation9 + $0x140] sm:$0xff]
    %v779 = vld [vmem:[#allocation9 + $0x148] sm:$0xff]
    %v780 = vld [vmem:[#allocation9 + $0x150] sm:$0xff]
    %v781 = vld [vmem:[#allocation9 + $0x158] sm:$0xff]
    %v782 = vld [vmem:[#allocation9 + $0x160] sm:$0xff]
    %v783 = vld [vmem:[#allocation9 + $0x168] sm:$0xff]
    %v784 = vld [vmem:[#allocation9 + $0x170] sm:$0xff]
    %v785 = vld [vmem:[#allocation9 + $0x178] sm:$0xff]
    %v786 = vld [vmem:[#allocation9 + $0x180] sm:$0xff]
    %v787 = vld [vmem:[#allocation9 + $0x188] sm:$0xff]
    %v788 = vld [vmem:[#allocation9 + $0x190] sm:$0xff]
    %v789 = vld [vmem:[#allocation9 + $0x198] sm:$0xff]
    %v790 = vld [vmem:[#allocation9 + $0x1a0] sm:$0xff]
    %v791 = vld [vmem:[#allocation9 + $0x1a8] sm:$0xff]
    %v792 = vld [vmem:[#allocation9 + $0x1b0] sm:$0xff]
    %v793 = vld [vmem:[#allocation9 + $0x1b8] sm:$0xff]
    %v794 = vld [vmem:[#allocation9 + $0x1c0] sm:$0xff]
    %v795 = vld [vmem:[#allocation9 + $0x1c8] sm:$0xff]
    %v796 = vld [vmem:[#allocation9 + $0x1d0] sm:$0xff]
    %v797 = vld [vmem:[#allocation9 + $0x1d8] sm:$0xff]
    %v798 = vld [vmem:[#allocation9 + $0x1e0] sm:$0xff]
    %v799 = vld [vmem:[#allocation9 + $0x1e8] sm:$0xff]
    %v800 = vld [vmem:[#allocation9 + $0x1f0] sm:$0xff]
    %v801 = vld [vmem:[#allocation9 + $0x1f8] sm:$0xff]
    %v802 = vld [vmem:[#allocation9 + $0x200] sm:$0xff]
    %v803 = vld [vmem:[#allocation9 + $0x208] sm:$0xff]
    %v804 = vld [vmem:[#allocation9 + $0x210] sm:$0xff]
    %v805 = vld [vmem:[#allocation9 + $0x218] sm:$0xff]
    %v806 = vld [vmem:[#allocation9 + $0x220] sm:$0xff]
    %v807 = vld [vmem:[#allocation9 + $0x228] sm:$0xff]
    %v808 = vld [vmem:[#allocation9 + $0x230] sm:$0xff]
    %v809 = vld [vmem:[#allocation9 + $0x238] sm:$0xff]
    %v810 = vld [vmem:[#allocation9 + $0x240] sm:$0xff]
    %v811 = vld [vmem:[#allocation9 + $0x248] sm:$0xff]
    %v812 = vld [vmem:[#allocation9 + $0x250] sm:$0xff]
    %v813 = vld [vmem:[#allocation9 + $0x258] sm:$0xff]
    %v814 = vld [vmem:[#allocation9 + $0x260] sm:$0xff]
    %v815 = vld [vmem:[#allocation9 + $0x268] sm:$0xff]
    %v816 = vld [vmem:[#allocation9 + $0x270] sm:$0xff]
    %v817 = vld [vmem:[#allocation9 + $0x278] sm:$0xff]
    %v818 = vld [vmem:[#allocation9 + $0x280] sm:$0xff]
    %v819 = vld [vmem:[#allocation9 + $0x288] sm:$0xff]
    %v820 = vld [vmem:[#allocation9 + $0x290] sm:$0xff]
    %v821 = vld [vmem:[#allocation9 + $0x298] sm:$0xff]
    %v822 = vld [vmem:[#allocation9 + $0x2a0] sm:$0xff]
    %v823 = vld [vmem:[#allocation9 + $0x2a8] sm:$0xff]
    %v824 = vld [vmem:[#allocation9 + $0x2b0] sm:$0xff]
    %v825 = vld [vmem:[#allocation9 + $0x2b8] sm:$0xff]
    %v826 = vld [vmem:[#allocation9 + $0x2c0] sm:$0xff]
    %v827 = vld [vmem:[#allocation9 + $0x2c8] sm:$0xff]
    %v828 = vld [vmem:[#allocation9 + $0x2d0] sm:$0xff]
    %v829 = vld [vmem:[#allocation9 + $0x2d8] sm:$0xff]
    %v830 = vld [vmem:[#allocation9 + $0x2e0] sm:$0xff]
    %v831 = vld [vmem:[#allocation9 + $0x2e8] sm:$0xff]
    %v832 = vld [vmem:[#allocation9 + $0x2f0] sm:$0xff]
    %v833 = vld [vmem:[#allocation9 + $0x2f8] sm:$0xff]
    %v834 = vld [vmem:[#allocation9 + $0x300] sm:$0xff]
    %v835 = vld [vmem:[#allocation9 + $0x308] sm:$0xff]
    %v836 = vld [vmem:[#allocation9 + $0x310] sm:$0xff]
    %v837 = vld [vmem:[#allocation9 + $0x318] sm:$0xff]
    %v838 = vld [vmem:[#allocation9 + $0x320] sm:$0xff]
    %v839 = vld [vmem:[#allocation9 + $0x328] sm:$0xff]
    %v840 = vld [vmem:[#allocation9 + $0x330] sm:$0xff]
    %v841 = vld [vmem:[#allocation9 + $0x338] sm:$0xff]
    %v842 = vld [vmem:[#allocation9 + $0x340] sm:$0xff]
    %v843 = vld [vmem:[#allocation9 + $0x348] sm:$0xff]
    %v844 = vld [vmem:[#allocation9 + $0x350] sm:$0xff]
    %v845 = vld [vmem:[#allocation9 + $0x358] sm:$0xff]
    %v846 = vld [vmem:[#allocation9 + $0x360] sm:$0xff]
    %v847 = vld [vmem:[#allocation9 + $0x368] sm:$0xff]
    %v848 = vld [vmem:[#allocation9 + $0x370] sm:$0xff]
    %v849 = vld [vmem:[#allocation9 + $0x378] sm:$0xff]
    %v850 = vld [vmem:[#allocation9 + $0x380] sm:$0xff]
    %v851 = vld [vmem:[#allocation9 + $0x388] sm:$0xff]
    %v852 = vld [vmem:[#allocation9 + $0x390] sm:$0xff]
    %v853 = vld [vmem:[#allocation9 + $0x398] sm:$0xff]
    %v854 = vld [vmem:[#allocation9 + $0x3a0] sm:$0xff]
    %v855 = vld [vmem:[#allocation9 + $0x3a8] sm:$0xff]
    %v856 = vld [vmem:[#allocation9 + $0x3b0] sm:$0xff]
    %v857 = vld [vmem:[#allocation9 + $0x3b8] sm:$0xff]
    %v858 = vld [vmem:[#allocation9 + $0x3c0] sm:$0xff]
    %v859 = vld [vmem:[#allocation9 + $0x3c8] sm:$0xff]
    %v860 = vld [vmem:[#allocation9 + $0x3d0] sm:$0xff]
    %v861 = vld [vmem:[#allocation9 + $0x3d8] sm:$0xff]
    %v862 = vld [vmem:[#allocation9 + $0x3e0] sm:$0xff]
    %v863 = vld [vmem:[#allocation9 + $0x3e8] sm:$0xff]
    %v864 = vld [vmem:[#allocation9 + $0x3f0] sm:$0xff]
    %v865 = vld [vmem:[#allocation9 + $0x3f8] sm:$0xff]
    %v866 = vld [vmem:[#allocation9 + $0x400] sm:$0xff]
    %v867 = vld [vmem:[#allocation9 + $0x408] sm:$0xff]
    %v868 = vld [vmem:[#allocation9 + $0x410] sm:$0xff]
    %v869 = vld [vmem:[#allocation9 + $0x418] sm:$0xff]
    %v870 = vld [vmem:[#allocation9 + $0x420] sm:$0xff]
    %v871 = vld [vmem:[#allocation9 + $0x428] sm:$0xff]
    %v872 = vld [vmem:[#allocation9 + $0x430] sm:$0xff]
    %v873 = vld [vmem:[#allocation9 + $0x438] sm:$0xff]
    %v874 = vld [vmem:[#allocation9 + $0x440] sm:$0xff]
    %v875 = vld [vmem:[#allocation9 + $0x448] sm:$0xff]
    %v876 = vld [vmem:[#allocation9 + $0x450] sm:$0xff]
    %v877 = vld [vmem:[#allocation9 + $0x458] sm:$0xff]
    %v878 = vld [vmem:[#allocation9 + $0x460] sm:$0xff]
    %v879 = vld [vmem:[#allocation9 + $0x468] sm:$0xff]
    %v880 = vld [vmem:[#allocation9 + $0x470] sm:$0xff]
    %v881 = vld [vmem:[#allocation9 + $0x478] sm:$0xff]
    %v882 = vld [vmem:[#allocation9 + $0x480] sm:$0xff]
    %v883 = vld [vmem:[#allocation9 + $0x488] sm:$0xff]
    %v884 = vld [vmem:[#allocation9 + $0x490] sm:$0xff]
    %v885 = vld [vmem:[#allocation9 + $0x498] sm:$0xff]
    %v886 = vld [vmem:[#allocation9 + $0x4a0] sm:$0xff]
    %v887 = vld [vmem:[#allocation9 + $0x4a8] sm:$0xff]
    %v888 = vld [vmem:[#allocation9 + $0x4b0] sm:$0xff]
    %v889 = vld [vmem:[#allocation9 + $0x4b8] sm:$0xff]
    %v890 = vld [vmem:[#allocation9 + $0x4c0] sm:$0xff]
    %v891 = vld [vmem:[#allocation9 + $0x4c8] sm:$0xff]
    %v892 = vld [vmem:[#allocation9 + $0x4d0] sm:$0xff]
    %v893 = vld [vmem:[#allocation9 + $0x4d8] sm:$0xff]
    %v894 = vld [vmem:[#allocation9 + $0x4e0] sm:$0xff]
    %v895 = vld [vmem:[#allocation9 + $0x4e8] sm:$0xff]
    %v896 = vld [vmem:[#allocation9 + $0x4f0] sm:$0xff]
    %v897 = vld [vmem:[#allocation9 + $0x4f8] sm:$0xff]
    %v898 = vld [vmem:[#allocation9 + $0x500] sm:$0xff]
    %v899 = vld [vmem:[#allocation9 + $0x508] sm:$0xff]
    %v900 = vld [vmem:[#allocation9 + $0x510] sm:$0xff]
    %v901 = vld [vmem:[#allocation9 + $0x518] sm:$0xff]
    %v902 = vld [vmem:[#allocation9 + $0x520] sm:$0xff]
    %v903 = vld [vmem:[#allocation9 + $0x528] sm:$0xff]
    %v904 = vld [vmem:[#allocation9 + $0x530] sm:$0xff]
    %v905 = vld [vmem:[#allocation9 + $0x538] sm:$0xff]
    %v906 = vld [vmem:[#allocation9 + $0x540] sm:$0xff]
    %v907 = vld [vmem:[#allocation9 + $0x548] sm:$0xff]
    %v908 = vld [vmem:[#allocation9 + $0x550] sm:$0xff]
    %v909 = vld [vmem:[#allocation9 + $0x558] sm:$0xff]
    %v910 = vld [vmem:[#allocation9 + $0x560] sm:$0xff]
    %v911 = vld [vmem:[#allocation9 + $0x568] sm:$0xff]
    %v912 = vld [vmem:[#allocation9 + $0x570] sm:$0xff]
    %v913 = vld [vmem:[#allocation9 + $0x578] sm:$0xff]
    %v914 = vld [vmem:[#allocation9 + $0x580] sm:$0xff]
    %v915 = vld [vmem:[#allocation9 + $0x588] sm:$0xff]
    %v916 = vld [vmem:[#allocation9 + $0x590] sm:$0xff]
    %v917 = vld [vmem:[#allocation9 + $0x598] sm:$0xff]
    %v918 = vld [vmem:[#allocation9 + $0x5a0] sm:$0xff]
    %v919 = vld [vmem:[#allocation9 + $0x5a8] sm:$0xff]
    %v920 = vld [vmem:[#allocation9 + $0x5b0] sm:$0xff]
    %v921 = vld [vmem:[#allocation9 + $0x5b8] sm:$0xff]
    %v922 = vld [vmem:[#allocation9 + $0x5c0] sm:$0xff]
    %v923 = vld [vmem:[#allocation9 + $0x5c8] sm:$0xff]
    %v924 = vld [vmem:[#allocation9 + $0x5d0] sm:$0xff]
    %v925 = vld [vmem:[#allocation9 + $0x5d8] sm:$0xff]
    %v926 = vld [vmem:[#allocation9 + $0x5e0] sm:$0xff]
    %v927 = vld [vmem:[#allocation9 + $0x5e8] sm:$0xff]
    %v928 = vld [vmem:[#allocation9 + $0x5f0] sm:$0xff]
    %v929 = vld [vmem:[#allocation9 + $0x5f8] sm:$0xff]
    %v930 = vld [vmem:[#allocation9 + $0x600] sm:$0xff]
    %v931 = vld [vmem:[#allocation9 + $0x608] sm:$0xff]
    %v932 = vld [vmem:[#allocation9 + $0x610] sm:$0xff]
    %v933 = vld [vmem:[#allocation9 + $0x618] sm:$0xff]
    %v934 = vld [vmem:[#allocation9 + $0x620] sm:$0xff]
    %v935 = vld [vmem:[#allocation9 + $0x628] sm:$0xff]
    %v936 = vld [vmem:[#allocation9 + $0x630] sm:$0xff]
    %v937 = vld [vmem:[#allocation9 + $0x638] sm:$0xff]
    %v938 = vld [vmem:[#allocation9 + $0x640] sm:$0xff]
    %v939 = vld [vmem:[#allocation9 + $0x648] sm:$0xff]
    %v940 = vld [vmem:[#allocation9 + $0x650] sm:$0xff]
    %v941 = vld [vmem:[#allocation9 + $0x658] sm:$0xff]
    %v942 = vld [vmem:[#allocation9 + $0x660] sm:$0xff]
    %v943 = vld [vmem:[#allocation9 + $0x668] sm:$0xff]
    %v944 = vld [vmem:[#allocation9 + $0x670] sm:$0xff]
    %v945 = vld [vmem:[#allocation9 + $0x678] sm:$0xff]
    %v946 = vld [vmem:[#allocation9 + $0x680] sm:$0xff]
    %v947 = vld [vmem:[#allocation9 + $0x688] sm:$0xff]
    %v948 = vld [vmem:[#allocation9 + $0x690] sm:$0xff]
    %v949 = vld [vmem:[#allocation9 + $0x698] sm:$0xff]
    %v950 = vld [vmem:[#allocation9 + $0x6a0] sm:$0xff]
    %v951 = vld [vmem:[#allocation9 + $0x6a8] sm:$0xff]
    %v952 = vld [vmem:[#allocation9 + $0x6b0] sm:$0xff]
    %v953 = vld [vmem:[#allocation9 + $0x6b8] sm:$0xff]
    %v954 = vld [vmem:[#allocation9 + $0x6c0] sm:$0xff]
    %v955 = vld [vmem:[#allocation9 + $0x6c8] sm:$0xff]
    %v956 = vld [vmem:[#allocation9 + $0x6d0] sm:$0xff]
    %v957 = vld [vmem:[#allocation9 + $0x6d8] sm:$0xff]
    %v958 = vld [vmem:[#allocation9 + $0x6e0] sm:$0xff]
    %v959 = vld [vmem:[#allocation9 + $0x6e8] sm:$0xff]
    %v960 = vld [vmem:[#allocation9 + $0x6f0] sm:$0xff]
    %v961 = vld [vmem:[#allocation9 + $0x6f8] sm:$0xff]
    %v962 = vld [vmem:[#allocation9 + $0x700] sm:$0xff]
    %v963 = vld [vmem:[#allocation9 + $0x708] sm:$0xff]
    %v964 = vld [vmem:[#allocation9 + $0x710] sm:$0xff]
    %v965 = vld [vmem:[#allocation9 + $0x718] sm:$0xff]
    %v966 = vld [vmem:[#allocation9 + $0x720] sm:$0xff]
    %v967 = vld [vmem:[#allocation9 + $0x728] sm:$0xff]
    %v968 = vld [vmem:[#allocation9 + $0x730] sm:$0xff]
    %v969 = vld [vmem:[#allocation9 + $0x738] sm:$0xff]
    %v970 = vld [vmem:[#allocation9 + $0x740] sm:$0xff]
    %v971 = vld [vmem:[#allocation9 + $0x748] sm:$0xff]
    %v972 = vld [vmem:[#allocation9 + $0x750] sm:$0xff]
    %v973 = vld [vmem:[#allocation9 + $0x758] sm:$0xff]
    %v974 = vld [vmem:[#allocation9 + $0x760] sm:$0xff]
    %v975 = vld [vmem:[#allocation9 + $0x768] sm:$0xff]
    %v976 = vld [vmem:[#allocation9 + $0x770] sm:$0xff]
    %v977 = vld [vmem:[#allocation9 + $0x778] sm:$0xff]
    %v978 = vld [vmem:[#allocation9 + $0x780] sm:$0xff]
    %v979 = vld [vmem:[#allocation9 + $0x788] sm:$0xff]
    %v980 = vld [vmem:[#allocation9 + $0x790] sm:$0xff]
    %v981 = vld [vmem:[#allocation9 + $0x798] sm:$0xff]
    %v982 = vld [vmem:[#allocation9 + $0x7a0] sm:$0xff]
    %v983 = vld [vmem:[#allocation9 + $0x7a8] sm:$0xff]
    %v984 = vld [vmem:[#allocation9 + $0x7b0] sm:$0xff]
    %v985 = vld [vmem:[#allocation9 + $0x7b8] sm:$0xff]
    %v986 = vld [vmem:[#allocation9 + $0x7c0] sm:$0xff]
    %v987 = vld [vmem:[#allocation9 + $0x7c8] sm:$0xff]
    %v988 = vld [vmem:[#allocation9 + $0x7d0] sm:$0xff]
    %v989 = vld [vmem:[#allocation9 + $0x7d8] sm:$0xff]
    %v990 = vld [vmem:[#allocation9 + $0x7e0] sm:$0xff]
    %v991 = vld [vmem:[#allocation9 + $0x7e8] sm:$0xff]
    %v992 = vld [vmem:[#allocation9 + $0x7f0] sm:$0xff]
    %v993 = vld [vmem:[#allocation9 + $0x7f8] sm:$0xff]
    %v994 = vld [vmem:[#allocation10] sm:$0xff]
    %v996 = vlaneseq
    %v997 = vshrl.u32 %v996, 7
    %v998 = vsub.s32 0, %v997
    %v999 = vrot.slane %v994, %v998
    %v1000 = vlaneseq
    %v1001 = vshrl.u32 %v1000, 7
    %v1002 = vsub.s32 1, %v1001
    %v1003 = vrot.slane %v994, %v1002
    %v1004 = vlaneseq
    %v1005 = vshrl.u32 %v1004, 7
    %v1006 = vsub.s32 2, %v1005
    %v1007 = vrot.slane %v994, %v1006
    %v1008 = vlaneseq
    %v1009 = vshrl.u32 %v1008, 7
    %v1010 = vsub.s32 3, %v1009
    %v1011 = vrot.slane %v994, %v1010
    %v1012 = vlaneseq
    %v1013 = vshrl.u32 %v1012, 7
    %v1014 = vsub.s32 4, %v1013
    %v1015 = vrot.slane %v994, %v1014
    %v1016 = vlaneseq
    %v1017 = vshrl.u32 %v1016, 7
    %v1018 = vsub.s32 5, %v1017
    %v1019 = vrot.slane %v994, %v1018
    %v1020 = vlaneseq
    %v1021 = vshrl.u32 %v1020, 7
    %v1022 = vsub.s32 6, %v1021
    %v1023 = vrot.slane %v994, %v1022
    %v1024 = vlaneseq
    %v1025 = vshrl.u32 %v1024, 7
    %v1026 = vsub.s32 7, %v1025
    %v1027 = vrot.slane %v994, %v1026
    %v1292 = vunpack.c.l.b16 %v738
    %v1293 = vunpack.c.h.b16 %v738
    %v1294 = vunpack.c.l.b16 %v739
    %v1295 = vunpack.c.h.b16 %v739
    %v1296 = vunpack.c.l.b16 %v740
    %v1297 = vunpack.c.h.b16 %v740
    %v1298 = vunpack.c.l.b16 %v741
    %v1299 = vunpack.c.h.b16 %v741
    %v1300 = vunpack.c.l.b16 %v742
    %v1301 = vunpack.c.h.b16 %v742
    %v1302 = vunpack.c.l.b16 %v743
    %v1303 = vunpack.c.h.b16 %v743
    %v1304 = vunpack.c.l.b16 %v744
    %v1305 = vunpack.c.h.b16 %v744
    %v1306 = vunpack.c.l.b16 %v745
    %v1307 = vunpack.c.h.b16 %v745
    %v1308 = vunpack.c.l.b16 %v746
    %v1309 = vunpack.c.h.b16 %v746
    %v1310 = vunpack.c.l.b16 %v747
    %v1311 = vunpack.c.h.b16 %v747
    %v1312 = vunpack.c.l.b16 %v748
    %v1313 = vunpack.c.h.b16 %v748
    %v1314 = vunpack.c.l.b16 %v749
    %v1315 = vunpack.c.h.b16 %v749
    %v1316 = vunpack.c.l.b16 %v750
    %v1317 = vunpack.c.h.b16 %v750
    %v1318 = vunpack.c.l.b16 %v751
    %v1319 = vunpack.c.h.b16 %v751
    %v1320 = vunpack.c.l.b16 %v752
    %v1321 = vunpack.c.h.b16 %v752
    %v1322 = vunpack.c.l.b16 %v753
    %v1323 = vunpack.c.h.b16 %v753
    %v1324 = vunpack.c.l.b16 %v754
    %v1325 = vunpack.c.h.b16 %v754
    %v1326 = vunpack.c.l.b16 %v755
    %v1327 = vunpack.c.h.b16 %v755
    %v1328 = vunpack.c.l.b16 %v756
    %v1329 = vunpack.c.h.b16 %v756
    %v1330 = vunpack.c.l.b16 %v757
    %v1331 = vunpack.c.h.b16 %v757
    %v1332 = vunpack.c.l.b16 %v758
    %v1333 = vunpack.c.h.b16 %v758
    %v1334 = vunpack.c.l.b16 %v759
    %v1335 = vunpack.c.h.b16 %v759
    %v1336 = vunpack.c.l.b16 %v760
    %v1337 = vunpack.c.h.b16 %v760
    %v1338 = vunpack.c.l.b16 %v761
    %v1339 = vunpack.c.h.b16 %v761
    %v1340 = vunpack.c.l.b16 %v762
    %v1341 = vunpack.c.h.b16 %v762
    %v1342 = vunpack.c.l.b16 %v763
    %v1343 = vunpack.c.h.b16 %v763
    %v1344 = vunpack.c.l.b16 %v764
    %v1345 = vunpack.c.h.b16 %v764
    %v1346 = vunpack.c.l.b16 %v765
    %v1347 = vunpack.c.h.b16 %v765
    %v1348 = vunpack.c.l.b16 %v766
    %v1349 = vunpack.c.h.b16 %v766
    %v1350 = vunpack.c.l.b16 %v767
    %v1351 = vunpack.c.h.b16 %v767
    %v1352 = vunpack.c.l.b16 %v768
    %v1353 = vunpack.c.h.b16 %v768
    %v1354 = vunpack.c.l.b16 %v769
    %v1355 = vunpack.c.h.b16 %v769
    %v1356 = vunpack.c.l.b16 %v770
    %v1357 = vunpack.c.h.b16 %v770
    %v1358 = vunpack.c.l.b16 %v771
    %v1359 = vunpack.c.h.b16 %v771
    %v1360 = vunpack.c.l.b16 %v772
    %v1361 = vunpack.c.h.b16 %v772
    %v1362 = vunpack.c.l.b16 %v773
    %v1363 = vunpack.c.h.b16 %v773
    %v1364 = vunpack.c.l.b16 %v774
    %v1365 = vunpack.c.h.b16 %v774
    %v1366 = vunpack.c.l.b16 %v775
    %v1367 = vunpack.c.h.b16 %v775
    %v1368 = vunpack.c.l.b16 %v776
    %v1369 = vunpack.c.h.b16 %v776
    %v1370 = vunpack.c.l.b16 %v777
    %v1371 = vunpack.c.h.b16 %v777
    %v1372 = vunpack.c.l.b16 %v778
    %v1373 = vunpack.c.h.b16 %v778
    %v1374 = vunpack.c.l.b16 %v779
    %v1375 = vunpack.c.h.b16 %v779
    %v1376 = vunpack.c.l.b16 %v780
    %v1377 = vunpack.c.h.b16 %v780
    %v1378 = vunpack.c.l.b16 %v781
    %v1379 = vunpack.c.h.b16 %v781
    %v1380 = vunpack.c.l.b16 %v782
    %v1381 = vunpack.c.h.b16 %v782
    %v1382 = vunpack.c.l.b16 %v783
    %v1383 = vunpack.c.h.b16 %v783
    %v1384 = vunpack.c.l.b16 %v784
    %v1385 = vunpack.c.h.b16 %v784
    %v1386 = vunpack.c.l.b16 %v785
    %v1387 = vunpack.c.h.b16 %v785
    %v1388 = vunpack.c.l.b16 %v786
    %v1389 = vunpack.c.h.b16 %v786
    %v1390 = vunpack.c.l.b16 %v787
    %v1391 = vunpack.c.h.b16 %v787
    %v1392 = vunpack.c.l.b16 %v788
    %v1393 = vunpack.c.h.b16 %v788
    %v1394 = vunpack.c.l.b16 %v789
    %v1395 = vunpack.c.h.b16 %v789
    %v1396 = vunpack.c.l.b16 %v790
    %v1397 = vunpack.c.h.b16 %v790
    %v1398 = vunpack.c.l.b16 %v791
    %v1399 = vunpack.c.h.b16 %v791
    %v1400 = vunpack.c.l.b16 %v792
    %v1401 = vunpack.c.h.b16 %v792
    %v1402 = vunpack.c.l.b16 %v793
    %v1403 = vunpack.c.h.b16 %v793
    %v1404 = vunpack.c.l.b16 %v794
    %v1405 = vunpack.c.h.b16 %v794
    %v1406 = vunpack.c.l.b16 %v795
    %v1407 = vunpack.c.h.b16 %v795
    %v1408 = vunpack.c.l.b16 %v796
    %v1409 = vunpack.c.h.b16 %v796
    %v1410 = vunpack.c.l.b16 %v797
    %v1411 = vunpack.c.h.b16 %v797
    %v1412 = vunpack.c.l.b16 %v798
    %v1413 = vunpack.c.h.b16 %v798
    %v1414 = vunpack.c.l.b16 %v799
    %v1415 = vunpack.c.h.b16 %v799
    %v1416 = vunpack.c.l.b16 %v800
    %v1417 = vunpack.c.h.b16 %v800
    %v1418 = vunpack.c.l.b16 %v801
    %v1419 = vunpack.c.h.b16 %v801
    %v1420 = vunpack.c.l.b16 %v802
    %v1421 = vunpack.c.h.b16 %v802
    %v1422 = vunpack.c.l.b16 %v803
    %v1423 = vunpack.c.h.b16 %v803
    %v1424 = vunpack.c.l.b16 %v804
    %v1425 = vunpack.c.h.b16 %v804
    %v1426 = vunpack.c.l.b16 %v805
    %v1427 = vunpack.c.h.b16 %v805
    %v1428 = vunpack.c.l.b16 %v806
    %v1429 = vunpack.c.h.b16 %v806
    %v1430 = vunpack.c.l.b16 %v807
    %v1431 = vunpack.c.h.b16 %v807
    %v1432 = vunpack.c.l.b16 %v808
    %v1433 = vunpack.c.h.b16 %v808
    %v1434 = vunpack.c.l.b16 %v809
    %v1435 = vunpack.c.h.b16 %v809
    %v1436 = vunpack.c.l.b16 %v810
    %v1437 = vunpack.c.h.b16 %v810
    %v1438 = vunpack.c.l.b16 %v811
    %v1439 = vunpack.c.h.b16 %v811
    %v1440 = vunpack.c.l.b16 %v812
    %v1441 = vunpack.c.h.b16 %v812
    %v1442 = vunpack.c.l.b16 %v813
    %v1443 = vunpack.c.h.b16 %v813
    %v1444 = vunpack.c.l.b16 %v814
    %v1445 = vunpack.c.h.b16 %v814
    %v1446 = vunpack.c.l.b16 %v815
    %v1447 = vunpack.c.h.b16 %v815
    %v1448 = vunpack.c.l.b16 %v816
    %v1449 = vunpack.c.h.b16 %v816
    %v1450 = vunpack.c.l.b16 %v817
    %v1451 = vunpack.c.h.b16 %v817
    %v1452 = vunpack.c.l.b16 %v818
    %v1453 = vunpack.c.h.b16 %v818
    %v1454 = vunpack.c.l.b16 %v819
    %v1455 = vunpack.c.h.b16 %v819
    %v1456 = vunpack.c.l.b16 %v820
    %v1457 = vunpack.c.h.b16 %v820
    %v1458 = vunpack.c.l.b16 %v821
    %v1459 = vunpack.c.h.b16 %v821
    %v1460 = vunpack.c.l.b16 %v822
    %v1461 = vunpack.c.h.b16 %v822
    %v1462 = vunpack.c.l.b16 %v823
    %v1463 = vunpack.c.h.b16 %v823
    %v1464 = vunpack.c.l.b16 %v824
    %v1465 = vunpack.c.h.b16 %v824
    %v1466 = vunpack.c.l.b16 %v825
    %v1467 = vunpack.c.h.b16 %v825
    %v1468 = vunpack.c.l.b16 %v826
    %v1469 = vunpack.c.h.b16 %v826
    %v1470 = vunpack.c.l.b16 %v827
    %v1471 = vunpack.c.h.b16 %v827
    %v1472 = vunpack.c.l.b16 %v828
    %v1473 = vunpack.c.h.b16 %v828
    %v1474 = vunpack.c.l.b16 %v829
    %v1475 = vunpack.c.h.b16 %v829
    %v1476 = vunpack.c.l.b16 %v830
    %v1477 = vunpack.c.h.b16 %v830
    %v1478 = vunpack.c.l.b16 %v831
    %v1479 = vunpack.c.h.b16 %v831
    %v1480 = vunpack.c.l.b16 %v832
    %v1481 = vunpack.c.h.b16 %v832
    %v1482 = vunpack.c.l.b16 %v833
    %v1483 = vunpack.c.h.b16 %v833
    %v1484 = vunpack.c.l.b16 %v834
    %v1485 = vunpack.c.h.b16 %v834
    %v1486 = vunpack.c.l.b16 %v835
    %v1487 = vunpack.c.h.b16 %v835
    %v1488 = vunpack.c.l.b16 %v836
    %v1489 = vunpack.c.h.b16 %v836
    %v1490 = vunpack.c.l.b16 %v837
    %v1491 = vunpack.c.h.b16 %v837
    %v1492 = vunpack.c.l.b16 %v838
    %v1493 = vunpack.c.h.b16 %v838
    %v1494 = vunpack.c.l.b16 %v839
    %v1495 = vunpack.c.h.b16 %v839
    %v1496 = vunpack.c.l.b16 %v840
    %v1497 = vunpack.c.h.b16 %v840
    %v1498 = vunpack.c.l.b16 %v841
    %v1499 = vunpack.c.h.b16 %v841
    %v1500 = vunpack.c.l.b16 %v842
    %v1501 = vunpack.c.h.b16 %v842
    %v1502 = vunpack.c.l.b16 %v843
    %v1503 = vunpack.c.h.b16 %v843
    %v1504 = vunpack.c.l.b16 %v844
    %v1505 = vunpack.c.h.b16 %v844
    %v1506 = vunpack.c.l.b16 %v845
    %v1507 = vunpack.c.h.b16 %v845
    %v1508 = vunpack.c.l.b16 %v846
    %v1509 = vunpack.c.h.b16 %v846
    %v1510 = vunpack.c.l.b16 %v847
    %v1511 = vunpack.c.h.b16 %v847
    %v1512 = vunpack.c.l.b16 %v848
    %v1513 = vunpack.c.h.b16 %v848
    %v1514 = vunpack.c.l.b16 %v849
    %v1515 = vunpack.c.h.b16 %v849
    %v1516 = vunpack.c.l.b16 %v850
    %v1517 = vunpack.c.h.b16 %v850
    %v1518 = vunpack.c.l.b16 %v851
    %v1519 = vunpack.c.h.b16 %v851
    %v1520 = vunpack.c.l.b16 %v852
    %v1521 = vunpack.c.h.b16 %v852
    %v1522 = vunpack.c.l.b16 %v853
    %v1523 = vunpack.c.h.b16 %v853
    %v1524 = vunpack.c.l.b16 %v854
    %v1525 = vunpack.c.h.b16 %v854
    %v1526 = vunpack.c.l.b16 %v855
    %v1527 = vunpack.c.h.b16 %v855
    %v1528 = vunpack.c.l.b16 %v856
    %v1529 = vunpack.c.h.b16 %v856
    %v1530 = vunpack.c.l.b16 %v857
    %v1531 = vunpack.c.h.b16 %v857
    %v1532 = vunpack.c.l.b16 %v858
    %v1533 = vunpack.c.h.b16 %v858
    %v1534 = vunpack.c.l.b16 %v859
    %v1535 = vunpack.c.h.b16 %v859
    %v1536 = vunpack.c.l.b16 %v860
    %v1537 = vunpack.c.h.b16 %v860
    %v1538 = vunpack.c.l.b16 %v861
    %v1539 = vunpack.c.h.b16 %v861
    %v1540 = vunpack.c.l.b16 %v862
    %v1541 = vunpack.c.h.b16 %v862
    %v1542 = vunpack.c.l.b16 %v863
    %v1543 = vunpack.c.h.b16 %v863
    %v1544 = vunpack.c.l.b16 %v864
    %v1545 = vunpack.c.h.b16 %v864
    %v1546 = vunpack.c.l.b16 %v865
    %v1547 = vunpack.c.h.b16 %v865
    %v1548 = vunpack.c.l.b16 %v866
    %v1549 = vunpack.c.h.b16 %v866
    %v1550 = vunpack.c.l.b16 %v867
    %v1551 = vunpack.c.h.b16 %v867
    %v1552 = vunpack.c.l.b16 %v868
    %v1553 = vunpack.c.h.b16 %v868
    %v1554 = vunpack.c.l.b16 %v869
    %v1555 = vunpack.c.h.b16 %v869
    %v1556 = vunpack.c.l.b16 %v870
    %v1557 = vunpack.c.h.b16 %v870
    %v1558 = vunpack.c.l.b16 %v871
    %v1559 = vunpack.c.h.b16 %v871
    %v1560 = vunpack.c.l.b16 %v872
    %v1561 = vunpack.c.h.b16 %v872
    %v1562 = vunpack.c.l.b16 %v873
    %v1563 = vunpack.c.h.b16 %v873
    %v1564 = vunpack.c.l.b16 %v874
    %v1565 = vunpack.c.h.b16 %v874
    %v1566 = vunpack.c.l.b16 %v875
    %v1567 = vunpack.c.h.b16 %v875
    %v1568 = vunpack.c.l.b16 %v876
    %v1569 = vunpack.c.h.b16 %v876
    %v1570 = vunpack.c.l.b16 %v877
    %v1571 = vunpack.c.h.b16 %v877
    %v1572 = vunpack.c.l.b16 %v878
    %v1573 = vunpack.c.h.b16 %v878
    %v1574 = vunpack.c.l.b16 %v879
    %v1575 = vunpack.c.h.b16 %v879
    %v1576 = vunpack.c.l.b16 %v880
    %v1577 = vunpack.c.h.b16 %v880
    %v1578 = vunpack.c.l.b16 %v881
    %v1579 = vunpack.c.h.b16 %v881
    %v1580 = vunpack.c.l.b16 %v882
    %v1581 = vunpack.c.h.b16 %v882
    %v1582 = vunpack.c.l.b16 %v883
    %v1583 = vunpack.c.h.b16 %v883
    %v1584 = vunpack.c.l.b16 %v884
    %v1585 = vunpack.c.h.b16 %v884
    %v1586 = vunpack.c.l.b16 %v885
    %v1587 = vunpack.c.h.b16 %v885
    %v1588 = vunpack.c.l.b16 %v886
    %v1589 = vunpack.c.h.b16 %v886
    %v1590 = vunpack.c.l.b16 %v887
    %v1591 = vunpack.c.h.b16 %v887
    %v1592 = vunpack.c.l.b16 %v888
    %v1593 = vunpack.c.h.b16 %v888
    %v1594 = vunpack.c.l.b16 %v889
    %v1595 = vunpack.c.h.b16 %v889
    %v1596 = vunpack.c.l.b16 %v890
    %v1597 = vunpack.c.h.b16 %v890
    %v1598 = vunpack.c.l.b16 %v891
    %v1599 = vunpack.c.h.b16 %v891
    %v1600 = vunpack.c.l.b16 %v892
    %v1601 = vunpack.c.h.b16 %v892
    %v1602 = vunpack.c.l.b16 %v893
    %v1603 = vunpack.c.h.b16 %v893
    %v1604 = vunpack.c.l.b16 %v894
    %v1605 = vunpack.c.h.b16 %v894
    %v1606 = vunpack.c.l.b16 %v895
    %v1607 = vunpack.c.h.b16 %v895
    %v1608 = vunpack.c.l.b16 %v896
    %v1609 = vunpack.c.h.b16 %v896
    %v1610 = vunpack.c.l.b16 %v897
    %v1611 = vunpack.c.h.b16 %v897
    %v1612 = vunpack.c.l.b16 %v898
    %v1613 = vunpack.c.h.b16 %v898
    %v1614 = vunpack.c.l.b16 %v899
    %v1615 = vunpack.c.h.b16 %v899
    %v1616 = vunpack.c.l.b16 %v900
    %v1617 = vunpack.c.h.b16 %v900
    %v1618 = vunpack.c.l.b16 %v901
    %v1619 = vunpack.c.h.b16 %v901
    %v1620 = vunpack.c.l.b16 %v902
    %v1621 = vunpack.c.h.b16 %v902
    %v1622 = vunpack.c.l.b16 %v903
    %v1623 = vunpack.c.h.b16 %v903
    %v1624 = vunpack.c.l.b16 %v904
    %v1625 = vunpack.c.h.b16 %v904
    %v1626 = vunpack.c.l.b16 %v905
    %v1627 = vunpack.c.h.b16 %v905
    %v1628 = vunpack.c.l.b16 %v906
    %v1629 = vunpack.c.h.b16 %v906
    %v1630 = vunpack.c.l.b16 %v907
    %v1631 = vunpack.c.h.b16 %v907
    %v1632 = vunpack.c.l.b16 %v908
    %v1633 = vunpack.c.h.b16 %v908
    %v1634 = vunpack.c.l.b16 %v909
    %v1635 = vunpack.c.h.b16 %v909
    %v1636 = vunpack.c.l.b16 %v910
    %v1637 = vunpack.c.h.b16 %v910
    %v1638 = vunpack.c.l.b16 %v911
    %v1639 = vunpack.c.h.b16 %v911
    %v1640 = vunpack.c.l.b16 %v912
    %v1641 = vunpack.c.h.b16 %v912
    %v1642 = vunpack.c.l.b16 %v913
    %v1643 = vunpack.c.h.b16 %v913
    %v1644 = vunpack.c.l.b16 %v914
    %v1645 = vunpack.c.h.b16 %v914
    %v1646 = vunpack.c.l.b16 %v915
    %v1647 = vunpack.c.h.b16 %v915
    %v1648 = vunpack.c.l.b16 %v916
    %v1649 = vunpack.c.h.b16 %v916
    %v1650 = vunpack.c.l.b16 %v917
    %v1651 = vunpack.c.h.b16 %v917
    %v1652 = vunpack.c.l.b16 %v918
    %v1653 = vunpack.c.h.b16 %v918
    %v1654 = vunpack.c.l.b16 %v919
    %v1655 = vunpack.c.h.b16 %v919
    %v1656 = vunpack.c.l.b16 %v920
    %v1657 = vunpack.c.h.b16 %v920
    %v1658 = vunpack.c.l.b16 %v921
    %v1659 = vunpack.c.h.b16 %v921
    %v1660 = vunpack.c.l.b16 %v922
    %v1661 = vunpack.c.h.b16 %v922
    %v1662 = vunpack.c.l.b16 %v923
    %v1663 = vunpack.c.h.b16 %v923
    %v1664 = vunpack.c.l.b16 %v924
    %v1665 = vunpack.c.h.b16 %v924
    %v1666 = vunpack.c.l.b16 %v925
    %v1667 = vunpack.c.h.b16 %v925
    %v1668 = vunpack.c.l.b16 %v926
    %v1669 = vunpack.c.h.b16 %v926
    %v1670 = vunpack.c.l.b16 %v927
    %v1671 = vunpack.c.h.b16 %v927
    %v1672 = vunpack.c.l.b16 %v928
    %v1673 = vunpack.c.h.b16 %v928
    %v1674 = vunpack.c.l.b16 %v929
    %v1675 = vunpack.c.h.b16 %v929
    %v1676 = vunpack.c.l.b16 %v930
    %v1677 = vunpack.c.h.b16 %v930
    %v1678 = vunpack.c.l.b16 %v931
    %v1679 = vunpack.c.h.b16 %v931
    %v1680 = vunpack.c.l.b16 %v932
    %v1681 = vunpack.c.h.b16 %v932
    %v1682 = vunpack.c.l.b16 %v933
    %v1683 = vunpack.c.h.b16 %v933
    %v1684 = vunpack.c.l.b16 %v934
    %v1685 = vunpack.c.h.b16 %v934
    %v1686 = vunpack.c.l.b16 %v935
    %v1687 = vunpack.c.h.b16 %v935
    %v1688 = vunpack.c.l.b16 %v936
    %v1689 = vunpack.c.h.b16 %v936
    %v1690 = vunpack.c.l.b16 %v937
    %v1691 = vunpack.c.h.b16 %v937
    %v1692 = vunpack.c.l.b16 %v938
    %v1693 = vunpack.c.h.b16 %v938
    %v1694 = vunpack.c.l.b16 %v939
    %v1695 = vunpack.c.h.b16 %v939
    %v1696 = vunpack.c.l.b16 %v940
    %v1697 = vunpack.c.h.b16 %v940
    %v1698 = vunpack.c.l.b16 %v941
    %v1699 = vunpack.c.h.b16 %v941
    %v1700 = vunpack.c.l.b16 %v942
    %v1701 = vunpack.c.h.b16 %v942
    %v1702 = vunpack.c.l.b16 %v943
    %v1703 = vunpack.c.h.b16 %v943
    %v1704 = vunpack.c.l.b16 %v944
    %v1705 = vunpack.c.h.b16 %v944
    %v1706 = vunpack.c.l.b16 %v945
    %v1707 = vunpack.c.h.b16 %v945
    %v1708 = vunpack.c.l.b16 %v946
    %v1709 = vunpack.c.h.b16 %v946
    %v1710 = vunpack.c.l.b16 %v947
    %v1711 = vunpack.c.h.b16 %v947
    %v1712 = vunpack.c.l.b16 %v948
    %v1713 = vunpack.c.h.b16 %v948
    %v1714 = vunpack.c.l.b16 %v949
    %v1715 = vunpack.c.h.b16 %v949
    %v1716 = vunpack.c.l.b16 %v950
    %v1717 = vunpack.c.h.b16 %v950
    %v1718 = vunpack.c.l.b16 %v951
    %v1719 = vunpack.c.h.b16 %v951
    %v1720 = vunpack.c.l.b16 %v952
    %v1721 = vunpack.c.h.b16 %v952
    %v1722 = vunpack.c.l.b16 %v953
    %v1723 = vunpack.c.h.b16 %v953
    %v1724 = vunpack.c.l.b16 %v954
    %v1725 = vunpack.c.h.b16 %v954
    %v1726 = vunpack.c.l.b16 %v955
    %v1727 = vunpack.c.h.b16 %v955
    %v1728 = vunpack.c.l.b16 %v956
    %v1729 = vunpack.c.h.b16 %v956
    %v1730 = vunpack.c.l.b16 %v957
    %v1731 = vunpack.c.h.b16 %v957
    %v1732 = vunpack.c.l.b16 %v958
    %v1733 = vunpack.c.h.b16 %v958
    %v1734 = vunpack.c.l.b16 %v959
    %v1735 = vunpack.c.h.b16 %v959
    %v1736 = vunpack.c.l.b16 %v960
    %v1737 = vunpack.c.h.b16 %v960
    %v1738 = vunpack.c.l.b16 %v961
    %v1739 = vunpack.c.h.b16 %v961
    %v1740 = vunpack.c.l.b16 %v962
    %v1741 = vunpack.c.h.b16 %v962
    %v1742 = vunpack.c.l.b16 %v963
    %v1743 = vunpack.c.h.b16 %v963
    %v1744 = vunpack.c.l.b16 %v964
    %v1745 = vunpack.c.h.b16 %v964
    %v1746 = vunpack.c.l.b16 %v965
    %v1747 = vunpack.c.h.b16 %v965
    %v1748 = vunpack.c.l.b16 %v966
    %v1749 = vunpack.c.h.b16 %v966
    %v1750 = vunpack.c.l.b16 %v967
    %v1751 = vunpack.c.h.b16 %v967
    %v1752 = vunpack.c.l.b16 %v968
    %v1753 = vunpack.c.h.b16 %v968
    %v1754 = vunpack.c.l.b16 %v969
    %v1755 = vunpack.c.h.b16 %v969
    %v1756 = vunpack.c.l.b16 %v970
    %v1757 = vunpack.c.h.b16 %v970
    %v1758 = vunpack.c.l.b16 %v971
    %v1759 = vunpack.c.h.b16 %v971
    %v1760 = vunpack.c.l.b16 %v972
    %v1761 = vunpack.c.h.b16 %v972
    %v1762 = vunpack.c.l.b16 %v973
    %v1763 = vunpack.c.h.b16 %v973
    %v1764 = vunpack.c.l.b16 %v974
    %v1765 = vunpack.c.h.b16 %v974
    %v1766 = vunpack.c.l.b16 %v975
    %v1767 = vunpack.c.h.b16 %v975
    %v1768 = vunpack.c.l.b16 %v976
    %v1769 = vunpack.c.h.b16 %v976
    %v1770 = vunpack.c.l.b16 %v977
    %v1771 = vunpack.c.h.b16 %v977
    %v1772 = vunpack.c.l.b16 %v978
    %v1773 = vunpack.c.h.b16 %v978
    %v1774 = vunpack.c.l.b16 %v979
    %v1775 = vunpack.c.h.b16 %v979
    %v1776 = vunpack.c.l.b16 %v980
    %v1777 = vunpack.c.h.b16 %v980
    %v1778 = vunpack.c.l.b16 %v981
    %v1779 = vunpack.c.h.b16 %v981
    %v1780 = vunpack.c.l.b16 %v982
    %v1781 = vunpack.c.h.b16 %v982
    %v1782 = vunpack.c.l.b16 %v983
    %v1783 = vunpack.c.h.b16 %v983
    %v1784 = vunpack.c.l.b16 %v984
    %v1785 = vunpack.c.h.b16 %v984
    %v1786 = vunpack.c.l.b16 %v985
    %v1787 = vunpack.c.h.b16 %v985
    %v1788 = vunpack.c.l.b16 %v986
    %v1789 = vunpack.c.h.b16 %v986
    %v1790 = vunpack.c.l.b16 %v987
    %v1791 = vunpack.c.h.b16 %v987
    %v1792 = vunpack.c.l.b16 %v988
    %v1793 = vunpack.c.h.b16 %v988
    %v1794 = vunpack.c.l.b16 %v989
    %v1795 = vunpack.c.h.b16 %v989
    %v1796 = vunpack.c.l.b16 %v990
    %v1797 = vunpack.c.h.b16 %v990
    %v1798 = vunpack.c.l.b16 %v991
    %v1799 = vunpack.c.h.b16 %v991
    %v1800 = vunpack.c.l.b16 %v992
    %v1801 = vunpack.c.h.b16 %v992
    %v1802 = vunpack.c.l.b16 %v993
    %v1803 = vunpack.c.h.b16 %v993
    %v1804 = vpack.c.b16 %v1300, %v1292
    %v1805 = vpack.c.b16 %v1301, %v1293
    %v1806 = vpack.c.b16 %v1302, %v1294
    %v1807 = vpack.c.b16 %v1303, %v1295
    %v1808 = vpack.c.b16 %v1304, %v1296
    %v1809 = vpack.c.b16 %v1305, %v1297
    %v1810 = vpack.c.b16 %v1306, %v1298
    %v1811 = vpack.c.b16 %v1307, %v1299
    %v1812 = vpack.c.b16 %v1316, %v1308
    %v1813 = vpack.c.b16 %v1317, %v1309
    %v1814 = vpack.c.b16 %v1318, %v1310
    %v1815 = vpack.c.b16 %v1319, %v1311
    %v1816 = vpack.c.b16 %v1320, %v1312
    %v1817 = vpack.c.b16 %v1321, %v1313
    %v1818 = vpack.c.b16 %v1322, %v1314
    %v1819 = vpack.c.b16 %v1323, %v1315
    %v1820 = vpack.c.b16 %v1332, %v1324
    %v1821 = vpack.c.b16 %v1333, %v1325
    %v1822 = vpack.c.b16 %v1334, %v1326
    %v1823 = vpack.c.b16 %v1335, %v1327
    %v1824 = vpack.c.b16 %v1336, %v1328
    %v1825 = vpack.c.b16 %v1337, %v1329
    %v1826 = vpack.c.b16 %v1338, %v1330
    %v1827 = vpack.c.b16 %v1339, %v1331
    %v1828 = vpack.c.b16 %v1348, %v1340
    %v1829 = vpack.c.b16 %v1349, %v1341
    %v1830 = vpack.c.b16 %v1350, %v1342
    %v1831 = vpack.c.b16 %v1351, %v1343
    %v1832 = vpack.c.b16 %v1352, %v1344
    %v1833 = vpack.c.b16 %v1353, %v1345
    %v1834 = vpack.c.b16 %v1354, %v1346
    %v1835 = vpack.c.b16 %v1355, %v1347
    %v1836 = vpack.c.b16 %v1364, %v1356
    %v1837 = vpack.c.b16 %v1365, %v1357
    %v1838 = vpack.c.b16 %v1366, %v1358
    %v1839 = vpack.c.b16 %v1367, %v1359
    %v1840 = vpack.c.b16 %v1368, %v1360
    %v1841 = vpack.c.b16 %v1369, %v1361
    %v1842 = vpack.c.b16 %v1370, %v1362
    %v1843 = vpack.c.b16 %v1371, %v1363
    %v1844 = vpack.c.b16 %v1380, %v1372
    %v1845 = vpack.c.b16 %v1381, %v1373
    %v1846 = vpack.c.b16 %v1382, %v1374
    %v1847 = vpack.c.b16 %v1383, %v1375
    %v1848 = vpack.c.b16 %v1384, %v1376
    %v1849 = vpack.c.b16 %v1385, %v1377
    %v1850 = vpack.c.b16 %v1386, %v1378
    %v1851 = vpack.c.b16 %v1387, %v1379
    %v1852 = vpack.c.b16 %v1396, %v1388
    %v1853 = vpack.c.b16 %v1397, %v1389
    %v1854 = vpack.c.b16 %v1398, %v1390
    %v1855 = vpack.c.b16 %v1399, %v1391
    %v1856 = vpack.c.b16 %v1400, %v1392
    %v1857 = vpack.c.b16 %v1401, %v1393
    %v1858 = vpack.c.b16 %v1402, %v1394
    %v1859 = vpack.c.b16 %v1403, %v1395
    %v1860 = vpack.c.b16 %v1412, %v1404
    %v1861 = vpack.c.b16 %v1413, %v1405
    %v1862 = vpack.c.b16 %v1414, %v1406
    %v1863 = vpack.c.b16 %v1415, %v1407
    %v1864 = vpack.c.b16 %v1416, %v1408
    %v1865 = vpack.c.b16 %v1417, %v1409
    %v1866 = vpack.c.b16 %v1418, %v1410
    %v1867 = vpack.c.b16 %v1419, %v1411
    %v1868 = vpack.c.b16 %v1428, %v1420
    %v1869 = vpack.c.b16 %v1429, %v1421
    %v1870 = vpack.c.b16 %v1430, %v1422
    %v1871 = vpack.c.b16 %v1431, %v1423
    %v1872 = vpack.c.b16 %v1432, %v1424
    %v1873 = vpack.c.b16 %v1433, %v1425
    %v1874 = vpack.c.b16 %v1434, %v1426
    %v1875 = vpack.c.b16 %v1435, %v1427
    %v1876 = vpack.c.b16 %v1444, %v1436
    %v1877 = vpack.c.b16 %v1445, %v1437
    %v1878 = vpack.c.b16 %v1446, %v1438
    %v1879 = vpack.c.b16 %v1447, %v1439
    %v1880 = vpack.c.b16 %v1448, %v1440
    %v1881 = vpack.c.b16 %v1449, %v1441
    %v1882 = vpack.c.b16 %v1450, %v1442
    %v1883 = vpack.c.b16 %v1451, %v1443
    %v1884 = vpack.c.b16 %v1460, %v1452
    %v1885 = vpack.c.b16 %v1461, %v1453
    %v1886 = vpack.c.b16 %v1462, %v1454
    %v1887 = vpack.c.b16 %v1463, %v1455
    %v1888 = vpack.c.b16 %v1464, %v1456
    %v1889 = vpack.c.b16 %v1465, %v1457
    %v1890 = vpack.c.b16 %v1466, %v1458
    %v1891 = vpack.c.b16 %v1467, %v1459
    %v1892 = vpack.c.b16 %v1476, %v1468
    %v1893 = vpack.c.b16 %v1477, %v1469
    %v1894 = vpack.c.b16 %v1478, %v1470
    %v1895 = vpack.c.b16 %v1479, %v1471
    %v1896 = vpack.c.b16 %v1480, %v1472
    %v1897 = vpack.c.b16 %v1481, %v1473
    %v1898 = vpack.c.b16 %v1482, %v1474
    %v1899 = vpack.c.b16 %v1483, %v1475
    %v1900 = vpack.c.b16 %v1492, %v1484
    %v1901 = vpack.c.b16 %v1493, %v1485
    %v1902 = vpack.c.b16 %v1494, %v1486
    %v1903 = vpack.c.b16 %v1495, %v1487
    %v1904 = vpack.c.b16 %v1496, %v1488
    %v1905 = vpack.c.b16 %v1497, %v1489
    %v1906 = vpack.c.b16 %v1498, %v1490
    %v1907 = vpack.c.b16 %v1499, %v1491
    %v1908 = vpack.c.b16 %v1508, %v1500
    %v1909 = vpack.c.b16 %v1509, %v1501
    %v1910 = vpack.c.b16 %v1510, %v1502
    %v1911 = vpack.c.b16 %v1511, %v1503
    %v1912 = vpack.c.b16 %v1512, %v1504
    %v1913 = vpack.c.b16 %v1513, %v1505
    %v1914 = vpack.c.b16 %v1514, %v1506
    %v1915 = vpack.c.b16 %v1515, %v1507
    %v1916 = vpack.c.b16 %v1524, %v1516
    %v1917 = vpack.c.b16 %v1525, %v1517
    %v1918 = vpack.c.b16 %v1526, %v1518
    %v1919 = vpack.c.b16 %v1527, %v1519
    %v1920 = vpack.c.b16 %v1528, %v1520
    %v1921 = vpack.c.b16 %v1529, %v1521
    %v1922 = vpack.c.b16 %v1530, %v1522
    %v1923 = vpack.c.b16 %v1531, %v1523
    %v1924 = vpack.c.b16 %v1540, %v1532
    %v1925 = vpack.c.b16 %v1541, %v1533
    %v1926 = vpack.c.b16 %v1542, %v1534
    %v1927 = vpack.c.b16 %v1543, %v1535
    %v1928 = vpack.c.b16 %v1544, %v1536
    %v1929 = vpack.c.b16 %v1545, %v1537
    %v1930 = vpack.c.b16 %v1546, %v1538
    %v1931 = vpack.c.b16 %v1547, %v1539
    %v1932 = vpack.c.b16 %v1556, %v1548
    %v1933 = vpack.c.b16 %v1557, %v1549
    %v1934 = vpack.c.b16 %v1558, %v1550
    %v1935 = vpack.c.b16 %v1559, %v1551
    %v1936 = vpack.c.b16 %v1560, %v1552
    %v1937 = vpack.c.b16 %v1561, %v1553
    %v1938 = vpack.c.b16 %v1562, %v1554
    %v1939 = vpack.c.b16 %v1563, %v1555
    %v1940 = vpack.c.b16 %v1572, %v1564
    %v1941 = vpack.c.b16 %v1573, %v1565
    %v1942 = vpack.c.b16 %v1574, %v1566
    %v1943 = vpack.c.b16 %v1575, %v1567
    %v1944 = vpack.c.b16 %v1576, %v1568
    %v1945 = vpack.c.b16 %v1577, %v1569
    %v1946 = vpack.c.b16 %v1578, %v1570
    %v1947 = vpack.c.b16 %v1579, %v1571
    %v1948 = vpack.c.b16 %v1588, %v1580
    %v1949 = vpack.c.b16 %v1589, %v1581
    %v1950 = vpack.c.b16 %v1590, %v1582
    %v1951 = vpack.c.b16 %v1591, %v1583
    %v1952 = vpack.c.b16 %v1592, %v1584
    %v1953 = vpack.c.b16 %v1593, %v1585
    %v1954 = vpack.c.b16 %v1594, %v1586
    %v1955 = vpack.c.b16 %v1595, %v1587
    %v1956 = vpack.c.b16 %v1604, %v1596
    %v1957 = vpack.c.b16 %v1605, %v1597
    %v1958 = vpack.c.b16 %v1606, %v1598
    %v1959 = vpack.c.b16 %v1607, %v1599
    %v1960 = vpack.c.b16 %v1608, %v1600
    %v1961 = vpack.c.b16 %v1609, %v1601
    %v1962 = vpack.c.b16 %v1610, %v1602
    %v1963 = vpack.c.b16 %v1611, %v1603
    %v1964 = vpack.c.b16 %v1620, %v1612
    %v1965 = vpack.c.b16 %v1621, %v1613
    %v1966 = vpack.c.b16 %v1622, %v1614
    %v1967 = vpack.c.b16 %v1623, %v1615
    %v1968 = vpack.c.b16 %v1624, %v1616
    %v1969 = vpack.c.b16 %v1625, %v1617
    %v1970 = vpack.c.b16 %v1626, %v1618
    %v1971 = vpack.c.b16 %v1627, %v1619
    %v1972 = vpack.c.b16 %v1636, %v1628
    %v1973 = vpack.c.b16 %v1637, %v1629
    %v1974 = vpack.c.b16 %v1638, %v1630
    %v1975 = vpack.c.b16 %v1639, %v1631
    %v1976 = vpack.c.b16 %v1640, %v1632
    %v1977 = vpack.c.b16 %v1641, %v1633
    %v1978 = vpack.c.b16 %v1642, %v1634
    %v1979 = vpack.c.b16 %v1643, %v1635
    %v1980 = vpack.c.b16 %v1652, %v1644
    %v1981 = vpack.c.b16 %v1653, %v1645
    %v1982 = vpack.c.b16 %v1654, %v1646
    %v1983 = vpack.c.b16 %v1655, %v1647
    %v1984 = vpack.c.b16 %v1656, %v1648
    %v1985 = vpack.c.b16 %v1657, %v1649
    %v1986 = vpack.c.b16 %v1658, %v1650
    %v1987 = vpack.c.b16 %v1659, %v1651
    %v1988 = vpack.c.b16 %v1668, %v1660
    %v1989 = vpack.c.b16 %v1669, %v1661
    %v1990 = vpack.c.b16 %v1670, %v1662
    %v1991 = vpack.c.b16 %v1671, %v1663
    %v1992 = vpack.c.b16 %v1672, %v1664
    %v1993 = vpack.c.b16 %v1673, %v1665
    %v1994 = vpack.c.b16 %v1674, %v1666
    %v1995 = vpack.c.b16 %v1675, %v1667
    %v1996 = vpack.c.b16 %v1684, %v1676
    %v1997 = vpack.c.b16 %v1685, %v1677
    %v1998 = vpack.c.b16 %v1686, %v1678
    %v1999 = vpack.c.b16 %v1687, %v1679
    %v2000 = vpack.c.b16 %v1688, %v1680
    %v2001 = vpack.c.b16 %v1689, %v1681
    %v2002 = vpack.c.b16 %v1690, %v1682
    %v2003 = vpack.c.b16 %v1691, %v1683
    %v2004 = vpack.c.b16 %v1700, %v1692
    %v2005 = vpack.c.b16 %v1701, %v1693
    %v2006 = vpack.c.b16 %v1702, %v1694
    %v2007 = vpack.c.b16 %v1703, %v1695
    %v2008 = vpack.c.b16 %v1704, %v1696
    %v2009 = vpack.c.b16 %v1705, %v1697
    %v2010 = vpack.c.b16 %v1706, %v1698
    %v2011 = vpack.c.b16 %v1707, %v1699
    %v2012 = vpack.c.b16 %v1716, %v1708
    %v2013 = vpack.c.b16 %v1717, %v1709
    %v2014 = vpack.c.b16 %v1718, %v1710
    %v2015 = vpack.c.b16 %v1719, %v1711
    %v2016 = vpack.c.b16 %v1720, %v1712
    %v2017 = vpack.c.b16 %v1721, %v1713
    %v2018 = vpack.c.b16 %v1722, %v1714
    %v2019 = vpack.c.b16 %v1723, %v1715
    %v2020 = vpack.c.b16 %v1732, %v1724
    %v2021 = vpack.c.b16 %v1733, %v1725
    %v2022 = vpack.c.b16 %v1734, %v1726
    %v2023 = vpack.c.b16 %v1735, %v1727
    %v2024 = vpack.c.b16 %v1736, %v1728
    %v2025 = vpack.c.b16 %v1737, %v1729
    %v2026 = vpack.c.b16 %v1738, %v1730
    %v2027 = vpack.c.b16 %v1739, %v1731
    %v2028 = vpack.c.b16 %v1748, %v1740
    %v2029 = vpack.c.b16 %v1749, %v1741
    %v2030 = vpack.c.b16 %v1750, %v1742
    %v2031 = vpack.c.b16 %v1751, %v1743
    %v2032 = vpack.c.b16 %v1752, %v1744
    %v2033 = vpack.c.b16 %v1753, %v1745
    %v2034 = vpack.c.b16 %v1754, %v1746
    %v2035 = vpack.c.b16 %v1755, %v1747
    %v2036 = vpack.c.b16 %v1764, %v1756
    %v2037 = vpack.c.b16 %v1765, %v1757
    %v2038 = vpack.c.b16 %v1766, %v1758
    %v2039 = vpack.c.b16 %v1767, %v1759
    %v2040 = vpack.c.b16 %v1768, %v1760
    %v2041 = vpack.c.b16 %v1769, %v1761
    %v2042 = vpack.c.b16 %v1770, %v1762
    %v2043 = vpack.c.b16 %v1771, %v1763
    %v2044 = vpack.c.b16 %v1780, %v1772
    %v2045 = vpack.c.b16 %v1781, %v1773
    %v2046 = vpack.c.b16 %v1782, %v1774
    %v2047 = vpack.c.b16 %v1783, %v1775
    %v2048 = vpack.c.b16 %v1784, %v1776
    %v2049 = vpack.c.b16 %v1785, %v1777
    %v2050 = vpack.c.b16 %v1786, %v1778
    %v2051 = vpack.c.b16 %v1787, %v1779
    %v2052 = vpack.c.b16 %v1796, %v1788
    %v2053 = vpack.c.b16 %v1797, %v1789
    %v2054 = vpack.c.b16 %v1798, %v1790
    %v2055 = vpack.c.b16 %v1799, %v1791
    %v2056 = vpack.c.b16 %v1800, %v1792
    %v2057 = vpack.c.b16 %v1801, %v1793
    %v2058 = vpack.c.b16 %v1802, %v1794
    %v2059 = vpack.c.b16 %v1803, %v1795
    %2316 = vmatprep.subr.bf16.mxu0 %v1805
    %2317 = vmatpush1.bf16.msra.mxu0 %v1804
    %2318 = vmatprep.subr.bf16.mxu0 %v1813
    %2319 = vmatpush1.bf16.msra.mxu0 %v1812
    %2320 = vmatprep.subr.bf16.mxu0 %v1821
    %2321 = vmatpush1.bf16.msra.mxu0 %v1820
    %2322 = vmatprep.subr.bf16.mxu0 %v1829
    %2323 = vmatpush1.bf16.msra.mxu0 %v1828
    %2324 = vmatprep.subr.bf16.mxu0 %v1837
    %2325 = vmatpush1.bf16.msra.mxu0 %v1836
    %2326 = vmatprep.subr.bf16.mxu0 %v1845
    %2327 = vmatpush1.bf16.msra.mxu0 %v1844
    %2328 = vmatprep.subr.bf16.mxu0 %v1853
    %2329 = vmatpush1.bf16.msra.mxu0 %v1852
    %2330 = vmatprep.subr.bf16.mxu0 %v1861
    %2331 = vmatpush1.bf16.msra.mxu0 %v1860
    %2332 = vmatprep.subr.bf16.mxu0 %v1869
    %2333 = vmatpush1.bf16.msra.mxu0 %v1868
    %2334 = vmatprep.subr.bf16.mxu0 %v1877
    %2335 = vmatpush1.bf16.msra.mxu0 %v1876
    %2336 = vmatprep.subr.bf16.mxu0 %v1885
    %2337 = vmatpush1.bf16.msra.mxu0 %v1884
    %2338 = vmatprep.subr.bf16.mxu0 %v1893
    %2339 = vmatpush1.bf16.msra.mxu0 %v1892
    %2340 = vmatprep.subr.bf16.mxu0 %v1901
    %2341 = vmatpush1.bf16.msra.mxu0 %v1900
    %2342 = vmatprep.subr.bf16.mxu0 %v1909
    %2343 = vmatpush1.bf16.msra.mxu0 %v1908
    %2344 = vmatprep.subr.bf16.mxu0 %v1917
    %2345 = vmatpush1.bf16.msra.mxu0 %v1916
    %2346 = vmatprep.subr.bf16.mxu0 %v1925
    %2347 = vmatpush1.bf16.msra.mxu0 %v1924
    %2348 = vmatprep.mubr.bf16.mxu0 %v735
    %2349 = vmatmul.mubr.bf16.gmra.mrb[0].mxu0 %v734
    %v2350 = vpop.f32.mrb[0].mxu0
    %v2351 = vadd.f32 %v999, %v2350
    %v2352 = vpop.f32.mrb[0].mxu0
    %v2353 = vadd.f32 %v1003, %v2352
    %v2354 = vpop.f32.mrb[0].mxu0
    %v2355 = vpop.f32.mrb[0].mxu0
    %2356 = vdwg.mxu0
    %2357 = vmatprep.subr.bf16.mxu0 %v1933
    %2358 = vmatpush1.bf16.msra.mxu0 %v1932
    %2359 = vmatprep.subr.bf16.mxu0 %v1941
    %2360 = vmatpush1.bf16.msra.mxu0 %v1940
    %2361 = vmatprep.subr.bf16.mxu0 %v1949
    %2362 = vmatpush1.bf16.msra.mxu0 %v1948
    %2363 = vmatprep.subr.bf16.mxu0 %v1957
    %2364 = vmatpush1.bf16.msra.mxu0 %v1956
    %2365 = vmatprep.subr.bf16.mxu0 %v1965
    %2366 = vmatpush1.bf16.msra.mxu0 %v1964
    %2367 = vmatprep.subr.bf16.mxu0 %v1973
    %2368 = vmatpush1.bf16.msra.mxu0 %v1972
    %2369 = vmatprep.subr.bf16.mxu0 %v1981
    %2370 = vmatpush1.bf16.msra.mxu0 %v1980
    %2371 = vmatprep.subr.bf16.mxu0 %v1989
    %2372 = vmatpush1.bf16.msra.mxu0 %v1988
    %2373 = vmatprep.subr.bf16.mxu0 %v1997
    %2374 = vmatpush1.bf16.msra.mxu0 %v1996
    %2375 = vmatprep.subr.bf16.mxu0 %v2005
    %2376 = vmatpush1.bf16.msra.mxu0 %v2004
    %2377 = vmatprep.subr.bf16.mxu0 %v2013
    %2378 = vmatpush1.bf16.msra.mxu0 %v2012
    %2379 = vmatprep.subr.bf16.mxu0 %v2021
    %2380 = vmatpush1.bf16.msra.mxu0 %v2020
    %2381 = vmatprep.subr.bf16.mxu0 %v2029
    %2382 = vmatpush1.bf16.msra.mxu0 %v2028
    %2383 = vmatprep.subr.bf16.mxu0 %v2037
    %2384 = vmatpush1.bf16.msra.mxu0 %v2036
    %2385 = vmatprep.subr.bf16.mxu0 %v2045
    %2386 = vmatpush1.bf16.msra.mxu0 %v2044
    %2387 = vmatprep.subr.bf16.mxu0 %v2053
    %2388 = vmatpush1.bf16.msra.mxu0 %v2052
    %2389 = vmatprep.mubr.bf16.mxu0 %v737
    %2390 = vmatmul.mubr.bf16.gmra.mrb[0].mxu0 %v736
    %v2391 = vpop.f32.mrb[0].mxu0
    %v2392 = vadd.f32 %v2351, %v2391
    %v2393 = vpop.f32.mrb[0].mxu0
    %v2394 = vadd.f32 %v2353, %v2393
    %v2395 = vpop.f32.mrb[0].mxu0
    %v2396 = vpop.f32.mrb[0].mxu0
    %2397 = vdwg.mxu0
    %2398 = vmatprep.subr.bf16.mxu0 %v1807
    %2399 = vmatpush1.bf16.msra.mxu0 %v1806
    %2400 = vmatprep.subr.bf16.mxu0 %v1815
    %2401 = vmatpush1.bf16.msra.mxu0 %v1814
    %2402 = vmatprep.subr.bf16.mxu0 %v1823
    %2403 = vmatpush1.bf16.msra.mxu0 %v1822
    %2404 = vmatprep.subr.bf16.mxu0 %v1831
    %2405 = vmatpush1.bf16.msra.mxu0 %v1830
    %2406 = vmatprep.subr.bf16.mxu0 %v1839
    %2407 = vmatpush1.bf16.msra.mxu0 %v1838
    %2408 = vmatprep.subr.bf16.mxu0 %v1847
    %2409 = vmatpush1.bf16.msra.mxu0 %v1846
    %2410 = vmatprep.subr.bf16.mxu0 %v1855
    %2411 = vmatpush1.bf16.msra.mxu0 %v1854
    %2412 = vmatprep.subr.bf16.mxu0 %v1863
    %2413 = vmatpush1.bf16.msra.mxu0 %v1862
    %2414 = vmatprep.subr.bf16.mxu0 %v1871
    %2415 = vmatpush1.bf16.msra.mxu0 %v1870
    %2416 = vmatprep.subr.bf16.mxu0 %v1879
    %2417 = vmatpush1.bf16.msra.mxu0 %v1878
    %2418 = vmatprep.subr.bf16.mxu0 %v1887
    %2419 = vmatpush1.bf16.msra.mxu0 %v1886
    %2420 = vmatprep.subr.bf16.mxu0 %v1895
    %2421 = vmatpush1.bf16.msra.mxu0 %v1894
    %2422 = vmatprep.subr.bf16.mxu0 %v1903
    %2423 = vmatpush1.bf16.msra.mxu0 %v1902
    %2424 = vmatprep.subr.bf16.mxu0 %v1911
    %2425 = vmatpush1.bf16.msra.mxu0 %v1910
    %2426 = vmatprep.subr.bf16.mxu0 %v1919
    %2427 = vmatpush1.bf16.msra.mxu0 %v1918
    %2428 = vmatprep.subr.bf16.mxu0 %v1927
    %2429 = vmatpush1.bf16.msra.mxu0 %v1926
    %2430 = vmatprep.mubr.bf16.mxu0 %v735
    %2431 = vmatmul.mubr.bf16.gmra.mrb[0].mxu0 %v734
    %v2432 = vpop.f32.mrb[0].mxu0
    %v2433 = vadd.f32 %v1007, %v2432
    %v2434 = vpop.f32.mrb[0].mxu0
    %v2435 = vadd.f32 %v1011, %v2434
    %v2436 = vpop.f32.mrb[0].mxu0
    %v2437 = vpop.f32.mrb[0].mxu0
    %2438 = vdwg.mxu0
    %2439 = vmatprep.subr.bf16.mxu0 %v1935
    %2440 = vmatpush1.bf16.msra.mxu0 %v1934
    %2441 = vmatprep.subr.bf16.mxu0 %v1943
    %2442 = vmatpush1.bf16.msra.mxu0 %v1942
    %2443 = vmatprep.subr.bf16.mxu0 %v1951
    %2444 = vmatpush1.bf16.msra.mxu0 %v1950
    %2445 = vmatprep.subr.bf16.mxu0 %v1959
    %2446 = vmatpush1.bf16.msra.mxu0 %v1958
    %2447 = vmatprep.subr.bf16.mxu0 %v1967
    %2448 = vmatpush1.bf16.msra.mxu0 %v1966
    %2449 = vmatprep.subr.bf16.mxu0 %v1975
    %2450 = vmatpush1.bf16.msra.mxu0 %v1974
    %2451 = vmatprep.subr.bf16.mxu0 %v1983
    %2452 = vmatpush1.bf16.msra.mxu0 %v1982
    %2453 = vmatprep.subr.bf16.mxu0 %v1991
    %2454 = vmatpush1.bf16.msra.mxu0 %v1990
    %2455 = vmatprep.subr.bf16.mxu0 %v1999
    %2456 = vmatpush1.bf16.msra.mxu0 %v1998
    %2457 = vmatprep.subr.bf16.mxu0 %v2007
    %2458 = vmatpush1.bf16.msra.mxu0 %v2006
    %2459 = vmatprep.subr.bf16.mxu0 %v2015
    %2460 = vmatpush1.bf16.msra.mxu0 %v2014
    %2461 = vmatprep.subr.bf16.mxu0 %v2023
    %2462 = vmatpush1.bf16.msra.mxu0 %v2022
    %2463 = vmatprep.subr.bf16.mxu0 %v2031
    %2464 = vmatpush1.bf16.msra.mxu0 %v2030
    %2465 = vmatprep.subr.bf16.mxu0 %v2039
    %2466 = vmatpush1.bf16.msra.mxu0 %v2038
    %2467 = vmatprep.subr.bf16.mxu0 %v2047
    %2468 = vmatpush1.bf16.msra.mxu0 %v2046
    %2469 = vmatprep.subr.bf16.mxu0 %v2055
    %2470 = vmatpush1.bf16.msra.mxu0 %v2054
    %2471 = vmatprep.mubr.bf16.mxu0 %v737
    %2472 = vmatmul.mubr.bf16.gmra.mrb[0].mxu0 %v736
    %v2473 = vpop.f32.mrb[0].mxu0
    %v2474 = vadd.f32 %v2433, %v2473
    %v2475 = vpop.f32.mrb[0].mxu0
    %v2476 = vadd.f32 %v2435, %v2475
    %v2477 = vpop.f32.mrb[0].mxu0
    %v2478 = vpop.f32.mrb[0].mxu0
    %2479 = vdwg.mxu0
    %2480 = vmatprep.subr.bf16.mxu0 %v1809
    %2481 = vmatpush1.bf16.msra.mxu0 %v1808
    %2482 = vmatprep.subr.bf16.mxu0 %v1817
    %2483 = vmatpush1.bf16.msra.mxu0 %v1816
    %2484 = vmatprep.subr.bf16.mxu0 %v1825
    %2485 = vmatpush1.bf16.msra.mxu0 %v1824
    %2486 = vmatprep.subr.bf16.mxu0 %v1833
    %2487 = vmatpush1.bf16.msra.mxu0 %v1832
    %2488 = vmatprep.subr.bf16.mxu0 %v1841
    %2489 = vmatpush1.bf16.msra.mxu0 %v1840
    %2490 = vmatprep.subr.bf16.mxu0 %v1849
    %2491 = vmatpush1.bf16.msra.mxu0 %v1848
    %2492 = vmatprep.subr.bf16.mxu0 %v1857
    %2493 = vmatpush1.bf16.msra.mxu0 %v1856
    %2494 = vmatprep.subr.bf16.mxu0 %v1865
    %2495 = vmatpush1.bf16.msra.mxu0 %v1864
    %2496 = vmatprep.subr.bf16.mxu0 %v1873
    %2497 = vmatpush1.bf16.msra.mxu0 %v1872
    %2498 = vmatprep.subr.bf16.mxu0 %v1881
    %2499 = vmatpush1.bf16.msra.mxu0 %v1880
    %2500 = vmatprep.subr.bf16.mxu0 %v1889
    %2501 = vmatpush1.bf16.msra.mxu0 %v1888
    %2502 = vmatprep.subr.bf16.mxu0 %v1897
    %2503 = vmatpush1.bf16.msra.mxu0 %v1896
    %2504 = vmatprep.subr.bf16.mxu0 %v1905
    %2505 = vmatpush1.bf16.msra.mxu0 %v1904
    %2506 = vmatprep.subr.bf16.mxu0 %v1913
    %2507 = vmatpush1.bf16.msra.mxu0 %v1912
    %2508 = vmatprep.subr.bf16.mxu0 %v1921
    %2509 = vmatpush1.bf16.msra.mxu0 %v1920
    %2510 = vmatprep.subr.bf16.mxu0 %v1929
    %2511 = vmatpush1.bf16.msra.mxu0 %v1928
    %2512 = vmatprep.mubr.bf16.mxu0 %v735
    %2513 = vmatmul.mubr.bf16.gmra.mrb[0].mxu0 %v734
    %v2514 = vpop.f32.mrb[0].mxu0
    %v2515 = vadd.f32 %v1015, %v2514
    %v2516 = vpop.f32.mrb[0].mxu0
    %v2517 = vadd.f32 %v1019, %v2516
    %v2518 = vpop.f32.mrb[0].mxu0
    %v2519 = vpop.f32.mrb[0].mxu0
    %2520 = vdwg.mxu0
    %2521 = vmatprep.subr.bf16.mxu0 %v1937
    %2522 = vmatpush1.bf16.msra.mxu0 %v1936
    %2523 = vmatprep.subr.bf16.mxu0 %v1945
    %2524 = vmatpush1.bf16.msra.mxu0 %v1944
    %2525 = vmatprep.subr.bf16.mxu0 %v1953
    %2526 = vmatpush1.bf16.msra.mxu0 %v1952
    %2527 = vmatprep.subr.bf16.mxu0 %v1961
    %2528 = vmatpush1.bf16.msra.mxu0 %v1960
    %2529 = vmatprep.subr.bf16.mxu0 %v1969
    %2530 = vmatpush1.bf16.msra.mxu0 %v1968
    %2531 = vmatprep.subr.bf16.mxu0 %v1977
    %2532 = vmatpush1.bf16.msra.mxu0 %v1976
    %2533 = vmatprep.subr.bf16.mxu0 %v1985
    %2534 = vmatpush1.bf16.msra.mxu0 %v1984
    %2535 = vmatprep.subr.bf16.mxu0 %v1993
    %2536 = vmatpush1.bf16.msra.mxu0 %v1992
    %2537 = vmatprep.subr.bf16.mxu0 %v2001
    %2538 = vmatpush1.bf16.msra.mxu0 %v2000
    %2539 = vmatprep.subr.bf16.mxu0 %v2009
    %2540 = vmatpush1.bf16.msra.mxu0 %v2008
    %2541 = vmatprep.subr.bf16.mxu0 %v2017
    %2542 = vmatpush1.bf16.msra.mxu0 %v2016
    %2543 = vmatprep.subr.bf16.mxu0 %v2025
    %2544 = vmatpush1.bf16.msra.mxu0 %v2024
    %2545 = vmatprep.subr.bf16.mxu0 %v2033
    %2546 = vmatpush1.bf16.msra.mxu0 %v2032
    %2547 = vmatprep.subr.bf16.mxu0 %v2041
    %2548 = vmatpush1.bf16.msra.mxu0 %v2040
    %2549 = vmatprep.subr.bf16.mxu0 %v2049
    %2550 = vmatpush1.bf16.msra.mxu0 %v2048
    %2551 = vmatprep.subr.bf16.mxu0 %v2057
    %2552 = vmatpush1.bf16.msra.mxu0 %v2056
    %2553 = vmatprep.mubr.bf16.mxu0 %v737
    %2554 = vmatmul.mubr.bf16.gmra.mrb[0].mxu0 %v736
    %v2555 = vpop.f32.mrb[0].mxu0
    %v2556 = vadd.f32 %v2515, %v2555
    %v2557 = vpop.f32.mrb[0].mxu0
    %v2558 = vadd.f32 %v2517, %v2557
    %v2559 = vpop.f32.mrb[0].mxu0
    %v2560 = vpop.f32.mrb[0].mxu0
    %2561 = vdwg.mxu0
    %2562 = vmatprep.subr.bf16.mxu0 %v1811
    %2563 = vmatpush1.bf16.msra.mxu0 %v1810
    %2564 = vmatprep.subr.bf16.mxu0 %v1819
    %2565 = vmatpush1.bf16.msra.mxu0 %v1818
    %2566 = vmatprep.subr.bf16.mxu0 %v1827
    %2567 = vmatpush1.bf16.msra.mxu0 %v1826
    %2568 = vmatprep.subr.bf16.mxu0 %v1835
    %2569 = vmatpush1.bf16.msra.mxu0 %v1834
    %2570 = vmatprep.subr.bf16.mxu0 %v1843
    %2571 = vmatpush1.bf16.msra.mxu0 %v1842
    %2572 = vmatprep.subr.bf16.mxu0 %v1851
    %2573 = vmatpush1.bf16.msra.mxu0 %v1850
    %2574 = vmatprep.subr.bf16.mxu0 %v1859
    %2575 = vmatpush1.bf16.msra.mxu0 %v1858
    %2576 = vmatprep.subr.bf16.mxu0 %v1867
    %2577 = vmatpush1.bf16.msra.mxu0 %v1866
    %2578 = vmatprep.subr.bf16.mxu0 %v1875
    %2579 = vmatpush1.bf16.msra.mxu0 %v1874
    %2580 = vmatprep.subr.bf16.mxu0 %v1883
    %2581 = vmatpush1.bf16.msra.mxu0 %v1882
    %2582 = vmatprep.subr.bf16.mxu0 %v1891
    %2583 = vmatpush1.bf16.msra.mxu0 %v1890
    %2584 = vmatprep.subr.bf16.mxu0 %v1899
    %2585 = vmatpush1.bf16.msra.mxu0 %v1898
    %2586 = vmatprep.subr.bf16.mxu0 %v1907
    %2587 = vmatpush1.bf16.msra.mxu0 %v1906
    %2588 = vmatprep.subr.bf16.mxu0 %v1915
    %2589 = vmatpush1.bf16.msra.mxu0 %v1914
    %2590 = vmatprep.subr.bf16.mxu0 %v1923
    %2591 = vmatpush1.bf16.msra.mxu0 %v1922
    %2592 = vmatprep.subr.bf16.mxu0 %v1931
    %2593 = vmatpush1.bf16.msra.mxu0 %v1930
    %2594 = vmatprep.mubr.bf16.mxu0 %v735
    %2595 = vmatmul.mubr.bf16.gmra.mrb[0].mxu0 %v734
    %v2596 = vpop.f32.mrb[0].mxu0
    %v2597 = vadd.f32 %v1023, %v2596
    %v2598 = vpop.f32.mrb[0].mxu0
    %v2599 = vadd.f32 %v1027, %v2598
    %v2600 = vpop.f32.mrb[0].mxu0
    %v2601 = vpop.f32.mrb[0].mxu0
    %2602 = vdwg.mxu0
    %2603 = vmatprep.subr.bf16.mxu0 %v1939
    %2604 = vmatpush1.bf16.msra.mxu0 %v1938
    %2605 = vmatprep.subr.bf16.mxu0 %v1947
    %2606 = vmatpush1.bf16.msra.mxu0 %v1946
    %2607 = vmatprep.subr.bf16.mxu0 %v1955
    %2608 = vmatpush1.bf16.msra.mxu0 %v1954
    %2609 = vmatprep.subr.bf16.mxu0 %v1963
    %2610 = vmatpush1.bf16.msra.mxu0 %v1962
    %2611 = vmatprep.subr.bf16.mxu0 %v1971
    %2612 = vmatpush1.bf16.msra.mxu0 %v1970
    %2613 = vmatprep.subr.bf16.mxu0 %v1979
    %2614 = vmatpush1.bf16.msra.mxu0 %v1978
    %2615 = vmatprep.subr.bf16.mxu0 %v1987
    %2616 = vmatpush1.bf16.msra.mxu0 %v1986
    %2617 = vmatprep.subr.bf16.mxu0 %v1995
    %2618 = vmatpush1.bf16.msra.mxu0 %v1994
    %2619 = vmatprep.subr.bf16.mxu0 %v2003
    %2620 = vmatpush1.bf16.msra.mxu0 %v2002
    %2621 = vmatprep.subr.bf16.mxu0 %v2011
    %2622 = vmatpush1.bf16.msra.mxu0 %v2010
    %2623 = vmatprep.subr.bf16.mxu0 %v2019
    %2624 = vmatpush1.bf16.msra.mxu0 %v2018
    %2625 = vmatprep.subr.bf16.mxu0 %v2027
    %2626 = vmatpush1.bf16.msra.mxu0 %v2026
    %2627 = vmatprep.subr.bf16.mxu0 %v2035
    %2628 = vmatpush1.bf16.msra.mxu0 %v2034
    %2629 = vmatprep.subr.bf16.mxu0 %v2043
    %2630 = vmatpush1.bf16.msra.mxu0 %v2042
    %2631 = vmatprep.subr.bf16.mxu0 %v2051
    %2632 = vmatpush1.bf16.msra.mxu0 %v2050
    %2633 = vmatprep.subr.bf16.mxu0 %v2059
    %2634 = vmatpush1.bf16.msra.mxu0 %v2058
    %2635 = vmatprep.mubr.bf16.mxu0 %v737
    %2636 = vmatmul.mubr.bf16.gmra.mrb[0].mxu0 %v736
    %v2637 = vpop.f32.mrb[0].mxu0
    %v2638 = vadd.f32 %v2597, %v2637
    %v2639 = vpop.f32.mrb[0].mxu0
    %v2640 = vadd.f32 %v2599, %v2639
    %v2641 = vpop.f32.mrb[0].mxu0
    %v2642 = vpop.f32.mrb[0].mxu0
    %2643 = vdwg.mxu0
    %v2644 = vmax.f32 %v2392, 0.0
    %v2645 = vmax.f32 %v2394, 0.0
    %v2646 = vmax.f32 %v2474, 0.0
    %v2647 = vmax.f32 %v2476, 0.0
    %v2648 = vmax.f32 %v2556, 0.0
    %v2649 = vmax.f32 %v2558, 0.0
    %v2650 = vmax.f32 %v2638, 0.0
    %v2651 = vmax.f32 %v2640, 0.0
    %v2652 = vpack.c.bf16 %v2644, %v2644
    %v2653 = vpack.c.bf16 %v2645, %v2645
    %v2654 = vpack.c.bf16 %v2646, %v2646
    %v2655 = vpack.c.bf16 %v2647, %v2647
    %v2656 = vpack.c.bf16 %v2648, %v2648
    %v2657 = vpack.c.bf16 %v2649, %v2649
    %v2658 = vpack.c.bf16 %v2650, %v2650
    %v2659 = vpack.c.bf16 %v2651, %v2651
    %v2660 = vld [vmem:[#allocation12] sm:$0xff]
    %v2661 = vld [vmem:[#allocation12 + $0x8] sm:$0xff]
    %v2662 = vld [vmem:[#allocation12 + $0x10] sm:$0xff]
    %v2663 = vld [vmem:[#allocation12 + $0x18] sm:$0xff]
    %v2664 = vld [vmem:[#allocation12 + $0x20] sm:$0xff]
    %v2665 = vld [vmem:[#allocation12 + $0x28] sm:$0xff]
    %v2666 = vld [vmem:[#allocation12 + $0x30] sm:$0xff]
    %v2667 = vld [vmem:[#allocation12 + $0x38] sm:$0xff]
    %v2668 = vld [vmem:[#allocation12 + $0x40] sm:$0xff]
    %v2669 = vld [vmem:[#allocation12 + $0x48] sm:$0xff]
    %v2670 = vld [vmem:[#allocation12 + $0x50] sm:$0xff]
    %v2671 = vld [vmem:[#allocation12 + $0x58] sm:$0xff]
    %v2672 = vld [vmem:[#allocation12 + $0x60] sm:$0xff]
    %v2673 = vld [vmem:[#allocation12 + $0x68] sm:$0xff]
    %v2674 = vld [vmem:[#allocation12 + $0x70] sm:$0xff]
    %v2675 = vld [vmem:[#allocation12 + $0x78] sm:$0xff]
    %v2676 = vld [vmem:[#allocation12 + $0x80] sm:$0xff]
    %v2677 = vld [vmem:[#allocation12 + $0x88] sm:$0xff]
    %v2678 = vld [vmem:[#allocation12 + $0x90] sm:$0xff]
    %v2679 = vld [vmem:[#allocation12 + $0x98] sm:$0xff]
    %v2680 = vld [vmem:[#allocation12 + $0xa0] sm:$0xff]
    %v2681 = vld [vmem:[#allocation12 + $0xa8] sm:$0xff]
    %v2682 = vld [vmem:[#allocation12 + $0xb0] sm:$0xff]
    %v2683 = vld [vmem:[#allocation12 + $0xb8] sm:$0xff]
    %v2684 = vld [vmem:[#allocation12 + $0xc0] sm:$0xff]
    %v2685 = vld [vmem:[#allocation12 + $0xc8] sm:$0xff]
    %v2686 = vld [vmem:[#allocation12 + $0xd0] sm:$0xff]
    %v2687 = vld [vmem:[#allocation12 + $0xd8] sm:$0xff]
    %v2688 = vld [vmem:[#allocation12 + $0xe0] sm:$0xff]
    %v2689 = vld [vmem:[#allocation12 + $0xe8] sm:$0xff]
    %v2690 = vld [vmem:[#allocation12 + $0xf0] sm:$0xff]
    %v2691 = vld [vmem:[#allocation12 + $0xf8] sm:$0xff]
    %v2692 = vld [vmem:[#allocation12 + $0x100] sm:$0xff]
    %v2693 = vld [vmem:[#allocation12 + $0x108] sm:$0xff]
    %v2694 = vld [vmem:[#allocation12 + $0x110] sm:$0xff]
    %v2695 = vld [vmem:[#allocation12 + $0x118] sm:$0xff]
    %v2696 = vld [vmem:[#allocation12 + $0x120] sm:$0xff]
    %v2697 = vld [vmem:[#allocation12 + $0x128] sm:$0xff]
    %v2698 = vld [vmem:[#allocation12 + $0x130] sm:$0xff]
    %v2699 = vld [vmem:[#allocation12 + $0x138] sm:$0xff]
    %v2700 = vld [vmem:[#allocation12 + $0x140] sm:$0xff]
    %v2701 = vld [vmem:[#allocation12 + $0x148] sm:$0xff]
    %v2702 = vld [vmem:[#allocation12 + $0x150] sm:$0xff]
    %v2703 = vld [vmem:[#allocation12 + $0x158] sm:$0xff]
    %v2704 = vld [vmem:[#allocation12 + $0x160] sm:$0xff]
    %v2705 = vld [vmem:[#allocation12 + $0x168] sm:$0xff]
    %v2706 = vld [vmem:[#allocation12 + $0x170] sm:$0xff]
    %v2707 = vld [vmem:[#allocation12 + $0x178] sm:$0xff]
    %v2708 = vld [vmem:[#allocation12 + $0x180] sm:$0xff]
    %v2709 = vld [vmem:[#allocation12 + $0x188] sm:$0xff]
    %v2710 = vld [vmem:[#allocation12 + $0x190] sm:$0xff]
    %v2711 = vld [vmem:[#allocation12 + $0x198] sm:$0xff]
    %v2712 = vld [vmem:[#allocation12 + $0x1a0] sm:$0xff]
    %v2713 = vld [vmem:[#allocation12 + $0x1a8] sm:$0xff]
    %v2714 = vld [vmem:[#allocation12 + $0x1b0] sm:$0xff]
    %v2715 = vld [vmem:[#allocation12 + $0x1b8] sm:$0xff]
    %v2716 = vld [vmem:[#allocation12 + $0x1c0] sm:$0xff]
    %v2717 = vld [vmem:[#allocation12 + $0x1c8] sm:$0xff]
    %v2718 = vld [vmem:[#allocation12 + $0x1d0] sm:$0xff]
    %v2719 = vld [vmem:[#allocation12 + $0x1d8] sm:$0xff]
    %v2720 = vld [vmem:[#allocation12 + $0x1e0] sm:$0xff]
    %v2721 = vld [vmem:[#allocation12 + $0x1e8] sm:$0xff]
    %v2722 = vld [vmem:[#allocation12 + $0x1f0] sm:$0xff]
    %v2723 = vld [vmem:[#allocation12 + $0x1f8] sm:$0xff]
    %v2724 = vld [vmem:[#allocation12 + $0x200] sm:$0xff]
    %v2725 = vld [vmem:[#allocation12 + $0x208] sm:$0xff]
    %v2726 = vld [vmem:[#allocation12 + $0x210] sm:$0xff]
    %v2727 = vld [vmem:[#allocation12 + $0x218] sm:$0xff]
    %v2728 = vld [vmem:[#allocation12 + $0x220] sm:$0xff]
    %v2729 = vld [vmem:[#allocation12 + $0x228] sm:$0xff]
    %v2730 = vld [vmem:[#allocation12 + $0x230] sm:$0xff]
    %v2731 = vld [vmem:[#allocation12 + $0x238] sm:$0xff]
    %v2732 = vld [vmem:[#allocation12 + $0x240] sm:$0xff]
    %v2733 = vld [vmem:[#allocation12 + $0x248] sm:$0xff]
    %v2734 = vld [vmem:[#allocation12 + $0x250] sm:$0xff]
    %v2735 = vld [vmem:[#allocation12 + $0x258] sm:$0xff]
    %v2736 = vld [vmem:[#allocation12 + $0x260] sm:$0xff]
    %v2737 = vld [vmem:[#allocation12 + $0x268] sm:$0xff]
    %v2738 = vld [vmem:[#allocation12 + $0x270] sm:$0xff]
    %v2739 = vld [vmem:[#allocation12 + $0x278] sm:$0xff]
    %v2740 = vld [vmem:[#allocation12 + $0x280] sm:$0xff]
    %v2741 = vld [vmem:[#allocation12 + $0x288] sm:$0xff]
    %v2742 = vld [vmem:[#allocation12 + $0x290] sm:$0xff]
    %v2743 = vld [vmem:[#allocation12 + $0x298] sm:$0xff]
    %v2744 = vld [vmem:[#allocation12 + $0x2a0] sm:$0xff]
    %v2745 = vld [vmem:[#allocation12 + $0x2a8] sm:$0xff]
    %v2746 = vld [vmem:[#allocation12 + $0x2b0] sm:$0xff]
    %v2747 = vld [vmem:[#allocation12 + $0x2b8] sm:$0xff]
    %v2748 = vld [vmem:[#allocation12 + $0x2c0] sm:$0xff]
    %v2749 = vld [vmem:[#allocation12 + $0x2c8] sm:$0xff]
    %v2750 = vld [vmem:[#allocation12 + $0x2d0] sm:$0xff]
    %v2751 = vld [vmem:[#allocation12 + $0x2d8] sm:$0xff]
    %v2752 = vld [vmem:[#allocation12 + $0x2e0] sm:$0xff]
    %v2753 = vld [vmem:[#allocation12 + $0x2e8] sm:$0xff]
    %v2754 = vld [vmem:[#allocation12 + $0x2f0] sm:$0xff]
    %v2755 = vld [vmem:[#allocation12 + $0x2f8] sm:$0xff]
    %v2756 = vld [vmem:[#allocation12 + $0x300] sm:$0xff]
    %v2757 = vld [vmem:[#allocation12 + $0x308] sm:$0xff]
    %v2758 = vld [vmem:[#allocation12 + $0x310] sm:$0xff]
    %v2759 = vld [vmem:[#allocation12 + $0x318] sm:$0xff]
    %v2760 = vld [vmem:[#allocation12 + $0x320] sm:$0xff]
    %v2761 = vld [vmem:[#allocation12 + $0x328] sm:$0xff]
    %v2762 = vld [vmem:[#allocation12 + $0x330] sm:$0xff]
    %v2763 = vld [vmem:[#allocation12 + $0x338] sm:$0xff]
    %v2764 = vld [vmem:[#allocation12 + $0x340] sm:$0xff]
    %v2765 = vld [vmem:[#allocation12 + $0x348] sm:$0xff]
    %v2766 = vld [vmem:[#allocation12 + $0x350] sm:$0xff]
    %v2767 = vld [vmem:[#allocation12 + $0x358] sm:$0xff]
    %v2768 = vld [vmem:[#allocation12 + $0x360] sm:$0xff]
    %v2769 = vld [vmem:[#allocation12 + $0x368] sm:$0xff]
    %v2770 = vld [vmem:[#allocation12 + $0x370] sm:$0xff]
    %v2771 = vld [vmem:[#allocation12 + $0x378] sm:$0xff]
    %v2772 = vld [vmem:[#allocation12 + $0x380] sm:$0xff]
    %v2773 = vld [vmem:[#allocation12 + $0x388] sm:$0xff]
    %v2774 = vld [vmem:[#allocation12 + $0x390] sm:$0xff]
    %v2775 = vld [vmem:[#allocation12 + $0x398] sm:$0xff]
    %v2776 = vld [vmem:[#allocation12 + $0x3a0] sm:$0xff]
    %v2777 = vld [vmem:[#allocation12 + $0x3a8] sm:$0xff]
    %v2778 = vld [vmem:[#allocation12 + $0x3b0] sm:$0xff]
    %v2779 = vld [vmem:[#allocation12 + $0x3b8] sm:$0xff]
    %v2780 = vld [vmem:[#allocation12 + $0x3c0] sm:$0xff]
    %v2781 = vld [vmem:[#allocation12 + $0x3c8] sm:$0xff]
    %v2782 = vld [vmem:[#allocation12 + $0x3d0] sm:$0xff]
    %v2783 = vld [vmem:[#allocation12 + $0x3d8] sm:$0xff]
    %v2784 = vld [vmem:[#allocation12 + $0x3e0] sm:$0xff]
    %v2785 = vld [vmem:[#allocation12 + $0x3e8] sm:$0xff]
    %v2786 = vld [vmem:[#allocation12 + $0x3f0] sm:$0xff]
    %v2787 = vld [vmem:[#allocation12 + $0x3f8] sm:$0xff]
    %v2788 = vld [vmem:[#allocation12 + $0x400] sm:$0xff]
    %v2789 = vld [vmem:[#allocation12 + $0x408] sm:$0xff]
    %v2790 = vld [vmem:[#allocation12 + $0x410] sm:$0xff]
    %v2791 = vld [vmem:[#allocation12 + $0x418] sm:$0xff]
    %v2792 = vld [vmem:[#allocation12 + $0x420] sm:$0xff]
    %v2793 = vld [vmem:[#allocation12 + $0x428] sm:$0xff]
    %v2794 = vld [vmem:[#allocation12 + $0x430] sm:$0xff]
    %v2795 = vld [vmem:[#allocation12 + $0x438] sm:$0xff]
    %v2796 = vld [vmem:[#allocation12 + $0x440] sm:$0xff]
    %v2797 = vld [vmem:[#allocation12 + $0x448] sm:$0xff]
    %v2798 = vld [vmem:[#allocation12 + $0x450] sm:$0xff]
    %v2799 = vld [vmem:[#allocation12 + $0x458] sm:$0xff]
    %v2800 = vld [vmem:[#allocation12 + $0x460] sm:$0xff]
    %v2801 = vld [vmem:[#allocation12 + $0x468] sm:$0xff]
    %v2802 = vld [vmem:[#allocation12 + $0x470] sm:$0xff]
    %v2803 = vld [vmem:[#allocation12 + $0x478] sm:$0xff]
    %v2804 = vld [vmem:[#allocation12 + $0x480] sm:$0xff]
    %v2805 = vld [vmem:[#allocation12 + $0x488] sm:$0xff]
    %v2806 = vld [vmem:[#allocation12 + $0x490] sm:$0xff]
    %v2807 = vld [vmem:[#allocation12 + $0x498] sm:$0xff]
    %v2808 = vld [vmem:[#allocation12 + $0x4a0] sm:$0xff]
    %v2809 = vld [vmem:[#allocation12 + $0x4a8] sm:$0xff]
    %v2810 = vld [vmem:[#allocation12 + $0x4b0] sm:$0xff]
    %v2811 = vld [vmem:[#allocation12 + $0x4b8] sm:$0xff]
    %v2812 = vld [vmem:[#allocation12 + $0x4c0] sm:$0xff]
    %v2813 = vld [vmem:[#allocation12 + $0x4c8] sm:$0xff]
    %v2814 = vld [vmem:[#allocation12 + $0x4d0] sm:$0xff]
    %v2815 = vld [vmem:[#allocation12 + $0x4d8] sm:$0xff]
    %v2816 = vld [vmem:[#allocation12 + $0x4e0] sm:$0xff]
    %v2817 = vld [vmem:[#allocation12 + $0x4e8] sm:$0xff]
    %v2818 = vld [vmem:[#allocation12 + $0x4f0] sm:$0xff]
    %v2819 = vld [vmem:[#allocation12 + $0x4f8] sm:$0xff]
    %v2820 = vld [vmem:[#allocation12 + $0x500] sm:$0xff]
    %v2821 = vld [vmem:[#allocation12 + $0x508] sm:$0xff]
    %v2822 = vld [vmem:[#allocation12 + $0x510] sm:$0xff]
    %v2823 = vld [vmem:[#allocation12 + $0x518] sm:$0xff]
    %v2824 = vld [vmem:[#allocation12 + $0x520] sm:$0xff]
    %v2825 = vld [vmem:[#allocation12 + $0x528] sm:$0xff]
    %v2826 = vld [vmem:[#allocation12 + $0x530] sm:$0xff]
    %v2827 = vld [vmem:[#allocation12 + $0x538] sm:$0xff]
    %v2828 = vld [vmem:[#allocation12 + $0x540] sm:$0xff]
    %v2829 = vld [vmem:[#allocation12 + $0x548] sm:$0xff]
    %v2830 = vld [vmem:[#allocation12 + $0x550] sm:$0xff]
    %v2831 = vld [vmem:[#allocation12 + $0x558] sm:$0xff]
    %v2832 = vld [vmem:[#allocation12 + $0x560] sm:$0xff]
    %v2833 = vld [vmem:[#allocation12 + $0x568] sm:$0xff]
    %v2834 = vld [vmem:[#allocation12 + $0x570] sm:$0xff]
    %v2835 = vld [vmem:[#allocation12 + $0x578] sm:$0xff]
    %v2836 = vld [vmem:[#allocation12 + $0x580] sm:$0xff]
    %v2837 = vld [vmem:[#allocation12 + $0x588] sm:$0xff]
    %v2838 = vld [vmem:[#allocation12 + $0x590] sm:$0xff]
    %v2839 = vld [vmem:[#allocation12 + $0x598] sm:$0xff]
    %v2840 = vld [vmem:[#allocation12 + $0x5a0] sm:$0xff]
    %v2841 = vld [vmem:[#allocation12 + $0x5a8] sm:$0xff]
    %v2842 = vld [vmem:[#allocation12 + $0x5b0] sm:$0xff]
    %v2843 = vld [vmem:[#allocation12 + $0x5b8] sm:$0xff]
    %v2844 = vld [vmem:[#allocation12 + $0x5c0] sm:$0xff]
    %v2845 = vld [vmem:[#allocation12 + $0x5c8] sm:$0xff]
    %v2846 = vld [vmem:[#allocation12 + $0x5d0] sm:$0xff]
    %v2847 = vld [vmem:[#allocation12 + $0x5d8] sm:$0xff]
    %v2848 = vld [vmem:[#allocation12 + $0x5e0] sm:$0xff]
    %v2849 = vld [vmem:[#allocation12 + $0x5e8] sm:$0xff]
    %v2850 = vld [vmem:[#allocation12 + $0x5f0] sm:$0xff]
    %v2851 = vld [vmem:[#allocation12 + $0x5f8] sm:$0xff]
    %v2852 = vld [vmem:[#allocation12 + $0x600] sm:$0xff]
    %v2853 = vld [vmem:[#allocation12 + $0x608] sm:$0xff]
    %v2854 = vld [vmem:[#allocation12 + $0x610] sm:$0xff]
    %v2855 = vld [vmem:[#allocation12 + $0x618] sm:$0xff]
    %v2856 = vld [vmem:[#allocation12 + $0x620] sm:$0xff]
    %v2857 = vld [vmem:[#allocation12 + $0x628] sm:$0xff]
    %v2858 = vld [vmem:[#allocation12 + $0x630] sm:$0xff]
    %v2859 = vld [vmem:[#allocation12 + $0x638] sm:$0xff]
    %v2860 = vld [vmem:[#allocation12 + $0x640] sm:$0xff]
    %v2861 = vld [vmem:[#allocation12 + $0x648] sm:$0xff]
    %v2862 = vld [vmem:[#allocation12 + $0x650] sm:$0xff]
    %v2863 = vld [vmem:[#allocation12 + $0x658] sm:$0xff]
    %v2864 = vld [vmem:[#allocation12 + $0x660] sm:$0xff]
    %v2865 = vld [vmem:[#allocation12 + $0x668] sm:$0xff]
    %v2866 = vld [vmem:[#allocation12 + $0x670] sm:$0xff]
    %v2867 = vld [vmem:[#allocation12 + $0x678] sm:$0xff]
    %v2868 = vld [vmem:[#allocation12 + $0x680] sm:$0xff]
    %v2869 = vld [vmem:[#allocation12 + $0x688] sm:$0xff]
    %v2870 = vld [vmem:[#allocation12 + $0x690] sm:$0xff]
    %v2871 = vld [vmem:[#allocation12 + $0x698] sm:$0xff]
    %v2872 = vld [vmem:[#allocation12 + $0x6a0] sm:$0xff]
    %v2873 = vld [vmem:[#allocation12 + $0x6a8] sm:$0xff]
    %v2874 = vld [vmem:[#allocation12 + $0x6b0] sm:$0xff]
    %v2875 = vld [vmem:[#allocation12 + $0x6b8] sm:$0xff]
    %v2876 = vld [vmem:[#allocation12 + $0x6c0] sm:$0xff]
    %v2877 = vld [vmem:[#allocation12 + $0x6c8] sm:$0xff]
    %v2878 = vld [vmem:[#allocation12 + $0x6d0] sm:$0xff]
    %v2879 = vld [vmem:[#allocation12 + $0x6d8] sm:$0xff]
    %v2880 = vld [vmem:[#allocation12 + $0x6e0] sm:$0xff]
    %v2881 = vld [vmem:[#allocation12 + $0x6e8] sm:$0xff]
    %v2882 = vld [vmem:[#allocation12 + $0x6f0] sm:$0xff]
    %v2883 = vld [vmem:[#allocation12 + $0x6f8] sm:$0xff]
    %v2884 = vld [vmem:[#allocation12 + $0x700] sm:$0xff]
    %v2885 = vld [vmem:[#allocation12 + $0x708] sm:$0xff]
    %v2886 = vld [vmem:[#allocation12 + $0x710] sm:$0xff]
    %v2887 = vld [vmem:[#allocation12 + $0x718] sm:$0xff]
    %v2888 = vld [vmem:[#allocation12 + $0x720] sm:$0xff]
    %v2889 = vld [vmem:[#allocation12 + $0x728] sm:$0xff]
    %v2890 = vld [vmem:[#allocation12 + $0x730] sm:$0xff]
    %v2891 = vld [vmem:[#allocation12 + $0x738] sm:$0xff]
    %v2892 = vld [vmem:[#allocation12 + $0x740] sm:$0xff]
    %v2893 = vld [vmem:[#allocation12 + $0x748] sm:$0xff]
    %v2894 = vld [vmem:[#allocation12 + $0x750] sm:$0xff]
    %v2895 = vld [vmem:[#allocation12 + $0x758] sm:$0xff]
    %v2896 = vld [vmem:[#allocation12 + $0x760] sm:$0xff]
    %v2897 = vld [vmem:[#allocation12 + $0x768] sm:$0xff]
    %v2898 = vld [vmem:[#allocation12 + $0x770] sm:$0xff]
    %v2899 = vld [vmem:[#allocation12 + $0x778] sm:$0xff]
    %v2900 = vld [vmem:[#allocation12 + $0x780] sm:$0xff]
    %v2901 = vld [vmem:[#allocation12 + $0x788] sm:$0xff]
    %v2902 = vld [vmem:[#allocation12 + $0x790] sm:$0xff]
    %v2903 = vld [vmem:[#allocation12 + $0x798] sm:$0xff]
    %v2904 = vld [vmem:[#allocation12 + $0x7a0] sm:$0xff]
    %v2905 = vld [vmem:[#allocation12 + $0x7a8] sm:$0xff]
    %v2906 = vld [vmem:[#allocation12 + $0x7b0] sm:$0xff]
    %v2907 = vld [vmem:[#allocation12 + $0x7b8] sm:$0xff]
    %v2908 = vld [vmem:[#allocation12 + $0x7c0] sm:$0xff]
    %v2909 = vld [vmem:[#allocation12 + $0x7c8] sm:$0xff]
    %v2910 = vld [vmem:[#allocation12 + $0x7d0] sm:$0xff]
    %v2911 = vld [vmem:[#allocation12 + $0x7d8] sm:$0xff]
    %v2912 = vld [vmem:[#allocation12 + $0x7e0] sm:$0xff]
    %v2913 = vld [vmem:[#allocation12 + $0x7e8] sm:$0xff]
    %v2914 = vld [vmem:[#allocation12 + $0x7f0] sm:$0xff]
    %v2915 = vld [vmem:[#allocation12 + $0x7f8] sm:$0xff]
    %v2916 = vld [vmem:[#allocation12 + $0x800] sm:$0xff]
    %v2917 = vld [vmem:[#allocation12 + $0x808] sm:$0xff]
    %v2918 = vld [vmem:[#allocation12 + $0x810] sm:$0xff]
    %v2919 = vld [vmem:[#allocation12 + $0x818] sm:$0xff]
    %v2920 = vld [vmem:[#allocation12 + $0x820] sm:$0xff]
    %v2921 = vld [vmem:[#allocation12 + $0x828] sm:$0xff]
    %v2922 = vld [vmem:[#allocation12 + $0x830] sm:$0xff]
    %v2923 = vld [vmem:[#allocation12 + $0x838] sm:$0xff]
    %v2924 = vld [vmem:[#allocation12 + $0x840] sm:$0xff]
    %v2925 = vld [vmem:[#allocation12 + $0x848] sm:$0xff]
    %v2926 = vld [vmem:[#allocation12 + $0x850] sm:$0xff]
    %v2927 = vld [vmem:[#allocation12 + $0x858] sm:$0xff]
    %v2928 = vld [vmem:[#allocation12 + $0x860] sm:$0xff]
    %v2929 = vld [vmem:[#allocation12 + $0x868] sm:$0xff]
    %v2930 = vld [vmem:[#allocation12 + $0x870] sm:$0xff]
    %v2931 = vld [vmem:[#allocation12 + $0x878] sm:$0xff]
    %v2932 = vld [vmem:[#allocation12 + $0x880] sm:$0xff]
    %v2933 = vld [vmem:[#allocation12 + $0x888] sm:$0xff]
    %v2934 = vld [vmem:[#allocation12 + $0x890] sm:$0xff]
    %v2935 = vld [vmem:[#allocation12 + $0x898] sm:$0xff]
    %v2936 = vld [vmem:[#allocation12 + $0x8a0] sm:$0xff]
    %v2937 = vld [vmem:[#allocation12 + $0x8a8] sm:$0xff]
    %v2938 = vld [vmem:[#allocation12 + $0x8b0] sm:$0xff]
    %v2939 = vld [vmem:[#allocation12 + $0x8b8] sm:$0xff]
    %v2940 = vld [vmem:[#allocation12 + $0x8c0] sm:$0xff]
    %v2941 = vld [vmem:[#allocation12 + $0x8c8] sm:$0xff]
    %v2942 = vld [vmem:[#allocation12 + $0x8d0] sm:$0xff]
    %v2943 = vld [vmem:[#allocation12 + $0x8d8] sm:$0xff]
    %v2944 = vld [vmem:[#allocation12 + $0x8e0] sm:$0xff]
    %v2945 = vld [vmem:[#allocation12 + $0x8e8] sm:$0xff]
    %v2946 = vld [vmem:[#allocation12 + $0x8f0] sm:$0xff]
    %v2947 = vld [vmem:[#allocation12 + $0x8f8] sm:$0xff]
    %v2948 = vld [vmem:[#allocation12 + $0x900] sm:$0xff]
    %v2949 = vld [vmem:[#allocation12 + $0x908] sm:$0xff]
    %v2950 = vld [vmem:[#allocation12 + $0x910] sm:$0xff]
    %v2951 = vld [vmem:[#allocation12 + $0x918] sm:$0xff]
    %v2952 = vld [vmem:[#allocation12 + $0x920] sm:$0xff]
    %v2953 = vld [vmem:[#allocation12 + $0x928] sm:$0xff]
    %v2954 = vld [vmem:[#allocation12 + $0x930] sm:$0xff]
    %v2955 = vld [vmem:[#allocation12 + $0x938] sm:$0xff]
    %v2956 = vld [vmem:[#allocation12 + $0x940] sm:$0xff]
    %v2957 = vld [vmem:[#allocation12 + $0x948] sm:$0xff]
    %v2958 = vld [vmem:[#allocation12 + $0x950] sm:$0xff]
    %v2959 = vld [vmem:[#allocation12 + $0x958] sm:$0xff]
    %v2960 = vld [vmem:[#allocation12 + $0x960] sm:$0xff]
    %v2961 = vld [vmem:[#allocation12 + $0x968] sm:$0xff]
    %v2962 = vld [vmem:[#allocation12 + $0x970] sm:$0xff]
    %v2963 = vld [vmem:[#allocation12 + $0x978] sm:$0xff]
    %v2964 = vld [vmem:[#allocation12 + $0x980] sm:$0xff]
    %v2965 = vld [vmem:[#allocation12 + $0x988] sm:$0xff]
    %v2966 = vld [vmem:[#allocation12 + $0x990] sm:$0xff]
    %v2967 = vld [vmem:[#allocation12 + $0x998] sm:$0xff]
    %v2968 = vld [vmem:[#allocation12 + $0x9a0] sm:$0xff]
    %v2969 = vld [vmem:[#allocation12 + $0x9a8] sm:$0xff]
    %v2970 = vld [vmem:[#allocation12 + $0x9b0] sm:$0xff]
    %v2971 = vld [vmem:[#allocation12 + $0x9b8] sm:$0xff]
    %v2972 = vld [vmem:[#allocation12 + $0x9c0] sm:$0xff]
    %v2973 = vld [vmem:[#allocation12 + $0x9c8] sm:$0xff]
    %v2974 = vld [vmem:[#allocation12 + $0x9d0] sm:$0xff]
    %v2975 = vld [vmem:[#allocation12 + $0x9d8] sm:$0xff]
    %v2976 = vld [vmem:[#allocation12 + $0x9e0] sm:$0xff]
    %v2977 = vld [vmem:[#allocation12 + $0x9e8] sm:$0xff]
    %v2978 = vld [vmem:[#allocation12 + $0x9f0] sm:$0xff]
    %v2979 = vld [vmem:[#allocation12 + $0x9f8] sm:$0xff]
    %v2980 = vld [vmem:[#allocation12 + $0xa00] sm:$0xff]
    %v2981 = vld [vmem:[#allocation12 + $0xa08] sm:$0xff]
    %v2982 = vld [vmem:[#allocation12 + $0xa10] sm:$0xff]
    %v2983 = vld [vmem:[#allocation12 + $0xa18] sm:$0xff]
    %v2984 = vld [vmem:[#allocation12 + $0xa20] sm:$0xff]
    %v2985 = vld [vmem:[#allocation12 + $0xa28] sm:$0xff]
    %v2986 = vld [vmem:[#allocation12 + $0xa30] sm:$0xff]
    %v2987 = vld [vmem:[#allocation12 + $0xa38] sm:$0xff]
    %v2988 = vld [vmem:[#allocation12 + $0xa40] sm:$0xff]
    %v2989 = vld [vmem:[#allocation12 + $0xa48] sm:$0xff]
    %v2990 = vld [vmem:[#allocation12 + $0xa50] sm:$0xff]
    %v2991 = vld [vmem:[#allocation12 + $0xa58] sm:$0xff]
    %v2992 = vld [vmem:[#allocation12 + $0xa60] sm:$0xff]
    %v2993 = vld [vmem:[#allocation12 + $0xa68] sm:$0xff]
    %v2994 = vld [vmem:[#allocation12 + $0xa70] sm:$0xff]
    %v2995 = vld [vmem:[#allocation12 + $0xa78] sm:$0xff]
    %v2996 = vld [vmem:[#allocation12 + $0xa80] sm:$0xff]
    %v2997 = vld [vmem:[#allocation12 + $0xa88] sm:$0xff]
    %v2998 = vld [vmem:[#allocation12 + $0xa90] sm:$0xff]
    %v2999 = vld [vmem:[#allocation12 + $0xa98] sm:$0xff]
    %v3000 = vld [vmem:[#allocation12 + $0xaa0] sm:$0xff]
    %v3001 = vld [vmem:[#allocation12 + $0xaa8] sm:$0xff]
    %v3002 = vld [vmem:[#allocation12 + $0xab0] sm:$0xff]
    %v3003 = vld [vmem:[#allocation12 + $0xab8] sm:$0xff]
    %v3004 = vld [vmem:[#allocation12 + $0xac0] sm:$0xff]
    %v3005 = vld [vmem:[#allocation12 + $0xac8] sm:$0xff]
    %v3006 = vld [vmem:[#allocation12 + $0xad0] sm:$0xff]
    %v3007 = vld [vmem:[#allocation12 + $0xad8] sm:$0xff]
    %v3008 = vld [vmem:[#allocation12 + $0xae0] sm:$0xff]
    %v3009 = vld [vmem:[#allocation12 + $0xae8] sm:$0xff]
    %v3010 = vld [vmem:[#allocation12 + $0xaf0] sm:$0xff]
    %v3011 = vld [vmem:[#allocation12 + $0xaf8] sm:$0xff]
    %v3012 = vld [vmem:[#allocation12 + $0xb00] sm:$0xff]
    %v3013 = vld [vmem:[#allocation12 + $0xb08] sm:$0xff]
    %v3014 = vld [vmem:[#allocation12 + $0xb10] sm:$0xff]
    %v3015 = vld [vmem:[#allocation12 + $0xb18] sm:$0xff]
    %v3016 = vld [vmem:[#allocation12 + $0xb20] sm:$0xff]
    %v3017 = vld [vmem:[#allocation12 + $0xb28] sm:$0xff]
    %v3018 = vld [vmem:[#allocation12 + $0xb30] sm:$0xff]
    %v3019 = vld [vmem:[#allocation12 + $0xb38] sm:$0xff]
    %v3020 = vld [vmem:[#allocation12 + $0xb40] sm:$0xff]
    %v3021 = vld [vmem:[#allocation12 + $0xb48] sm:$0xff]
    %v3022 = vld [vmem:[#allocation12 + $0xb50] sm:$0xff]
    %v3023 = vld [vmem:[#allocation12 + $0xb58] sm:$0xff]
    %v3024 = vld [vmem:[#allocation12 + $0xb60] sm:$0xff]
    %v3025 = vld [vmem:[#allocation12 + $0xb68] sm:$0xff]
    %v3026 = vld [vmem:[#allocation12 + $0xb70] sm:$0xff]
    %v3027 = vld [vmem:[#allocation12 + $0xb78] sm:$0xff]
    %v3028 = vld [vmem:[#allocation12 + $0xb80] sm:$0xff]
    %v3029 = vld [vmem:[#allocation12 + $0xb88] sm:$0xff]
    %v3030 = vld [vmem:[#allocation12 + $0xb90] sm:$0xff]
    %v3031 = vld [vmem:[#allocation12 + $0xb98] sm:$0xff]
    %v3032 = vld [vmem:[#allocation12 + $0xba0] sm:$0xff]
    %v3033 = vld [vmem:[#allocation12 + $0xba8] sm:$0xff]
    %v3034 = vld [vmem:[#allocation12 + $0xbb0] sm:$0xff]
    %v3035 = vld [vmem:[#allocation12 + $0xbb8] sm:$0xff]
    %v3036 = vld [vmem:[#allocation12 + $0xbc0] sm:$0xff]
    %v3037 = vld [vmem:[#allocation12 + $0xbc8] sm:$0xff]
    %v3038 = vld [vmem:[#allocation12 + $0xbd0] sm:$0xff]
    %v3039 = vld [vmem:[#allocation12 + $0xbd8] sm:$0xff]
    %v3040 = vld [vmem:[#allocation12 + $0xbe0] sm:$0xff]
    %v3041 = vld [vmem:[#allocation12 + $0xbe8] sm:$0xff]
    %v3042 = vld [vmem:[#allocation12 + $0xbf0] sm:$0xff]
    %v3043 = vld [vmem:[#allocation12 + $0xbf8] sm:$0xff]
    %v3044 = vld [vmem:[#allocation12 + $0xc00] sm:$0xff]
    %v3045 = vld [vmem:[#allocation12 + $0xc08] sm:$0xff]
    %v3046 = vld [vmem:[#allocation12 + $0xc10] sm:$0xff]
    %v3047 = vld [vmem:[#allocation12 + $0xc18] sm:$0xff]
    %v3048 = vld [vmem:[#allocation12 + $0xc20] sm:$0xff]
    %v3049 = vld [vmem:[#allocation12 + $0xc28] sm:$0xff]
    %v3050 = vld [vmem:[#allocation12 + $0xc30] sm:$0xff]
    %v3051 = vld [vmem:[#allocation12 + $0xc38] sm:$0xff]
    %v3052 = vld [vmem:[#allocation12 + $0xc40] sm:$0xff]
    %v3053 = vld [vmem:[#allocation12 + $0xc48] sm:$0xff]
    %v3054 = vld [vmem:[#allocation12 + $0xc50] sm:$0xff]
    %v3055 = vld [vmem:[#allocation12 + $0xc58] sm:$0xff]
    %v3056 = vld [vmem:[#allocation12 + $0xc60] sm:$0xff]
    %v3057 = vld [vmem:[#allocation12 + $0xc68] sm:$0xff]
    %v3058 = vld [vmem:[#allocation12 + $0xc70] sm:$0xff]
    %v3059 = vld [vmem:[#allocation12 + $0xc78] sm:$0xff]
    %v3060 = vld [vmem:[#allocation12 + $0xc80] sm:$0xff]
    %v3061 = vld [vmem:[#allocation12 + $0xc88] sm:$0xff]
    %v3062 = vld [vmem:[#allocation12 + $0xc90] sm:$0xff]
    %v3063 = vld [vmem:[#allocation12 + $0xc98] sm:$0xff]
    %v3064 = vld [vmem:[#allocation12 + $0xca0] sm:$0xff]
    %v3065 = vld [vmem:[#allocation12 + $0xca8] sm:$0xff]
    %v3066 = vld [vmem:[#allocation12 + $0xcb0] sm:$0xff]
    %v3067 = vld [vmem:[#allocation12 + $0xcb8] sm:$0xff]
    %v3068 = vld [vmem:[#allocation12 + $0xcc0] sm:$0xff]
    %v3069 = vld [vmem:[#allocation12 + $0xcc8] sm:$0xff]
    %v3070 = vld [vmem:[#allocation12 + $0xcd0] sm:$0xff]
    %v3071 = vld [vmem:[#allocation12 + $0xcd8] sm:$0xff]
    %v3072 = vld [vmem:[#allocation12 + $0xce0] sm:$0xff]
    %v3073 = vld [vmem:[#allocation12 + $0xce8] sm:$0xff]
    %v3074 = vld [vmem:[#allocation12 + $0xcf0] sm:$0xff]
    %v3075 = vld [vmem:[#allocation12 + $0xcf8] sm:$0xff]
    %v3076 = vld [vmem:[#allocation12 + $0xd00] sm:$0xff]
    %v3077 = vld [vmem:[#allocation12 + $0xd08] sm:$0xff]
    %v3078 = vld [vmem:[#allocation12 + $0xd10] sm:$0xff]
    %v3079 = vld [vmem:[#allocation12 + $0xd18] sm:$0xff]
    %v3080 = vld [vmem:[#allocation12 + $0xd20] sm:$0xff]
    %v3081 = vld [vmem:[#allocation12 + $0xd28] sm:$0xff]
    %v3082 = vld [vmem:[#allocation12 + $0xd30] sm:$0xff]
    %v3083 = vld [vmem:[#allocation12 + $0xd38] sm:$0xff]
    %v3084 = vld [vmem:[#allocation12 + $0xd40] sm:$0xff]
    %v3085 = vld [vmem:[#allocation12 + $0xd48] sm:$0xff]
    %v3086 = vld [vmem:[#allocation12 + $0xd50] sm:$0xff]
    %v3087 = vld [vmem:[#allocation12 + $0xd58] sm:$0xff]
    %v3088 = vld [vmem:[#allocation12 + $0xd60] sm:$0xff]
    %v3089 = vld [vmem:[#allocation12 + $0xd68] sm:$0xff]
    %v3090 = vld [vmem:[#allocation12 + $0xd70] sm:$0xff]
    %v3091 = vld [vmem:[#allocation12 + $0xd78] sm:$0xff]
    %v3092 = vld [vmem:[#allocation12 + $0xd80] sm:$0xff]
    %v3093 = vld [vmem:[#allocation12 + $0xd88] sm:$0xff]
    %v3094 = vld [vmem:[#allocation12 + $0xd90] sm:$0xff]
    %v3095 = vld [vmem:[#allocation12 + $0xd98] sm:$0xff]
    %v3096 = vld [vmem:[#allocation12 + $0xda0] sm:$0xff]
    %v3097 = vld [vmem:[#allocation12 + $0xda8] sm:$0xff]
    %v3098 = vld [vmem:[#allocation12 + $0xdb0] sm:$0xff]
    %v3099 = vld [vmem:[#allocation12 + $0xdb8] sm:$0xff]
    %v3100 = vld [vmem:[#allocation12 + $0xdc0] sm:$0xff]
    %v3101 = vld [vmem:[#allocation12 + $0xdc8] sm:$0xff]
    %v3102 = vld [vmem:[#allocation12 + $0xdd0] sm:$0xff]
    %v3103 = vld [vmem:[#allocation12 + $0xdd8] sm:$0xff]
    %v3104 = vld [vmem:[#allocation12 + $0xde0] sm:$0xff]
    %v3105 = vld [vmem:[#allocation12 + $0xde8] sm:$0xff]
    %v3106 = vld [vmem:[#allocation12 + $0xdf0] sm:$0xff]
    %v3107 = vld [vmem:[#allocation12 + $0xdf8] sm:$0xff]
    %v3108 = vld [vmem:[#allocation12 + $0xe00] sm:$0xff]
    %v3109 = vld [vmem:[#allocation12 + $0xe08] sm:$0xff]
    %v3110 = vld [vmem:[#allocation12 + $0xe10] sm:$0xff]
    %v3111 = vld [vmem:[#allocation12 + $0xe18] sm:$0xff]
    %v3112 = vld [vmem:[#allocation12 + $0xe20] sm:$0xff]
    %v3113 = vld [vmem:[#allocation12 + $0xe28] sm:$0xff]
    %v3114 = vld [vmem:[#allocation12 + $0xe30] sm:$0xff]
    %v3115 = vld [vmem:[#allocation12 + $0xe38] sm:$0xff]
    %v3116 = vld [vmem:[#allocation12 + $0xe40] sm:$0xff]
    %v3117 = vld [vmem:[#allocation12 + $0xe48] sm:$0xff]
    %v3118 = vld [vmem:[#allocation12 + $0xe50] sm:$0xff]
    %v3119 = vld [vmem:[#allocation12 + $0xe58] sm:$0xff]
    %v3120 = vld [vmem:[#allocation12 + $0xe60] sm:$0xff]
    %v3121 = vld [vmem:[#allocation12 + $0xe68] sm:$0xff]
    %v3122 = vld [vmem:[#allocation12 + $0xe70] sm:$0xff]
    %v3123 = vld [vmem:[#allocation12 + $0xe78] sm:$0xff]
    %v3124 = vld [vmem:[#allocation12 + $0xe80] sm:$0xff]
    %v3125 = vld [vmem:[#allocation12 + $0xe88] sm:$0xff]
    %v3126 = vld [vmem:[#allocation12 + $0xe90] sm:$0xff]
    %v3127 = vld [vmem:[#allocation12 + $0xe98] sm:$0xff]
    %v3128 = vld [vmem:[#allocation12 + $0xea0] sm:$0xff]
    %v3129 = vld [vmem:[#allocation12 + $0xea8] sm:$0xff]
    %v3130 = vld [vmem:[#allocation12 + $0xeb0] sm:$0xff]
    %v3131 = vld [vmem:[#allocation12 + $0xeb8] sm:$0xff]
    %v3132 = vld [vmem:[#allocation12 + $0xec0] sm:$0xff]
    %v3133 = vld [vmem:[#allocation12 + $0xec8] sm:$0xff]
    %v3134 = vld [vmem:[#allocation12 + $0xed0] sm:$0xff]
    %v3135 = vld [vmem:[#allocation12 + $0xed8] sm:$0xff]
    %v3136 = vld [vmem:[#allocation12 + $0xee0] sm:$0xff]
    %v3137 = vld [vmem:[#allocation12 + $0xee8] sm:$0xff]
    %v3138 = vld [vmem:[#allocation12 + $0xef0] sm:$0xff]
    %v3139 = vld [vmem:[#allocation12 + $0xef8] sm:$0xff]
    %v3140 = vld [vmem:[#allocation12 + $0xf00] sm:$0xff]
    %v3141 = vld [vmem:[#allocation12 + $0xf08] sm:$0xff]
    %v3142 = vld [vmem:[#allocation12 + $0xf10] sm:$0xff]
    %v3143 = vld [vmem:[#allocation12 + $0xf18] sm:$0xff]
    %v3144 = vld [vmem:[#allocation12 + $0xf20] sm:$0xff]
    %v3145 = vld [vmem:[#allocation12 + $0xf28] sm:$0xff]
    %v3146 = vld [vmem:[#allocation12 + $0xf30] sm:$0xff]
    %v3147 = vld [vmem:[#allocation12 + $0xf38] sm:$0xff]
    %v3148 = vld [vmem:[#allocation12 + $0xf40] sm:$0xff]
    %v3149 = vld [vmem:[#allocation12 + $0xf48] sm:$0xff]
    %v3150 = vld [vmem:[#allocation12 + $0xf50] sm:$0xff]
    %v3151 = vld [vmem:[#allocation12 + $0xf58] sm:$0xff]
    %v3152 = vld [vmem:[#allocation12 + $0xf60] sm:$0xff]
    %v3153 = vld [vmem:[#allocation12 + $0xf68] sm:$0xff]
    %v3154 = vld [vmem:[#allocation12 + $0xf70] sm:$0xff]
    %v3155 = vld [vmem:[#allocation12 + $0xf78] sm:$0xff]
    %v3156 = vld [vmem:[#allocation12 + $0xf80] sm:$0xff]
    %v3157 = vld [vmem:[#allocation12 + $0xf88] sm:$0xff]
    %v3158 = vld [vmem:[#allocation12 + $0xf90] sm:$0xff]
    %v3159 = vld [vmem:[#allocation12 + $0xf98] sm:$0xff]
    %v3160 = vld [vmem:[#allocation12 + $0xfa0] sm:$0xff]
    %v3161 = vld [vmem:[#allocation12 + $0xfa8] sm:$0xff]
    %v3162 = vld [vmem:[#allocation12 + $0xfb0] sm:$0xff]
    %v3163 = vld [vmem:[#allocation12 + $0xfb8] sm:$0xff]
    %v3164 = vld [vmem:[#allocation12 + $0xfc0] sm:$0xff]
    %v3165 = vld [vmem:[#allocation12 + $0xfc8] sm:$0xff]
    %v3166 = vld [vmem:[#allocation12 + $0xfd0] sm:$0xff]
    %v3167 = vld [vmem:[#allocation12 + $0xfd8] sm:$0xff]
    %v3168 = vld [vmem:[#allocation12 + $0xfe0] sm:$0xff]
    %v3169 = vld [vmem:[#allocation12 + $0xfe8] sm:$0xff]
    %v3170 = vld [vmem:[#allocation12 + $0xff0] sm:$0xff]
    %v3171 = vld [vmem:[#allocation12 + $0xff8] sm:$0xff]
    %v3172 = vld [vmem:[#allocation13] sm:$0xff]
    %v3174 = vlaneseq
    %v3175 = vshrl.u32 %v3174, 7
    %v3176 = vsub.s32 0, %v3175
    %v3177 = vrot.slane %v3172, %v3176
    %v3178 = vlaneseq
    %v3179 = vshrl.u32 %v3178, 7
    %v3180 = vsub.s32 1, %v3179
    %v3181 = vrot.slane %v3172, %v3180
    %v3182 = vlaneseq
    %v3183 = vshrl.u32 %v3182, 7
    %v3184 = vsub.s32 2, %v3183
    %v3185 = vrot.slane %v3172, %v3184
    %v3186 = vlaneseq
    %v3187 = vshrl.u32 %v3186, 7
    %v3188 = vsub.s32 3, %v3187
    %v3189 = vrot.slane %v3172, %v3188
    %v3190 = vlaneseq
    %v3191 = vshrl.u32 %v3190, 7
    %v3192 = vsub.s32 4, %v3191
    %v3193 = vrot.slane %v3172, %v3192
    %v3194 = vlaneseq
    %v3195 = vshrl.u32 %v3194, 7
    %v3196 = vsub.s32 5, %v3195
    %v3197 = vrot.slane %v3172, %v3196
    %v3198 = vlaneseq
    %v3199 = vshrl.u32 %v3198, 7
    %v3200 = vsub.s32 6, %v3199
    %v3201 = vrot.slane %v3172, %v3200
    %v3202 = vlaneseq
    %v3203 = vshrl.u32 %v3202, 7
    %v3204 = vsub.s32 7, %v3203
    %v3205 = vrot.slane %v3172, %v3204
    %v3726 = vunpack.c.l.b16 %v2660
    %v3727 = vunpack.c.h.b16 %v2660
    %v3728 = vunpack.c.l.b16 %v2661
    %v3729 = vunpack.c.h.b16 %v2661
    %v3730 = vunpack.c.l.b16 %v2662
    %v3731 = vunpack.c.h.b16 %v2662
    %v3732 = vunpack.c.l.b16 %v2663
    %v3733 = vunpack.c.h.b16 %v2663
    %v3734 = vunpack.c.l.b16 %v2664
    %v3735 = vunpack.c.h.b16 %v2664
    %v3736 = vunpack.c.l.b16 %v2665
    %v3737 = vunpack.c.h.b16 %v2665
    %v3738 = vunpack.c.l.b16 %v2666
    %v3739 = vunpack.c.h.b16 %v2666
    %v3740 = vunpack.c.l.b16 %v2667
    %v3741 = vunpack.c.h.b16 %v2667
    %v3742 = vunpack.c.l.b16 %v2668
    %v3743 = vunpack.c.h.b16 %v2668
    %v3744 = vunpack.c.l.b16 %v2669
    %v3745 = vunpack.c.h.b16 %v2669
    %v3746 = vunpack.c.l.b16 %v2670
    %v3747 = vunpack.c.h.b16 %v2670
    %v3748 = vunpack.c.l.b16 %v2671
    %v3749 = vunpack.c.h.b16 %v2671
    %v3750 = vunpack.c.l.b16 %v2672
    %v3751 = vunpack.c.h.b16 %v2672
    %v3752 = vunpack.c.l.b16 %v2673
    %v3753 = vunpack.c.h.b16 %v2673
    %v3754 = vunpack.c.l.b16 %v2674
    %v3755 = vunpack.c.h.b16 %v2674
    %v3756 = vunpack.c.l.b16 %v2675
    %v3757 = vunpack.c.h.b16 %v2675
    %v3758 = vunpack.c.l.b16 %v2676
    %v3759 = vunpack.c.h.b16 %v2676
    %v3760 = vunpack.c.l.b16 %v2677
    %v3761 = vunpack.c.h.b16 %v2677
    %v3762 = vunpack.c.l.b16 %v2678
    %v3763 = vunpack.c.h.b16 %v2678
    %v3764 = vunpack.c.l.b16 %v2679
    %v3765 = vunpack.c.h.b16 %v2679
    %v3766 = vunpack.c.l.b16 %v2680
    %v3767 = vunpack.c.h.b16 %v2680
    %v3768 = vunpack.c.l.b16 %v2681
    %v3769 = vunpack.c.h.b16 %v2681
    %v3770 = vunpack.c.l.b16 %v2682
    %v3771 = vunpack.c.h.b16 %v2682
    %v3772 = vunpack.c.l.b16 %v2683
    %v3773 = vunpack.c.h.b16 %v2683
    %v3774 = vunpack.c.l.b16 %v2684
    %v3775 = vunpack.c.h.b16 %v2684
    %v3776 = vunpack.c.l.b16 %v2685
    %v3777 = vunpack.c.h.b16 %v2685
    %v3778 = vunpack.c.l.b16 %v2686
    %v3779 = vunpack.c.h.b16 %v2686
    %v3780 = vunpack.c.l.b16 %v2687
    %v3781 = vunpack.c.h.b16 %v2687
    %v3782 = vunpack.c.l.b16 %v2688
    %v3783 = vunpack.c.h.b16 %v2688
    %v3784 = vunpack.c.l.b16 %v2689
    %v3785 = vunpack.c.h.b16 %v2689
    %v3786 = vunpack.c.l.b16 %v2690
    %v3787 = vunpack.c.h.b16 %v2690
    %v3788 = vunpack.c.l.b16 %v2691
    %v3789 = vunpack.c.h.b16 %v2691
    %v3790 = vunpack.c.l.b16 %v2692
    %v3791 = vunpack.c.h.b16 %v2692
    %v3792 = vunpack.c.l.b16 %v2693
    %v3793 = vunpack.c.h.b16 %v2693
    %v3794 = vunpack.c.l.b16 %v2694
    %v3795 = vunpack.c.h.b16 %v2694
    %v3796 = vunpack.c.l.b16 %v2695
    %v3797 = vunpack.c.h.b16 %v2695
    %v3798 = vunpack.c.l.b16 %v2696
    %v3799 = vunpack.c.h.b16 %v2696
    %v3800 = vunpack.c.l.b16 %v2697
    %v3801 = vunpack.c.h.b16 %v2697
    %v3802 = vunpack.c.l.b16 %v2698
    %v3803 = vunpack.c.h.b16 %v2698
    %v3804 = vunpack.c.l.b16 %v2699
    %v3805 = vunpack.c.h.b16 %v2699
    %v3806 = vunpack.c.l.b16 %v2700
    %v3807 = vunpack.c.h.b16 %v2700
    %v3808 = vunpack.c.l.b16 %v2701
    %v3809 = vunpack.c.h.b16 %v2701
    %v3810 = vunpack.c.l.b16 %v2702
    %v3811 = vunpack.c.h.b16 %v2702
    %v3812 = vunpack.c.l.b16 %v2703
    %v3813 = vunpack.c.h.b16 %v2703
    %v3814 = vunpack.c.l.b16 %v2704
    %v3815 = vunpack.c.h.b16 %v2704
    %v3816 = vunpack.c.l.b16 %v2705
    %v3817 = vunpack.c.h.b16 %v2705
    %v3818 = vunpack.c.l.b16 %v2706
    %v3819 = vunpack.c.h.b16 %v2706
    %v3820 = vunpack.c.l.b16 %v2707
    %v3821 = vunpack.c.h.b16 %v2707
    %v3822 = vunpack.c.l.b16 %v2708
    %v3823 = vunpack.c.h.b16 %v2708
    %v3824 = vunpack.c.l.b16 %v2709
    %v3825 = vunpack.c.h.b16 %v2709
    %v3826 = vunpack.c.l.b16 %v2710
    %v3827 = vunpack.c.h.b16 %v2710
    %v3828 = vunpack.c.l.b16 %v2711
    %v3829 = vunpack.c.h.b16 %v2711
    %v3830 = vunpack.c.l.b16 %v2712
    %v3831 = vunpack.c.h.b16 %v2712
    %v3832 = vunpack.c.l.b16 %v2713
    %v3833 = vunpack.c.h.b16 %v2713
    %v3834 = vunpack.c.l.b16 %v2714
    %v3835 = vunpack.c.h.b16 %v2714
    %v3836 = vunpack.c.l.b16 %v2715
    %v3837 = vunpack.c.h.b16 %v2715
    %v3838 = vunpack.c.l.b16 %v2716
    %v3839 = vunpack.c.h.b16 %v2716
    %v3840 = vunpack.c.l.b16 %v2717
    %v3841 = vunpack.c.h.b16 %v2717
    %v3842 = vunpack.c.l.b16 %v2718
    %v3843 = vunpack.c.h.b16 %v2718
    %v3844 = vunpack.c.l.b16 %v2719
    %v3845 = vunpack.c.h.b16 %v2719
    %v3846 = vunpack.c.l.b16 %v2720
    %v3847 = vunpack.c.h.b16 %v2720
    %v3848 = vunpack.c.l.b16 %v2721
    %v3849 = vunpack.c.h.b16 %v2721
    %v3850 = vunpack.c.l.b16 %v2722
    %v3851 = vunpack.c.h.b16 %v2722
    %v3852 = vunpack.c.l.b16 %v2723
    %v3853 = vunpack.c.h.b16 %v2723
    %v3854 = vunpack.c.l.b16 %v2724
    %v3855 = vunpack.c.h.b16 %v2724
    %v3856 = vunpack.c.l.b16 %v2725
    %v3857 = vunpack.c.h.b16 %v2725
    %v3858 = vunpack.c.l.b16 %v2726
    %v3859 = vunpack.c.h.b16 %v2726
    %v3860 = vunpack.c.l.b16 %v2727
    %v3861 = vunpack.c.h.b16 %v2727
    %v3862 = vunpack.c.l.b16 %v2728
    %v3863 = vunpack.c.h.b16 %v2728
    %v3864 = vunpack.c.l.b16 %v2729
    %v3865 = vunpack.c.h.b16 %v2729
    %v3866 = vunpack.c.l.b16 %v2730
    %v3867 = vunpack.c.h.b16 %v2730
    %v3868 = vunpack.c.l.b16 %v2731
    %v3869 = vunpack.c.h.b16 %v2731
    %v3870 = vunpack.c.l.b16 %v2732
    %v3871 = vunpack.c.h.b16 %v2732
    %v3872 = vunpack.c.l.b16 %v2733
    %v3873 = vunpack.c.h.b16 %v2733
    %v3874 = vunpack.c.l.b16 %v2734
    %v3875 = vunpack.c.h.b16 %v2734
    %v3876 = vunpack.c.l.b16 %v2735
    %v3877 = vunpack.c.h.b16 %v2735
    %v3878 = vunpack.c.l.b16 %v2736
    %v3879 = vunpack.c.h.b16 %v2736
    %v3880 = vunpack.c.l.b16 %v2737
    %v3881 = vunpack.c.h.b16 %v2737
    %v3882 = vunpack.c.l.b16 %v2738
    %v3883 = vunpack.c.h.b16 %v2738
    %v3884 = vunpack.c.l.b16 %v2739
    %v3885 = vunpack.c.h.b16 %v2739
    %v3886 = vunpack.c.l.b16 %v2740
    %v3887 = vunpack.c.h.b16 %v2740
    %v3888 = vunpack.c.l.b16 %v2741
    %v3889 = vunpack.c.h.b16 %v2741
    %v3890 = vunpack.c.l.b16 %v2742
    %v3891 = vunpack.c.h.b16 %v2742
    %v3892 = vunpack.c.l.b16 %v2743
    %v3893 = vunpack.c.h.b16 %v2743
    %v3894 = vunpack.c.l.b16 %v2744
    %v3895 = vunpack.c.h.b16 %v2744
    %v3896 = vunpack.c.l.b16 %v2745
    %v3897 = vunpack.c.h.b16 %v2745
    %v3898 = vunpack.c.l.b16 %v2746
    %v3899 = vunpack.c.h.b16 %v2746
    %v3900 = vunpack.c.l.b16 %v2747
    %v3901 = vunpack.c.h.b16 %v2747
    %v3902 = vunpack.c.l.b16 %v2748
    %v3903 = vunpack.c.h.b16 %v2748
    %v3904 = vunpack.c.l.b16 %v2749
    %v3905 = vunpack.c.h.b16 %v2749
    %v3906 = vunpack.c.l.b16 %v2750
    %v3907 = vunpack.c.h.b16 %v2750
    %v3908 = vunpack.c.l.b16 %v2751
    %v3909 = vunpack.c.h.b16 %v2751
    %v3910 = vunpack.c.l.b16 %v2752
    %v3911 = vunpack.c.h.b16 %v2752
    %v3912 = vunpack.c.l.b16 %v2753
    %v3913 = vunpack.c.h.b16 %v2753
    %v3914 = vunpack.c.l.b16 %v2754
    %v3915 = vunpack.c.h.b16 %v2754
    %v3916 = vunpack.c.l.b16 %v2755
    %v3917 = vunpack.c.h.b16 %v2755
    %v3918 = vunpack.c.l.b16 %v2756
    %v3919 = vunpack.c.h.b16 %v2756
    %v3920 = vunpack.c.l.b16 %v2757
    %v3921 = vunpack.c.h.b16 %v2757
    %v3922 = vunpack.c.l.b16 %v2758
    %v3923 = vunpack.c.h.b16 %v2758
    %v3924 = vunpack.c.l.b16 %v2759
    %v3925 = vunpack.c.h.b16 %v2759
    %v3926 = vunpack.c.l.b16 %v2760
    %v3927 = vunpack.c.h.b16 %v2760
    %v3928 = vunpack.c.l.b16 %v2761
    %v3929 = vunpack.c.h.b16 %v2761
    %v3930 = vunpack.c.l.b16 %v2762
    %v3931 = vunpack.c.h.b16 %v2762
    %v3932 = vunpack.c.l.b16 %v2763
    %v3933 = vunpack.c.h.b16 %v2763
    %v3934 = vunpack.c.l.b16 %v2764
    %v3935 = vunpack.c.h.b16 %v2764
    %v3936 = vunpack.c.l.b16 %v2765
    %v3937 = vunpack.c.h.b16 %v2765
    %v3938 = vunpack.c.l.b16 %v2766
    %v3939 = vunpack.c.h.b16 %v2766
    %v3940 = vunpack.c.l.b16 %v2767
    %v3941 = vunpack.c.h.b16 %v2767
    %v3942 = vunpack.c.l.b16 %v2768
    %v3943 = vunpack.c.h.b16 %v2768
    %v3944 = vunpack.c.l.b16 %v2769
    %v3945 = vunpack.c.h.b16 %v2769
    %v3946 = vunpack.c.l.b16 %v2770
    %v3947 = vunpack.c.h.b16 %v2770
    %v3948 = vunpack.c.l.b16 %v2771
    %v3949 = vunpack.c.h.b16 %v2771
    %v3950 = vunpack.c.l.b16 %v2772
    %v3951 = vunpack.c.h.b16 %v2772
    %v3952 = vunpack.c.l.b16 %v2773
    %v3953 = vunpack.c.h.b16 %v2773
    %v3954 = vunpack.c.l.b16 %v2774
    %v3955 = vunpack.c.h.b16 %v2774
    %v3956 = vunpack.c.l.b16 %v2775
    %v3957 = vunpack.c.h.b16 %v2775
    %v3958 = vunpack.c.l.b16 %v2776
    %v3959 = vunpack.c.h.b16 %v2776
    %v3960 = vunpack.c.l.b16 %v2777
    %v3961 = vunpack.c.h.b16 %v2777
    %v3962 = vunpack.c.l.b16 %v2778
    %v3963 = vunpack.c.h.b16 %v2778
    %v3964 = vunpack.c.l.b16 %v2779
    %v3965 = vunpack.c.h.b16 %v2779
    %v3966 = vunpack.c.l.b16 %v2780
    %v3967 = vunpack.c.h.b16 %v2780
    %v3968 = vunpack.c.l.b16 %v2781
    %v3969 = vunpack.c.h.b16 %v2781
    %v3970 = vunpack.c.l.b16 %v2782
    %v3971 = vunpack.c.h.b16 %v2782
    %v3972 = vunpack.c.l.b16 %v2783
    %v3973 = vunpack.c.h.b16 %v2783
    %v3974 = vunpack.c.l.b16 %v2784
    %v3975 = vunpack.c.h.b16 %v2784
    %v3976 = vunpack.c.l.b16 %v2785
    %v3977 = vunpack.c.h.b16 %v2785
    %v3978 = vunpack.c.l.b16 %v2786
    %v3979 = vunpack.c.h.b16 %v2786
    %v3980 = vunpack.c.l.b16 %v2787
    %v3981 = vunpack.c.h.b16 %v2787
    %v3982 = vunpack.c.l.b16 %v2788
    %v3983 = vunpack.c.h.b16 %v2788
    %v3984 = vunpack.c.l.b16 %v2789
    %v3985 = vunpack.c.h.b16 %v2789
    %v3986 = vunpack.c.l.b16 %v2790
    %v3987 = vunpack.c.h.b16 %v2790
    %v3988 = vunpack.c.l.b16 %v2791
    %v3989 = vunpack.c.h.b16 %v2791
    %v3990 = vunpack.c.l.b16 %v2792
    %v3991 = vunpack.c.h.b16 %v2792
    %v3992 = vunpack.c.l.b16 %v2793
    %v3993 = vunpack.c.h.b16 %v2793
    %v3994 = vunpack.c.l.b16 %v2794
    %v3995 = vunpack.c.h.b16 %v2794
    %v3996 = vunpack.c.l.b16 %v2795
    %v3997 = vunpack.c.h.b16 %v2795
    %v3998 = vunpack.c.l.b16 %v2796
    %v3999 = vunpack.c.h.b16 %v2796
    %v4000 = vunpack.c.l.b16 %v2797
    %v4001 = vunpack.c.h.b16 %v2797
    %v4002 = vunpack.c.l.b16 %v2798
    %v4003 = vunpack.c.h.b16 %v2798
    %v4004 = vunpack.c.l.b16 %v2799
    %v4005 = vunpack.c.h.b16 %v2799
    %v4006 = vunpack.c.l.b16 %v2800
    %v4007 = vunpack.c.h.b16 %v2800
    %v4008 = vunpack.c.l.b16 %v2801
    %v4009 = vunpack.c.h.b16 %v2801
    %v4010 = vunpack.c.l.b16 %v2802
    %v4011 = vunpack.c.h.b16 %v2802
    %v4012 = vunpack.c.l.b16 %v2803
    %v4013 = vunpack.c.h.b16 %v2803
    %v4014 = vunpack.c.l.b16 %v2804
    %v4015 = vunpack.c.h.b16 %v2804
    %v4016 = vunpack.c.l.b16 %v2805
    %v4017 = vunpack.c.h.b16 %v2805
    %v4018 = vunpack.c.l.b16 %v2806
    %v4019 = vunpack.c.h.b16 %v2806
    %v4020 = vunpack.c.l.b16 %v2807
    %v4021 = vunpack.c.h.b16 %v2807
    %v4022 = vunpack.c.l.b16 %v2808
    %v4023 = vunpack.c.h.b16 %v2808
    %v4024 = vunpack.c.l.b16 %v2809
    %v4025 = vunpack.c.h.b16 %v2809
    %v4026 = vunpack.c.l.b16 %v2810
    %v4027 = vunpack.c.h.b16 %v2810
    %v4028 = vunpack.c.l.b16 %v2811
    %v4029 = vunpack.c.h.b16 %v2811
    %v4030 = vunpack.c.l.b16 %v2812
    %v4031 = vunpack.c.h.b16 %v2812
    %v4032 = vunpack.c.l.b16 %v2813
    %v4033 = vunpack.c.h.b16 %v2813
    %v4034 = vunpack.c.l.b16 %v2814
    %v4035 = vunpack.c.h.b16 %v2814
    %v4036 = vunpack.c.l.b16 %v2815
    %v4037 = vunpack.c.h.b16 %v2815
    %v4038 = vunpack.c.l.b16 %v2816
    %v4039 = vunpack.c.h.b16 %v2816
    %v4040 = vunpack.c.l.b16 %v2817
    %v4041 = vunpack.c.h.b16 %v2817
    %v4042 = vunpack.c.l.b16 %v2818
    %v4043 = vunpack.c.h.b16 %v2818
    %v4044 = vunpack.c.l.b16 %v2819
    %v4045 = vunpack.c.h.b16 %v2819
    %v4046 = vunpack.c.l.b16 %v2820
    %v4047 = vunpack.c.h.b16 %v2820
    %v4048 = vunpack.c.l.b16 %v2821
    %v4049 = vunpack.c.h.b16 %v2821
    %v4050 = vunpack.c.l.b16 %v2822
    %v4051 = vunpack.c.h.b16 %v2822
    %v4052 = vunpack.c.l.b16 %v2823
    %v4053 = vunpack.c.h.b16 %v2823
    %v4054 = vunpack.c.l.b16 %v2824
    %v4055 = vunpack.c.h.b16 %v2824
    %v4056 = vunpack.c.l.b16 %v2825
    %v4057 = vunpack.c.h.b16 %v2825
    %v4058 = vunpack.c.l.b16 %v2826
    %v4059 = vunpack.c.h.b16 %v2826
    %v4060 = vunpack.c.l.b16 %v2827
    %v4061 = vunpack.c.h.b16 %v2827
    %v4062 = vunpack.c.l.b16 %v2828
    %v4063 = vunpack.c.h.b16 %v2828
    %v4064 = vunpack.c.l.b16 %v2829
    %v4065 = vunpack.c.h.b16 %v2829
    %v4066 = vunpack.c.l.b16 %v2830
    %v4067 = vunpack.c.h.b16 %v2830
    %v4068 = vunpack.c.l.b16 %v2831
    %v4069 = vunpack.c.h.b16 %v2831
    %v4070 = vunpack.c.l.b16 %v2832
    %v4071 = vunpack.c.h.b16 %v2832
    %v4072 = vunpack.c.l.b16 %v2833
    %v4073 = vunpack.c.h.b16 %v2833
    %v4074 = vunpack.c.l.b16 %v2834
    %v4075 = vunpack.c.h.b16 %v2834
    %v4076 = vunpack.c.l.b16 %v2835
    %v4077 = vunpack.c.h.b16 %v2835
    %v4078 = vunpack.c.l.b16 %v2836
    %v4079 = vunpack.c.h.b16 %v2836
    %v4080 = vunpack.c.l.b16 %v2837
    %v4081 = vunpack.c.h.b16 %v2837
    %v4082 = vunpack.c.l.b16 %v2838
    %v4083 = vunpack.c.h.b16 %v2838
    %v4084 = vunpack.c.l.b16 %v2839
    %v4085 = vunpack.c.h.b16 %v2839
    %v4086 = vunpack.c.l.b16 %v2840
    %v4087 = vunpack.c.h.b16 %v2840
    %v4088 = vunpack.c.l.b16 %v2841
    %v4089 = vunpack.c.h.b16 %v2841
    %v4090 = vunpack.c.l.b16 %v2842
    %v4091 = vunpack.c.h.b16 %v2842
    %v4092 = vunpack.c.l.b16 %v2843
    %v4093 = vunpack.c.h.b16 %v2843
    %v4094 = vunpack.c.l.b16 %v2844
    %v4095 = vunpack.c.h.b16 %v2844
    %v4096 = vunpack.c.l.b16 %v2845
    %v4097 = vunpack.c.h.b16 %v2845
    %v4098 = vunpack.c.l.b16 %v2846
    %v4099 = vunpack.c.h.b16 %v2846
    %v4100 = vunpack.c.l.b16 %v2847
    %v4101 = vunpack.c.h.b16 %v2847
    %v4102 = vunpack.c.l.b16 %v2848
    %v4103 = vunpack.c.h.b16 %v2848
    %v4104 = vunpack.c.l.b16 %v2849
    %v4105 = vunpack.c.h.b16 %v2849
    %v4106 = vunpack.c.l.b16 %v2850
    %v4107 = vunpack.c.h.b16 %v2850
    %v4108 = vunpack.c.l.b16 %v2851
    %v4109 = vunpack.c.h.b16 %v2851
    %v4110 = vunpack.c.l.b16 %v2852
    %v4111 = vunpack.c.h.b16 %v2852
    %v4112 = vunpack.c.l.b16 %v2853
    %v4113 = vunpack.c.h.b16 %v2853
    %v4114 = vunpack.c.l.b16 %v2854
    %v4115 = vunpack.c.h.b16 %v2854
    %v4116 = vunpack.c.l.b16 %v2855
    %v4117 = vunpack.c.h.b16 %v2855
    %v4118 = vunpack.c.l.b16 %v2856
    %v4119 = vunpack.c.h.b16 %v2856
    %v4120 = vunpack.c.l.b16 %v2857
    %v4121 = vunpack.c.h.b16 %v2857
    %v4122 = vunpack.c.l.b16 %v2858
    %v4123 = vunpack.c.h.b16 %v2858
    %v4124 = vunpack.c.l.b16 %v2859
    %v4125 = vunpack.c.h.b16 %v2859
    %v4126 = vunpack.c.l.b16 %v2860
    %v4127 = vunpack.c.h.b16 %v2860
    %v4128 = vunpack.c.l.b16 %v2861
    %v4129 = vunpack.c.h.b16 %v2861
    %v4130 = vunpack.c.l.b16 %v2862
    %v4131 = vunpack.c.h.b16 %v2862
    %v4132 = vunpack.c.l.b16 %v2863
    %v4133 = vunpack.c.h.b16 %v2863
    %v4134 = vunpack.c.l.b16 %v2864
    %v4135 = vunpack.c.h.b16 %v2864
    %v4136 = vunpack.c.l.b16 %v2865
    %v4137 = vunpack.c.h.b16 %v2865
    %v4138 = vunpack.c.l.b16 %v2866
    %v4139 = vunpack.c.h.b16 %v2866
    %v4140 = vunpack.c.l.b16 %v2867
    %v4141 = vunpack.c.h.b16 %v2867
    %v4142 = vunpack.c.l.b16 %v2868
    %v4143 = vunpack.c.h.b16 %v2868
    %v4144 = vunpack.c.l.b16 %v2869
    %v4145 = vunpack.c.h.b16 %v2869
    %v4146 = vunpack.c.l.b16 %v2870
    %v4147 = vunpack.c.h.b16 %v2870
    %v4148 = vunpack.c.l.b16 %v2871
    %v4149 = vunpack.c.h.b16 %v2871
    %v4150 = vunpack.c.l.b16 %v2872
    %v4151 = vunpack.c.h.b16 %v2872
    %v4152 = vunpack.c.l.b16 %v2873
    %v4153 = vunpack.c.h.b16 %v2873
    %v4154 = vunpack.c.l.b16 %v2874
    %v4155 = vunpack.c.h.b16 %v2874
    %v4156 = vunpack.c.l.b16 %v2875
    %v4157 = vunpack.c.h.b16 %v2875
    %v4158 = vunpack.c.l.b16 %v2876
    %v4159 = vunpack.c.h.b16 %v2876
    %v4160 = vunpack.c.l.b16 %v2877
    %v4161 = vunpack.c.h.b16 %v2877
    %v4162 = vunpack.c.l.b16 %v2878
    %v4163 = vunpack.c.h.b16 %v2878
    %v4164 = vunpack.c.l.b16 %v2879
    %v4165 = vunpack.c.h.b16 %v2879
    %v4166 = vunpack.c.l.b16 %v2880
    %v4167 = vunpack.c.h.b16 %v2880
    %v4168 = vunpack.c.l.b16 %v2881
    %v4169 = vunpack.c.h.b16 %v2881
    %v4170 = vunpack.c.l.b16 %v2882
    %v4171 = vunpack.c.h.b16 %v2882
    %v4172 = vunpack.c.l.b16 %v2883
    %v4173 = vunpack.c.h.b16 %v2883
    %v4174 = vunpack.c.l.b16 %v2884
    %v4175 = vunpack.c.h.b16 %v2884
    %v4176 = vunpack.c.l.b16 %v2885
    %v4177 = vunpack.c.h.b16 %v2885
    %v4178 = vunpack.c.l.b16 %v2886
    %v4179 = vunpack.c.h.b16 %v2886
    %v4180 = vunpack.c.l.b16 %v2887
    %v4181 = vunpack.c.h.b16 %v2887
    %v4182 = vunpack.c.l.b16 %v2888
    %v4183 = vunpack.c.h.b16 %v2888
    %v4184 = vunpack.c.l.b16 %v2889
    %v4185 = vunpack.c.h.b16 %v2889
    %v4186 = vunpack.c.l.b16 %v2890
    %v4187 = vunpack.c.h.b16 %v2890
    %v4188 = vunpack.c.l.b16 %v2891
    %v4189 = vunpack.c.h.b16 %v2891
    %v4190 = vunpack.c.l.b16 %v2892
    %v4191 = vunpack.c.h.b16 %v2892
    %v4192 = vunpack.c.l.b16 %v2893
    %v4193 = vunpack.c.h.b16 %v2893
    %v4194 = vunpack.c.l.b16 %v2894
    %v4195 = vunpack.c.h.b16 %v2894
    %v4196 = vunpack.c.l.b16 %v2895
    %v4197 = vunpack.c.h.b16 %v2895
    %v4198 = vunpack.c.l.b16 %v2896
    %v4199 = vunpack.c.h.b16 %v2896
    %v4200 = vunpack.c.l.b16 %v2897
    %v4201 = vunpack.c.h.b16 %v2897
    %v4202 = vunpack.c.l.b16 %v2898
    %v4203 = vunpack.c.h.b16 %v2898
    %v4204 = vunpack.c.l.b16 %v2899
    %v4205 = vunpack.c.h.b16 %v2899
    %v4206 = vunpack.c.l.b16 %v2900
    %v4207 = vunpack.c.h.b16 %v2900
    %v4208 = vunpack.c.l.b16 %v2901
    %v4209 = vunpack.c.h.b16 %v2901
    %v4210 = vunpack.c.l.b16 %v2902
    %v4211 = vunpack.c.h.b16 %v2902
    %v4212 = vunpack.c.l.b16 %v2903
    %v4213 = vunpack.c.h.b16 %v2903
    %v4214 = vunpack.c.l.b16 %v2904
    %v4215 = vunpack.c.h.b16 %v2904
    %v4216 = vunpack.c.l.b16 %v2905
    %v4217 = vunpack.c.h.b16 %v2905
    %v4218 = vunpack.c.l.b16 %v2906
    %v4219 = vunpack.c.h.b16 %v2906
    %v4220 = vunpack.c.l.b16 %v2907
    %v4221 = vunpack.c.h.b16 %v2907
    %v4222 = vunpack.c.l.b16 %v2908
    %v4223 = vunpack.c.h.b16 %v2908
    %v4224 = vunpack.c.l.b16 %v2909
    %v4225 = vunpack.c.h.b16 %v2909
    %v4226 = vunpack.c.l.b16 %v2910
    %v4227 = vunpack.c.h.b16 %v2910
    %v4228 = vunpack.c.l.b16 %v2911
    %v4229 = vunpack.c.h.b16 %v2911
    %v4230 = vunpack.c.l.b16 %v2912
    %v4231 = vunpack.c.h.b16 %v2912
    %v4232 = vunpack.c.l.b16 %v2913
    %v4233 = vunpack.c.h.b16 %v2913
    %v4234 = vunpack.c.l.b16 %v2914
    %v4235 = vunpack.c.h.b16 %v2914
    %v4236 = vunpack.c.l.b16 %v2915
    %v4237 = vunpack.c.h.b16 %v2915
    %v4238 = vunpack.c.l.b16 %v2916
    %v4239 = vunpack.c.h.b16 %v2916
    %v4240 = vunpack.c.l.b16 %v2917
    %v4241 = vunpack.c.h.b16 %v2917
    %v4242 = vunpack.c.l.b16 %v2918
    %v4243 = vunpack.c.h.b16 %v2918
    %v4244 = vunpack.c.l.b16 %v2919
    %v4245 = vunpack.c.h.b16 %v2919
    %v4246 = vunpack.c.l.b16 %v2920
    %v4247 = vunpack.c.h.b16 %v2920
    %v4248 = vunpack.c.l.b16 %v2921
    %v4249 = vunpack.c.h.b16 %v2921
    %v4250 = vunpack.c.l.b16 %v2922
    %v4251 = vunpack.c.h.b16 %v2922
    %v4252 = vunpack.c.l.b16 %v2923
    %v4253 = vunpack.c.h.b16 %v2923
    %v4254 = vunpack.c.l.b16 %v2924
    %v4255 = vunpack.c.h.b16 %v2924
    %v4256 = vunpack.c.l.b16 %v2925
    %v4257 = vunpack.c.h.b16 %v2925
    %v4258 = vunpack.c.l.b16 %v2926
    %v4259 = vunpack.c.h.b16 %v2926
    %v4260 = vunpack.c.l.b16 %v2927
    %v4261 = vunpack.c.h.b16 %v2927
    %v4262 = vunpack.c.l.b16 %v2928
    %v4263 = vunpack.c.h.b16 %v2928
    %v4264 = vunpack.c.l.b16 %v2929
    %v4265 = vunpack.c.h.b16 %v2929
    %v4266 = vunpack.c.l.b16 %v2930
    %v4267 = vunpack.c.h.b16 %v2930
    %v4268 = vunpack.c.l.b16 %v2931
    %v4269 = vunpack.c.h.b16 %v2931
    %v4270 = vunpack.c.l.b16 %v2932
    %v4271 = vunpack.c.h.b16 %v2932
    %v4272 = vunpack.c.l.b16 %v2933
    %v4273 = vunpack.c.h.b16 %v2933
    %v4274 = vunpack.c.l.b16 %v2934
    %v4275 = vunpack.c.h.b16 %v2934
    %v4276 = vunpack.c.l.b16 %v2935
    %v4277 = vunpack.c.h.b16 %v2935
    %v4278 = vunpack.c.l.b16 %v2936
    %v4279 = vunpack.c.h.b16 %v2936
    %v4280 = vunpack.c.l.b16 %v2937
    %v4281 = vunpack.c.h.b16 %v2937
    %v4282 = vunpack.c.l.b16 %v2938
    %v4283 = vunpack.c.h.b16 %v2938
    %v4284 = vunpack.c.l.b16 %v2939
    %v4285 = vunpack.c.h.b16 %v2939
    %v4286 = vunpack.c.l.b16 %v2940
    %v4287 = vunpack.c.h.b16 %v2940
    %v4288 = vunpack.c.l.b16 %v2941
    %v4289 = vunpack.c.h.b16 %v2941
    %v4290 = vunpack.c.l.b16 %v2942
    %v4291 = vunpack.c.h.b16 %v2942
    %v4292 = vunpack.c.l.b16 %v2943
    %v4293 = vunpack.c.h.b16 %v2943
    %v4294 = vunpack.c.l.b16 %v2944
    %v4295 = vunpack.c.h.b16 %v2944
    %v4296 = vunpack.c.l.b16 %v2945
    %v4297 = vunpack.c.h.b16 %v2945
    %v4298 = vunpack.c.l.b16 %v2946
    %v4299 = vunpack.c.h.b16 %v2946
    %v4300 = vunpack.c.l.b16 %v2947
    %v4301 = vunpack.c.h.b16 %v2947
    %v4302 = vunpack.c.l.b16 %v2948
    %v4303 = vunpack.c.h.b16 %v2948
    %v4304 = vunpack.c.l.b16 %v2949
    %v4305 = vunpack.c.h.b16 %v2949
    %v4306 = vunpack.c.l.b16 %v2950
    %v4307 = vunpack.c.h.b16 %v2950
    %v4308 = vunpack.c.l.b16 %v2951
    %v4309 = vunpack.c.h.b16 %v2951
    %v4310 = vunpack.c.l.b16 %v2952
    %v4311 = vunpack.c.h.b16 %v2952
    %v4312 = vunpack.c.l.b16 %v2953
    %v4313 = vunpack.c.h.b16 %v2953
    %v4314 = vunpack.c.l.b16 %v2954
    %v4315 = vunpack.c.h.b16 %v2954
    %v4316 = vunpack.c.l.b16 %v2955
    %v4317 = vunpack.c.h.b16 %v2955
    %v4318 = vunpack.c.l.b16 %v2956
    %v4319 = vunpack.c.h.b16 %v2956
    %v4320 = vunpack.c.l.b16 %v2957
    %v4321 = vunpack.c.h.b16 %v2957
    %v4322 = vunpack.c.l.b16 %v2958
    %v4323 = vunpack.c.h.b16 %v2958
    %v4324 = vunpack.c.l.b16 %v2959
    %v4325 = vunpack.c.h.b16 %v2959
    %v4326 = vunpack.c.l.b16 %v2960
    %v4327 = vunpack.c.h.b16 %v2960
    %v4328 = vunpack.c.l.b16 %v2961
    %v4329 = vunpack.c.h.b16 %v2961
    %v4330 = vunpack.c.l.b16 %v2962
    %v4331 = vunpack.c.h.b16 %v2962
    %v4332 = vunpack.c.l.b16 %v2963
    %v4333 = vunpack.c.h.b16 %v2963
    %v4334 = vunpack.c.l.b16 %v2964
    %v4335 = vunpack.c.h.b16 %v2964
    %v4336 = vunpack.c.l.b16 %v2965
    %v4337 = vunpack.c.h.b16 %v2965
    %v4338 = vunpack.c.l.b16 %v2966
    %v4339 = vunpack.c.h.b16 %v2966
    %v4340 = vunpack.c.l.b16 %v2967
    %v4341 = vunpack.c.h.b16 %v2967
    %v4342 = vunpack.c.l.b16 %v2968
    %v4343 = vunpack.c.h.b16 %v2968
    %v4344 = vunpack.c.l.b16 %v2969
    %v4345 = vunpack.c.h.b16 %v2969
    %v4346 = vunpack.c.l.b16 %v2970
    %v4347 = vunpack.c.h.b16 %v2970
    %v4348 = vunpack.c.l.b16 %v2971
    %v4349 = vunpack.c.h.b16 %v2971
    %v4350 = vunpack.c.l.b16 %v2972
    %v4351 = vunpack.c.h.b16 %v2972
    %v4352 = vunpack.c.l.b16 %v2973
    %v4353 = vunpack.c.h.b16 %v2973
    %v4354 = vunpack.c.l.b16 %v2974
    %v4355 = vunpack.c.h.b16 %v2974
    %v4356 = vunpack.c.l.b16 %v2975
    %v4357 = vunpack.c.h.b16 %v2975
    %v4358 = vunpack.c.l.b16 %v2976
    %v4359 = vunpack.c.h.b16 %v2976
    %v4360 = vunpack.c.l.b16 %v2977
    %v4361 = vunpack.c.h.b16 %v2977
    %v4362 = vunpack.c.l.b16 %v2978
    %v4363 = vunpack.c.h.b16 %v2978
    %v4364 = vunpack.c.l.b16 %v2979
    %v4365 = vunpack.c.h.b16 %v2979
    %v4366 = vunpack.c.l.b16 %v2980
    %v4367 = vunpack.c.h.b16 %v2980
    %v4368 = vunpack.c.l.b16 %v2981
    %v4369 = vunpack.c.h.b16 %v2981
    %v4370 = vunpack.c.l.b16 %v2982
    %v4371 = vunpack.c.h.b16 %v2982
    %v4372 = vunpack.c.l.b16 %v2983
    %v4373 = vunpack.c.h.b16 %v2983
    %v4374 = vunpack.c.l.b16 %v2984
    %v4375 = vunpack.c.h.b16 %v2984
    %v4376 = vunpack.c.l.b16 %v2985
    %v4377 = vunpack.c.h.b16 %v2985
    %v4378 = vunpack.c.l.b16 %v2986
    %v4379 = vunpack.c.h.b16 %v2986
    %v4380 = vunpack.c.l.b16 %v2987
    %v4381 = vunpack.c.h.b16 %v2987
    %v4382 = vunpack.c.l.b16 %v2988
    %v4383 = vunpack.c.h.b16 %v2988
    %v4384 = vunpack.c.l.b16 %v2989
    %v4385 = vunpack.c.h.b16 %v2989
    %v4386 = vunpack.c.l.b16 %v2990
    %v4387 = vunpack.c.h.b16 %v2990
    %v4388 = vunpack.c.l.b16 %v2991
    %v4389 = vunpack.c.h.b16 %v2991
    %v4390 = vunpack.c.l.b16 %v2992
    %v4391 = vunpack.c.h.b16 %v2992
    %v4392 = vunpack.c.l.b16 %v2993
    %v4393 = vunpack.c.h.b16 %v2993
    %v4394 = vunpack.c.l.b16 %v2994
    %v4395 = vunpack.c.h.b16 %v2994
    %v4396 = vunpack.c.l.b16 %v2995
    %v4397 = vunpack.c.h.b16 %v2995
    %v4398 = vunpack.c.l.b16 %v2996
    %v4399 = vunpack.c.h.b16 %v2996
    %v4400 = vunpack.c.l.b16 %v2997
    %v4401 = vunpack.c.h.b16 %v2997
    %v4402 = vunpack.c.l.b16 %v2998
    %v4403 = vunpack.c.h.b16 %v2998
    %v4404 = vunpack.c.l.b16 %v2999
    %v4405 = vunpack.c.h.b16 %v2999
    %v4406 = vunpack.c.l.b16 %v3000
    %v4407 = vunpack.c.h.b16 %v3000
    %v4408 = vunpack.c.l.b16 %v3001
    %v4409 = vunpack.c.h.b16 %v3001
    %v4410 = vunpack.c.l.b16 %v3002
    %v4411 = vunpack.c.h.b16 %v3002
    %v4412 = vunpack.c.l.b16 %v3003
    %v4413 = vunpack.c.h.b16 %v3003
    %v4414 = vunpack.c.l.b16 %v3004
    %v4415 = vunpack.c.h.b16 %v3004
    %v4416 = vunpack.c.l.b16 %v3005
    %v4417 = vunpack.c.h.b16 %v3005
    %v4418 = vunpack.c.l.b16 %v3006
    %v4419 = vunpack.c.h.b16 %v3006
    %v4420 = vunpack.c.l.b16 %v3007
    %v4421 = vunpack.c.h.b16 %v3007
    %v4422 = vunpack.c.l.b16 %v3008
    %v4423 = vunpack.c.h.b16 %v3008
    %v4424 = vunpack.c.l.b16 %v3009
    %v4425 = vunpack.c.h.b16 %v3009
    %v4426 = vunpack.c.l.b16 %v3010
    %v4427 = vunpack.c.h.b16 %v3010
    %v4428 = vunpack.c.l.b16 %v3011
    %v4429 = vunpack.c.h.b16 %v3011
    %v4430 = vunpack.c.l.b16 %v3012
    %v4431 = vunpack.c.h.b16 %v3012
    %v4432 = vunpack.c.l.b16 %v3013
    %v4433 = vunpack.c.h.b16 %v3013
    %v4434 = vunpack.c.l.b16 %v3014
    %v4435 = vunpack.c.h.b16 %v3014
    %v4436 = vunpack.c.l.b16 %v3015
    %v4437 = vunpack.c.h.b16 %v3015
    %v4438 = vunpack.c.l.b16 %v3016
    %v4439 = vunpack.c.h.b16 %v3016
    %v4440 = vunpack.c.l.b16 %v3017
    %v4441 = vunpack.c.h.b16 %v3017
    %v4442 = vunpack.c.l.b16 %v3018
    %v4443 = vunpack.c.h.b16 %v3018
    %v4444 = vunpack.c.l.b16 %v3019
    %v4445 = vunpack.c.h.b16 %v3019
    %v4446 = vunpack.c.l.b16 %v3020
    %v4447 = vunpack.c.h.b16 %v3020
    %v4448 = vunpack.c.l.b16 %v3021
    %v4449 = vunpack.c.h.b16 %v3021
    %v4450 = vunpack.c.l.b16 %v3022
    %v4451 = vunpack.c.h.b16 %v3022
    %v4452 = vunpack.c.l.b16 %v3023
    %v4453 = vunpack.c.h.b16 %v3023
    %v4454 = vunpack.c.l.b16 %v3024
    %v4455 = vunpack.c.h.b16 %v3024
    %v4456 = vunpack.c.l.b16 %v3025
    %v4457 = vunpack.c.h.b16 %v3025
    %v4458 = vunpack.c.l.b16 %v3026
    %v4459 = vunpack.c.h.b16 %v3026
    %v4460 = vunpack.c.l.b16 %v3027
    %v4461 = vunpack.c.h.b16 %v3027
    %v4462 = vunpack.c.l.b16 %v3028
    %v4463 = vunpack.c.h.b16 %v3028
    %v4464 = vunpack.c.l.b16 %v3029
    %v4465 = vunpack.c.h.b16 %v3029
    %v4466 = vunpack.c.l.b16 %v3030
    %v4467 = vunpack.c.h.b16 %v3030
    %v4468 = vunpack.c.l.b16 %v3031
    %v4469 = vunpack.c.h.b16 %v3031
    %v4470 = vunpack.c.l.b16 %v3032
    %v4471 = vunpack.c.h.b16 %v3032
    %v4472 = vunpack.c.l.b16 %v3033
    %v4473 = vunpack.c.h.b16 %v3033
    %v4474 = vunpack.c.l.b16 %v3034
    %v4475 = vunpack.c.h.b16 %v3034
    %v4476 = vunpack.c.l.b16 %v3035
    %v4477 = vunpack.c.h.b16 %v3035
    %v4478 = vunpack.c.l.b16 %v3036
    %v4479 = vunpack.c.h.b16 %v3036
    %v4480 = vunpack.c.l.b16 %v3037
    %v4481 = vunpack.c.h.b16 %v3037
    %v4482 = vunpack.c.l.b16 %v3038
    %v4483 = vunpack.c.h.b16 %v3038
    %v4484 = vunpack.c.l.b16 %v3039
    %v4485 = vunpack.c.h.b16 %v3039
    %v4486 = vunpack.c.l.b16 %v3040
    %v4487 = vunpack.c.h.b16 %v3040
    %v4488 = vunpack.c.l.b16 %v3041
    %v4489 = vunpack.c.h.b16 %v3041
    %v4490 = vunpack.c.l.b16 %v3042
    %v4491 = vunpack.c.h.b16 %v3042
    %v4492 = vunpack.c.l.b16 %v3043
    %v4493 = vunpack.c.h.b16 %v3043
    %v4494 = vunpack.c.l.b16 %v3044
    %v4495 = vunpack.c.h.b16 %v3044
    %v4496 = vunpack.c.l.b16 %v3045
    %v4497 = vunpack.c.h.b16 %v3045
    %v4498 = vunpack.c.l.b16 %v3046
    %v4499 = vunpack.c.h.b16 %v3046
    %v4500 = vunpack.c.l.b16 %v3047
    %v4501 = vunpack.c.h.b16 %v3047
    %v4502 = vunpack.c.l.b16 %v3048
    %v4503 = vunpack.c.h.b16 %v3048
    %v4504 = vunpack.c.l.b16 %v3049
    %v4505 = vunpack.c.h.b16 %v3049
    %v4506 = vunpack.c.l.b16 %v3050
    %v4507 = vunpack.c.h.b16 %v3050
    %v4508 = vunpack.c.l.b16 %v3051
    %v4509 = vunpack.c.h.b16 %v3051
    %v4510 = vunpack.c.l.b16 %v3052
    %v4511 = vunpack.c.h.b16 %v3052
    %v4512 = vunpack.c.l.b16 %v3053
    %v4513 = vunpack.c.h.b16 %v3053
    %v4514 = vunpack.c.l.b16 %v3054
    %v4515 = vunpack.c.h.b16 %v3054
    %v4516 = vunpack.c.l.b16 %v3055
    %v4517 = vunpack.c.h.b16 %v3055
    %v4518 = vunpack.c.l.b16 %v3056
    %v4519 = vunpack.c.h.b16 %v3056
    %v4520 = vunpack.c.l.b16 %v3057
    %v4521 = vunpack.c.h.b16 %v3057
    %v4522 = vunpack.c.l.b16 %v3058
    %v4523 = vunpack.c.h.b16 %v3058
    %v4524 = vunpack.c.l.b16 %v3059
    %v4525 = vunpack.c.h.b16 %v3059
    %v4526 = vunpack.c.l.b16 %v3060
    %v4527 = vunpack.c.h.b16 %v3060
    %v4528 = vunpack.c.l.b16 %v3061
    %v4529 = vunpack.c.h.b16 %v3061
    %v4530 = vunpack.c.l.b16 %v3062
    %v4531 = vunpack.c.h.b16 %v3062
    %v4532 = vunpack.c.l.b16 %v3063
    %v4533 = vunpack.c.h.b16 %v3063
    %v4534 = vunpack.c.l.b16 %v3064
    %v4535 = vunpack.c.h.b16 %v3064
    %v4536 = vunpack.c.l.b16 %v3065
    %v4537 = vunpack.c.h.b16 %v3065
    %v4538 = vunpack.c.l.b16 %v3066
    %v4539 = vunpack.c.h.b16 %v3066
    %v4540 = vunpack.c.l.b16 %v3067
    %v4541 = vunpack.c.h.b16 %v3067
    %v4542 = vunpack.c.l.b16 %v3068
    %v4543 = vunpack.c.h.b16 %v3068
    %v4544 = vunpack.c.l.b16 %v3069
    %v4545 = vunpack.c.h.b16 %v3069
    %v4546 = vunpack.c.l.b16 %v3070
    %v4547 = vunpack.c.h.b16 %v3070
    %v4548 = vunpack.c.l.b16 %v3071
    %v4549 = vunpack.c.h.b16 %v3071
    %v4550 = vunpack.c.l.b16 %v3072
    %v4551 = vunpack.c.h.b16 %v3072
    %v4552 = vunpack.c.l.b16 %v3073
    %v4553 = vunpack.c.h.b16 %v3073
    %v4554 = vunpack.c.l.b16 %v3074
    %v4555 = vunpack.c.h.b16 %v3074
    %v4556 = vunpack.c.l.b16 %v3075
    %v4557 = vunpack.c.h.b16 %v3075
    %v4558 = vunpack.c.l.b16 %v3076
    %v4559 = vunpack.c.h.b16 %v3076
    %v4560 = vunpack.c.l.b16 %v3077
    %v4561 = vunpack.c.h.b16 %v3077
    %v4562 = vunpack.c.l.b16 %v3078
    %v4563 = vunpack.c.h.b16 %v3078
    %v4564 = vunpack.c.l.b16 %v3079
    %v4565 = vunpack.c.h.b16 %v3079
    %v4566 = vunpack.c.l.b16 %v3080
    %v4567 = vunpack.c.h.b16 %v3080
    %v4568 = vunpack.c.l.b16 %v3081
    %v4569 = vunpack.c.h.b16 %v3081
    %v4570 = vunpack.c.l.b16 %v3082
    %v4571 = vunpack.c.h.b16 %v3082
    %v4572 = vunpack.c.l.b16 %v3083
    %v4573 = vunpack.c.h.b16 %v3083
    %v4574 = vunpack.c.l.b16 %v3084
    %v4575 = vunpack.c.h.b16 %v3084
    %v4576 = vunpack.c.l.b16 %v3085
    %v4577 = vunpack.c.h.b16 %v3085
    %v4578 = vunpack.c.l.b16 %v3086
    %v4579 = vunpack.c.h.b16 %v3086
    %v4580 = vunpack.c.l.b16 %v3087
    %v4581 = vunpack.c.h.b16 %v3087
    %v4582 = vunpack.c.l.b16 %v3088
    %v4583 = vunpack.c.h.b16 %v3088
    %v4584 = vunpack.c.l.b16 %v3089
    %v4585 = vunpack.c.h.b16 %v3089
    %v4586 = vunpack.c.l.b16 %v3090
    %v4587 = vunpack.c.h.b16 %v3090
    %v4588 = vunpack.c.l.b16 %v3091
    %v4589 = vunpack.c.h.b16 %v3091
    %v4590 = vunpack.c.l.b16 %v3092
    %v4591 = vunpack.c.h.b16 %v3092
    %v4592 = vunpack.c.l.b16 %v3093
    %v4593 = vunpack.c.h.b16 %v3093
    %v4594 = vunpack.c.l.b16 %v3094
    %v4595 = vunpack.c.h.b16 %v3094
    %v4596 = vunpack.c.l.b16 %v3095
    %v4597 = vunpack.c.h.b16 %v3095
    %v4598 = vunpack.c.l.b16 %v3096
    %v4599 = vunpack.c.h.b16 %v3096
    %v4600 = vunpack.c.l.b16 %v3097
    %v4601 = vunpack.c.h.b16 %v3097
    %v4602 = vunpack.c.l.b16 %v3098
    %v4603 = vunpack.c.h.b16 %v3098
    %v4604 = vunpack.c.l.b16 %v3099
    %v4605 = vunpack.c.h.b16 %v3099
    %v4606 = vunpack.c.l.b16 %v3100
    %v4607 = vunpack.c.h.b16 %v3100
    %v4608 = vunpack.c.l.b16 %v3101
    %v4609 = vunpack.c.h.b16 %v3101
    %v4610 = vunpack.c.l.b16 %v3102
    %v4611 = vunpack.c.h.b16 %v3102
    %v4612 = vunpack.c.l.b16 %v3103
    %v4613 = vunpack.c.h.b16 %v3103
    %v4614 = vunpack.c.l.b16 %v3104
    %v4615 = vunpack.c.h.b16 %v3104
    %v4616 = vunpack.c.l.b16 %v3105
    %v4617 = vunpack.c.h.b16 %v3105
    %v4618 = vunpack.c.l.b16 %v3106
    %v4619 = vunpack.c.h.b16 %v3106
    %v4620 = vunpack.c.l.b16 %v3107
    %v4621 = vunpack.c.h.b16 %v3107
    %v4622 = vunpack.c.l.b16 %v3108
    %v4623 = vunpack.c.h.b16 %v3108
    %v4624 = vunpack.c.l.b16 %v3109
    %v4625 = vunpack.c.h.b16 %v3109
    %v4626 = vunpack.c.l.b16 %v3110
    %v4627 = vunpack.c.h.b16 %v3110
    %v4628 = vunpack.c.l.b16 %v3111
    %v4629 = vunpack.c.h.b16 %v3111
    %v4630 = vunpack.c.l.b16 %v3112
    %v4631 = vunpack.c.h.b16 %v3112
    %v4632 = vunpack.c.l.b16 %v3113
    %v4633 = vunpack.c.h.b16 %v3113
    %v4634 = vunpack.c.l.b16 %v3114
    %v4635 = vunpack.c.h.b16 %v3114
    %v4636 = vunpack.c.l.b16 %v3115
    %v4637 = vunpack.c.h.b16 %v3115
    %v4638 = vunpack.c.l.b16 %v3116
    %v4639 = vunpack.c.h.b16 %v3116
    %v4640 = vunpack.c.l.b16 %v3117
    %v4641 = vunpack.c.h.b16 %v3117
    %v4642 = vunpack.c.l.b16 %v3118
    %v4643 = vunpack.c.h.b16 %v3118
    %v4644 = vunpack.c.l.b16 %v3119
    %v4645 = vunpack.c.h.b16 %v3119
    %v4646 = vunpack.c.l.b16 %v3120
    %v4647 = vunpack.c.h.b16 %v3120
    %v4648 = vunpack.c.l.b16 %v3121
    %v4649 = vunpack.c.h.b16 %v3121
    %v4650 = vunpack.c.l.b16 %v3122
    %v4651 = vunpack.c.h.b16 %v3122
    %v4652 = vunpack.c.l.b16 %v3123
    %v4653 = vunpack.c.h.b16 %v3123
    %v4654 = vunpack.c.l.b16 %v3124
    %v4655 = vunpack.c.h.b16 %v3124
    %v4656 = vunpack.c.l.b16 %v3125
    %v4657 = vunpack.c.h.b16 %v3125
    %v4658 = vunpack.c.l.b16 %v3126
    %v4659 = vunpack.c.h.b16 %v3126
    %v4660 = vunpack.c.l.b16 %v3127
    %v4661 = vunpack.c.h.b16 %v3127
    %v4662 = vunpack.c.l.b16 %v3128
    %v4663 = vunpack.c.h.b16 %v3128
    %v4664 = vunpack.c.l.b16 %v3129
    %v4665 = vunpack.c.h.b16 %v3129
    %v4666 = vunpack.c.l.b16 %v3130
    %v4667 = vunpack.c.h.b16 %v3130
    %v4668 = vunpack.c.l.b16 %v3131
    %v4669 = vunpack.c.h.b16 %v3131
    %v4670 = vunpack.c.l.b16 %v3132
    %v4671 = vunpack.c.h.b16 %v3132
    %v4672 = vunpack.c.l.b16 %v3133
    %v4673 = vunpack.c.h.b16 %v3133
    %v4674 = vunpack.c.l.b16 %v3134
    %v4675 = vunpack.c.h.b16 %v3134
    %v4676 = vunpack.c.l.b16 %v3135
    %v4677 = vunpack.c.h.b16 %v3135
    %v4678 = vunpack.c.l.b16 %v3136
    %v4679 = vunpack.c.h.b16 %v3136
    %v4680 = vunpack.c.l.b16 %v3137
    %v4681 = vunpack.c.h.b16 %v3137
    %v4682 = vunpack.c.l.b16 %v3138
    %v4683 = vunpack.c.h.b16 %v3138
    %v4684 = vunpack.c.l.b16 %v3139
    %v4685 = vunpack.c.h.b16 %v3139
    %v4686 = vunpack.c.l.b16 %v3140
    %v4687 = vunpack.c.h.b16 %v3140
    %v4688 = vunpack.c.l.b16 %v3141
    %v4689 = vunpack.c.h.b16 %v3141
    %v4690 = vunpack.c.l.b16 %v3142
    %v4691 = vunpack.c.h.b16 %v3142
    %v4692 = vunpack.c.l.b16 %v3143
    %v4693 = vunpack.c.h.b16 %v3143
    %v4694 = vunpack.c.l.b16 %v3144
    %v4695 = vunpack.c.h.b16 %v3144
    %v4696 = vunpack.c.l.b16 %v3145
    %v4697 = vunpack.c.h.b16 %v3145
    %v4698 = vunpack.c.l.b16 %v3146
    %v4699 = vunpack.c.h.b16 %v3146
    %v4700 = vunpack.c.l.b16 %v3147
    %v4701 = vunpack.c.h.b16 %v3147
    %v4702 = vunpack.c.l.b16 %v3148
    %v4703 = vunpack.c.h.b16 %v3148
    %v4704 = vunpack.c.l.b16 %v3149
    %v4705 = vunpack.c.h.b16 %v3149
    %v4706 = vunpack.c.l.b16 %v3150
    %v4707 = vunpack.c.h.b16 %v3150
    %v4708 = vunpack.c.l.b16 %v3151
    %v4709 = vunpack.c.h.b16 %v3151
    %v4710 = vunpack.c.l.b16 %v3152
    %v4711 = vunpack.c.h.b16 %v3152
    %v4712 = vunpack.c.l.b16 %v3153
    %v4713 = vunpack.c.h.b16 %v3153
    %v4714 = vunpack.c.l.b16 %v3154
    %v4715 = vunpack.c.h.b16 %v3154
    %v4716 = vunpack.c.l.b16 %v3155
    %v4717 = vunpack.c.h.b16 %v3155
    %v4718 = vunpack.c.l.b16 %v3156
    %v4719 = vunpack.c.h.b16 %v3156
    %v4720 = vunpack.c.l.b16 %v3157
    %v4721 = vunpack.c.h.b16 %v3157
    %v4722 = vunpack.c.l.b16 %v3158
    %v4723 = vunpack.c.h.b16 %v3158
    %v4724 = vunpack.c.l.b16 %v3159
    %v4725 = vunpack.c.h.b16 %v3159
    %v4726 = vunpack.c.l.b16 %v3160
    %v4727 = vunpack.c.h.b16 %v3160
    %v4728 = vunpack.c.l.b16 %v3161
    %v4729 = vunpack.c.h.b16 %v3161
    %v4730 = vunpack.c.l.b16 %v3162
    %v4731 = vunpack.c.h.b16 %v3162
    %v4732 = vunpack.c.l.b16 %v3163
    %v4733 = vunpack.c.h.b16 %v3163
    %v4734 = vunpack.c.l.b16 %v3164
    %v4735 = vunpack.c.h.b16 %v3164
    %v4736 = vunpack.c.l.b16 %v3165
    %v4737 = vunpack.c.h.b16 %v3165
    %v4738 = vunpack.c.l.b16 %v3166
    %v4739 = vunpack.c.h.b16 %v3166
    %v4740 = vunpack.c.l.b16 %v3167
    %v4741 = vunpack.c.h.b16 %v3167
    %v4742 = vunpack.c.l.b16 %v3168
    %v4743 = vunpack.c.h.b16 %v3168
    %v4744 = vunpack.c.l.b16 %v3169
    %v4745 = vunpack.c.h.b16 %v3169
    %v4746 = vunpack.c.l.b16 %v3170
    %v4747 = vunpack.c.h.b16 %v3170
    %v4748 = vunpack.c.l.b16 %v3171
    %v4749 = vunpack.c.h.b16 %v3171
    %v4750 = vpack.c.b16 %v3734, %v3726
    %v4751 = vpack.c.b16 %v3735, %v3727
    %v4752 = vpack.c.b16 %v3736, %v3728
    %v4753 = vpack.c.b16 %v3737, %v3729
    %v4754 = vpack.c.b16 %v3738, %v3730
    %v4755 = vpack.c.b16 %v3739, %v3731
    %v4756 = vpack.c.b16 %v3740, %v3732
    %v4757 = vpack.c.b16 %v3741, %v3733
    %v4758 = vpack.c.b16 %v3750, %v3742
    %v4759 = vpack.c.b16 %v3751, %v3743
    %v4760 = vpack.c.b16 %v3752, %v3744
    %v4761 = vpack.c.b16 %v3753, %v3745
    %v4762 = vpack.c.b16 %v3754, %v3746
    %v4763 = vpack.c.b16 %v3755, %v3747
    %v4764 = vpack.c.b16 %v3756, %v3748
    %v4765 = vpack.c.b16 %v3757, %v3749
    %v4766 = vpack.c.b16 %v3766, %v3758
    %v4767 = vpack.c.b16 %v3767, %v3759
    %v4768 = vpack.c.b16 %v3768, %v3760
    %v4769 = vpack.c.b16 %v3769, %v3761
    %v4770 = vpack.c.b16 %v3770, %v3762
    %v4771 = vpack.c.b16 %v3771, %v3763
    %v4772 = vpack.c.b16 %v3772, %v3764
    %v4773 = vpack.c.b16 %v3773, %v3765
    %v4774 = vpack.c.b16 %v3782, %v3774
    %v4775 = vpack.c.b16 %v3783, %v3775
    %v4776 = vpack.c.b16 %v3784, %v3776
    %v4777 = vpack.c.b16 %v3785, %v3777
    %v4778 = vpack.c.b16 %v3786, %v3778
    %v4779 = vpack.c.b16 %v3787, %v3779
    %v4780 = vpack.c.b16 %v3788, %v3780
    %v4781 = vpack.c.b16 %v3789, %v3781
    %v4782 = vpack.c.b16 %v3798, %v3790
    %v4783 = vpack.c.b16 %v3799, %v3791
    %v4784 = vpack.c.b16 %v3800, %v3792
    %v4785 = vpack.c.b16 %v3801, %v3793
    %v4786 = vpack.c.b16 %v3802, %v3794
    %v4787 = vpack.c.b16 %v3803, %v3795
    %v4788 = vpack.c.b16 %v3804, %v3796
    %v4789 = vpack.c.b16 %v3805, %v3797
    %v4790 = vpack.c.b16 %v3814, %v3806
    %v4791 = vpack.c.b16 %v3815, %v3807
    %v4792 = vpack.c.b16 %v3816, %v3808
    %v4793 = vpack.c.b16 %v3817, %v3809
    %v4794 = vpack.c.b16 %v3818, %v3810
    %v4795 = vpack.c.b16 %v3819, %v3811
    %v4796 = vpack.c.b16 %v3820, %v3812
    %v4797 = vpack.c.b16 %v3821, %v3813
    %v4798 = vpack.c.b16 %v3830, %v3822
    %v4799 = vpack.c.b16 %v3831, %v3823
    %v4800 = vpack.c.b16 %v3832, %v3824
    %v4801 = vpack.c.b16 %v3833, %v3825
    %v4802 = vpack.c.b16 %v3834, %v3826
    %v4803 = vpack.c.b16 %v3835, %v3827
    %v4804 = vpack.c.b16 %v3836, %v3828
    %v4805 = vpack.c.b16 %v3837, %v3829
    %v4806 = vpack.c.b16 %v3846, %v3838
    %v4807 = vpack.c.b16 %v3847, %v3839
    %v4808 = vpack.c.b16 %v3848, %v3840
    %v4809 = vpack.c.b16 %v3849, %v3841
    %v4810 = vpack.c.b16 %v3850, %v3842
    %v4811 = vpack.c.b16 %v3851, %v3843
    %v4812 = vpack.c.b16 %v3852, %v3844
    %v4813 = vpack.c.b16 %v3853, %v3845
    %v4814 = vpack.c.b16 %v3862, %v3854
    %v4815 = vpack.c.b16 %v3863, %v3855
    %v4816 = vpack.c.b16 %v3864, %v3856
    %v4817 = vpack.c.b16 %v3865, %v3857
    %v4818 = vpack.c.b16 %v3866, %v3858
    %v4819 = vpack.c.b16 %v3867, %v3859
    %v4820 = vpack.c.b16 %v3868, %v3860
    %v4821 = vpack.c.b16 %v3869, %v3861
    %v4822 = vpack.c.b16 %v3878, %v3870
    %v4823 = vpack.c.b16 %v3879, %v3871
    %v4824 = vpack.c.b16 %v3880, %v3872
    %v4825 = vpack.c.b16 %v3881, %v3873
    %v4826 = vpack.c.b16 %v3882, %v3874
    %v4827 = vpack.c.b16 %v3883, %v3875
    %v4828 = vpack.c.b16 %v3884, %v3876
    %v4829 = vpack.c.b16 %v3885, %v3877
    %v4830 = vpack.c.b16 %v3894, %v3886
    %v4831 = vpack.c.b16 %v3895, %v3887
    %v4832 = vpack.c.b16 %v3896, %v3888
    %v4833 = vpack.c.b16 %v3897, %v3889
    %v4834 = vpack.c.b16 %v3898, %v3890
    %v4835 = vpack.c.b16 %v3899, %v3891
    %v4836 = vpack.c.b16 %v3900, %v3892
    %v4837 = vpack.c.b16 %v3901, %v3893
    %v4838 = vpack.c.b16 %v3910, %v3902
    %v4839 = vpack.c.b16 %v3911, %v3903
    %v4840 = vpack.c.b16 %v3912, %v3904
    %v4841 = vpack.c.b16 %v3913, %v3905
    %v4842 = vpack.c.b16 %v3914, %v3906
    %v4843 = vpack.c.b16 %v3915, %v3907
    %v4844 = vpack.c.b16 %v3916, %v3908
    %v4845 = vpack.c.b16 %v3917, %v3909
    %v4846 = vpack.c.b16 %v3926, %v3918
    %v4847 = vpack.c.b16 %v3927, %v3919
    %v4848 = vpack.c.b16 %v3928, %v3920
    %v4849 = vpack.c.b16 %v3929, %v3921
    %v4850 = vpack.c.b16 %v3930, %v3922
    %v4851 = vpack.c.b16 %v3931, %v3923
    %v4852 = vpack.c.b16 %v3932, %v3924
    %v4853 = vpack.c.b16 %v3933, %v3925
    %v4854 = vpack.c.b16 %v3942, %v3934
    %v4855 = vpack.c.b16 %v3943, %v3935
    %v4856 = vpack.c.b16 %v3944, %v3936
    %v4857 = vpack.c.b16 %v3945, %v3937
    %v4858 = vpack.c.b16 %v3946, %v3938
    %v4859 = vpack.c.b16 %v3947, %v3939
    %v4860 = vpack.c.b16 %v3948, %v3940
    %v4861 = vpack.c.b16 %v3949, %v3941
    %v4862 = vpack.c.b16 %v3958, %v3950
    %v4863 = vpack.c.b16 %v3959, %v3951
    %v4864 = vpack.c.b16 %v3960, %v3952
    %v4865 = vpack.c.b16 %v3961, %v3953
    %v4866 = vpack.c.b16 %v3962, %v3954
    %v4867 = vpack.c.b16 %v3963, %v3955
    %v4868 = vpack.c.b16 %v3964, %v3956
    %v4869 = vpack.c.b16 %v3965, %v3957
    %v4870 = vpack.c.b16 %v3974, %v3966
    %v4871 = vpack.c.b16 %v3975, %v3967
    %v4872 = vpack.c.b16 %v3976, %v3968
    %v4873 = vpack.c.b16 %v3977, %v3969
    %v4874 = vpack.c.b16 %v3978, %v3970
    %v4875 = vpack.c.b16 %v3979, %v3971
    %v4876 = vpack.c.b16 %v3980, %v3972
    %v4877 = vpack.c.b16 %v3981, %v3973
    %v4878 = vpack.c.b16 %v3990, %v3982
    %v4879 = vpack.c.b16 %v3991, %v3983
    %v4880 = vpack.c.b16 %v3992, %v3984
    %v4881 = vpack.c.b16 %v3993, %v3985
    %v4882 = vpack.c.b16 %v3994, %v3986
    %v4883 = vpack.c.b16 %v3995, %v3987
    %v4884 = vpack.c.b16 %v3996, %v3988
    %v4885 = vpack.c.b16 %v3997, %v3989
    %v4886 = vpack.c.b16 %v4006, %v3998
    %v4887 = vpack.c.b16 %v4007, %v3999
    %v4888 = vpack.c.b16 %v4008, %v4000
    %v4889 = vpack.c.b16 %v4009, %v4001
    %v4890 = vpack.c.b16 %v4010, %v4002
    %v4891 = vpack.c.b16 %v4011, %v4003
    %v4892 = vpack.c.b16 %v4012, %v4004
    %v4893 = vpack.c.b16 %v4013, %v4005
    %v4894 = vpack.c.b16 %v4022, %v4014
    %v4895 = vpack.c.b16 %v4023, %v4015
    %v4896 = vpack.c.b16 %v4024, %v4016
    %v4897 = vpack.c.b16 %v4025, %v4017
    %v4898 = vpack.c.b16 %v4026, %v4018
    %v4899 = vpack.c.b16 %v4027, %v4019
    %v4900 = vpack.c.b16 %v4028, %v4020
    %v4901 = vpack.c.b16 %v4029, %v4021
    %v4902 = vpack.c.b16 %v4038, %v4030
    %v4903 = vpack.c.b16 %v4039, %v4031
    %v4904 = vpack.c.b16 %v4040, %v4032
    %v4905 = vpack.c.b16 %v4041, %v4033
    %v4906 = vpack.c.b16 %v4042, %v4034
    %v4907 = vpack.c.b16 %v4043, %v4035
    %v4908 = vpack.c.b16 %v4044, %v4036
    %v4909 = vpack.c.b16 %v4045, %v4037
    %v4910 = vpack.c.b16 %v4054, %v4046
    %v4911 = vpack.c.b16 %v4055, %v4047
    %v4912 = vpack.c.b16 %v4056, %v4048
    %v4913 = vpack.c.b16 %v4057, %v4049
    %v4914 = vpack.c.b16 %v4058, %v4050
    %v4915 = vpack.c.b16 %v4059, %v4051
    %v4916 = vpack.c.b16 %v4060, %v4052
    %v4917 = vpack.c.b16 %v4061, %v4053
    %v4918 = vpack.c.b16 %v4070, %v4062
    %v4919 = vpack.c.b16 %v4071, %v4063
    %v4920 = vpack.c.b16 %v4072, %v4064
    %v4921 = vpack.c.b16 %v4073, %v4065
    %v4922 = vpack.c.b16 %v4074, %v4066
    %v4923 = vpack.c.b16 %v4075, %v4067
    %v4924 = vpack.c.b16 %v4076, %v4068
    %v4925 = vpack.c.b16 %v4077, %v4069
    %v4926 = vpack.c.b16 %v4086, %v4078
    %v4927 = vpack.c.b16 %v4087, %v4079
    %v4928 = vpack.c.b16 %v4088, %v4080
    %v4929 = vpack.c.b16 %v4089, %v4081
    %v4930 = vpack.c.b16 %v4090, %v4082
    %v4931 = vpack.c.b16 %v4091, %v4083
    %v4932 = vpack.c.b16 %v4092, %v4084
    %v4933 = vpack.c.b16 %v4093, %v4085
    %v4934 = vpack.c.b16 %v4102, %v4094
    %v4935 = vpack.c.b16 %v4103, %v4095
    %v4936 = vpack.c.b16 %v4104, %v4096
    %v4937 = vpack.c.b16 %v4105, %v4097
    %v4938 = vpack.c.b16 %v4106, %v4098
    %v4939 = vpack.c.b16 %v4107, %v4099
    %v4940 = vpack.c.b16 %v4108, %v4100
    %v4941 = vpack.c.b16 %v4109, %v4101
    %v4942 = vpack.c.b16 %v4118, %v4110
    %v4943 = vpack.c.b16 %v4119, %v4111
    %v4944 = vpack.c.b16 %v4120, %v4112
    %v4945 = vpack.c.b16 %v4121, %v4113
    %v4946 = vpack.c.b16 %v4122, %v4114
    %v4947 = vpack.c.b16 %v4123, %v4115
    %v4948 = vpack.c.b16 %v4124, %v4116
    %v4949 = vpack.c.b16 %v4125, %v4117
    %v4950 = vpack.c.b16 %v4134, %v4126
    %v4951 = vpack.c.b16 %v4135, %v4127
    %v4952 = vpack.c.b16 %v4136, %v4128
    %v4953 = vpack.c.b16 %v4137, %v4129
    %v4954 = vpack.c.b16 %v4138, %v4130
    %v4955 = vpack.c.b16 %v4139, %v4131
    %v4956 = vpack.c.b16 %v4140, %v4132
    %v4957 = vpack.c.b16 %v4141, %v4133
    %v4958 = vpack.c.b16 %v4150, %v4142
    %v4959 = vpack.c.b16 %v4151, %v4143
    %v4960 = vpack.c.b16 %v4152, %v4144
    %v4961 = vpack.c.b16 %v4153, %v4145
    %v4962 = vpack.c.b16 %v4154, %v4146
    %v4963 = vpack.c.b16 %v4155, %v4147
    %v4964 = vpack.c.b16 %v4156, %v4148
    %v4965 = vpack.c.b16 %v4157, %v4149
    %v4966 = vpack.c.b16 %v4166, %v4158
    %v4967 = vpack.c.b16 %v4167, %v4159
    %v4968 = vpack.c.b16 %v4168, %v4160
    %v4969 = vpack.c.b16 %v4169, %v4161
    %v4970 = vpack.c.b16 %v4170, %v4162
    %v4971 = vpack.c.b16 %v4171, %v4163
    %v4972 = vpack.c.b16 %v4172, %v4164
    %v4973 = vpack.c.b16 %v4173, %v4165
    %v4974 = vpack.c.b16 %v4182, %v4174
    %v4975 = vpack.c.b16 %v4183, %v4175
    %v4976 = vpack.c.b16 %v4184, %v4176
    %v4977 = vpack.c.b16 %v4185, %v4177
    %v4978 = vpack.c.b16 %v4186, %v4178
    %v4979 = vpack.c.b16 %v4187, %v4179
    %v4980 = vpack.c.b16 %v4188, %v4180
    %v4981 = vpack.c.b16 %v4189, %v4181
    %v4982 = vpack.c.b16 %v4198, %v4190
    %v4983 = vpack.c.b16 %v4199, %v4191
    %v4984 = vpack.c.b16 %v4200, %v4192
    %v4985 = vpack.c.b16 %v4201, %v4193
    %v4986 = vpack.c.b16 %v4202, %v4194
    %v4987 = vpack.c.b16 %v4203, %v4195
    %v4988 = vpack.c.b16 %v4204, %v4196
    %v4989 = vpack.c.b16 %v4205, %v4197
    %v4990 = vpack.c.b16 %v4214, %v4206
    %v4991 = vpack.c.b16 %v4215, %v4207
    %v4992 = vpack.c.b16 %v4216, %v4208
    %v4993 = vpack.c.b16 %v4217, %v4209
    %v4994 = vpack.c.b16 %v4218, %v4210
    %v4995 = vpack.c.b16 %v4219, %v4211
    %v4996 = vpack.c.b16 %v4220, %v4212
    %v4997 = vpack.c.b16 %v4221, %v4213
    %v4998 = vpack.c.b16 %v4230, %v4222
    %v4999 = vpack.c.b16 %v4231, %v4223
    %v5000 = vpack.c.b16 %v4232, %v4224
    %v5001 = vpack.c.b16 %v4233, %v4225
    %v5002 = vpack.c.b16 %v4234, %v4226
    %v5003 = vpack.c.b16 %v4235, %v4227
    %v5004 = vpack.c.b16 %v4236, %v4228
    %v5005 = vpack.c.b16 %v4237, %v4229
    %v5006 = vpack.c.b16 %v4246, %v4238
    %v5007 = vpack.c.b16 %v4247, %v4239
    %v5008 = vpack.c.b16 %v4248, %v4240
    %v5009 = vpack.c.b16 %v4249, %v4241
    %v5010 = vpack.c.b16 %v4250, %v4242
    %v5011 = vpack.c.b16 %v4251, %v4243
    %v5012 = vpack.c.b16 %v4252, %v4244
    %v5013 = vpack.c.b16 %v4253, %v4245
    %v5014 = vpack.c.b16 %v4262, %v4254
    %v5015 = vpack.c.b16 %v4263, %v4255
    %v5016 = vpack.c.b16 %v4264, %v4256
    %v5017 = vpack.c.b16 %v4265, %v4257
    %v5018 = vpack.c.b16 %v4266, %v4258
    %v5019 = vpack.c.b16 %v4267, %v4259
    %v5020 = vpack.c.b16 %v4268, %v4260
    %v5021 = vpack.c.b16 %v4269, %v4261
    %v5022 = vpack.c.b16 %v4278, %v4270
    %v5023 = vpack.c.b16 %v4279, %v4271
    %v5024 = vpack.c.b16 %v4280, %v4272
    %v5025 = vpack.c.b16 %v4281, %v4273
    %v5026 = vpack.c.b16 %v4282, %v4274
    %v5027 = vpack.c.b16 %v4283, %v4275
    %v5028 = vpack.c.b16 %v4284, %v4276
    %v5029 = vpack.c.b16 %v4285, %v4277
    %v5030 = vpack.c.b16 %v4294, %v4286
    %v5031 = vpack.c.b16 %v4295, %v4287
    %v5032 = vpack.c.b16 %v4296, %v4288
    %v5033 = vpack.c.b16 %v4297, %v4289
    %v5034 = vpack.c.b16 %v4298, %v4290
    %v5035 = vpack.c.b16 %v4299, %v4291
    %v5036 = vpack.c.b16 %v4300, %v4292
    %v5037 = vpack.c.b16 %v4301, %v4293
    %v5038 = vpack.c.b16 %v4310, %v4302
    %v5039 = vpack.c.b16 %v4311, %v4303
    %v5040 = vpack.c.b16 %v4312, %v4304
    %v5041 = vpack.c.b16 %v4313, %v4305
    %v5042 = vpack.c.b16 %v4314, %v4306
    %v5043 = vpack.c.b16 %v4315, %v4307
    %v5044 = vpack.c.b16 %v4316, %v4308
    %v5045 = vpack.c.b16 %v4317, %v4309
    %v5046 = vpack.c.b16 %v4326, %v4318
    %v5047 = vpack.c.b16 %v4327, %v4319
    %v5048 = vpack.c.b16 %v4328, %v4320
    %v5049 = vpack.c.b16 %v4329, %v4321
    %v5050 = vpack.c.b16 %v4330, %v4322
    %v5051 = vpack.c.b16 %v4331, %v4323
    %v5052 = vpack.c.b16 %v4332, %v4324
    %v5053 = vpack.c.b16 %v4333, %v4325
    %v5054 = vpack.c.b16 %v4342, %v4334
    %v5055 = vpack.c.b16 %v4343, %v4335
    %v5056 = vpack.c.b16 %v4344, %v4336
    %v5057 = vpack.c.b16 %v4345, %v4337
    %v5058 = vpack.c.b16 %v4346, %v4338
    %v5059 = vpack.c.b16 %v4347, %v4339
    %v5060 = vpack.c.b16 %v4348, %v4340
    %v5061 = vpack.c.b16 %v4349, %v4341
    %v5062 = vpack.c.b16 %v4358, %v4350
    %v5063 = vpack.c.b16 %v4359, %v4351
    %v5064 = vpack.c.b16 %v4360, %v4352
    %v5065 = vpack.c.b16 %v4361, %v4353
    %v5066 = vpack.c.b16 %v4362, %v4354
    %v5067 = vpack.c.b16 %v4363, %v4355
    %v5068 = vpack.c.b16 %v4364, %v4356
    %v5069 = vpack.c.b16 %v4365, %v4357
    %v5070 = vpack.c.b16 %v4374, %v4366
    %v5071 = vpack.c.b16 %v4375, %v4367
    %v5072 = vpack.c.b16 %v4376, %v4368
    %v5073 = vpack.c.b16 %v4377, %v4369
    %v5074 = vpack.c.b16 %v4378, %v4370
    %v5075 = vpack.c.b16 %v4379, %v4371
    %v5076 = vpack.c.b16 %v4380, %v4372
    %v5077 = vpack.c.b16 %v4381, %v4373
    %v5078 = vpack.c.b16 %v4390, %v4382
    %v5079 = vpack.c.b16 %v4391, %v4383
    %v5080 = vpack.c.b16 %v4392, %v4384
    %v5081 = vpack.c.b16 %v4393, %v4385
    %v5082 = vpack.c.b16 %v4394, %v4386
    %v5083 = vpack.c.b16 %v4395, %v4387
    %v5084 = vpack.c.b16 %v4396, %v4388
    %v5085 = vpack.c.b16 %v4397, %v4389
    %v5086 = vpack.c.b16 %v4406, %v4398
    %v5087 = vpack.c.b16 %v4407, %v4399
    %v5088 = vpack.c.b16 %v4408, %v4400
    %v5089 = vpack.c.b16 %v4409, %v4401
    %v5090 = vpack.c.b16 %v4410, %v4402
    %v5091 = vpack.c.b16 %v4411, %v4403
    %v5092 = vpack.c.b16 %v4412, %v4404
    %v5093 = vpack.c.b16 %v4413, %v4405
    %v5094 = vpack.c.b16 %v4422, %v4414
    %v5095 = vpack.c.b16 %v4423, %v4415
    %v5096 = vpack.c.b16 %v4424, %v4416
    %v5097 = vpack.c.b16 %v4425, %v4417
    %v5098 = vpack.c.b16 %v4426, %v4418
    %v5099 = vpack.c.b16 %v4427, %v4419
    %v5100 = vpack.c.b16 %v4428, %v4420
    %v5101 = vpack.c.b16 %v4429, %v4421
    %v5102 = vpack.c.b16 %v4438, %v4430
    %v5103 = vpack.c.b16 %v4439, %v4431
    %v5104 = vpack.c.b16 %v4440, %v4432
    %v5105 = vpack.c.b16 %v4441, %v4433
    %v5106 = vpack.c.b16 %v4442, %v4434
    %v5107 = vpack.c.b16 %v4443, %v4435
    %v5108 = vpack.c.b16 %v4444, %v4436
    %v5109 = vpack.c.b16 %v4445, %v4437
    %v5110 = vpack.c.b16 %v4454, %v4446
    %v5111 = vpack.c.b16 %v4455, %v4447
    %v5112 = vpack.c.b16 %v4456, %v4448
    %v5113 = vpack.c.b16 %v4457, %v4449
    %v5114 = vpack.c.b16 %v4458, %v4450
    %v5115 = vpack.c.b16 %v4459, %v4451
    %v5116 = vpack.c.b16 %v4460, %v4452
    %v5117 = vpack.c.b16 %v4461, %v4453
    %v5118 = vpack.c.b16 %v4470, %v4462
    %v5119 = vpack.c.b16 %v4471, %v4463
    %v5120 = vpack.c.b16 %v4472, %v4464
    %v5121 = vpack.c.b16 %v4473, %v4465
    %v5122 = vpack.c.b16 %v4474, %v4466
    %v5123 = vpack.c.b16 %v4475, %v4467
    %v5124 = vpack.c.b16 %v4476, %v4468
    %v5125 = vpack.c.b16 %v4477, %v4469
    %v5126 = vpack.c.b16 %v4486, %v4478
    %v5127 = vpack.c.b16 %v4487, %v4479
    %v5128 = vpack.c.b16 %v4488, %v4480
    %v5129 = vpack.c.b16 %v4489, %v4481
    %v5130 = vpack.c.b16 %v4490, %v4482
    %v5131 = vpack.c.b16 %v4491, %v4483
    %v5132 = vpack.c.b16 %v4492, %v4484
    %v5133 = vpack.c.b16 %v4493, %v4485
    %v5134 = vpack.c.b16 %v4502, %v4494
    %v5135 = vpack.c.b16 %v4503, %v4495
    %v5136 = vpack.c.b16 %v4504, %v4496
    %v5137 = vpack.c.b16 %v4505, %v4497
    %v5138 = vpack.c.b16 %v4506, %v4498
    %v5139 = vpack.c.b16 %v4507, %v4499
    %v5140 = vpack.c.b16 %v4508, %v4500
    %v5141 = vpack.c.b16 %v4509, %v4501
    %v5142 = vpack.c.b16 %v4518, %v4510
    %v5143 = vpack.c.b16 %v4519, %v4511
    %v5144 = vpack.c.b16 %v4520, %v4512
    %v5145 = vpack.c.b16 %v4521, %v4513
    %v5146 = vpack.c.b16 %v4522, %v4514
    %v5147 = vpack.c.b16 %v4523, %v4515
    %v5148 = vpack.c.b16 %v4524, %v4516
    %v5149 = vpack.c.b16 %v4525, %v4517
    %v5150 = vpack.c.b16 %v4534, %v4526
    %v5151 = vpack.c.b16 %v4535, %v4527
    %v5152 = vpack.c.b16 %v4536, %v4528
    %v5153 = vpack.c.b16 %v4537, %v4529
    %v5154 = vpack.c.b16 %v4538, %v4530
    %v5155 = vpack.c.b16 %v4539, %v4531
    %v5156 = vpack.c.b16 %v4540, %v4532
    %v5157 = vpack.c.b16 %v4541, %v4533
    %v5158 = vpack.c.b16 %v4550, %v4542
    %v5159 = vpack.c.b16 %v4551, %v4543
    %v5160 = vpack.c.b16 %v4552, %v4544
    %v5161 = vpack.c.b16 %v4553, %v4545
    %v5162 = vpack.c.b16 %v4554, %v4546
    %v5163 = vpack.c.b16 %v4555, %v4547
    %v5164 = vpack.c.b16 %v4556, %v4548
    %v5165 = vpack.c.b16 %v4557, %v4549
    %v5166 = vpack.c.b16 %v4566, %v4558
    %v5167 = vpack.c.b16 %v4567, %v4559
    %v5168 = vpack.c.b16 %v4568, %v4560
    %v5169 = vpack.c.b16 %v4569, %v4561
    %v5170 = vpack.c.b16 %v4570, %v4562
    %v5171 = vpack.c.b16 %v4571, %v4563
    %v5172 = vpack.c.b16 %v4572, %v4564
    %v5173 = vpack.c.b16 %v4573, %v4565
    %v5174 = vpack.c.b16 %v4582, %v4574
    %v5175 = vpack.c.b16 %v4583, %v4575
    %v5176 = vpack.c.b16 %v4584, %v4576
    %v5177 = vpack.c.b16 %v4585, %v4577
    %v5178 = vpack.c.b16 %v4586, %v4578
    %v5179 = vpack.c.b16 %v4587, %v4579
    %v5180 = vpack.c.b16 %v4588, %v4580
    %v5181 = vpack.c.b16 %v4589, %v4581
    %v5182 = vpack.c.b16 %v4598, %v4590
    %v5183 = vpack.c.b16 %v4599, %v4591
    %v5184 = vpack.c.b16 %v4600, %v4592
    %v5185 = vpack.c.b16 %v4601, %v4593
    %v5186 = vpack.c.b16 %v4602, %v4594
    %v5187 = vpack.c.b16 %v4603, %v4595
    %v5188 = vpack.c.b16 %v4604, %v4596
    %v5189 = vpack.c.b16 %v4605, %v4597
    %v5190 = vpack.c.b16 %v4614, %v4606
    %v5191 = vpack.c.b16 %v4615, %v4607
    %v5192 = vpack.c.b16 %v4616, %v4608
    %v5193 = vpack.c.b16 %v4617, %v4609
    %v5194 = vpack.c.b16 %v4618, %v4610
    %v5195 = vpack.c.b16 %v4619, %v4611
    %v5196 = vpack.c.b16 %v4620, %v4612
    %v5197 = vpack.c.b16 %v4621, %v4613
    %v5198 = vpack.c.b16 %v4630, %v4622
    %v5199 = vpack.c.b16 %v4631, %v4623
    %v5200 = vpack.c.b16 %v4632, %v4624
    %v5201 = vpack.c.b16 %v4633, %v4625
    %v5202 = vpack.c.b16 %v4634, %v4626
    %v5203 = vpack.c.b16 %v4635, %v4627
    %v5204 = vpack.c.b16 %v4636, %v4628
    %v5205 = vpack.c.b16 %v4637, %v4629
    %v5206 = vpack.c.b16 %v4646, %v4638
    %v5207 = vpack.c.b16 %v4647, %v4639
    %v5208 = vpack.c.b16 %v4648, %v4640
    %v5209 = vpack.c.b16 %v4649, %v4641
    %v5210 = vpack.c.b16 %v4650, %v4642
    %v5211 = vpack.c.b16 %v4651, %v4643
    %v5212 = vpack.c.b16 %v4652, %v4644
    %v5213 = vpack.c.b16 %v4653, %v4645
    %v5214 = vpack.c.b16 %v4662, %v4654
    %v5215 = vpack.c.b16 %v4663, %v4655
    %v5216 = vpack.c.b16 %v4664, %v4656
    %v5217 = vpack.c.b16 %v4665, %v4657
    %v5218 = vpack.c.b16 %v4666, %v4658
    %v5219 = vpack.c.b16 %v4667, %v4659
    %v5220 = vpack.c.b16 %v4668, %v4660
    %v5221 = vpack.c.b16 %v4669, %v4661
    %v5222 = vpack.c.b16 %v4678, %v4670
    %v5223 = vpack.c.b16 %v4679, %v4671
    %v5224 = vpack.c.b16 %v4680, %v4672
    %v5225 = vpack.c.b16 %v4681, %v4673
    %v5226 = vpack.c.b16 %v4682, %v4674
    %v5227 = vpack.c.b16 %v4683, %v4675
    %v5228 = vpack.c.b16 %v4684, %v4676
    %v5229 = vpack.c.b16 %v4685, %v4677
    %v5230 = vpack.c.b16 %v4694, %v4686
    %v5231 = vpack.c.b16 %v4695, %v4687
    %v5232 = vpack.c.b16 %v4696, %v4688
    %v5233 = vpack.c.b16 %v4697, %v4689
    %v5234 = vpack.c.b16 %v4698, %v4690
    %v5235 = vpack.c.b16 %v4699, %v4691
    %v5236 = vpack.c.b16 %v4700, %v4692
    %v5237 = vpack.c.b16 %v4701, %v4693
    %v5238 = vpack.c.b16 %v4710, %v4702
    %v5239 = vpack.c.b16 %v4711, %v4703
    %v5240 = vpack.c.b16 %v4712, %v4704
    %v5241 = vpack.c.b16 %v4713, %v4705
    %v5242 = vpack.c.b16 %v4714, %v4706
    %v5243 = vpack.c.b16 %v4715, %v4707
    %v5244 = vpack.c.b16 %v4716, %v4708
    %v5245 = vpack.c.b16 %v4717, %v4709
    %v5246 = vpack.c.b16 %v4726, %v4718
    %v5247 = vpack.c.b16 %v4727, %v4719
    %v5248 = vpack.c.b16 %v4728, %v4720
    %v5249 = vpack.c.b16 %v4729, %v4721
    %v5250 = vpack.c.b16 %v4730, %v4722
    %v5251 = vpack.c.b16 %v4731, %v4723
    %v5252 = vpack.c.b16 %v4732, %v4724
    %v5253 = vpack.c.b16 %v4733, %v4725
    %v5254 = vpack.c.b16 %v4742, %v4734
    %v5255 = vpack.c.b16 %v4743, %v4735
    %v5256 = vpack.c.b16 %v4744, %v4736
    %v5257 = vpack.c.b16 %v4745, %v4737
    %v5258 = vpack.c.b16 %v4746, %v4738
    %v5259 = vpack.c.b16 %v4747, %v4739
    %v5260 = vpack.c.b16 %v4748, %v4740
    %v5261 = vpack.c.b16 %v4749, %v4741
    %5774 = vmatprep.subr.bf16.mxu0 %v4751
    %5775 = vmatpush1.bf16.msra.mxu0 %v4750
    %5776 = vmatprep.subr.bf16.mxu0 %v4759
    %5777 = vmatpush1.bf16.msra.mxu0 %v4758
    %5778 = vmatprep.subr.bf16.mxu0 %v4767
    %5779 = vmatpush1.bf16.msra.mxu0 %v4766
    %5780 = vmatprep.subr.bf16.mxu0 %v4775
    %5781 = vmatpush1.bf16.msra.mxu0 %v4774
    %5782 = vmatprep.subr.bf16.mxu0 %v4783
    %5783 = vmatpush1.bf16.msra.mxu0 %v4782
    %5784 = vmatprep.subr.bf16.mxu0 %v4791
    %5785 = vmatpush1.bf16.msra.mxu0 %v4790
    %5786 = vmatprep.subr.bf16.mxu0 %v4799
    %5787 = vmatpush1.bf16.msra.mxu0 %v4798
    %5788 = vmatprep.subr.bf16.mxu0 %v4807
    %5789 = vmatpush1.bf16.msra.mxu0 %v4806
    %5790 = vmatprep.subr.bf16.mxu0 %v4815
    %5791 = vmatpush1.bf16.msra.mxu0 %v4814
    %5792 = vmatprep.subr.bf16.mxu0 %v4823
    %5793 = vmatpush1.bf16.msra.mxu0 %v4822
    %5794 = vmatprep.subr.bf16.mxu0 %v4831
    %5795 = vmatpush1.bf16.msra.mxu0 %v4830
    %5796 = vmatprep.subr.bf16.mxu0 %v4839
    %5797 = vmatpush1.bf16.msra.mxu0 %v4838
    %5798 = vmatprep.subr.bf16.mxu0 %v4847
    %5799 = vmatpush1.bf16.msra.mxu0 %v4846
    %5800 = vmatprep.subr.bf16.mxu0 %v4855
    %5801 = vmatpush1.bf16.msra.mxu0 %v4854
    %5802 = vmatprep.subr.bf16.mxu0 %v4863
    %5803 = vmatpush1.bf16.msra.mxu0 %v4862
    %5804 = vmatprep.subr.bf16.mxu0 %v4871
    %5805 = vmatpush1.bf16.msra.mxu0 %v4870
    %5806 = vmatprep.mubr.bf16.mxu0 %v2653
    %5807 = vmatmul.mubr.bf16.gmra.mrb[0].mxu0 %v2652
    %v5808 = vpop.f32.mrb[0].mxu0
    %v5809 = vadd.f32 %v3177, %v5808
    %v5810 = vpop.f32.mrb[0].mxu0
    %v5811 = vadd.f32 %v3181, %v5810
    %v5812 = vpop.f32.mrb[0].mxu0
    %v5813 = vpop.f32.mrb[0].mxu0
    %5814 = vdwg.mxu0
    %5815 = vmatprep.subr.bf16.mxu0 %v4879
    %5816 = vmatpush1.bf16.msra.mxu0 %v4878
    %5817 = vmatprep.subr.bf16.mxu0 %v4887
    %5818 = vmatpush1.bf16.msra.mxu0 %v4886
    %5819 = vmatprep.subr.bf16.mxu0 %v4895
    %5820 = vmatpush1.bf16.msra.mxu0 %v4894
    %5821 = vmatprep.subr.bf16.mxu0 %v4903
    %5822 = vmatpush1.bf16.msra.mxu0 %v4902
    %5823 = vmatprep.subr.bf16.mxu0 %v4911
    %5824 = vmatpush1.bf16.msra.mxu0 %v4910
    %5825 = vmatprep.subr.bf16.mxu0 %v4919
    %5826 = vmatpush1.bf16.msra.mxu0 %v4918
    %5827 = vmatprep.subr.bf16.mxu0 %v4927
    %5828 = vmatpush1.bf16.msra.mxu0 %v4926
    %5829 = vmatprep.subr.bf16.mxu0 %v4935
    %5830 = vmatpush1.bf16.msra.mxu0 %v4934
    %5831 = vmatprep.subr.bf16.mxu0 %v4943
    %5832 = vmatpush1.bf16.msra.mxu0 %v4942
    %5833 = vmatprep.subr.bf16.mxu0 %v4951
    %5834 = vmatpush1.bf16.msra.mxu0 %v4950
    %5835 = vmatprep.subr.bf16.mxu0 %v4959
    %5836 = vmatpush1.bf16.msra.mxu0 %v4958
    %5837 = vmatprep.subr.bf16.mxu0 %v4967
    %5838 = vmatpush1.bf16.msra.mxu0 %v4966
    %5839 = vmatprep.subr.bf16.mxu0 %v4975
    %5840 = vmatpush1.bf16.msra.mxu0 %v4974
    %5841 = vmatprep.subr.bf16.mxu0 %v4983
    %5842 = vmatpush1.bf16.msra.mxu0 %v4982
    %5843 = vmatprep.subr.bf16.mxu0 %v4991
    %5844 = vmatpush1.bf16.msra.mxu0 %v4990
    %5845 = vmatprep.subr.bf16.mxu0 %v4999
    %5846 = vmatpush1.bf16.msra.mxu0 %v4998
    %5847 = vmatprep.mubr.bf16.mxu0 %v2655
    %5848 = vmatmul.mubr.bf16.gmra.mrb[0].mxu0 %v2654
    %v5849 = vpop.f32.mrb[0].mxu0
    %v5850 = vadd.f32 %v5809, %v5849
    %v5851 = vpop.f32.mrb[0].mxu0
    %v5852 = vadd.f32 %v5811, %v5851
    %v5853 = vpop.f32.mrb[0].mxu0
    %v5854 = vpop.f32.mrb[0].mxu0
    %5855 = vdwg.mxu0
    %5856 = vmatprep.subr.bf16.mxu0 %v5007
    %5857 = vmatpush1.bf16.msra.mxu0 %v5006
    %5858 = vmatprep.subr.bf16.mxu0 %v5015
    %5859 = vmatpush1.bf16.msra.mxu0 %v5014
    %5860 = vmatprep.subr.bf16.mxu0 %v5023
    %5861 = vmatpush1.bf16.msra.mxu0 %v5022
    %5862 = vmatprep.subr.bf16.mxu0 %v5031
    %5863 = vmatpush1.bf16.msra.mxu0 %v5030
    %5864 = vmatprep.subr.bf16.mxu0 %v5039
    %5865 = vmatpush1.bf16.msra.mxu0 %v5038
    %5866 = vmatprep.subr.bf16.mxu0 %v5047
    %5867 = vmatpush1.bf16.msra.mxu0 %v5046
    %5868 = vmatprep.subr.bf16.mxu0 %v5055
    %5869 = vmatpush1.bf16.msra.mxu0 %v5054
    %5870 = vmatprep.subr.bf16.mxu0 %v5063
    %5871 = vmatpush1.bf16.msra.mxu0 %v5062
    %5872 = vmatprep.subr.bf16.mxu0 %v5071
    %5873 = vmatpush1.bf16.msra.mxu0 %v5070
    %5874 = vmatprep.subr.bf16.mxu0 %v5079
    %5875 = vmatpush1.bf16.msra.mxu0 %v5078
    %5876 = vmatprep.subr.bf16.mxu0 %v5087
    %5877 = vmatpush1.bf16.msra.mxu0 %v5086
    %5878 = vmatprep.subr.bf16.mxu0 %v5095
    %5879 = vmatpush1.bf16.msra.mxu0 %v5094
    %5880 = vmatprep.subr.bf16.mxu0 %v5103
    %5881 = vmatpush1.bf16.msra.mxu0 %v5102
    %5882 = vmatprep.subr.bf16.mxu0 %v5111
    %5883 = vmatpush1.bf16.msra.mxu0 %v5110
    %5884 = vmatprep.subr.bf16.mxu0 %v5119
    %5885 = vmatpush1.bf16.msra.mxu0 %v5118
    %5886 = vmatprep.subr.bf16.mxu0 %v5127
    %5887 = vmatpush1.bf16.msra.mxu0 %v5126
    %5888 = vmatprep.mubr.bf16.mxu0 %v2657
    %5889 = vmatmul.mubr.bf16.gmra.mrb[0].mxu0 %v2656
    %v5890 = vpop.f32.mrb[0].mxu0
    %v5891 = vadd.f32 %v5850, %v5890
    %v5892 = vpop.f32.mrb[0].mxu0
    %v5893 = vadd.f32 %v5852, %v5892
    %v5894 = vpop.f32.mrb[0].mxu0
    %v5895 = vpop.f32.mrb[0].mxu0
    %5896 = vdwg.mxu0
    %5897 = vmatprep.subr.bf16.mxu0 %v5135
    %5898 = vmatpush1.bf16.msra.mxu0 %v5134
    %5899 = vmatprep.subr.bf16.mxu0 %v5143
    %5900 = vmatpush1.bf16.msra.mxu0 %v5142
    %5901 = vmatprep.subr.bf16.mxu0 %v5151
    %5902 = vmatpush1.bf16.msra.mxu0 %v5150
    %5903 = vmatprep.subr.bf16.mxu0 %v5159
    %5904 = vmatpush1.bf16.msra.mxu0 %v5158
    %5905 = vmatprep.subr.bf16.mxu0 %v5167
    %5906 = vmatpush1.bf16.msra.mxu0 %v5166
    %5907 = vmatprep.subr.bf16.mxu0 %v5175
    %5908 = vmatpush1.bf16.msra.mxu0 %v5174
    %5909 = vmatprep.subr.bf16.mxu0 %v5183
    %5910 = vmatpush1.bf16.msra.mxu0 %v5182
    %5911 = vmatprep.subr.bf16.mxu0 %v5191
    %5912 = vmatpush1.bf16.msra.mxu0 %v5190
    %5913 = vmatprep.subr.bf16.mxu0 %v5199
    %5914 = vmatpush1.bf16.msra.mxu0 %v5198
    %5915 = vmatprep.subr.bf16.mxu0 %v5207
    %5916 = vmatpush1.bf16.msra.mxu0 %v5206
    %5917 = vmatprep.subr.bf16.mxu0 %v5215
    %5918 = vmatpush1.bf16.msra.mxu0 %v5214
    %5919 = vmatprep.subr.bf16.mxu0 %v5223
    %5920 = vmatpush1.bf16.msra.mxu0 %v5222
    %5921 = vmatprep.subr.bf16.mxu0 %v5231
    %5922 = vmatpush1.bf16.msra.mxu0 %v5230
    %5923 = vmatprep.subr.bf16.mxu0 %v5239
    %5924 = vmatpush1.bf16.msra.mxu0 %v5238
    %5925 = vmatprep.subr.bf16.mxu0 %v5247
    %5926 = vmatpush1.bf16.msra.mxu0 %v5246
    %5927 = vmatprep.subr.bf16.mxu0 %v5255
    %5928 = vmatpush1.bf16.msra.mxu0 %v5254
    %5929 = vmatprep.mubr.bf16.mxu0 %v2659
    %5930 = vmatmul.mubr.bf16.gmra.mrb[0].mxu0 %v2658
    %v5931 = vpop.f32.mrb[0].mxu0
    %v5932 = vadd.f32 %v5891, %v5931
    %v5933 = vpop.f32.mrb[0].mxu0
    %v5934 = vadd.f32 %v5893, %v5933
    %v5935 = vpop.f32.mrb[0].mxu0
    %v5936 = vpop.f32.mrb[0].mxu0
    %5937 = vdwg.mxu0
    %5938 = vmatprep.subr.bf16.mxu0 %v4753
    %5939 = vmatpush1.bf16.msra.mxu0 %v4752
    %5940 = vmatprep.subr.bf16.mxu0 %v4761
    %5941 = vmatpush1.bf16.msra.mxu0 %v4760
    %5942 = vmatprep.subr.bf16.mxu0 %v4769
    %5943 = vmatpush1.bf16.msra.mxu0 %v4768
    %5944 = vmatprep.subr.bf16.mxu0 %v4777
    %5945 = vmatpush1.bf16.msra.mxu0 %v4776
    %5946 = vmatprep.subr.bf16.mxu0 %v4785
    %5947 = vmatpush1.bf16.msra.mxu0 %v4784
    %5948 = vmatprep.subr.bf16.mxu0 %v4793
    %5949 = vmatpush1.bf16.msra.mxu0 %v4792
    %5950 = vmatprep.subr.bf16.mxu0 %v4801
    %5951 = vmatpush1.bf16.msra.mxu0 %v4800
    %5952 = vmatprep.subr.bf16.mxu0 %v4809
    %5953 = vmatpush1.bf16.msra.mxu0 %v4808
    %5954 = vmatprep.subr.bf16.mxu0 %v4817
    %5955 = vmatpush1.bf16.msra.mxu0 %v4816
    %5956 = vmatprep.subr.bf16.mxu0 %v4825
    %5957 = vmatpush1.bf16.msra.mxu0 %v4824
    %5958 = vmatprep.subr.bf16.mxu0 %v4833
    %5959 = vmatpush1.bf16.msra.mxu0 %v4832
    %5960 = vmatprep.subr.bf16.mxu0 %v4841
    %5961 = vmatpush1.bf16.msra.mxu0 %v4840
    %5962 = vmatprep.subr.bf16.mxu0 %v4849
    %5963 = vmatpush1.bf16.msra.mxu0 %v4848
    %5964 = vmatprep.subr.bf16.mxu0 %v4857
    %5965 = vmatpush1.bf16.msra.mxu0 %v4856
    %5966 = vmatprep.subr.bf16.mxu0 %v4865
    %5967 = vmatpush1.bf16.msra.mxu0 %v4864
    %5968 = vmatprep.subr.bf16.mxu0 %v4873
    %5969 = vmatpush1.bf16.msra.mxu0 %v4872
    %5970 = vmatprep.mubr.bf16.mxu0 %v2653
    %5971 = vmatmul.mubr.bf16.gmra.mrb[0].mxu0 %v2652
    %v5972 = vpop.f32.mrb[0].mxu0
    %v5973 = vadd.f32 %v3185, %v5972
    %v5974 = vpop.f32.mrb[0].mxu0
    %v5975 = vadd.f32 %v3189, %v5974
    %v5976 = vpop.f32.mrb[0].mxu0
    %v5977 = vpop.f32.mrb[0].mxu0
    %5978 = vdwg.mxu0
    %5979 = vmatprep.subr.bf16.mxu0 %v4881
    %5980 = vmatpush1.bf16.msra.mxu0 %v4880
    %5981 = vmatprep.subr.bf16.mxu0 %v4889
    %5982 = vmatpush1.bf16.msra.mxu0 %v4888
    %5983 = vmatprep.subr.bf16.mxu0 %v4897
    %5984 = vmatpush1.bf16.msra.mxu0 %v4896
    %5985 = vmatprep.subr.bf16.mxu0 %v4905
    %5986 = vmatpush1.bf16.msra.mxu0 %v4904
    %5987 = vmatprep.subr.bf16.mxu0 %v4913
    %5988 = vmatpush1.bf16.msra.mxu0 %v4912
    %5989 = vmatprep.subr.bf16.mxu0 %v4921
    %5990 = vmatpush1.bf16.msra.mxu0 %v4920
    %5991 = vmatprep.subr.bf16.mxu0 %v4929
    %5992 = vmatpush1.bf16.msra.mxu0 %v4928
    %5993 = vmatprep.subr.bf16.mxu0 %v4937
    %5994 = vmatpush1.bf16.msra.mxu0 %v4936
    %5995 = vmatprep.subr.bf16.mxu0 %v4945
    %5996 = vmatpush1.bf16.msra.mxu0 %v4944
    %5997 = vmatprep.subr.bf16.mxu0 %v4953
    %5998 = vmatpush1.bf16.msra.mxu0 %v4952
    %5999 = vmatprep.subr.bf16.mxu0 %v4961
    %6000 = vmatpush1.bf16.msra.mxu0 %v4960
    %6001 = vmatprep.subr.bf16.mxu0 %v4969
    %6002 = vmatpush1.bf16.msra.mxu0 %v4968
    %6003 = vmatprep.subr.bf16.mxu0 %v4977
    %6004 = vmatpush1.bf16.msra.mxu0 %v4976
    %6005 = vmatprep.subr.bf16.mxu0 %v4985
    %6006 = vmatpush1.bf16.msra.mxu0 %v4984
    %6007 = vmatprep.subr.bf16.mxu0 %v4993
    %6008 = vmatpush1.bf16.msra.mxu0 %v4992
    %6009 = vmatprep.subr.bf16.mxu0 %v5001
    %6010 = vmatpush1.bf16.msra.mxu0 %v5000
    %6011 = vmatprep.mubr.bf16.mxu0 %v2655
    %6012 = vmatmul.mubr.bf16.gmra.mrb[0].mxu0 %v2654
    %v6013 = vpop.f32.mrb[0].mxu0
    %v6014 = vadd.f32 %v5973, %v6013
    %v6015 = vpop.f32.mrb[0].mxu0
    %v6016 = vadd.f32 %v5975, %v6015
    %v6017 = vpop.f32.mrb[0].mxu0
    %v6018 = vpop.f32.mrb[0].mxu0
    %6019 = vdwg.mxu0
    %6020 = vmatprep.subr.bf16.mxu0 %v5009
    %6021 = vmatpush1.bf16.msra.mxu0 %v5008
    %6022 = vmatprep.subr.bf16.mxu0 %v5017
    %6023 = vmatpush1.bf16.msra.mxu0 %v5016
    %6024 = vmatprep.subr.bf16.mxu0 %v5025
    %6025 = vmatpush1.bf16.msra.mxu0 %v5024
    %6026 = vmatprep.subr.bf16.mxu0 %v5033
    %6027 = vmatpush1.bf16.msra.mxu0 %v5032
    %6028 = vmatprep.subr.bf16.mxu0 %v5041
    %6029 = vmatpush1.bf16.msra.mxu0 %v5040
    %6030 = vmatprep.subr.bf16.mxu0 %v5049
    %6031 = vmatpush1.bf16.msra.mxu0 %v5048
    %6032 = vmatprep.subr.bf16.mxu0 %v5057
    %6033 = vmatpush1.bf16.msra.mxu0 %v5056
    %6034 = vmatprep.subr.bf16.mxu0 %v5065
    %6035 = vmatpush1.bf16.msra.mxu0 %v5064
    %6036 = vmatprep.subr.bf16.mxu0 %v5073
    %6037 = vmatpush1.bf16.msra.mxu0 %v5072
    %6038 = vmatprep.subr.bf16.mxu0 %v5081
    %6039 = vmatpush1.bf16.msra.mxu0 %v5080
    %6040 = vmatprep.subr.bf16.mxu0 %v5089
    %6041 = vmatpush1.bf16.msra.mxu0 %v5088
    %6042 = vmatprep.subr.bf16.mxu0 %v5097
    %6043 = vmatpush1.bf16.msra.mxu0 %v5096
    %6044 = vmatprep.subr.bf16.mxu0 %v5105
    %6045 = vmatpush1.bf16.msra.mxu0 %v5104
    %6046 = vmatprep.subr.bf16.mxu0 %v5113
    %6047 = vmatpush1.bf16.msra.mxu0 %v5112
    %6048 = vmatprep.subr.bf16.mxu0 %v5121
    %6049 = vmatpush1.bf16.msra.mxu0 %v5120
    %6050 = vmatprep.subr.bf16.mxu0 %v5129
    %6051 = vmatpush1.bf16.msra.mxu0 %v5128
    %6052 = vmatprep.mubr.bf16.mxu0 %v2657
    %6053 = vmatmul.mubr.bf16.gmra.mrb[0].mxu0 %v2656
    %v6054 = vpop.f32.mrb[0].mxu0
    %v6055 = vadd.f32 %v6014, %v6054
    %v6056 = vpop.f32.mrb[0].mxu0
    %v6057 = vadd.f32 %v6016, %v6056
    %v6058 = vpop.f32.mrb[0].mxu0
    %v6059 = vpop.f32.mrb[0].mxu0
    %6060 = vdwg.mxu0
    %6061 = vmatprep.subr.bf16.mxu0 %v5137
    %6062 = vmatpush1.bf16.msra.mxu0 %v5136
    %6063 = vmatprep.subr.bf16.mxu0 %v5145
    %6064 = vmatpush1.bf16.msra.mxu0 %v5144
    %6065 = vmatprep.subr.bf16.mxu0 %v5153
    %6066 = vmatpush1.bf16.msra.mxu0 %v5152
    %6067 = vmatprep.subr.bf16.mxu0 %v5161
    %6068 = vmatpush1.bf16.msra.mxu0 %v5160
    %6069 = vmatprep.subr.bf16.mxu0 %v5169
    %6070 = vmatpush1.bf16.msra.mxu0 %v5168
    %6071 = vmatprep.subr.bf16.mxu0 %v5177
    %6072 = vmatpush1.bf16.msra.mxu0 %v5176
    %6073 = vmatprep.subr.bf16.mxu0 %v5185
    %6074 = vmatpush1.bf16.msra.mxu0 %v5184
    %6075 = vmatprep.subr.bf16.mxu0 %v5193
    %6076 = vmatpush1.bf16.msra.mxu0 %v5192
    %6077 = vmatprep.subr.bf16.mxu0 %v5201
    %6078 = vmatpush1.bf16.msra.mxu0 %v5200
    %6079 = vmatprep.subr.bf16.mxu0 %v5209
    %6080 = vmatpush1.bf16.msra.mxu0 %v5208
    %6081 = vmatprep.subr.bf16.mxu0 %v5217
    %6082 = vmatpush1.bf16.msra.mxu0 %v5216
    %6083 = vmatprep.subr.bf16.mxu0 %v5225
    %6084 = vmatpush1.bf16.msra.mxu0 %v5224
    %6085 = vmatprep.subr.bf16.mxu0 %v5233
    %6086 = vmatpush1.bf16.msra.mxu0 %v5232
    %6087 = vmatprep.subr.bf16.mxu0 %v5241
    %6088 = vmatpush1.bf16.msra.mxu0 %v5240
    %6089 = vmatprep.subr.bf16.mxu0 %v5249
    %6090 = vmatpush1.bf16.msra.mxu0 %v5248
    %6091 = vmatprep.subr.bf16.mxu0 %v5257
    %6092 = vmatpush1.bf16.msra.mxu0 %v5256
    %6093 = vmatprep.mubr.bf16.mxu0 %v2659
    %6094 = vmatmul.mubr.bf16.gmra.mrb[0].mxu0 %v2658
    %v6095 = vpop.f32.mrb[0].mxu0
    %v6096 = vadd.f32 %v6055, %v6095
    %v6097 = vpop.f32.mrb[0].mxu0
    %v6098 = vadd.f32 %v6057, %v6097
    %v6099 = vpop.f32.mrb[0].mxu0
    %v6100 = vpop.f32.mrb[0].mxu0
    %6101 = vdwg.mxu0
    %6102 = vmatprep.subr.bf16.mxu0 %v4755
    %6103 = vmatpush1.bf16.msra.mxu0 %v4754
    %6104 = vmatprep.subr.bf16.mxu0 %v4763
    %6105 = vmatpush1.bf16.msra.mxu0 %v4762
    %6106 = vmatprep.subr.bf16.mxu0 %v4771
    %6107 = vmatpush1.bf16.msra.mxu0 %v4770
    %6108 = vmatprep.subr.bf16.mxu0 %v4779
    %6109 = vmatpush1.bf16.msra.mxu0 %v4778
    %6110 = vmatprep.subr.bf16.mxu0 %v4787
    %6111 = vmatpush1.bf16.msra.mxu0 %v4786
    %6112 = vmatprep.subr.bf16.mxu0 %v4795
    %6113 = vmatpush1.bf16.msra.mxu0 %v4794
    %6114 = vmatprep.subr.bf16.mxu0 %v4803
    %6115 = vmatpush1.bf16.msra.mxu0 %v4802
    %6116 = vmatprep.subr.bf16.mxu0 %v4811
    %6117 = vmatpush1.bf16.msra.mxu0 %v4810
    %6118 = vmatprep.subr.bf16.mxu0 %v4819
    %6119 = vmatpush1.bf16.msra.mxu0 %v4818
    %6120 = vmatprep.subr.bf16.mxu0 %v4827
    %6121 = vmatpush1.bf16.msra.mxu0 %v4826
    %6122 = vmatprep.subr.bf16.mxu0 %v4835
    %6123 = vmatpush1.bf16.msra.mxu0 %v4834
    %6124 = vmatprep.subr.bf16.mxu0 %v4843
    %6125 = vmatpush1.bf16.msra.mxu0 %v4842
    %6126 = vmatprep.subr.bf16.mxu0 %v4851
    %6127 = vmatpush1.bf16.msra.mxu0 %v4850
    %6128 = vmatprep.subr.bf16.mxu0 %v4859
    %6129 = vmatpush1.bf16.msra.mxu0 %v4858
    %6130 = vmatprep.subr.bf16.mxu0 %v4867
    %6131 = vmatpush1.bf16.msra.mxu0 %v4866
    %6132 = vmatprep.subr.bf16.mxu0 %v4875
    %6133 = vmatpush1.bf16.msra.mxu0 %v4874
    %6134 = vmatprep.mubr.bf16.mxu0 %v2653
    %6135 = vmatmul.mubr.bf16.gmra.mrb[0].mxu0 %v2652
    %v6136 = vpop.f32.mrb[0].mxu0
    %v6137 = vadd.f32 %v3193, %v6136
    %v6138 = vpop.f32.mrb[0].mxu0
    %v6139 = vadd.f32 %v3197, %v6138
    %v6140 = vpop.f32.mrb[0].mxu0
    %v6141 = vpop.f32.mrb[0].mxu0
    %6142 = vdwg.mxu0
    %6143 = vmatprep.subr.bf16.mxu0 %v4883
    %6144 = vmatpush1.bf16.msra.mxu0 %v4882
    %6145 = vmatprep.subr.bf16.mxu0 %v4891
    %6146 = vmatpush1.bf16.msra.mxu0 %v4890
    %6147 = vmatprep.subr.bf16.mxu0 %v4899
    %6148 = vmatpush1.bf16.msra.mxu0 %v4898
    %6149 = vmatprep.subr.bf16.mxu0 %v4907
    %6150 = vmatpush1.bf16.msra.mxu0 %v4906
    %6151 = vmatprep.subr.bf16.mxu0 %v4915
    %6152 = vmatpush1.bf16.msra.mxu0 %v4914
    %6153 = vmatprep.subr.bf16.mxu0 %v4923
    %6154 = vmatpush1.bf16.msra.mxu0 %v4922
    %6155 = vmatprep.subr.bf16.mxu0 %v4931
    %6156 = vmatpush1.bf16.msra.mxu0 %v4930
    %6157 = vmatprep.subr.bf16.mxu0 %v4939
    %6158 = vmatpush1.bf16.msra.mxu0 %v4938
    %6159 = vmatprep.subr.bf16.mxu0 %v4947
    %6160 = vmatpush1.bf16.msra.mxu0 %v4946
    %6161 = vmatprep.subr.bf16.mxu0 %v4955
    %6162 = vmatpush1.bf16.msra.mxu0 %v4954
    %6163 = vmatprep.subr.bf16.mxu0 %v4963
    %6164 = vmatpush1.bf16.msra.mxu0 %v4962
    %6165 = vmatprep.subr.bf16.mxu0 %v4971
    %6166 = vmatpush1.bf16.msra.mxu0 %v4970
    %6167 = vmatprep.subr.bf16.mxu0 %v4979
    %6168 = vmatpush1.bf16.msra.mxu0 %v4978
    %6169 = vmatprep.subr.bf16.mxu0 %v4987
    %6170 = vmatpush1.bf16.msra.mxu0 %v4986
    %6171 = vmatprep.subr.bf16.mxu0 %v4995
    %6172 = vmatpush1.bf16.msra.mxu0 %v4994
    %6173 = vmatprep.subr.bf16.mxu0 %v5003
    %6174 = vmatpush1.bf16.msra.mxu0 %v5002
    %6175 = vmatprep.mubr.bf16.mxu0 %v2655
    %6176 = vmatmul.mubr.bf16.gmra.mrb[0].mxu0 %v2654
    %v6177 = vpop.f32.mrb[0].mxu0
    %v6178 = vadd.f32 %v6137, %v6177
    %v6179 = vpop.f32.mrb[0].mxu0
    %v6180 = vadd.f32 %v6139, %v6179
    %v6181 = vpop.f32.mrb[0].mxu0
    %v6182 = vpop.f32.mrb[0].mxu0
    %6183 = vdwg.mxu0
    %6184 = vmatprep.subr.bf16.mxu0 %v5011
    %6185 = vmatpush1.bf16.msra.mxu0 %v5010
    %6186 = vmatprep.subr.bf16.mxu0 %v5019
    %6187 = vmatpush1.bf16.msra.mxu0 %v5018
    %6188 = vmatprep.subr.bf16.mxu0 %v5027
    %6189 = vmatpush1.bf16.msra.mxu0 %v5026
    %6190 = vmatprep.subr.bf16.mxu0 %v5035
    %6191 = vmatpush1.bf16.msra.mxu0 %v5034
    %6192 = vmatprep.subr.bf16.mxu0 %v5043
    %6193 = vmatpush1.bf16.msra.mxu0 %v5042
    %6194 = vmatprep.subr.bf16.mxu0 %v5051
    %6195 = vmatpush1.bf16.msra.mxu0 %v5050
    %6196 = vmatprep.subr.bf16.mxu0 %v5059
    %6197 = vmatpush1.bf16.msra.mxu0 %v5058
    %6198 = vmatprep.subr.bf16.mxu0 %v5067
    %6199 = vmatpush1.bf16.msra.mxu0 %v5066
    %6200 = vmatprep.subr.bf16.mxu0 %v5075
    %6201 = vmatpush1.bf16.msra.mxu0 %v5074
    %6202 = vmatprep.subr.bf16.mxu0 %v5083
    %6203 = vmatpush1.bf16.msra.mxu0 %v5082
    %6204 = vmatprep.subr.bf16.mxu0 %v5091
    %6205 = vmatpush1.bf16.msra.mxu0 %v5090
    %6206 = vmatprep.subr.bf16.mxu0 %v5099
    %6207 = vmatpush1.bf16.msra.mxu0 %v5098
    %6208 = vmatprep.subr.bf16.mxu0 %v5107
    %6209 = vmatpush1.bf16.msra.mxu0 %v5106
    %6210 = vmatprep.subr.bf16.mxu0 %v5115
    %6211 = vmatpush1.bf16.msra.mxu0 %v5114
    %6212 = vmatprep.subr.bf16.mxu0 %v5123
    %6213 = vmatpush1.bf16.msra.mxu0 %v5122
    %6214 = vmatprep.subr.bf16.mxu0 %v5131
    %6215 = vmatpush1.bf16.msra.mxu0 %v5130
    %6216 = vmatprep.mubr.bf16.mxu0 %v2657
    %6217 = vmatmul.mubr.bf16.gmra.mrb[0].mxu0 %v2656
    %v6218 = vpop.f32.mrb[0].mxu0
    %v6219 = vadd.f32 %v6178, %v6218
    %v6220 = vpop.f32.mrb[0].mxu0
    %v6221 = vadd.f32 %v6180, %v6220
    %v6222 = vpop.f32.mrb[0].mxu0
    %v6223 = vpop.f32.mrb[0].mxu0
    %6224 = vdwg.mxu0
    %6225 = vmatprep.subr.bf16.mxu0 %v5139
    %6226 = vmatpush1.bf16.msra.mxu0 %v5138
    %6227 = vmatprep.subr.bf16.mxu0 %v5147
    %6228 = vmatpush1.bf16.msra.mxu0 %v5146
    %6229 = vmatprep.subr.bf16.mxu0 %v5155
    %6230 = vmatpush1.bf16.msra.mxu0 %v5154
    %6231 = vmatprep.subr.bf16.mxu0 %v5163
    %6232 = vmatpush1.bf16.msra.mxu0 %v5162
    %6233 = vmatprep.subr.bf16.mxu0 %v5171
    %6234 = vmatpush1.bf16.msra.mxu0 %v5170
    %6235 = vmatprep.subr.bf16.mxu0 %v5179
    %6236 = vmatpush1.bf16.msra.mxu0 %v5178
    %6237 = vmatprep.subr.bf16.mxu0 %v5187
    %6238 = vmatpush1.bf16.msra.mxu0 %v5186
    %6239 = vmatprep.subr.bf16.mxu0 %v5195
    %6240 = vmatpush1.bf16.msra.mxu0 %v5194
    %6241 = vmatprep.subr.bf16.mxu0 %v5203
    %6242 = vmatpush1.bf16.msra.mxu0 %v5202
    %6243 = vmatprep.subr.bf16.mxu0 %v5211
    %6244 = vmatpush1.bf16.msra.mxu0 %v5210
    %6245 = vmatprep.subr.bf16.mxu0 %v5219
    %6246 = vmatpush1.bf16.msra.mxu0 %v5218
    %6247 = vmatprep.subr.bf16.mxu0 %v5227
    %6248 = vmatpush1.bf16.msra.mxu0 %v5226
    %6249 = vmatprep.subr.bf16.mxu0 %v5235
    %6250 = vmatpush1.bf16.msra.mxu0 %v5234
    %6251 = vmatprep.subr.bf16.mxu0 %v5243
    %6252 = vmatpush1.bf16.msra.mxu0 %v5242
    %6253 = vmatprep.subr.bf16.mxu0 %v5251
    %6254 = vmatpush1.bf16.msra.mxu0 %v5250
    %6255 = vmatprep.subr.bf16.mxu0 %v5259
    %6256 = vmatpush1.bf16.msra.mxu0 %v5258
    %6257 = vmatprep.mubr.bf16.mxu0 %v2659
    %6258 = vmatmul.mubr.bf16.gmra.mrb[0].mxu0 %v2658
    %v6259 = vpop.f32.mrb[0].mxu0
    %v6260 = vadd.f32 %v6219, %v6259
    %v6261 = vpop.f32.mrb[0].mxu0
    %v6262 = vadd.f32 %v6221, %v6261
    %v6263 = vpop.f32.mrb[0].mxu0
    %v6264 = vpop.f32.mrb[0].mxu0
    %6265 = vdwg.mxu0
    %6266 = vmatprep.subr.bf16.mxu0 %v4757
    %6267 = vmatpush1.bf16.msra.mxu0 %v4756
    %6268 = vmatprep.subr.bf16.mxu0 %v4765
    %6269 = vmatpush1.bf16.msra.mxu0 %v4764
    %6270 = vmatprep.subr.bf16.mxu0 %v4773
    %6271 = vmatpush1.bf16.msra.mxu0 %v4772
    %6272 = vmatprep.subr.bf16.mxu0 %v4781
    %6273 = vmatpush1.bf16.msra.mxu0 %v4780
    %6274 = vmatprep.subr.bf16.mxu0 %v4789
    %6275 = vmatpush1.bf16.msra.mxu0 %v4788
    %6276 = vmatprep.subr.bf16.mxu0 %v4797
    %6277 = vmatpush1.bf16.msra.mxu0 %v4796
    %6278 = vmatprep.subr.bf16.mxu0 %v4805
    %6279 = vmatpush1.bf16.msra.mxu0 %v4804
    %6280 = vmatprep.subr.bf16.mxu0 %v4813
    %6281 = vmatpush1.bf16.msra.mxu0 %v4812
    %6282 = vmatprep.subr.bf16.mxu0 %v4821
    %6283 = vmatpush1.bf16.msra.mxu0 %v4820
    %6284 = vmatprep.subr.bf16.mxu0 %v4829
    %6285 = vmatpush1.bf16.msra.mxu0 %v4828
    %6286 = vmatprep.subr.bf16.mxu0 %v4837
    %6287 = vmatpush1.bf16.msra.mxu0 %v4836
    %6288 = vmatprep.subr.bf16.mxu0 %v4845
    %6289 = vmatpush1.bf16.msra.mxu0 %v4844
    %6290 = vmatprep.subr.bf16.mxu0 %v4853
    %6291 = vmatpush1.bf16.msra.mxu0 %v4852
    %6292 = vmatprep.subr.bf16.mxu0 %v4861
    %6293 = vmatpush1.bf16.msra.mxu0 %v4860
    %6294 = vmatprep.subr.bf16.mxu0 %v4869
    %6295 = vmatpush1.bf16.msra.mxu0 %v4868
    %6296 = vmatprep.subr.bf16.mxu0 %v4877
    %6297 = vmatpush1.bf16.msra.mxu0 %v4876
    %6298 = vmatprep.mubr.bf16.mxu0 %v2653
    %6299 = vmatmul.mubr.bf16.gmra.mrb[0].mxu0 %v2652
    %v6300 = vpop.f32.mrb[0].mxu0
    %v6301 = vadd.f32 %v3201, %v6300
    %v6302 = vpop.f32.mrb[0].mxu0
    %v6303 = vadd.f32 %v3205, %v6302
    %v6304 = vpop.f32.mrb[0].mxu0
    %v6305 = vpop.f32.mrb[0].mxu0
    %6306 = vdwg.mxu0
    %6307 = vmatprep.subr.bf16.mxu0 %v4885
    %6308 = vmatpush1.bf16.msra.mxu0 %v4884
    %6309 = vmatprep.subr.bf16.mxu0 %v4893
    %6310 = vmatpush1.bf16.msra.mxu0 %v4892
    %6311 = vmatprep.subr.bf16.mxu0 %v4901
    %6312 = vmatpush1.bf16.msra.mxu0 %v4900
    %6313 = vmatprep.subr.bf16.mxu0 %v4909
    %6314 = vmatpush1.bf16.msra.mxu0 %v4908
    %6315 = vmatprep.subr.bf16.mxu0 %v4917
    %6316 = vmatpush1.bf16.msra.mxu0 %v4916
    %6317 = vmatprep.subr.bf16.mxu0 %v4925
    %6318 = vmatpush1.bf16.msra.mxu0 %v4924
    %6319 = vmatprep.subr.bf16.mxu0 %v4933
    %6320 = vmatpush1.bf16.msra.mxu0 %v4932
    %6321 = vmatprep.subr.bf16.mxu0 %v4941
    %6322 = vmatpush1.bf16.msra.mxu0 %v4940
    %6323 = vmatprep.subr.bf16.mxu0 %v4949
    %6324 = vmatpush1.bf16.msra.mxu0 %v4948
    %6325 = vmatprep.subr.bf16.mxu0 %v4957
    %6326 = vmatpush1.bf16.msra.mxu0 %v4956
    %6327 = vmatprep.subr.bf16.mxu0 %v4965
    %6328 = vmatpush1.bf16.msra.mxu0 %v4964
    %6329 = vmatprep.subr.bf16.mxu0 %v4973
    %6330 = vmatpush1.bf16.msra.mxu0 %v4972
    %6331 = vmatprep.subr.bf16.mxu0 %v4981
    %6332 = vmatpush1.bf16.msra.mxu0 %v4980
    %6333 = vmatprep.subr.bf16.mxu0 %v4989
    %6334 = vmatpush1.bf16.msra.mxu0 %v4988
    %6335 = vmatprep.subr.bf16.mxu0 %v4997
    %6336 = vmatpush1.bf16.msra.mxu0 %v4996
    %6337 = vmatprep.subr.bf16.mxu0 %v5005
    %6338 = vmatpush1.bf16.msra.mxu0 %v5004
    %6339 = vmatprep.mubr.bf16.mxu0 %v2655
    %6340 = vmatmul.mubr.bf16.gmra.mrb[0].mxu0 %v2654
    %v6341 = vpop.f32.mrb[0].mxu0
    %v6342 = vadd.f32 %v6301, %v6341
    %v6343 = vpop.f32.mrb[0].mxu0
    %v6344 = vadd.f32 %v6303, %v6343
    %v6345 = vpop.f32.mrb[0].mxu0
    %v6346 = vpop.f32.mrb[0].mxu0
    %6347 = vdwg.mxu0
    %6348 = vmatprep.subr.bf16.mxu0 %v5013
    %6349 = vmatpush1.bf16.msra.mxu0 %v5012
    %6350 = vmatprep.subr.bf16.mxu0 %v5021
    %6351 = vmatpush1.bf16.msra.mxu0 %v5020
    %6352 = vmatprep.subr.bf16.mxu0 %v5029
    %6353 = vmatpush1.bf16.msra.mxu0 %v5028
    %6354 = vmatprep.subr.bf16.mxu0 %v5037
    %6355 = vmatpush1.bf16.msra.mxu0 %v5036
    %6356 = vmatprep.subr.bf16.mxu0 %v5045
    %6357 = vmatpush1.bf16.msra.mxu0 %v5044
    %6358 = vmatprep.subr.bf16.mxu0 %v5053
    %6359 = vmatpush1.bf16.msra.mxu0 %v5052
    %6360 = vmatprep.subr.bf16.mxu0 %v5061
    %6361 = vmatpush1.bf16.msra.mxu0 %v5060
    %6362 = vmatprep.subr.bf16.mxu0 %v5069
    %6363 = vmatpush1.bf16.msra.mxu0 %v5068
    %6364 = vmatprep.subr.bf16.mxu0 %v5077
    %6365 = vmatpush1.bf16.msra.mxu0 %v5076
    %6366 = vmatprep.subr.bf16.mxu0 %v5085
    %6367 = vmatpush1.bf16.msra.mxu0 %v5084
    %6368 = vmatprep.subr.bf16.mxu0 %v5093
    %6369 = vmatpush1.bf16.msra.mxu0 %v5092
    %6370 = vmatprep.subr.bf16.mxu0 %v5101
    %6371 = vmatpush1.bf16.msra.mxu0 %v5100
    %6372 = vmatprep.subr.bf16.mxu0 %v5109
    %6373 = vmatpush1.bf16.msra.mxu0 %v5108
    %6374 = vmatprep.subr.bf16.mxu0 %v5117
    %6375 = vmatpush1.bf16.msra.mxu0 %v5116
    %6376 = vmatprep.subr.bf16.mxu0 %v5125
    %6377 = vmatpush1.bf16.msra.mxu0 %v5124
    %6378 = vmatprep.subr.bf16.mxu0 %v5133
    %6379 = vmatpush1.bf16.msra.mxu0 %v5132
    %6380 = vmatprep.mubr.bf16.mxu0 %v2657
    %6381 = vmatmul.mubr.bf16.gmra.mrb[0].mxu0 %v2656
    %v6382 = vpop.f32.mrb[0].mxu0
    %v6383 = vadd.f32 %v6342, %v6382
    %v6384 = vpop.f32.mrb[0].mxu0
    %v6385 = vadd.f32 %v6344, %v6384
    %v6386 = vpop.f32.mrb[0].mxu0
    %v6387 = vpop.f32.mrb[0].mxu0
    %6388 = vdwg.mxu0
    %6389 = vmatprep.subr.bf16.mxu0 %v5141
    %6390 = vmatpush1.bf16.msra.mxu0 %v5140
    %6391 = vmatprep.subr.bf16.mxu0 %v5149
    %6392 = vmatpush1.bf16.msra.mxu0 %v5148
    %6393 = vmatprep.subr.bf16.mxu0 %v5157
    %6394 = vmatpush1.bf16.msra.mxu0 %v5156
    %6395 = vmatprep.subr.bf16.mxu0 %v5165
    %6396 = vmatpush1.bf16.msra.mxu0 %v5164
    %6397 = vmatprep.subr.bf16.mxu0 %v5173
    %6398 = vmatpush1.bf16.msra.mxu0 %v5172
    %6399 = vmatprep.subr.bf16.mxu0 %v5181
    %6400 = vmatpush1.bf16.msra.mxu0 %v5180
    %6401 = vmatprep.subr.bf16.mxu0 %v5189
    %6402 = vmatpush1.bf16.msra.mxu0 %v5188
    %6403 = vmatprep.subr.bf16.mxu0 %v5197
    %6404 = vmatpush1.bf16.msra.mxu0 %v5196
    %6405 = vmatprep.subr.bf16.mxu0 %v5205
    %6406 = vmatpush1.bf16.msra.mxu0 %v5204
    %6407 = vmatprep.subr.bf16.mxu0 %v5213
    %6408 = vmatpush1.bf16.msra.mxu0 %v5212
    %6409 = vmatprep.subr.bf16.mxu0 %v5221
    %6410 = vmatpush1.bf16.msra.mxu0 %v5220
    %6411 = vmatprep.subr.bf16.mxu0 %v5229
    %6412 = vmatpush1.bf16.msra.mxu0 %v5228
    %6413 = vmatprep.subr.bf16.mxu0 %v5237
    %6414 = vmatpush1.bf16.msra.mxu0 %v5236
    %6415 = vmatprep.subr.bf16.mxu0 %v5245
    %6416 = vmatpush1.bf16.msra.mxu0 %v5244
    %6417 = vmatprep.subr.bf16.mxu0 %v5253
    %6418 = vmatpush1.bf16.msra.mxu0 %v5252
    %6419 = vmatprep.subr.bf16.mxu0 %v5261
    %6420 = vmatpush1.bf16.msra.mxu0 %v5260
    %6421 = vmatprep.mubr.bf16.mxu0 %v2659
    %6422 = vmatmul.mubr.bf16.gmra.mrb[0].mxu0 %v2658
    %v6423 = vpop.f32.mrb[0].mxu0
    %v6424 = vadd.f32 %v6383, %v6423
    %v6425 = vpop.f32.mrb[0].mxu0
    %v6426 = vadd.f32 %v6385, %v6425
    %v6427 = vpop.f32.mrb[0].mxu0
    %v6428 = vpop.f32.mrb[0].mxu0
    %6429 = vdwg.mxu0
    %v6430 = vmax.f32 %v5932, 0.0
    %v6431 = vmax.f32 %v5934, 0.0
    %v6432 = vmax.f32 %v6096, 0.0
    %v6433 = vmax.f32 %v6098, 0.0
    %v6434 = vmax.f32 %v6260, 0.0
    %v6435 = vmax.f32 %v6262, 0.0
    %v6436 = vmax.f32 %v6424, 0.0
    %v6437 = vmax.f32 %v6426, 0.0
    %v6438 = vpack.c.bf16 %v6430, %v6430
    %v6439 = vpack.c.bf16 %v6431, %v6431
    %v6440 = vpack.c.bf16 %v6432, %v6432
    %v6441 = vpack.c.bf16 %v6433, %v6433
    %v6442 = vpack.c.bf16 %v6434, %v6434
    %v6443 = vpack.c.bf16 %v6435, %v6435
    %v6444 = vpack.c.bf16 %v6436, %v6436
    %v6445 = vpack.c.bf16 %v6437, %v6437
    %v6446 = vld [vmem:[#allocation15] sm:$0xff]
    %v6447 = vld [vmem:[#allocation15 + $0x8] sm:$0xff]
    %v6448 = vld [vmem:[#allocation15 + $0x10] sm:$0xff]
    %v6449 = vld [vmem:[#allocation15 + $0x18] sm:$0xff]
    %v6450 = vld [vmem:[#allocation15 + $0x20] sm:$0xff]
    %v6451 = vld [vmem:[#allocation15 + $0x28] sm:$0xff]
    %v6452 = vld [vmem:[#allocation15 + $0x30] sm:$0xff]
    %v6453 = vld [vmem:[#allocation15 + $0x38] sm:$0xff]
    %v6454 = vld [vmem:[#allocation15 + $0x40] sm:$0xff]
    %v6455 = vld [vmem:[#allocation15 + $0x48] sm:$0xff]
    %v6456 = vld [vmem:[#allocation15 + $0x50] sm:$0xff]
    %v6457 = vld [vmem:[#allocation15 + $0x58] sm:$0xff]
    %v6458 = vld [vmem:[#allocation15 + $0x60] sm:$0xff]
    %v6459 = vld [vmem:[#allocation15 + $0x68] sm:$0xff]
    %v6460 = vld [vmem:[#allocation15 + $0x70] sm:$0xff]
    %v6461 = vld [vmem:[#allocation15 + $0x78] sm:$0xff]
    %v6462 = vld [vmem:[#allocation15 + $0x80] sm:$0xff]
    %v6463 = vld [vmem:[#allocation15 + $0x88] sm:$0xff]
    %v6464 = vld [vmem:[#allocation15 + $0x90] sm:$0xff]
    %v6465 = vld [vmem:[#allocation15 + $0x98] sm:$0xff]
    %v6466 = vld [vmem:[#allocation15 + $0xa0] sm:$0xff]
    %v6467 = vld [vmem:[#allocation15 + $0xa8] sm:$0xff]
    %v6468 = vld [vmem:[#allocation15 + $0xb0] sm:$0xff]
    %v6469 = vld [vmem:[#allocation15 + $0xb8] sm:$0xff]
    %v6470 = vld [vmem:[#allocation15 + $0xc0] sm:$0xff]
    %v6471 = vld [vmem:[#allocation15 + $0xc8] sm:$0xff]
    %v6472 = vld [vmem:[#allocation15 + $0xd0] sm:$0xff]
    %v6473 = vld [vmem:[#allocation15 + $0xd8] sm:$0xff]
    %v6474 = vld [vmem:[#allocation15 + $0xe0] sm:$0xff]
    %v6475 = vld [vmem:[#allocation15 + $0xe8] sm:$0xff]
    %v6476 = vld [vmem:[#allocation15 + $0xf0] sm:$0xff]
    %v6477 = vld [vmem:[#allocation15 + $0xf8] sm:$0xff]
    %v6478 = vld [vmem:[#allocation15 + $0x100] sm:$0xff]
    %v6479 = vld [vmem:[#allocation15 + $0x108] sm:$0xff]
    %v6480 = vld [vmem:[#allocation15 + $0x110] sm:$0xff]
    %v6481 = vld [vmem:[#allocation15 + $0x118] sm:$0xff]
    %v6482 = vld [vmem:[#allocation15 + $0x120] sm:$0xff]
    %v6483 = vld [vmem:[#allocation15 + $0x128] sm:$0xff]
    %v6484 = vld [vmem:[#allocation15 + $0x130] sm:$0xff]
    %v6485 = vld [vmem:[#allocation15 + $0x138] sm:$0xff]
    %v6486 = vld [vmem:[#allocation15 + $0x140] sm:$0xff]
    %v6487 = vld [vmem:[#allocation15 + $0x148] sm:$0xff]
    %v6488 = vld [vmem:[#allocation15 + $0x150] sm:$0xff]
    %v6489 = vld [vmem:[#allocation15 + $0x158] sm:$0xff]
    %v6490 = vld [vmem:[#allocation15 + $0x160] sm:$0xff]
    %v6491 = vld [vmem:[#allocation15 + $0x168] sm:$0xff]
    %v6492 = vld [vmem:[#allocation15 + $0x170] sm:$0xff]
    %v6493 = vld [vmem:[#allocation15 + $0x178] sm:$0xff]
    %v6494 = vld [vmem:[#allocation15 + $0x180] sm:$0xff]
    %v6495 = vld [vmem:[#allocation15 + $0x188] sm:$0xff]
    %v6496 = vld [vmem:[#allocation15 + $0x190] sm:$0xff]
    %v6497 = vld [vmem:[#allocation15 + $0x198] sm:$0xff]
    %v6498 = vld [vmem:[#allocation15 + $0x1a0] sm:$0xff]
    %v6499 = vld [vmem:[#allocation15 + $0x1a8] sm:$0xff]
    %v6500 = vld [vmem:[#allocation15 + $0x1b0] sm:$0xff]
    %v6501 = vld [vmem:[#allocation15 + $0x1b8] sm:$0xff]
    %v6502 = vld [vmem:[#allocation15 + $0x1c0] sm:$0xff]
    %v6503 = vld [vmem:[#allocation15 + $0x1c8] sm:$0xff]
    %v6504 = vld [vmem:[#allocation15 + $0x1d0] sm:$0xff]
    %v6505 = vld [vmem:[#allocation15 + $0x1d8] sm:$0xff]
    %v6506 = vld [vmem:[#allocation15 + $0x1e0] sm:$0xff]
    %v6507 = vld [vmem:[#allocation15 + $0x1e8] sm:$0xff]
    %v6508 = vld [vmem:[#allocation15 + $0x1f0] sm:$0xff]
    %v6509 = vld [vmem:[#allocation15 + $0x1f8] sm:$0xff]
    %v6510 = vld [vmem:[#allocation15 + $0x200] sm:$0xff]
    %v6511 = vld [vmem:[#allocation15 + $0x208] sm:$0xff]
    %v6512 = vld [vmem:[#allocation15 + $0x210] sm:$0xff]
    %v6513 = vld [vmem:[#allocation15 + $0x218] sm:$0xff]
    %v6514 = vld [vmem:[#allocation15 + $0x220] sm:$0xff]
    %v6515 = vld [vmem:[#allocation15 + $0x228] sm:$0xff]
    %v6516 = vld [vmem:[#allocation15 + $0x230] sm:$0xff]
    %v6517 = vld [vmem:[#allocation15 + $0x238] sm:$0xff]
    %v6518 = vld [vmem:[#allocation15 + $0x240] sm:$0xff]
    %v6519 = vld [vmem:[#allocation15 + $0x248] sm:$0xff]
    %v6520 = vld [vmem:[#allocation15 + $0x250] sm:$0xff]
    %v6521 = vld [vmem:[#allocation15 + $0x258] sm:$0xff]
    %v6522 = vld [vmem:[#allocation15 + $0x260] sm:$0xff]
    %v6523 = vld [vmem:[#allocation15 + $0x268] sm:$0xff]
    %v6524 = vld [vmem:[#allocation15 + $0x270] sm:$0xff]
    %v6525 = vld [vmem:[#allocation15 + $0x278] sm:$0xff]
    %v6526 = vld [vmem:[#allocation15 + $0x280] sm:$0xff]
    %v6527 = vld [vmem:[#allocation15 + $0x288] sm:$0xff]
    %v6528 = vld [vmem:[#allocation15 + $0x290] sm:$0xff]
    %v6529 = vld [vmem:[#allocation15 + $0x298] sm:$0xff]
    %v6530 = vld [vmem:[#allocation15 + $0x2a0] sm:$0xff]
    %v6531 = vld [vmem:[#allocation15 + $0x2a8] sm:$0xff]
    %v6532 = vld [vmem:[#allocation15 + $0x2b0] sm:$0xff]
    %v6533 = vld [vmem:[#allocation15 + $0x2b8] sm:$0xff]
    %v6534 = vld [vmem:[#allocation15 + $0x2c0] sm:$0xff]
    %v6535 = vld [vmem:[#allocation15 + $0x2c8] sm:$0xff]
    %v6536 = vld [vmem:[#allocation15 + $0x2d0] sm:$0xff]
    %v6537 = vld [vmem:[#allocation15 + $0x2d8] sm:$0xff]
    %v6538 = vld [vmem:[#allocation15 + $0x2e0] sm:$0xff]
    %v6539 = vld [vmem:[#allocation15 + $0x2e8] sm:$0xff]
    %v6540 = vld [vmem:[#allocation15 + $0x2f0] sm:$0xff]
    %v6541 = vld [vmem:[#allocation15 + $0x2f8] sm:$0xff]
    %v6542 = vld [vmem:[#allocation15 + $0x300] sm:$0xff]
    %v6543 = vld [vmem:[#allocation15 + $0x308] sm:$0xff]
    %v6544 = vld [vmem:[#allocation15 + $0x310] sm:$0xff]
    %v6545 = vld [vmem:[#allocation15 + $0x318] sm:$0xff]
    %v6546 = vld [vmem:[#allocation15 + $0x320] sm:$0xff]
    %v6547 = vld [vmem:[#allocation15 + $0x328] sm:$0xff]
    %v6548 = vld [vmem:[#allocation15 + $0x330] sm:$0xff]
    %v6549 = vld [vmem:[#allocation15 + $0x338] sm:$0xff]
    %v6550 = vld [vmem:[#allocation15 + $0x340] sm:$0xff]
    %v6551 = vld [vmem:[#allocation15 + $0x348] sm:$0xff]
    %v6552 = vld [vmem:[#allocation15 + $0x350] sm:$0xff]
    %v6553 = vld [vmem:[#allocation15 + $0x358] sm:$0xff]
    %v6554 = vld [vmem:[#allocation15 + $0x360] sm:$0xff]
    %v6555 = vld [vmem:[#allocation15 + $0x368] sm:$0xff]
    %v6556 = vld [vmem:[#allocation15 + $0x370] sm:$0xff]
    %v6557 = vld [vmem:[#allocation15 + $0x378] sm:$0xff]
    %v6558 = vld [vmem:[#allocation15 + $0x380] sm:$0xff]
    %v6559 = vld [vmem:[#allocation15 + $0x388] sm:$0xff]
    %v6560 = vld [vmem:[#allocation15 + $0x390] sm:$0xff]
    %v6561 = vld [vmem:[#allocation15 + $0x398] sm:$0xff]
    %v6562 = vld [vmem:[#allocation15 + $0x3a0] sm:$0xff]
    %v6563 = vld [vmem:[#allocation15 + $0x3a8] sm:$0xff]
    %v6564 = vld [vmem:[#allocation15 + $0x3b0] sm:$0xff]
    %v6565 = vld [vmem:[#allocation15 + $0x3b8] sm:$0xff]
    %v6566 = vld [vmem:[#allocation15 + $0x3c0] sm:$0xff]
    %v6567 = vld [vmem:[#allocation15 + $0x3c8] sm:$0xff]
    %v6568 = vld [vmem:[#allocation15 + $0x3d0] sm:$0xff]
    %v6569 = vld [vmem:[#allocation15 + $0x3d8] sm:$0xff]
    %v6570 = vld [vmem:[#allocation15 + $0x3e0] sm:$0xff]
    %v6571 = vld [vmem:[#allocation15 + $0x3e8] sm:$0xff]
    %v6572 = vld [vmem:[#allocation15 + $0x3f0] sm:$0xff]
    %v6573 = vld [vmem:[#allocation15 + $0x3f8] sm:$0xff]
    %v6574 = vld [vmem:[#allocation15 + $0x400] sm:$0xff]
    %v6575 = vld [vmem:[#allocation15 + $0x408] sm:$0xff]
    %v6576 = vld [vmem:[#allocation15 + $0x410] sm:$0xff]
    %v6577 = vld [vmem:[#allocation15 + $0x418] sm:$0xff]
    %v6578 = vld [vmem:[#allocation15 + $0x420] sm:$0xff]
    %v6579 = vld [vmem:[#allocation15 + $0x428] sm:$0xff]
    %v6580 = vld [vmem:[#allocation15 + $0x430] sm:$0xff]
    %v6581 = vld [vmem:[#allocation15 + $0x438] sm:$0xff]
    %v6582 = vld [vmem:[#allocation15 + $0x440] sm:$0xff]
    %v6583 = vld [vmem:[#allocation15 + $0x448] sm:$0xff]
    %v6584 = vld [vmem:[#allocation15 + $0x450] sm:$0xff]
    %v6585 = vld [vmem:[#allocation15 + $0x458] sm:$0xff]
    %v6586 = vld [vmem:[#allocation15 + $0x460] sm:$0xff]
    %v6587 = vld [vmem:[#allocation15 + $0x468] sm:$0xff]
    %v6588 = vld [vmem:[#allocation15 + $0x470] sm:$0xff]
    %v6589 = vld [vmem:[#allocation15 + $0x478] sm:$0xff]
    %v6590 = vld [vmem:[#allocation15 + $0x480] sm:$0xff]
    %v6591 = vld [vmem:[#allocation15 + $0x488] sm:$0xff]
    %v6592 = vld [vmem:[#allocation15 + $0x490] sm:$0xff]
    %v6593 = vld [vmem:[#allocation15 + $0x498] sm:$0xff]
    %v6594 = vld [vmem:[#allocation15 + $0x4a0] sm:$0xff]
    %v6595 = vld [vmem:[#allocation15 + $0x4a8] sm:$0xff]
    %v6596 = vld [vmem:[#allocation15 + $0x4b0] sm:$0xff]
    %v6597 = vld [vmem:[#allocation15 + $0x4b8] sm:$0xff]
    %v6598 = vld [vmem:[#allocation15 + $0x4c0] sm:$0xff]
    %v6599 = vld [vmem:[#allocation15 + $0x4c8] sm:$0xff]
    %v6600 = vld [vmem:[#allocation15 + $0x4d0] sm:$0xff]
    %v6601 = vld [vmem:[#allocation15 + $0x4d8] sm:$0xff]
    %v6602 = vld [vmem:[#allocation15 + $0x4e0] sm:$0xff]
    %v6603 = vld [vmem:[#allocation15 + $0x4e8] sm:$0xff]
    %v6604 = vld [vmem:[#allocation15 + $0x4f0] sm:$0xff]
    %v6605 = vld [vmem:[#allocation15 + $0x4f8] sm:$0xff]
    %v6606 = vld [vmem:[#allocation15 + $0x500] sm:$0xff]
    %v6607 = vld [vmem:[#allocation15 + $0x508] sm:$0xff]
    %v6608 = vld [vmem:[#allocation15 + $0x510] sm:$0xff]
    %v6609 = vld [vmem:[#allocation15 + $0x518] sm:$0xff]
    %v6610 = vld [vmem:[#allocation15 + $0x520] sm:$0xff]
    %v6611 = vld [vmem:[#allocation15 + $0x528] sm:$0xff]
    %v6612 = vld [vmem:[#allocation15 + $0x530] sm:$0xff]
    %v6613 = vld [vmem:[#allocation15 + $0x538] sm:$0xff]
    %v6614 = vld [vmem:[#allocation15 + $0x540] sm:$0xff]
    %v6615 = vld [vmem:[#allocation15 + $0x548] sm:$0xff]
    %v6616 = vld [vmem:[#allocation15 + $0x550] sm:$0xff]
    %v6617 = vld [vmem:[#allocation15 + $0x558] sm:$0xff]
    %v6618 = vld [vmem:[#allocation15 + $0x560] sm:$0xff]
    %v6619 = vld [vmem:[#allocation15 + $0x568] sm:$0xff]
    %v6620 = vld [vmem:[#allocation15 + $0x570] sm:$0xff]
    %v6621 = vld [vmem:[#allocation15 + $0x578] sm:$0xff]
    %v6622 = vld [vmem:[#allocation15 + $0x580] sm:$0xff]
    %v6623 = vld [vmem:[#allocation15 + $0x588] sm:$0xff]
    %v6624 = vld [vmem:[#allocation15 + $0x590] sm:$0xff]
    %v6625 = vld [vmem:[#allocation15 + $0x598] sm:$0xff]
    %v6626 = vld [vmem:[#allocation15 + $0x5a0] sm:$0xff]
    %v6627 = vld [vmem:[#allocation15 + $0x5a8] sm:$0xff]
    %v6628 = vld [vmem:[#allocation15 + $0x5b0] sm:$0xff]
    %v6629 = vld [vmem:[#allocation15 + $0x5b8] sm:$0xff]
    %v6630 = vld [vmem:[#allocation15 + $0x5c0] sm:$0xff]
    %v6631 = vld [vmem:[#allocation15 + $0x5c8] sm:$0xff]
    %v6632 = vld [vmem:[#allocation15 + $0x5d0] sm:$0xff]
    %v6633 = vld [vmem:[#allocation15 + $0x5d8] sm:$0xff]
    %v6634 = vld [vmem:[#allocation15 + $0x5e0] sm:$0xff]
    %v6635 = vld [vmem:[#allocation15 + $0x5e8] sm:$0xff]
    %v6636 = vld [vmem:[#allocation15 + $0x5f0] sm:$0xff]
    %v6637 = vld [vmem:[#allocation15 + $0x5f8] sm:$0xff]
    %v6638 = vld [vmem:[#allocation15 + $0x600] sm:$0xff]
    %v6639 = vld [vmem:[#allocation15 + $0x608] sm:$0xff]
    %v6640 = vld [vmem:[#allocation15 + $0x610] sm:$0xff]
    %v6641 = vld [vmem:[#allocation15 + $0x618] sm:$0xff]
    %v6642 = vld [vmem:[#allocation15 + $0x620] sm:$0xff]
    %v6643 = vld [vmem:[#allocation15 + $0x628] sm:$0xff]
    %v6644 = vld [vmem:[#allocation15 + $0x630] sm:$0xff]
    %v6645 = vld [vmem:[#allocation15 + $0x638] sm:$0xff]
    %v6646 = vld [vmem:[#allocation15 + $0x640] sm:$0xff]
    %v6647 = vld [vmem:[#allocation15 + $0x648] sm:$0xff]
    %v6648 = vld [vmem:[#allocation15 + $0x650] sm:$0xff]
    %v6649 = vld [vmem:[#allocation15 + $0x658] sm:$0xff]
    %v6650 = vld [vmem:[#allocation15 + $0x660] sm:$0xff]
    %v6651 = vld [vmem:[#allocation15 + $0x668] sm:$0xff]
    %v6652 = vld [vmem:[#allocation15 + $0x670] sm:$0xff]
    %v6653 = vld [vmem:[#allocation15 + $0x678] sm:$0xff]
    %v6654 = vld [vmem:[#allocation15 + $0x680] sm:$0xff]
    %v6655 = vld [vmem:[#allocation15 + $0x688] sm:$0xff]
    %v6656 = vld [vmem:[#allocation15 + $0x690] sm:$0xff]
    %v6657 = vld [vmem:[#allocation15 + $0x698] sm:$0xff]
    %v6658 = vld [vmem:[#allocation15 + $0x6a0] sm:$0xff]
    %v6659 = vld [vmem:[#allocation15 + $0x6a8] sm:$0xff]
    %v6660 = vld [vmem:[#allocation15 + $0x6b0] sm:$0xff]
    %v6661 = vld [vmem:[#allocation15 + $0x6b8] sm:$0xff]
    %v6662 = vld [vmem:[#allocation15 + $0x6c0] sm:$0xff]
    %v6663 = vld [vmem:[#allocation15 + $0x6c8] sm:$0xff]
    %v6664 = vld [vmem:[#allocation15 + $0x6d0] sm:$0xff]
    %v6665 = vld [vmem:[#allocation15 + $0x6d8] sm:$0xff]
    %v6666 = vld [vmem:[#allocation15 + $0x6e0] sm:$0xff]
    %v6667 = vld [vmem:[#allocation15 + $0x6e8] sm:$0xff]
    %v6668 = vld [vmem:[#allocation15 + $0x6f0] sm:$0xff]
    %v6669 = vld [vmem:[#allocation15 + $0x6f8] sm:$0xff]
    %v6670 = vld [vmem:[#allocation15 + $0x700] sm:$0xff]
    %v6671 = vld [vmem:[#allocation15 + $0x708] sm:$0xff]
    %v6672 = vld [vmem:[#allocation15 + $0x710] sm:$0xff]
    %v6673 = vld [vmem:[#allocation15 + $0x718] sm:$0xff]
    %v6674 = vld [vmem:[#allocation15 + $0x720] sm:$0xff]
    %v6675 = vld [vmem:[#allocation15 + $0x728] sm:$0xff]
    %v6676 = vld [vmem:[#allocation15 + $0x730] sm:$0xff]
    %v6677 = vld [vmem:[#allocation15 + $0x738] sm:$0xff]
    %v6678 = vld [vmem:[#allocation15 + $0x740] sm:$0xff]
    %v6679 = vld [vmem:[#allocation15 + $0x748] sm:$0xff]
    %v6680 = vld [vmem:[#allocation15 + $0x750] sm:$0xff]
    %v6681 = vld [vmem:[#allocation15 + $0x758] sm:$0xff]
    %v6682 = vld [vmem:[#allocation15 + $0x760] sm:$0xff]
    %v6683 = vld [vmem:[#allocation15 + $0x768] sm:$0xff]
    %v6684 = vld [vmem:[#allocation15 + $0x770] sm:$0xff]
    %v6685 = vld [vmem:[#allocation15 + $0x778] sm:$0xff]
    %v6686 = vld [vmem:[#allocation15 + $0x780] sm:$0xff]
    %v6687 = vld [vmem:[#allocation15 + $0x788] sm:$0xff]
    %v6688 = vld [vmem:[#allocation15 + $0x790] sm:$0xff]
    %v6689 = vld [vmem:[#allocation15 + $0x798] sm:$0xff]
    %v6690 = vld [vmem:[#allocation15 + $0x7a0] sm:$0xff]
    %v6691 = vld [vmem:[#allocation15 + $0x7a8] sm:$0xff]
    %v6692 = vld [vmem:[#allocation15 + $0x7b0] sm:$0xff]
    %v6693 = vld [vmem:[#allocation15 + $0x7b8] sm:$0xff]
    %v6694 = vld [vmem:[#allocation15 + $0x7c0] sm:$0xff]
    %v6695 = vld [vmem:[#allocation15 + $0x7c8] sm:$0xff]
    %v6696 = vld [vmem:[#allocation15 + $0x7d0] sm:$0xff]
    %v6697 = vld [vmem:[#allocation15 + $0x7d8] sm:$0xff]
    %v6698 = vld [vmem:[#allocation15 + $0x7e0] sm:$0xff]
    %v6699 = vld [vmem:[#allocation15 + $0x7e8] sm:$0xff]
    %v6700 = vld [vmem:[#allocation15 + $0x7f0] sm:$0xff]
    %v6701 = vld [vmem:[#allocation15 + $0x7f8] sm:$0xff]
    %v6702 = vld [vmem:[#allocation16] sm:$0xf]
    %v6704 = vlaneseq
    %v6705 = vshrl.u32 %v6704, 7
    %v6706 = vsub.s32 0, %v6705
    %v6707 = vrot.slane %v6702, %v6706
    %v6708 = vlaneseq
    %v6709 = vshrl.u32 %v6708, 7
    %v6710 = vsub.s32 1, %v6709
    %v6711 = vrot.slane %v6702, %v6710
    %v6712 = vlaneseq
    %v6713 = vshrl.u32 %v6712, 7
    %v6714 = vsub.s32 2, %v6713
    %v6715 = vrot.slane %v6702, %v6714
    %v6716 = vlaneseq
    %v6717 = vshrl.u32 %v6716, 7
    %v6718 = vsub.s32 3, %v6717
    %v6719 = vrot.slane %v6702, %v6718
    %v6980 = vunpack.c.l.b16 %v6446
    %v6981 = vunpack.c.h.b16 %v6446
    %v6982 = vunpack.c.l.b16 %v6447
    %v6983 = vunpack.c.h.b16 %v6447
    %v6984 = vunpack.c.l.b16 %v6448
    %v6985 = vunpack.c.h.b16 %v6448
    %v6986 = vunpack.c.l.b16 %v6449
    %v6987 = vunpack.c.h.b16 %v6449
    %v6988 = vunpack.c.l.b16 %v6450
    %v6989 = vunpack.c.h.b16 %v6450
    %v6990 = vunpack.c.l.b16 %v6451
    %v6991 = vunpack.c.h.b16 %v6451
    %v6992 = vunpack.c.l.b16 %v6452
    %v6993 = vunpack.c.h.b16 %v6452
    %v6994 = vunpack.c.l.b16 %v6453
    %v6995 = vunpack.c.h.b16 %v6453
    %v6996 = vunpack.c.l.b16 %v6454
    %v6997 = vunpack.c.h.b16 %v6454
    %v6998 = vunpack.c.l.b16 %v6455
    %v6999 = vunpack.c.h.b16 %v6455
    %v7000 = vunpack.c.l.b16 %v6456
    %v7001 = vunpack.c.h.b16 %v6456
    %v7002 = vunpack.c.l.b16 %v6457
    %v7003 = vunpack.c.h.b16 %v6457
    %v7004 = vunpack.c.l.b16 %v6458
    %v7005 = vunpack.c.h.b16 %v6458
    %v7006 = vunpack.c.l.b16 %v6459
    %v7007 = vunpack.c.h.b16 %v6459
    %v7008 = vunpack.c.l.b16 %v6460
    %v7009 = vunpack.c.h.b16 %v6460
    %v7010 = vunpack.c.l.b16 %v6461
    %v7011 = vunpack.c.h.b16 %v6461
    %v7012 = vunpack.c.l.b16 %v6462
    %v7013 = vunpack.c.h.b16 %v6462
    %v7014 = vunpack.c.l.b16 %v6463
    %v7015 = vunpack.c.h.b16 %v6463
    %v7016 = vunpack.c.l.b16 %v6464
    %v7017 = vunpack.c.h.b16 %v6464
    %v7018 = vunpack.c.l.b16 %v6465
    %v7019 = vunpack.c.h.b16 %v6465
    %v7020 = vunpack.c.l.b16 %v6466
    %v7021 = vunpack.c.h.b16 %v6466
    %v7022 = vunpack.c.l.b16 %v6467
    %v7023 = vunpack.c.h.b16 %v6467
    %v7024 = vunpack.c.l.b16 %v6468
    %v7025 = vunpack.c.h.b16 %v6468
    %v7026 = vunpack.c.l.b16 %v6469
    %v7027 = vunpack.c.h.b16 %v6469
    %v7028 = vunpack.c.l.b16 %v6470
    %v7029 = vunpack.c.h.b16 %v6470
    %v7030 = vunpack.c.l.b16 %v6471
    %v7031 = vunpack.c.h.b16 %v6471
    %v7032 = vunpack.c.l.b16 %v6472
    %v7033 = vunpack.c.h.b16 %v6472
    %v7034 = vunpack.c.l.b16 %v6473
    %v7035 = vunpack.c.h.b16 %v6473
    %v7036 = vunpack.c.l.b16 %v6474
    %v7037 = vunpack.c.h.b16 %v6474
    %v7038 = vunpack.c.l.b16 %v6475
    %v7039 = vunpack.c.h.b16 %v6475
    %v7040 = vunpack.c.l.b16 %v6476
    %v7041 = vunpack.c.h.b16 %v6476
    %v7042 = vunpack.c.l.b16 %v6477
    %v7043 = vunpack.c.h.b16 %v6477
    %v7044 = vunpack.c.l.b16 %v6478
    %v7045 = vunpack.c.h.b16 %v6478
    %v7046 = vunpack.c.l.b16 %v6479
    %v7047 = vunpack.c.h.b16 %v6479
    %v7048 = vunpack.c.l.b16 %v6480
    %v7049 = vunpack.c.h.b16 %v6480
    %v7050 = vunpack.c.l.b16 %v6481
    %v7051 = vunpack.c.h.b16 %v6481
    %v7052 = vunpack.c.l.b16 %v6482
    %v7053 = vunpack.c.h.b16 %v6482
    %v7054 = vunpack.c.l.b16 %v6483
    %v7055 = vunpack.c.h.b16 %v6483
    %v7056 = vunpack.c.l.b16 %v6484
    %v7057 = vunpack.c.h.b16 %v6484
    %v7058 = vunpack.c.l.b16 %v6485
    %v7059 = vunpack.c.h.b16 %v6485
    %v7060 = vunpack.c.l.b16 %v6486
    %v7061 = vunpack.c.h.b16 %v6486
    %v7062 = vunpack.c.l.b16 %v6487
    %v7063 = vunpack.c.h.b16 %v6487
    %v7064 = vunpack.c.l.b16 %v6488
    %v7065 = vunpack.c.h.b16 %v6488
    %v7066 = vunpack.c.l.b16 %v6489
    %v7067 = vunpack.c.h.b16 %v6489
    %v7068 = vunpack.c.l.b16 %v6490
    %v7069 = vunpack.c.h.b16 %v6490
    %v7070 = vunpack.c.l.b16 %v6491
    %v7071 = vunpack.c.h.b16 %v6491
    %v7072 = vunpack.c.l.b16 %v6492
    %v7073 = vunpack.c.h.b16 %v6492
    %v7074 = vunpack.c.l.b16 %v6493
    %v7075 = vunpack.c.h.b16 %v6493
    %v7076 = vunpack.c.l.b16 %v6494
    %v7077 = vunpack.c.h.b16 %v6494
    %v7078 = vunpack.c.l.b16 %v6495
    %v7079 = vunpack.c.h.b16 %v6495
    %v7080 = vunpack.c.l.b16 %v6496
    %v7081 = vunpack.c.h.b16 %v6496
    %v7082 = vunpack.c.l.b16 %v6497
    %v7083 = vunpack.c.h.b16 %v6497
    %v7084 = vunpack.c.l.b16 %v6498
    %v7085 = vunpack.c.h.b16 %v6498
    %v7086 = vunpack.c.l.b16 %v6499
    %v7087 = vunpack.c.h.b16 %v6499
    %v7088 = vunpack.c.l.b16 %v6500
    %v7089 = vunpack.c.h.b16 %v6500
    %v7090 = vunpack.c.l.b16 %v6501
    %v7091 = vunpack.c.h.b16 %v6501
    %v7092 = vunpack.c.l.b16 %v6502
    %v7093 = vunpack.c.h.b16 %v6502
    %v7094 = vunpack.c.l.b16 %v6503
    %v7095 = vunpack.c.h.b16 %v6503
    %v7096 = vunpack.c.l.b16 %v6504
    %v7097 = vunpack.c.h.b16 %v6504
    %v7098 = vunpack.c.l.b16 %v6505
    %v7099 = vunpack.c.h.b16 %v6505
    %v7100 = vunpack.c.l.b16 %v6506
    %v7101 = vunpack.c.h.b16 %v6506
    %v7102 = vunpack.c.l.b16 %v6507
    %v7103 = vunpack.c.h.b16 %v6507
    %v7104 = vunpack.c.l.b16 %v6508
    %v7105 = vunpack.c.h.b16 %v6508
    %v7106 = vunpack.c.l.b16 %v6509
    %v7107 = vunpack.c.h.b16 %v6509
    %v7108 = vunpack.c.l.b16 %v6510
    %v7109 = vunpack.c.h.b16 %v6510
    %v7110 = vunpack.c.l.b16 %v6511
    %v7111 = vunpack.c.h.b16 %v6511
    %v7112 = vunpack.c.l.b16 %v6512
    %v7113 = vunpack.c.h.b16 %v6512
    %v7114 = vunpack.c.l.b16 %v6513
    %v7115 = vunpack.c.h.b16 %v6513
    %v7116 = vunpack.c.l.b16 %v6514
    %v7117 = vunpack.c.h.b16 %v6514
    %v7118 = vunpack.c.l.b16 %v6515
    %v7119 = vunpack.c.h.b16 %v6515
    %v7120 = vunpack.c.l.b16 %v6516
    %v7121 = vunpack.c.h.b16 %v6516
    %v7122 = vunpack.c.l.b16 %v6517
    %v7123 = vunpack.c.h.b16 %v6517
    %v7124 = vunpack.c.l.b16 %v6518
    %v7125 = vunpack.c.h.b16 %v6518
    %v7126 = vunpack.c.l.b16 %v6519
    %v7127 = vunpack.c.h.b16 %v6519
    %v7128 = vunpack.c.l.b16 %v6520
    %v7129 = vunpack.c.h.b16 %v6520
    %v7130 = vunpack.c.l.b16 %v6521
    %v7131 = vunpack.c.h.b16 %v6521
    %v7132 = vunpack.c.l.b16 %v6522
    %v7133 = vunpack.c.h.b16 %v6522
    %v7134 = vunpack.c.l.b16 %v6523
    %v7135 = vunpack.c.h.b16 %v6523
    %v7136 = vunpack.c.l.b16 %v6524
    %v7137 = vunpack.c.h.b16 %v6524
    %v7138 = vunpack.c.l.b16 %v6525
    %v7139 = vunpack.c.h.b16 %v6525
    %v7140 = vunpack.c.l.b16 %v6526
    %v7141 = vunpack.c.h.b16 %v6526
    %v7142 = vunpack.c.l.b16 %v6527
    %v7143 = vunpack.c.h.b16 %v6527
    %v7144 = vunpack.c.l.b16 %v6528
    %v7145 = vunpack.c.h.b16 %v6528
    %v7146 = vunpack.c.l.b16 %v6529
    %v7147 = vunpack.c.h.b16 %v6529
    %v7148 = vunpack.c.l.b16 %v6530
    %v7149 = vunpack.c.h.b16 %v6530
    %v7150 = vunpack.c.l.b16 %v6531
    %v7151 = vunpack.c.h.b16 %v6531
    %v7152 = vunpack.c.l.b16 %v6532
    %v7153 = vunpack.c.h.b16 %v6532
    %v7154 = vunpack.c.l.b16 %v6533
    %v7155 = vunpack.c.h.b16 %v6533
    %v7156 = vunpack.c.l.b16 %v6534
    %v7157 = vunpack.c.h.b16 %v6534
    %v7158 = vunpack.c.l.b16 %v6535
    %v7159 = vunpack.c.h.b16 %v6535
    %v7160 = vunpack.c.l.b16 %v6536
    %v7161 = vunpack.c.h.b16 %v6536
    %v7162 = vunpack.c.l.b16 %v6537
    %v7163 = vunpack.c.h.b16 %v6537
    %v7164 = vunpack.c.l.b16 %v6538
    %v7165 = vunpack.c.h.b16 %v6538
    %v7166 = vunpack.c.l.b16 %v6539
    %v7167 = vunpack.c.h.b16 %v6539
    %v7168 = vunpack.c.l.b16 %v6540
    %v7169 = vunpack.c.h.b16 %v6540
    %v7170 = vunpack.c.l.b16 %v6541
    %v7171 = vunpack.c.h.b16 %v6541
    %v7172 = vunpack.c.l.b16 %v6542
    %v7173 = vunpack.c.h.b16 %v6542
    %v7174 = vunpack.c.l.b16 %v6543
    %v7175 = vunpack.c.h.b16 %v6543
    %v7176 = vunpack.c.l.b16 %v6544
    %v7177 = vunpack.c.h.b16 %v6544
    %v7178 = vunpack.c.l.b16 %v6545
    %v7179 = vunpack.c.h.b16 %v6545
    %v7180 = vunpack.c.l.b16 %v6546
    %v7181 = vunpack.c.h.b16 %v6546
    %v7182 = vunpack.c.l.b16 %v6547
    %v7183 = vunpack.c.h.b16 %v6547
    %v7184 = vunpack.c.l.b16 %v6548
    %v7185 = vunpack.c.h.b16 %v6548
    %v7186 = vunpack.c.l.b16 %v6549
    %v7187 = vunpack.c.h.b16 %v6549
    %v7188 = vunpack.c.l.b16 %v6550
    %v7189 = vunpack.c.h.b16 %v6550
    %v7190 = vunpack.c.l.b16 %v6551
    %v7191 = vunpack.c.h.b16 %v6551
    %v7192 = vunpack.c.l.b16 %v6552
    %v7193 = vunpack.c.h.b16 %v6552
    %v7194 = vunpack.c.l.b16 %v6553
    %v7195 = vunpack.c.h.b16 %v6553
    %v7196 = vunpack.c.l.b16 %v6554
    %v7197 = vunpack.c.h.b16 %v6554
    %v7198 = vunpack.c.l.b16 %v6555
    %v7199 = vunpack.c.h.b16 %v6555
    %v7200 = vunpack.c.l.b16 %v6556
    %v7201 = vunpack.c.h.b16 %v6556
    %v7202 = vunpack.c.l.b16 %v6557
    %v7203 = vunpack.c.h.b16 %v6557
    %v7204 = vunpack.c.l.b16 %v6558
    %v7205 = vunpack.c.h.b16 %v6558
    %v7206 = vunpack.c.l.b16 %v6559
    %v7207 = vunpack.c.h.b16 %v6559
    %v7208 = vunpack.c.l.b16 %v6560
    %v7209 = vunpack.c.h.b16 %v6560
    %v7210 = vunpack.c.l.b16 %v6561
    %v7211 = vunpack.c.h.b16 %v6561
    %v7212 = vunpack.c.l.b16 %v6562
    %v7213 = vunpack.c.h.b16 %v6562
    %v7214 = vunpack.c.l.b16 %v6563
    %v7215 = vunpack.c.h.b16 %v6563
    %v7216 = vunpack.c.l.b16 %v6564
    %v7217 = vunpack.c.h.b16 %v6564
    %v7218 = vunpack.c.l.b16 %v6565
    %v7219 = vunpack.c.h.b16 %v6565
    %v7220 = vunpack.c.l.b16 %v6566
    %v7221 = vunpack.c.h.b16 %v6566
    %v7222 = vunpack.c.l.b16 %v6567
    %v7223 = vunpack.c.h.b16 %v6567
    %v7224 = vunpack.c.l.b16 %v6568
    %v7225 = vunpack.c.h.b16 %v6568
    %v7226 = vunpack.c.l.b16 %v6569
    %v7227 = vunpack.c.h.b16 %v6569
    %v7228 = vunpack.c.l.b16 %v6570
    %v7229 = vunpack.c.h.b16 %v6570
    %v7230 = vunpack.c.l.b16 %v6571
    %v7231 = vunpack.c.h.b16 %v6571
    %v7232 = vunpack.c.l.b16 %v6572
    %v7233 = vunpack.c.h.b16 %v6572
    %v7234 = vunpack.c.l.b16 %v6573
    %v7235 = vunpack.c.h.b16 %v6573
    %v7236 = vunpack.c.l.b16 %v6574
    %v7237 = vunpack.c.h.b16 %v6574
    %v7238 = vunpack.c.l.b16 %v6575
    %v7239 = vunpack.c.h.b16 %v6575
    %v7240 = vunpack.c.l.b16 %v6576
    %v7241 = vunpack.c.h.b16 %v6576
    %v7242 = vunpack.c.l.b16 %v6577
    %v7243 = vunpack.c.h.b16 %v6577
    %v7244 = vunpack.c.l.b16 %v6578
    %v7245 = vunpack.c.h.b16 %v6578
    %v7246 = vunpack.c.l.b16 %v6579
    %v7247 = vunpack.c.h.b16 %v6579
    %v7248 = vunpack.c.l.b16 %v6580
    %v7249 = vunpack.c.h.b16 %v6580
    %v7250 = vunpack.c.l.b16 %v6581
    %v7251 = vunpack.c.h.b16 %v6581
    %v7252 = vunpack.c.l.b16 %v6582
    %v7253 = vunpack.c.h.b16 %v6582
    %v7254 = vunpack.c.l.b16 %v6583
    %v7255 = vunpack.c.h.b16 %v6583
    %v7256 = vunpack.c.l.b16 %v6584
    %v7257 = vunpack.c.h.b16 %v6584
    %v7258 = vunpack.c.l.b16 %v6585
    %v7259 = vunpack.c.h.b16 %v6585
    %v7260 = vunpack.c.l.b16 %v6586
    %v7261 = vunpack.c.h.b16 %v6586
    %v7262 = vunpack.c.l.b16 %v6587
    %v7263 = vunpack.c.h.b16 %v6587
    %v7264 = vunpack.c.l.b16 %v6588
    %v7265 = vunpack.c.h.b16 %v6588
    %v7266 = vunpack.c.l.b16 %v6589
    %v7267 = vunpack.c.h.b16 %v6589
    %v7268 = vunpack.c.l.b16 %v6590
    %v7269 = vunpack.c.h.b16 %v6590
    %v7270 = vunpack.c.l.b16 %v6591
    %v7271 = vunpack.c.h.b16 %v6591
    %v7272 = vunpack.c.l.b16 %v6592
    %v7273 = vunpack.c.h.b16 %v6592
    %v7274 = vunpack.c.l.b16 %v6593
    %v7275 = vunpack.c.h.b16 %v6593
    %v7276 = vunpack.c.l.b16 %v6594
    %v7277 = vunpack.c.h.b16 %v6594
    %v7278 = vunpack.c.l.b16 %v6595
    %v7279 = vunpack.c.h.b16 %v6595
    %v7280 = vunpack.c.l.b16 %v6596
    %v7281 = vunpack.c.h.b16 %v6596
    %v7282 = vunpack.c.l.b16 %v6597
    %v7283 = vunpack.c.h.b16 %v6597
    %v7284 = vunpack.c.l.b16 %v6598
    %v7285 = vunpack.c.h.b16 %v6598
    %v7286 = vunpack.c.l.b16 %v6599
    %v7287 = vunpack.c.h.b16 %v6599
    %v7288 = vunpack.c.l.b16 %v6600
    %v7289 = vunpack.c.h.b16 %v6600
    %v7290 = vunpack.c.l.b16 %v6601
    %v7291 = vunpack.c.h.b16 %v6601
    %v7292 = vunpack.c.l.b16 %v6602
    %v7293 = vunpack.c.h.b16 %v6602
    %v7294 = vunpack.c.l.b16 %v6603
    %v7295 = vunpack.c.h.b16 %v6603
    %v7296 = vunpack.c.l.b16 %v6604
    %v7297 = vunpack.c.h.b16 %v6604
    %v7298 = vunpack.c.l.b16 %v6605
    %v7299 = vunpack.c.h.b16 %v6605
    %v7300 = vunpack.c.l.b16 %v6606
    %v7301 = vunpack.c.h.b16 %v6606
    %v7302 = vunpack.c.l.b16 %v6607
    %v7303 = vunpack.c.h.b16 %v6607
    %v7304 = vunpack.c.l.b16 %v6608
    %v7305 = vunpack.c.h.b16 %v6608
    %v7306 = vunpack.c.l.b16 %v6609
    %v7307 = vunpack.c.h.b16 %v6609
    %v7308 = vunpack.c.l.b16 %v6610
    %v7309 = vunpack.c.h.b16 %v6610
    %v7310 = vunpack.c.l.b16 %v6611
    %v7311 = vunpack.c.h.b16 %v6611
    %v7312 = vunpack.c.l.b16 %v6612
    %v7313 = vunpack.c.h.b16 %v6612
    %v7314 = vunpack.c.l.b16 %v6613
    %v7315 = vunpack.c.h.b16 %v6613
    %v7316 = vunpack.c.l.b16 %v6614
    %v7317 = vunpack.c.h.b16 %v6614
    %v7318 = vunpack.c.l.b16 %v6615
    %v7319 = vunpack.c.h.b16 %v6615
    %v7320 = vunpack.c.l.b16 %v6616
    %v7321 = vunpack.c.h.b16 %v6616
    %v7322 = vunpack.c.l.b16 %v6617
    %v7323 = vunpack.c.h.b16 %v6617
    %v7324 = vunpack.c.l.b16 %v6618
    %v7325 = vunpack.c.h.b16 %v6618
    %v7326 = vunpack.c.l.b16 %v6619
    %v7327 = vunpack.c.h.b16 %v6619
    %v7328 = vunpack.c.l.b16 %v6620
    %v7329 = vunpack.c.h.b16 %v6620
    %v7330 = vunpack.c.l.b16 %v6621
    %v7331 = vunpack.c.h.b16 %v6621
    %v7332 = vunpack.c.l.b16 %v6622
    %v7333 = vunpack.c.h.b16 %v6622
    %v7334 = vunpack.c.l.b16 %v6623
    %v7335 = vunpack.c.h.b16 %v6623
    %v7336 = vunpack.c.l.b16 %v6624
    %v7337 = vunpack.c.h.b16 %v6624
    %v7338 = vunpack.c.l.b16 %v6625
    %v7339 = vunpack.c.h.b16 %v6625
    %v7340 = vunpack.c.l.b16 %v6626
    %v7341 = vunpack.c.h.b16 %v6626
    %v7342 = vunpack.c.l.b16 %v6627
    %v7343 = vunpack.c.h.b16 %v6627
    %v7344 = vunpack.c.l.b16 %v6628
    %v7345 = vunpack.c.h.b16 %v6628
    %v7346 = vunpack.c.l.b16 %v6629
    %v7347 = vunpack.c.h.b16 %v6629
    %v7348 = vunpack.c.l.b16 %v6630
    %v7349 = vunpack.c.h.b16 %v6630
    %v7350 = vunpack.c.l.b16 %v6631
    %v7351 = vunpack.c.h.b16 %v6631
    %v7352 = vunpack.c.l.b16 %v6632
    %v7353 = vunpack.c.h.b16 %v6632
    %v7354 = vunpack.c.l.b16 %v6633
    %v7355 = vunpack.c.h.b16 %v6633
    %v7356 = vunpack.c.l.b16 %v6634
    %v7357 = vunpack.c.h.b16 %v6634
    %v7358 = vunpack.c.l.b16 %v6635
    %v7359 = vunpack.c.h.b16 %v6635
    %v7360 = vunpack.c.l.b16 %v6636
    %v7361 = vunpack.c.h.b16 %v6636
    %v7362 = vunpack.c.l.b16 %v6637
    %v7363 = vunpack.c.h.b16 %v6637
    %v7364 = vunpack.c.l.b16 %v6638
    %v7365 = vunpack.c.h.b16 %v6638
    %v7366 = vunpack.c.l.b16 %v6639
    %v7367 = vunpack.c.h.b16 %v6639
    %v7368 = vunpack.c.l.b16 %v6640
    %v7369 = vunpack.c.h.b16 %v6640
    %v7370 = vunpack.c.l.b16 %v6641
    %v7371 = vunpack.c.h.b16 %v6641
    %v7372 = vunpack.c.l.b16 %v6642
    %v7373 = vunpack.c.h.b16 %v6642
    %v7374 = vunpack.c.l.b16 %v6643
    %v7375 = vunpack.c.h.b16 %v6643
    %v7376 = vunpack.c.l.b16 %v6644
    %v7377 = vunpack.c.h.b16 %v6644
    %v7378 = vunpack.c.l.b16 %v6645
    %v7379 = vunpack.c.h.b16 %v6645
    %v7380 = vunpack.c.l.b16 %v6646
    %v7381 = vunpack.c.h.b16 %v6646
    %v7382 = vunpack.c.l.b16 %v6647
    %v7383 = vunpack.c.h.b16 %v6647
    %v7384 = vunpack.c.l.b16 %v6648
    %v7385 = vunpack.c.h.b16 %v6648
    %v7386 = vunpack.c.l.b16 %v6649
    %v7387 = vunpack.c.h.b16 %v6649
    %v7388 = vunpack.c.l.b16 %v6650
    %v7389 = vunpack.c.h.b16 %v6650
    %v7390 = vunpack.c.l.b16 %v6651
    %v7391 = vunpack.c.h.b16 %v6651
    %v7392 = vunpack.c.l.b16 %v6652
    %v7393 = vunpack.c.h.b16 %v6652
    %v7394 = vunpack.c.l.b16 %v6653
    %v7395 = vunpack.c.h.b16 %v6653
    %v7396 = vunpack.c.l.b16 %v6654
    %v7397 = vunpack.c.h.b16 %v6654
    %v7398 = vunpack.c.l.b16 %v6655
    %v7399 = vunpack.c.h.b16 %v6655
    %v7400 = vunpack.c.l.b16 %v6656
    %v7401 = vunpack.c.h.b16 %v6656
    %v7402 = vunpack.c.l.b16 %v6657
    %v7403 = vunpack.c.h.b16 %v6657
    %v7404 = vunpack.c.l.b16 %v6658
    %v7405 = vunpack.c.h.b16 %v6658
    %v7406 = vunpack.c.l.b16 %v6659
    %v7407 = vunpack.c.h.b16 %v6659
    %v7408 = vunpack.c.l.b16 %v6660
    %v7409 = vunpack.c.h.b16 %v6660
    %v7410 = vunpack.c.l.b16 %v6661
    %v7411 = vunpack.c.h.b16 %v6661
    %v7412 = vunpack.c.l.b16 %v6662
    %v7413 = vunpack.c.h.b16 %v6662
    %v7414 = vunpack.c.l.b16 %v6663
    %v7415 = vunpack.c.h.b16 %v6663
    %v7416 = vunpack.c.l.b16 %v6664
    %v7417 = vunpack.c.h.b16 %v6664
    %v7418 = vunpack.c.l.b16 %v6665
    %v7419 = vunpack.c.h.b16 %v6665
    %v7420 = vunpack.c.l.b16 %v6666
    %v7421 = vunpack.c.h.b16 %v6666
    %v7422 = vunpack.c.l.b16 %v6667
    %v7423 = vunpack.c.h.b16 %v6667
    %v7424 = vunpack.c.l.b16 %v6668
    %v7425 = vunpack.c.h.b16 %v6668
    %v7426 = vunpack.c.l.b16 %v6669
    %v7427 = vunpack.c.h.b16 %v6669
    %v7428 = vunpack.c.l.b16 %v6670
    %v7429 = vunpack.c.h.b16 %v6670
    %v7430 = vunpack.c.l.b16 %v6671
    %v7431 = vunpack.c.h.b16 %v6671
    %v7432 = vunpack.c.l.b16 %v6672
    %v7433 = vunpack.c.h.b16 %v6672
    %v7434 = vunpack.c.l.b16 %v6673
    %v7435 = vunpack.c.h.b16 %v6673
    %v7436 = vunpack.c.l.b16 %v6674
    %v7437 = vunpack.c.h.b16 %v6674
    %v7438 = vunpack.c.l.b16 %v6675
    %v7439 = vunpack.c.h.b16 %v6675
    %v7440 = vunpack.c.l.b16 %v6676
    %v7441 = vunpack.c.h.b16 %v6676
    %v7442 = vunpack.c.l.b16 %v6677
    %v7443 = vunpack.c.h.b16 %v6677
    %v7444 = vunpack.c.l.b16 %v6678
    %v7445 = vunpack.c.h.b16 %v6678
    %v7446 = vunpack.c.l.b16 %v6679
    %v7447 = vunpack.c.h.b16 %v6679
    %v7448 = vunpack.c.l.b16 %v6680
    %v7449 = vunpack.c.h.b16 %v6680
    %v7450 = vunpack.c.l.b16 %v6681
    %v7451 = vunpack.c.h.b16 %v6681
    %v7452 = vunpack.c.l.b16 %v6682
    %v7453 = vunpack.c.h.b16 %v6682
    %v7454 = vunpack.c.l.b16 %v6683
    %v7455 = vunpack.c.h.b16 %v6683
    %v7456 = vunpack.c.l.b16 %v6684
    %v7457 = vunpack.c.h.b16 %v6684
    %v7458 = vunpack.c.l.b16 %v6685
    %v7459 = vunpack.c.h.b16 %v6685
    %v7460 = vunpack.c.l.b16 %v6686
    %v7461 = vunpack.c.h.b16 %v6686
    %v7462 = vunpack.c.l.b16 %v6687
    %v7463 = vunpack.c.h.b16 %v6687
    %v7464 = vunpack.c.l.b16 %v6688
    %v7465 = vunpack.c.h.b16 %v6688
    %v7466 = vunpack.c.l.b16 %v6689
    %v7467 = vunpack.c.h.b16 %v6689
    %v7468 = vunpack.c.l.b16 %v6690
    %v7469 = vunpack.c.h.b16 %v6690
    %v7470 = vunpack.c.l.b16 %v6691
    %v7471 = vunpack.c.h.b16 %v6691
    %v7472 = vunpack.c.l.b16 %v6692
    %v7473 = vunpack.c.h.b16 %v6692
    %v7474 = vunpack.c.l.b16 %v6693
    %v7475 = vunpack.c.h.b16 %v6693
    %v7476 = vunpack.c.l.b16 %v6694
    %v7477 = vunpack.c.h.b16 %v6694
    %v7478 = vunpack.c.l.b16 %v6695
    %v7479 = vunpack.c.h.b16 %v6695
    %v7480 = vunpack.c.l.b16 %v6696
    %v7481 = vunpack.c.h.b16 %v6696
    %v7482 = vunpack.c.l.b16 %v6697
    %v7483 = vunpack.c.h.b16 %v6697
    %v7484 = vunpack.c.l.b16 %v6698
    %v7485 = vunpack.c.h.b16 %v6698
    %v7486 = vunpack.c.l.b16 %v6699
    %v7487 = vunpack.c.h.b16 %v6699
    %v7488 = vunpack.c.l.b16 %v6700
    %v7489 = vunpack.c.h.b16 %v6700
    %v7490 = vunpack.c.l.b16 %v6701
    %v7491 = vunpack.c.h.b16 %v6701
    %v7492 = vpack.c.b16 %v6984, %v6980
    %v7493 = vpack.c.b16 %v6985, %v6981
    %v7494 = vpack.c.b16 %v6986, %v6982
    %v7495 = vpack.c.b16 %v6987, %v6983
    %v7496 = vpack.c.b16 %v6992, %v6988
    %v7497 = vpack.c.b16 %v6993, %v6989
    %v7498 = vpack.c.b16 %v6994, %v6990
    %v7499 = vpack.c.b16 %v6995, %v6991
    %v7500 = vpack.c.b16 %v7000, %v6996
    %v7501 = vpack.c.b16 %v7001, %v6997
    %v7502 = vpack.c.b16 %v7002, %v6998
    %v7503 = vpack.c.b16 %v7003, %v6999
    %v7504 = vpack.c.b16 %v7008, %v7004
    %v7505 = vpack.c.b16 %v7009, %v7005
    %v7506 = vpack.c.b16 %v7010, %v7006
    %v7507 = vpack.c.b16 %v7011, %v7007
    %v7508 = vpack.c.b16 %v7016, %v7012
    %v7509 = vpack.c.b16 %v7017, %v7013
    %v7510 = vpack.c.b16 %v7018, %v7014
    %v7511 = vpack.c.b16 %v7019, %v7015
    %v7512 = vpack.c.b16 %v7024, %v7020
    %v7513 = vpack.c.b16 %v7025, %v7021
    %v7514 = vpack.c.b16 %v7026, %v7022
    %v7515 = vpack.c.b16 %v7027, %v7023
    %v7516 = vpack.c.b16 %v7032, %v7028
    %v7517 = vpack.c.b16 %v7033, %v7029
    %v7518 = vpack.c.b16 %v7034, %v7030
    %v7519 = vpack.c.b16 %v7035, %v7031
    %v7520 = vpack.c.b16 %v7040, %v7036
    %v7521 = vpack.c.b16 %v7041, %v7037
    %v7522 = vpack.c.b16 %v7042, %v7038
    %v7523 = vpack.c.b16 %v7043, %v7039
    %v7524 = vpack.c.b16 %v7048, %v7044
    %v7525 = vpack.c.b16 %v7049, %v7045
    %v7526 = vpack.c.b16 %v7050, %v7046
    %v7527 = vpack.c.b16 %v7051, %v7047
    %v7528 = vpack.c.b16 %v7056, %v7052
    %v7529 = vpack.c.b16 %v7057, %v7053
    %v7530 = vpack.c.b16 %v7058, %v7054
    %v7531 = vpack.c.b16 %v7059, %v7055
    %v7532 = vpack.c.b16 %v7064, %v7060
    %v7533 = vpack.c.b16 %v7065, %v7061
    %v7534 = vpack.c.b16 %v7066, %v7062
    %v7535 = vpack.c.b16 %v7067, %v7063
    %v7536 = vpack.c.b16 %v7072, %v7068
    %v7537 = vpack.c.b16 %v7073, %v7069
    %v7538 = vpack.c.b16 %v7074, %v7070
    %v7539 = vpack.c.b16 %v7075, %v7071
    %v7540 = vpack.c.b16 %v7080, %v7076
    %v7541 = vpack.c.b16 %v7081, %v7077
    %v7542 = vpack.c.b16 %v7082, %v7078
    %v7543 = vpack.c.b16 %v7083, %v7079
    %v7544 = vpack.c.b16 %v7088, %v7084
    %v7545 = vpack.c.b16 %v7089, %v7085
    %v7546 = vpack.c.b16 %v7090, %v7086
    %v7547 = vpack.c.b16 %v7091, %v7087
    %v7548 = vpack.c.b16 %v7096, %v7092
    %v7549 = vpack.c.b16 %v7097, %v7093
    %v7550 = vpack.c.b16 %v7098, %v7094
    %v7551 = vpack.c.b16 %v7099, %v7095
    %v7552 = vpack.c.b16 %v7104, %v7100
    %v7553 = vpack.c.b16 %v7105, %v7101
    %v7554 = vpack.c.b16 %v7106, %v7102
    %v7555 = vpack.c.b16 %v7107, %v7103
    %v7556 = vpack.c.b16 %v7112, %v7108
    %v7557 = vpack.c.b16 %v7113, %v7109
    %v7558 = vpack.c.b16 %v7114, %v7110
    %v7559 = vpack.c.b16 %v7115, %v7111
    %v7560 = vpack.c.b16 %v7120, %v7116
    %v7561 = vpack.c.b16 %v7121, %v7117
    %v7562 = vpack.c.b16 %v7122, %v7118
    %v7563 = vpack.c.b16 %v7123, %v7119
    %v7564 = vpack.c.b16 %v7128, %v7124
    %v7565 = vpack.c.b16 %v7129, %v7125
    %v7566 = vpack.c.b16 %v7130, %v7126
    %v7567 = vpack.c.b16 %v7131, %v7127
    %v7568 = vpack.c.b16 %v7136, %v7132
    %v7569 = vpack.c.b16 %v7137, %v7133
    %v7570 = vpack.c.b16 %v7138, %v7134
    %v7571 = vpack.c.b16 %v7139, %v7135
    %v7572 = vpack.c.b16 %v7144, %v7140
    %v7573 = vpack.c.b16 %v7145, %v7141
    %v7574 = vpack.c.b16 %v7146, %v7142
    %v7575 = vpack.c.b16 %v7147, %v7143
    %v7576 = vpack.c.b16 %v7152, %v7148
    %v7577 = vpack.c.b16 %v7153, %v7149
    %v7578 = vpack.c.b16 %v7154, %v7150
    %v7579 = vpack.c.b16 %v7155, %v7151
    %v7580 = vpack.c.b16 %v7160, %v7156
    %v7581 = vpack.c.b16 %v7161, %v7157
    %v7582 = vpack.c.b16 %v7162, %v7158
    %v7583 = vpack.c.b16 %v7163, %v7159
    %v7584 = vpack.c.b16 %v7168, %v7164
    %v7585 = vpack.c.b16 %v7169, %v7165
    %v7586 = vpack.c.b16 %v7170, %v7166
    %v7587 = vpack.c.b16 %v7171, %v7167
    %v7588 = vpack.c.b16 %v7176, %v7172
    %v7589 = vpack.c.b16 %v7177, %v7173
    %v7590 = vpack.c.b16 %v7178, %v7174
    %v7591 = vpack.c.b16 %v7179, %v7175
    %v7592 = vpack.c.b16 %v7184, %v7180
    %v7593 = vpack.c.b16 %v7185, %v7181
    %v7594 = vpack.c.b16 %v7186, %v7182
    %v7595 = vpack.c.b16 %v7187, %v7183
    %v7596 = vpack.c.b16 %v7192, %v7188
    %v7597 = vpack.c.b16 %v7193, %v7189
    %v7598 = vpack.c.b16 %v7194, %v7190
    %v7599 = vpack.c.b16 %v7195, %v7191
    %v7600 = vpack.c.b16 %v7200, %v7196
    %v7601 = vpack.c.b16 %v7201, %v7197
    %v7602 = vpack.c.b16 %v7202, %v7198
    %v7603 = vpack.c.b16 %v7203, %v7199
    %v7604 = vpack.c.b16 %v7208, %v7204
    %v7605 = vpack.c.b16 %v7209, %v7205
    %v7606 = vpack.c.b16 %v7210, %v7206
    %v7607 = vpack.c.b16 %v7211, %v7207
    %v7608 = vpack.c.b16 %v7216, %v7212
    %v7609 = vpack.c.b16 %v7217, %v7213
    %v7610 = vpack.c.b16 %v7218, %v7214
    %v7611 = vpack.c.b16 %v7219, %v7215
    %v7612 = vpack.c.b16 %v7224, %v7220
    %v7613 = vpack.c.b16 %v7225, %v7221
    %v7614 = vpack.c.b16 %v7226, %v7222
    %v7615 = vpack.c.b16 %v7227, %v7223
    %v7616 = vpack.c.b16 %v7232, %v7228
    %v7617 = vpack.c.b16 %v7233, %v7229
    %v7618 = vpack.c.b16 %v7234, %v7230
    %v7619 = vpack.c.b16 %v7235, %v7231
    %v7620 = vpack.c.b16 %v7240, %v7236
    %v7621 = vpack.c.b16 %v7241, %v7237
    %v7622 = vpack.c.b16 %v7242, %v7238
    %v7623 = vpack.c.b16 %v7243, %v7239
    %v7624 = vpack.c.b16 %v7248, %v7244
    %v7625 = vpack.c.b16 %v7249, %v7245
    %v7626 = vpack.c.b16 %v7250, %v7246
    %v7627 = vpack.c.b16 %v7251, %v7247
    %v7628 = vpack.c.b16 %v7256, %v7252
    %v7629 = vpack.c.b16 %v7257, %v7253
    %v7630 = vpack.c.b16 %v7258, %v7254
    %v7631 = vpack.c.b16 %v7259, %v7255
    %v7632 = vpack.c.b16 %v7264, %v7260
    %v7633 = vpack.c.b16 %v7265, %v7261
    %v7634 = vpack.c.b16 %v7266, %v7262
    %v7635 = vpack.c.b16 %v7267, %v7263
    %v7636 = vpack.c.b16 %v7272, %v7268
    %v7637 = vpack.c.b16 %v7273, %v7269
    %v7638 = vpack.c.b16 %v7274, %v7270
    %v7639 = vpack.c.b16 %v7275, %v7271
    %v7640 = vpack.c.b16 %v7280, %v7276
    %v7641 = vpack.c.b16 %v7281, %v7277
    %v7642 = vpack.c.b16 %v7282, %v7278
    %v7643 = vpack.c.b16 %v7283, %v7279
    %v7644 = vpack.c.b16 %v7288, %v7284
    %v7645 = vpack.c.b16 %v7289, %v7285
    %v7646 = vpack.c.b16 %v7290, %v7286
    %v7647 = vpack.c.b16 %v7291, %v7287
    %v7648 = vpack.c.b16 %v7296, %v7292
    %v7649 = vpack.c.b16 %v7297, %v7293
    %v7650 = vpack.c.b16 %v7298, %v7294
    %v7651 = vpack.c.b16 %v7299, %v7295
    %v7652 = vpack.c.b16 %v7304, %v7300
    %v7653 = vpack.c.b16 %v7305, %v7301
    %v7654 = vpack.c.b16 %v7306, %v7302
    %v7655 = vpack.c.b16 %v7307, %v7303
    %v7656 = vpack.c.b16 %v7312, %v7308
    %v7657 = vpack.c.b16 %v7313, %v7309
    %v7658 = vpack.c.b16 %v7314, %v7310
    %v7659 = vpack.c.b16 %v7315, %v7311
    %v7660 = vpack.c.b16 %v7320, %v7316
    %v7661 = vpack.c.b16 %v7321, %v7317
    %v7662 = vpack.c.b16 %v7322, %v7318
    %v7663 = vpack.c.b16 %v7323, %v7319
    %v7664 = vpack.c.b16 %v7328, %v7324
    %v7665 = vpack.c.b16 %v7329, %v7325
    %v7666 = vpack.c.b16 %v7330, %v7326
    %v7667 = vpack.c.b16 %v7331, %v7327
    %v7668 = vpack.c.b16 %v7336, %v7332
    %v7669 = vpack.c.b16 %v7337, %v7333
    %v7670 = vpack.c.b16 %v7338, %v7334
    %v7671 = vpack.c.b16 %v7339, %v7335
    %v7672 = vpack.c.b16 %v7344, %v7340
    %v7673 = vpack.c.b16 %v7345, %v7341
    %v7674 = vpack.c.b16 %v7346, %v7342
    %v7675 = vpack.c.b16 %v7347, %v7343
    %v7676 = vpack.c.b16 %v7352, %v7348
    %v7677 = vpack.c.b16 %v7353, %v7349
    %v7678 = vpack.c.b16 %v7354, %v7350
    %v7679 = vpack.c.b16 %v7355, %v7351
    %v7680 = vpack.c.b16 %v7360, %v7356
    %v7681 = vpack.c.b16 %v7361, %v7357
    %v7682 = vpack.c.b16 %v7362, %v7358
    %v7683 = vpack.c.b16 %v7363, %v7359
    %v7684 = vpack.c.b16 %v7368, %v7364
    %v7685 = vpack.c.b16 %v7369, %v7365
    %v7686 = vpack.c.b16 %v7370, %v7366
    %v7687 = vpack.c.b16 %v7371, %v7367
    %v7688 = vpack.c.b16 %v7376, %v7372
    %v7689 = vpack.c.b16 %v7377, %v7373
    %v7690 = vpack.c.b16 %v7378, %v7374
    %v7691 = vpack.c.b16 %v7379, %v7375
    %v7692 = vpack.c.b16 %v7384, %v7380
    %v7693 = vpack.c.b16 %v7385, %v7381
    %v7694 = vpack.c.b16 %v7386, %v7382
    %v7695 = vpack.c.b16 %v7387, %v7383
    %v7696 = vpack.c.b16 %v7392, %v7388
    %v7697 = vpack.c.b16 %v7393, %v7389
    %v7698 = vpack.c.b16 %v7394, %v7390
    %v7699 = vpack.c.b16 %v7395, %v7391
    %v7700 = vpack.c.b16 %v7400, %v7396
    %v7701 = vpack.c.b16 %v7401, %v7397
    %v7702 = vpack.c.b16 %v7402, %v7398
    %v7703 = vpack.c.b16 %v7403, %v7399
    %v7704 = vpack.c.b16 %v7408, %v7404
    %v7705 = vpack.c.b16 %v7409, %v7405
    %v7706 = vpack.c.b16 %v7410, %v7406
    %v7707 = vpack.c.b16 %v7411, %v7407
    %v7708 = vpack.c.b16 %v7416, %v7412
    %v7709 = vpack.c.b16 %v7417, %v7413
    %v7710 = vpack.c.b16 %v7418, %v7414
    %v7711 = vpack.c.b16 %v7419, %v7415
    %v7712 = vpack.c.b16 %v7424, %v7420
    %v7713 = vpack.c.b16 %v7425, %v7421
    %v7714 = vpack.c.b16 %v7426, %v7422
    %v7715 = vpack.c.b16 %v7427, %v7423
    %v7716 = vpack.c.b16 %v7432, %v7428
    %v7717 = vpack.c.b16 %v7433, %v7429
    %v7718 = vpack.c.b16 %v7434, %v7430
    %v7719 = vpack.c.b16 %v7435, %v7431
    %v7720 = vpack.c.b16 %v7440, %v7436
    %v7721 = vpack.c.b16 %v7441, %v7437
    %v7722 = vpack.c.b16 %v7442, %v7438
    %v7723 = vpack.c.b16 %v7443, %v7439
    %v7724 = vpack.c.b16 %v7448, %v7444
    %v7725 = vpack.c.b16 %v7449, %v7445
    %v7726 = vpack.c.b16 %v7450, %v7446
    %v7727 = vpack.c.b16 %v7451, %v7447
    %v7728 = vpack.c.b16 %v7456, %v7452
    %v7729 = vpack.c.b16 %v7457, %v7453
    %v7730 = vpack.c.b16 %v7458, %v7454
    %v7731 = vpack.c.b16 %v7459, %v7455
    %v7732 = vpack.c.b16 %v7464, %v7460
    %v7733 = vpack.c.b16 %v7465, %v7461
    %v7734 = vpack.c.b16 %v7466, %v7462
    %v7735 = vpack.c.b16 %v7467, %v7463
    %v7736 = vpack.c.b16 %v7472, %v7468
    %v7737 = vpack.c.b16 %v7473, %v7469
    %v7738 = vpack.c.b16 %v7474, %v7470
    %v7739 = vpack.c.b16 %v7475, %v7471
    %v7740 = vpack.c.b16 %v7480, %v7476
    %v7741 = vpack.c.b16 %v7481, %v7477
    %v7742 = vpack.c.b16 %v7482, %v7478
    %v7743 = vpack.c.b16 %v7483, %v7479
    %v7744 = vpack.c.b16 %v7488, %v7484
    %v7745 = vpack.c.b16 %v7489, %v7485
    %v7746 = vpack.c.b16 %v7490, %v7486
    %v7747 = vpack.c.b16 %v7491, %v7487
    %8004 = vmatprep.subr.bf16.mxu0 %v7493
    %8005 = vmatpush1.bf16.msra.mxu0 %v7492
    %8006 = vmatprep.subr.bf16.mxu0 %v7497
    %8007 = vmatpush1.bf16.msra.mxu0 %v7496
    %8008 = vmatprep.subr.bf16.mxu0 %v7501
    %8009 = vmatpush1.bf16.msra.mxu0 %v7500
    %8010 = vmatprep.subr.bf16.mxu0 %v7505
    %8011 = vmatpush1.bf16.msra.mxu0 %v7504
    %8012 = vmatprep.subr.bf16.mxu0 %v7509
    %8013 = vmatpush1.bf16.msra.mxu0 %v7508
    %8014 = vmatprep.subr.bf16.mxu0 %v7513
    %8015 = vmatpush1.bf16.msra.mxu0 %v7512
    %8016 = vmatprep.subr.bf16.mxu0 %v7517
    %8017 = vmatpush1.bf16.msra.mxu0 %v7516
    %8018 = vmatprep.subr.bf16.mxu0 %v7521
    %8019 = vmatpush1.bf16.msra.mxu0 %v7520
    %8020 = vmatprep.subr.bf16.mxu0 %v7525
    %8021 = vmatpush1.bf16.msra.mxu0 %v7524
    %8022 = vmatprep.subr.bf16.mxu0 %v7529
    %8023 = vmatpush1.bf16.msra.mxu0 %v7528
    %8024 = vmatprep.subr.bf16.mxu0 %v7533
    %8025 = vmatpush1.bf16.msra.mxu0 %v7532
    %8026 = vmatprep.subr.bf16.mxu0 %v7537
    %8027 = vmatpush1.bf16.msra.mxu0 %v7536
    %8028 = vmatprep.subr.bf16.mxu0 %v7541
    %8029 = vmatpush1.bf16.msra.mxu0 %v7540
    %8030 = vmatprep.subr.bf16.mxu0 %v7545
    %8031 = vmatpush1.bf16.msra.mxu0 %v7544
    %8032 = vmatprep.subr.bf16.mxu0 %v7549
    %8033 = vmatpush1.bf16.msra.mxu0 %v7548
    %8034 = vmatprep.subr.bf16.mxu0 %v7553
    %8035 = vmatpush1.bf16.msra.mxu0 %v7552
    %8036 = vmatprep.mubr.bf16.mxu0 %v6439
    %8037 = vmatmul.mubr.bf16.gmra.mrb[0].mxu0 %v6438
    %v8038 = vpop.f32.mrb[0].mxu0
    %v8039 = vadd.f32 %v6707, %v8038
    %v8040 = vpop.f32.mrb[0].mxu0
    %v8041 = vadd.f32 %v6711, %v8040
    %v8042 = vpop.f32.mrb[0].mxu0
    %v8043 = vpop.f32.mrb[0].mxu0
    %8044 = vdwg.mxu0
    %8045 = vmatprep.subr.bf16.mxu0 %v7557
    %8046 = vmatpush1.bf16.msra.mxu0 %v7556
    %8047 = vmatprep.subr.bf16.mxu0 %v7561
    %8048 = vmatpush1.bf16.msra.mxu0 %v7560
    %8049 = vmatprep.subr.bf16.mxu0 %v7565
    %8050 = vmatpush1.bf16.msra.mxu0 %v7564
    %8051 = vmatprep.subr.bf16.mxu0 %v7569
    %8052 = vmatpush1.bf16.msra.mxu0 %v7568
    %8053 = vmatprep.subr.bf16.mxu0 %v7573
    %8054 = vmatpush1.bf16.msra.mxu0 %v7572
    %8055 = vmatprep.subr.bf16.mxu0 %v7577
    %8056 = vmatpush1.bf16.msra.mxu0 %v7576
    %8057 = vmatprep.subr.bf16.mxu0 %v7581
    %8058 = vmatpush1.bf16.msra.mxu0 %v7580
    %8059 = vmatprep.subr.bf16.mxu0 %v7585
    %8060 = vmatpush1.bf16.msra.mxu0 %v7584
    %8061 = vmatprep.subr.bf16.mxu0 %v7589
    %8062 = vmatpush1.bf16.msra.mxu0 %v7588
    %8063 = vmatprep.subr.bf16.mxu0 %v7593
    %8064 = vmatpush1.bf16.msra.mxu0 %v7592
    %8065 = vmatprep.subr.bf16.mxu0 %v7597
    %8066 = vmatpush1.bf16.msra.mxu0 %v7596
    %8067 = vmatprep.subr.bf16.mxu0 %v7601
    %8068 = vmatpush1.bf16.msra.mxu0 %v7600
    %8069 = vmatprep.subr.bf16.mxu0 %v7605
    %8070 = vmatpush1.bf16.msra.mxu0 %v7604
    %8071 = vmatprep.subr.bf16.mxu0 %v7609
    %8072 = vmatpush1.bf16.msra.mxu0 %v7608
    %8073 = vmatprep.subr.bf16.mxu0 %v7613
    %8074 = vmatpush1.bf16.msra.mxu0 %v7612
    %8075 = vmatprep.subr.bf16.mxu0 %v7617
    %8076 = vmatpush1.bf16.msra.mxu0 %v7616
    %8077 = vmatprep.mubr.bf16.mxu0 %v6441
    %8078 = vmatmul.mubr.bf16.gmra.mrb[0].mxu0 %v6440
    %v8079 = vpop.f32.mrb[0].mxu0
    %v8080 = vadd.f32 %v8039, %v8079
    %v8081 = vpop.f32.mrb[0].mxu0
    %v8082 = vadd.f32 %v8041, %v8081
    %v8083 = vpop.f32.mrb[0].mxu0
    %v8084 = vpop.f32.mrb[0].mxu0
    %8085 = vdwg.mxu0
    %8086 = vmatprep.subr.bf16.mxu0 %v7621
    %8087 = vmatpush1.bf16.msra.mxu0 %v7620
    %8088 = vmatprep.subr.bf16.mxu0 %v7625
    %8089 = vmatpush1.bf16.msra.mxu0 %v7624
    %8090 = vmatprep.subr.bf16.mxu0 %v7629
    %8091 = vmatpush1.bf16.msra.mxu0 %v7628
    %8092 = vmatprep.subr.bf16.mxu0 %v7633
    %8093 = vmatpush1.bf16.msra.mxu0 %v7632
    %8094 = vmatprep.subr.bf16.mxu0 %v7637
    %8095 = vmatpush1.bf16.msra.mxu0 %v7636
    %8096 = vmatprep.subr.bf16.mxu0 %v7641
    %8097 = vmatpush1.bf16.msra.mxu0 %v7640
    %8098 = vmatprep.subr.bf16.mxu0 %v7645
    %8099 = vmatpush1.bf16.msra.mxu0 %v7644
    %8100 = vmatprep.subr.bf16.mxu0 %v7649
    %8101 = vmatpush1.bf16.msra.mxu0 %v7648
    %8102 = vmatprep.subr.bf16.mxu0 %v7653
    %8103 = vmatpush1.bf16.msra.mxu0 %v7652
    %8104 = vmatprep.subr.bf16.mxu0 %v7657
    %8105 = vmatpush1.bf16.msra.mxu0 %v7656
    %8106 = vmatprep.subr.bf16.mxu0 %v7661
    %8107 = vmatpush1.bf16.msra.mxu0 %v7660
    %8108 = vmatprep.subr.bf16.mxu0 %v7665
    %8109 = vmatpush1.bf16.msra.mxu0 %v7664
    %8110 = vmatprep.subr.bf16.mxu0 %v7669
    %8111 = vmatpush1.bf16.msra.mxu0 %v7668
    %8112 = vmatprep.subr.bf16.mxu0 %v7673
    %8113 = vmatpush1.bf16.msra.mxu0 %v7672
    %8114 = vmatprep.subr.bf16.mxu0 %v7677
    %8115 = vmatpush1.bf16.msra.mxu0 %v7676
    %8116 = vmatprep.subr.bf16.mxu0 %v7681
    %8117 = vmatpush1.bf16.msra.mxu0 %v7680
    %8118 = vmatprep.mubr.bf16.mxu0 %v6443
    %8119 = vmatmul.mubr.bf16.gmra.mrb[0].mxu0 %v6442
    %v8120 = vpop.f32.mrb[0].mxu0
    %v8121 = vadd.f32 %v8080, %v8120
    %v8122 = vpop.f32.mrb[0].mxu0
    %v8123 = vadd.f32 %v8082, %v8122
    %v8124 = vpop.f32.mrb[0].mxu0
    %v8125 = vpop.f32.mrb[0].mxu0
    %8126 = vdwg.mxu0
    %8127 = vmatprep.subr.bf16.mxu0 %v7685
    %8128 = vmatpush1.bf16.msra.mxu0 %v7684
    %8129 = vmatprep.subr.bf16.mxu0 %v7689
    %8130 = vmatpush1.bf16.msra.mxu0 %v7688
    %8131 = vmatprep.subr.bf16.mxu0 %v7693
    %8132 = vmatpush1.bf16.msra.mxu0 %v7692
    %8133 = vmatprep.subr.bf16.mxu0 %v7697
    %8134 = vmatpush1.bf16.msra.mxu0 %v7696
    %8135 = vmatprep.subr.bf16.mxu0 %v7701
    %8136 = vmatpush1.bf16.msra.mxu0 %v7700
    %8137 = vmatprep.subr.bf16.mxu0 %v7705
    %8138 = vmatpush1.bf16.msra.mxu0 %v7704
    %8139 = vmatprep.subr.bf16.mxu0 %v7709
    %8140 = vmatpush1.bf16.msra.mxu0 %v7708
    %8141 = vmatprep.subr.bf16.mxu0 %v7713
    %8142 = vmatpush1.bf16.msra.mxu0 %v7712
    %8143 = vmatprep.subr.bf16.mxu0 %v7717
    %8144 = vmatpush1.bf16.msra.mxu0 %v7716
    %8145 = vmatprep.subr.bf16.mxu0 %v7721
    %8146 = vmatpush1.bf16.msra.mxu0 %v7720
    %8147 = vmatprep.subr.bf16.mxu0 %v7725
    %8148 = vmatpush1.bf16.msra.mxu0 %v7724
    %8149 = vmatprep.subr.bf16.mxu0 %v7729
    %8150 = vmatpush1.bf16.msra.mxu0 %v7728
    %8151 = vmatprep.subr.bf16.mxu0 %v7733
    %8152 = vmatpush1.bf16.msra.mxu0 %v7732
    %8153 = vmatprep.subr.bf16.mxu0 %v7737
    %8154 = vmatpush1.bf16.msra.mxu0 %v7736
    %8155 = vmatprep.subr.bf16.mxu0 %v7741
    %8156 = vmatpush1.bf16.msra.mxu0 %v7740
    %8157 = vmatprep.subr.bf16.mxu0 %v7745
    %8158 = vmatpush1.bf16.msra.mxu0 %v7744
    %8159 = vmatprep.mubr.bf16.mxu0 %v6445
    %8160 = vmatmul.mubr.bf16.gmra.mrb[0].mxu0 %v6444
    %v8161 = vpop.f32.mrb[0].mxu0
    %v8162 = vadd.f32 %v8121, %v8161
    %v8163 = vpop.f32.mrb[0].mxu0
    %v8164 = vadd.f32 %v8123, %v8163
    %v8165 = vpop.f32.mrb[0].mxu0
    %v8166 = vpop.f32.mrb[0].mxu0
    %8167 = vdwg.mxu0
    %8168 = vmatprep.subr.bf16.mxu0 %v7495
    %8169 = vmatpush1.bf16.msra.mxu0 %v7494
    %8170 = vmatprep.subr.bf16.mxu0 %v7499
    %8171 = vmatpush1.bf16.msra.mxu0 %v7498
    %8172 = vmatprep.subr.bf16.mxu0 %v7503
    %8173 = vmatpush1.bf16.msra.mxu0 %v7502
    %8174 = vmatprep.subr.bf16.mxu0 %v7507
    %8175 = vmatpush1.bf16.msra.mxu0 %v7506
    %8176 = vmatprep.subr.bf16.mxu0 %v7511
    %8177 = vmatpush1.bf16.msra.mxu0 %v7510
    %8178 = vmatprep.subr.bf16.mxu0 %v7515
    %8179 = vmatpush1.bf16.msra.mxu0 %v7514
    %8180 = vmatprep.subr.bf16.mxu0 %v7519
    %8181 = vmatpush1.bf16.msra.mxu0 %v7518
    %8182 = vmatprep.subr.bf16.mxu0 %v7523
    %8183 = vmatpush1.bf16.msra.mxu0 %v7522
    %8184 = vmatprep.subr.bf16.mxu0 %v7527
    %8185 = vmatpush1.bf16.msra.mxu0 %v7526
    %8186 = vmatprep.subr.bf16.mxu0 %v7531
    %8187 = vmatpush1.bf16.msra.mxu0 %v7530
    %8188 = vmatprep.subr.bf16.mxu0 %v7535
    %8189 = vmatpush1.bf16.msra.mxu0 %v7534
    %8190 = vmatprep.subr.bf16.mxu0 %v7539
    %8191 = vmatpush1.bf16.msra.mxu0 %v7538
    %8192 = vmatprep.subr.bf16.mxu0 %v7543
    %8193 = vmatpush1.bf16.msra.mxu0 %v7542
    %8194 = vmatprep.subr.bf16.mxu0 %v7547
    %8195 = vmatpush1.bf16.msra.mxu0 %v7546
    %8196 = vmatprep.subr.bf16.mxu0 %v7551
    %8197 = vmatpush1.bf16.msra.mxu0 %v7550
    %8198 = vmatprep.subr.bf16.mxu0 %v7555
    %8199 = vmatpush1.bf16.msra.mxu0 %v7554
    %8200 = vmatprep.mubr.bf16.mxu0 %v6439
    %8201 = vmatmul.mubr.bf16.gmra.mrb[0].mxu0 %v6438
    %v8202 = vpop.f32.mrb[0].mxu0
    %v8203 = vadd.f32 %v6715, %v8202
    %v8204 = vpop.f32.mrb[0].mxu0
    %v8205 = vadd.f32 %v6719, %v8204
    %v8206 = vpop.f32.mrb[0].mxu0
    %v8207 = vpop.f32.mrb[0].mxu0
    %8208 = vdwg.mxu0
    %8209 = vmatprep.subr.bf16.mxu0 %v7559
    %8210 = vmatpush1.bf16.msra.mxu0 %v7558
    %8211 = vmatprep.subr.bf16.mxu0 %v7563
    %8212 = vmatpush1.bf16.msra.mxu0 %v7562
    %8213 = vmatprep.subr.bf16.mxu0 %v7567
    %8214 = vmatpush1.bf16.msra.mxu0 %v7566
    %8215 = vmatprep.subr.bf16.mxu0 %v7571
    %8216 = vmatpush1.bf16.msra.mxu0 %v7570
    %8217 = vmatprep.subr.bf16.mxu0 %v7575
    %8218 = vmatpush1.bf16.msra.mxu0 %v7574
    %8219 = vmatprep.subr.bf16.mxu0 %v7579
    %8220 = vmatpush1.bf16.msra.mxu0 %v7578
    %8221 = vmatprep.subr.bf16.mxu0 %v7583
    %8222 = vmatpush1.bf16.msra.mxu0 %v7582
    %8223 = vmatprep.subr.bf16.mxu0 %v7587
    %8224 = vmatpush1.bf16.msra.mxu0 %v7586
    %8225 = vmatprep.subr.bf16.mxu0 %v7591
    %8226 = vmatpush1.bf16.msra.mxu0 %v7590
    %8227 = vmatprep.subr.bf16.mxu0 %v7595
    %8228 = vmatpush1.bf16.msra.mxu0 %v7594
    %8229 = vmatprep.subr.bf16.mxu0 %v7599
    %8230 = vmatpush1.bf16.msra.mxu0 %v7598
    %8231 = vmatprep.subr.bf16.mxu0 %v7603
    %8232 = vmatpush1.bf16.msra.mxu0 %v7602
    %8233 = vmatprep.subr.bf16.mxu0 %v7607
    %8234 = vmatpush1.bf16.msra.mxu0 %v7606
    %8235 = vmatprep.subr.bf16.mxu0 %v7611
    %8236 = vmatpush1.bf16.msra.mxu0 %v7610
    %8237 = vmatprep.subr.bf16.mxu0 %v7615
    %8238 = vmatpush1.bf16.msra.mxu0 %v7614
    %8239 = vmatprep.subr.bf16.mxu0 %v7619
    %8240 = vmatpush1.bf16.msra.mxu0 %v7618
    %8241 = vmatprep.mubr.bf16.mxu0 %v6441
    %8242 = vmatmul.mubr.bf16.gmra.mrb[0].mxu0 %v6440
    %v8243 = vpop.f32.mrb[0].mxu0
    %v8244 = vadd.f32 %v8203, %v8243
    %v8245 = vpop.f32.mrb[0].mxu0
    %v8246 = vadd.f32 %v8205, %v8245
    %v8247 = vpop.f32.mrb[0].mxu0
    %v8248 = vpop.f32.mrb[0].mxu0
    %8249 = vdwg.mxu0
    %8250 = vmatprep.subr.bf16.mxu0 %v7623
    %8251 = vmatpush1.bf16.msra.mxu0 %v7622
    %8252 = vmatprep.subr.bf16.mxu0 %v7627
    %8253 = vmatpush1.bf16.msra.mxu0 %v7626
    %8254 = vmatprep.subr.bf16.mxu0 %v7631
    %8255 = vmatpush1.bf16.msra.mxu0 %v7630
    %8256 = vmatprep.subr.bf16.mxu0 %v7635
    %8257 = vmatpush1.bf16.msra.mxu0 %v7634
    %8258 = vmatprep.subr.bf16.mxu0 %v7639
    %8259 = vmatpush1.bf16.msra.mxu0 %v7638
    %8260 = vmatprep.subr.bf16.mxu0 %v7643
    %8261 = vmatpush1.bf16.msra.mxu0 %v7642
    %8262 = vmatprep.subr.bf16.mxu0 %v7647
    %8263 = vmatpush1.bf16.msra.mxu0 %v7646
    %8264 = vmatprep.subr.bf16.mxu0 %v7651
    %8265 = vmatpush1.bf16.msra.mxu0 %v7650
    %8266 = vmatprep.subr.bf16.mxu0 %v7655
    %8267 = vmatpush1.bf16.msra.mxu0 %v7654
    %8268 = vmatprep.subr.bf16.mxu0 %v7659
    %8269 = vmatpush1.bf16.msra.mxu0 %v7658
    %8270 = vmatprep.subr.bf16.mxu0 %v7663
    %8271 = vmatpush1.bf16.msra.mxu0 %v7662
    %8272 = vmatprep.subr.bf16.mxu0 %v7667
    %8273 = vmatpush1.bf16.msra.mxu0 %v7666
    %8274 = vmatprep.subr.bf16.mxu0 %v7671
    %8275 = vmatpush1.bf16.msra.mxu0 %v7670
    %8276 = vmatprep.subr.bf16.mxu0 %v7675
    %8277 = vmatpush1.bf16.msra.mxu0 %v7674
    %8278 = vmatprep.subr.bf16.mxu0 %v7679
    %8279 = vmatpush1.bf16.msra.mxu0 %v7678
    %8280 = vmatprep.subr.bf16.mxu0 %v7683
    %8281 = vmatpush1.bf16.msra.mxu0 %v7682
    %8282 = vmatprep.mubr.bf16.mxu0 %v6443
    %8283 = vmatmul.mubr.bf16.gmra.mrb[0].mxu0 %v6442
    %v8284 = vpop.f32.mrb[0].mxu0
    %v8285 = vadd.f32 %v8244, %v8284
    %v8286 = vpop.f32.mrb[0].mxu0
    %v8287 = vadd.f32 %v8246, %v8286
    %v8288 = vpop.f32.mrb[0].mxu0
    %v8289 = vpop.f32.mrb[0].mxu0
    %8290 = vdwg.mxu0
    %8291 = vmatprep.subr.bf16.mxu0 %v7687
    %8292 = vmatpush1.bf16.msra.mxu0 %v7686
    %8293 = vmatprep.subr.bf16.mxu0 %v7691
    %8294 = vmatpush1.bf16.msra.mxu0 %v7690
    %8295 = vmatprep.subr.bf16.mxu0 %v7695
    %8296 = vmatpush1.bf16.msra.mxu0 %v7694
    %8297 = vmatprep.subr.bf16.mxu0 %v7699
    %8298 = vmatpush1.bf16.msra.mxu0 %v7698
    %8299 = vmatprep.subr.bf16.mxu0 %v7703
    %8300 = vmatpush1.bf16.msra.mxu0 %v7702
    %8301 = vmatprep.subr.bf16.mxu0 %v7707
    %8302 = vmatpush1.bf16.msra.mxu0 %v7706
    %8303 = vmatprep.subr.bf16.mxu0 %v7711
    %8304 = vmatpush1.bf16.msra.mxu0 %v7710
    %8305 = vmatprep.subr.bf16.mxu0 %v7715
    %8306 = vmatpush1.bf16.msra.mxu0 %v7714
    %8307 = vmatprep.subr.bf16.mxu0 %v7719
    %8308 = vmatpush1.bf16.msra.mxu0 %v7718
    %8309 = vmatprep.subr.bf16.mxu0 %v7723
    %8310 = vmatpush1.bf16.msra.mxu0 %v7722
    %8311 = vmatprep.subr.bf16.mxu0 %v7727
    %8312 = vmatpush1.bf16.msra.mxu0 %v7726
    %8313 = vmatprep.subr.bf16.mxu0 %v7731
    %8314 = vmatpush1.bf16.msra.mxu0 %v7730
    %8315 = vmatprep.subr.bf16.mxu0 %v7735
    %8316 = vmatpush1.bf16.msra.mxu0 %v7734
    %8317 = vmatprep.subr.bf16.mxu0 %v7739
    %8318 = vmatpush1.bf16.msra.mxu0 %v7738
    %8319 = vmatprep.subr.bf16.mxu0 %v7743
    %8320 = vmatpush1.bf16.msra.mxu0 %v7742
    %8321 = vmatprep.subr.bf16.mxu0 %v7747
    %8322 = vmatpush1.bf16.msra.mxu0 %v7746
    %8323 = vmatprep.mubr.bf16.mxu0 %v6445
    %8324 = vmatmul.mubr.bf16.gmra.mrb[0].mxu0 %v6444
    %v8325 = vpop.f32.mrb[0].mxu0
    %v8326 = vadd.f32 %v8285, %v8325
    %v8327 = vpop.f32.mrb[0].mxu0
    %v8328 = vadd.f32 %v8287, %v8327
    %v8329 = vpop.f32.mrb[0].mxu0
    %v8330 = vpop.f32.mrb[0].mxu0
    %8331 = vdwg.mxu0
    %v8332 = vmax.f32 %v8162, 0.0
    %v8333 = vmax.f32 %v8164, 0.0
    %v8334 = vmax.f32 %v8326, 0.0
    %v8335 = vmax.f32 %v8328, 0.0
    %v8336 = vpack.c.bf16 %v8332, %v8332
    %v8337 = vpack.c.bf16 %v8333, %v8333
    %v8338 = vpack.c.bf16 %v8334, %v8334
    %v8339 = vpack.c.bf16 %v8335, %v8335
    %v8340 = vld [vmem:[#allocation18] sm:$0xff]
    %v8341 = vld [vmem:[#allocation18 + $0x8] sm:$0xff]
    %v8342 = vld [vmem:[#allocation18 + $0x10] sm:$0xff]
    %v8343 = vld [vmem:[#allocation18 + $0x18] sm:$0xff]
    %v8344 = vld [vmem:[#allocation18 + $0x20] sm:$0xff]
    %v8345 = vld [vmem:[#allocation18 + $0x28] sm:$0xff]
    %v8346 = vld [vmem:[#allocation18 + $0x30] sm:$0xff]
    %v8347 = vld [vmem:[#allocation18 + $0x38] sm:$0xff]
    %v8348 = vld [vmem:[#allocation18 + $0x40] sm:$0xff]
    %v8349 = vld [vmem:[#allocation18 + $0x48] sm:$0xff]
    %v8350 = vld [vmem:[#allocation18 + $0x50] sm:$0xff]
    %v8351 = vld [vmem:[#allocation18 + $0x58] sm:$0xff]
    %v8352 = vld [vmem:[#allocation18 + $0x60] sm:$0xff]
    %v8353 = vld [vmem:[#allocation18 + $0x68] sm:$0xff]
    %v8354 = vld [vmem:[#allocation18 + $0x70] sm:$0xff]
    %v8355 = vld [vmem:[#allocation18 + $0x78] sm:$0xff]
    %v8356 = vld [vmem:[#allocation18 + $0x80] sm:$0xff]
    %v8357 = vld [vmem:[#allocation18 + $0x88] sm:$0xff]
    %v8358 = vld [vmem:[#allocation18 + $0x90] sm:$0xff]
    %v8359 = vld [vmem:[#allocation18 + $0x98] sm:$0xff]
    %v8360 = vld [vmem:[#allocation18 + $0xa0] sm:$0xff]
    %v8361 = vld [vmem:[#allocation18 + $0xa8] sm:$0xff]
    %v8362 = vld [vmem:[#allocation18 + $0xb0] sm:$0xff]
    %v8363 = vld [vmem:[#allocation18 + $0xb8] sm:$0xff]
    %v8364 = vld [vmem:[#allocation18 + $0xc0] sm:$0xff]
    %v8365 = vld [vmem:[#allocation18 + $0xc8] sm:$0xff]
    %v8366 = vld [vmem:[#allocation18 + $0xd0] sm:$0xff]
    %v8367 = vld [vmem:[#allocation18 + $0xd8] sm:$0xff]
    %v8368 = vld [vmem:[#allocation18 + $0xe0] sm:$0xff]
    %v8369 = vld [vmem:[#allocation18 + $0xe8] sm:$0xff]
    %v8370 = vld [vmem:[#allocation18 + $0xf0] sm:$0xff]
    %v8371 = vld [vmem:[#allocation18 + $0xf8] sm:$0xff]
    %v8372 = vld [vmem:[#allocation18 + $0x100] sm:$0xff]
    %v8373 = vld [vmem:[#allocation18 + $0x108] sm:$0xff]
    %v8374 = vld [vmem:[#allocation18 + $0x110] sm:$0xff]
    %v8375 = vld [vmem:[#allocation18 + $0x118] sm:$0xff]
    %v8376 = vld [vmem:[#allocation18 + $0x120] sm:$0xff]
    %v8377 = vld [vmem:[#allocation18 + $0x128] sm:$0xff]
    %v8378 = vld [vmem:[#allocation18 + $0x130] sm:$0xff]
    %v8379 = vld [vmem:[#allocation18 + $0x138] sm:$0xff]
    %v8380 = vld [vmem:[#allocation18 + $0x140] sm:$0xff]
    %v8381 = vld [vmem:[#allocation18 + $0x148] sm:$0xff]
    %v8382 = vld [vmem:[#allocation18 + $0x150] sm:$0xff]
    %v8383 = vld [vmem:[#allocation18 + $0x158] sm:$0xff]
    %v8384 = vld [vmem:[#allocation18 + $0x160] sm:$0xff]
    %v8385 = vld [vmem:[#allocation18 + $0x168] sm:$0xff]
    %v8386 = vld [vmem:[#allocation18 + $0x170] sm:$0xff]
    %v8387 = vld [vmem:[#allocation18 + $0x178] sm:$0xff]
    %v8388 = vld [vmem:[#allocation18 + $0x180] sm:$0xff]
    %v8389 = vld [vmem:[#allocation18 + $0x188] sm:$0xff]
    %v8390 = vld [vmem:[#allocation18 + $0x190] sm:$0xff]
    %v8391 = vld [vmem:[#allocation18 + $0x198] sm:$0xff]
    %v8392 = vld [vmem:[#allocation18 + $0x1a0] sm:$0xff]
    %v8393 = vld [vmem:[#allocation18 + $0x1a8] sm:$0xff]
    %v8394 = vld [vmem:[#allocation18 + $0x1b0] sm:$0xff]
    %v8395 = vld [vmem:[#allocation18 + $0x1b8] sm:$0xff]
    %v8396 = vld [vmem:[#allocation18 + $0x1c0] sm:$0xff]
    %v8397 = vld [vmem:[#allocation18 + $0x1c8] sm:$0xff]
    %v8398 = vld [vmem:[#allocation18 + $0x1d0] sm:$0xff]
    %v8399 = vld [vmem:[#allocation18 + $0x1d8] sm:$0xff]
    %v8400 = vld [vmem:[#allocation18 + $0x1e0] sm:$0xff]
    %v8401 = vld [vmem:[#allocation18 + $0x1e8] sm:$0xff]
    %v8402 = vld [vmem:[#allocation18 + $0x1f0] sm:$0xff]
    %v8403 = vld [vmem:[#allocation18 + $0x1f8] sm:$0xff]
    %v8404 = vld [vmem:[#allocation18 + $0x200] sm:$0xff]
    %v8405 = vld [vmem:[#allocation18 + $0x208] sm:$0xff]
    %v8406 = vld [vmem:[#allocation18 + $0x210] sm:$0xff]
    %v8407 = vld [vmem:[#allocation18 + $0x218] sm:$0xff]
    %v8408 = vld [vmem:[#allocation18 + $0x220] sm:$0xff]
    %v8409 = vld [vmem:[#allocation18 + $0x228] sm:$0xff]
    %v8410 = vld [vmem:[#allocation18 + $0x230] sm:$0xff]
    %v8411 = vld [vmem:[#allocation18 + $0x238] sm:$0xff]
    %v8412 = vld [vmem:[#allocation18 + $0x240] sm:$0xff]
    %v8413 = vld [vmem:[#allocation18 + $0x248] sm:$0xff]
    %v8414 = vld [vmem:[#allocation18 + $0x250] sm:$0xff]
    %v8415 = vld [vmem:[#allocation18 + $0x258] sm:$0xff]
    %v8416 = vld [vmem:[#allocation18 + $0x260] sm:$0xff]
    %v8417 = vld [vmem:[#allocation18 + $0x268] sm:$0xff]
    %v8418 = vld [vmem:[#allocation18 + $0x270] sm:$0xff]
    %v8419 = vld [vmem:[#allocation18 + $0x278] sm:$0xff]
    %v8420 = vld [vmem:[#allocation18 + $0x280] sm:$0xff]
    %v8421 = vld [vmem:[#allocation18 + $0x288] sm:$0xff]
    %v8422 = vld [vmem:[#allocation18 + $0x290] sm:$0xff]
    %v8423 = vld [vmem:[#allocation18 + $0x298] sm:$0xff]
    %v8424 = vld [vmem:[#allocation18 + $0x2a0] sm:$0xff]
    %v8425 = vld [vmem:[#allocation18 + $0x2a8] sm:$0xff]
    %v8426 = vld [vmem:[#allocation18 + $0x2b0] sm:$0xff]
    %v8427 = vld [vmem:[#allocation18 + $0x2b8] sm:$0xff]
    %v8428 = vld [vmem:[#allocation18 + $0x2c0] sm:$0xff]
    %v8429 = vld [vmem:[#allocation18 + $0x2c8] sm:$0xff]
    %v8430 = vld [vmem:[#allocation18 + $0x2d0] sm:$0xff]
    %v8431 = vld [vmem:[#allocation18 + $0x2d8] sm:$0xff]
    %v8432 = vld [vmem:[#allocation18 + $0x2e0] sm:$0xff]
    %v8433 = vld [vmem:[#allocation18 + $0x2e8] sm:$0xff]
    %v8434 = vld [vmem:[#allocation18 + $0x2f0] sm:$0xff]
    %v8435 = vld [vmem:[#allocation18 + $0x2f8] sm:$0xff]
    %v8436 = vld [vmem:[#allocation18 + $0x300] sm:$0xff]
    %v8437 = vld [vmem:[#allocation18 + $0x308] sm:$0xff]
    %v8438 = vld [vmem:[#allocation18 + $0x310] sm:$0xff]
    %v8439 = vld [vmem:[#allocation18 + $0x318] sm:$0xff]
    %v8440 = vld [vmem:[#allocation18 + $0x320] sm:$0xff]
    %v8441 = vld [vmem:[#allocation18 + $0x328] sm:$0xff]
    %v8442 = vld [vmem:[#allocation18 + $0x330] sm:$0xff]
    %v8443 = vld [vmem:[#allocation18 + $0x338] sm:$0xff]
    %v8444 = vld [vmem:[#allocation18 + $0x340] sm:$0xff]
    %v8445 = vld [vmem:[#allocation18 + $0x348] sm:$0xff]
    %v8446 = vld [vmem:[#allocation18 + $0x350] sm:$0xff]
    %v8447 = vld [vmem:[#allocation18 + $0x358] sm:$0xff]
    %v8448 = vld [vmem:[#allocation18 + $0x360] sm:$0xff]
    %v8449 = vld [vmem:[#allocation18 + $0x368] sm:$0xff]
    %v8450 = vld [vmem:[#allocation18 + $0x370] sm:$0xff]
    %v8451 = vld [vmem:[#allocation18 + $0x378] sm:$0xff]
    %v8452 = vld [vmem:[#allocation18 + $0x380] sm:$0xff]
    %v8453 = vld [vmem:[#allocation18 + $0x388] sm:$0xff]
    %v8454 = vld [vmem:[#allocation18 + $0x390] sm:$0xff]
    %v8455 = vld [vmem:[#allocation18 + $0x398] sm:$0xff]
    %v8456 = vld [vmem:[#allocation18 + $0x3a0] sm:$0xff]
    %v8457 = vld [vmem:[#allocation18 + $0x3a8] sm:$0xff]
    %v8458 = vld [vmem:[#allocation18 + $0x3b0] sm:$0xff]
    %v8459 = vld [vmem:[#allocation18 + $0x3b8] sm:$0xff]
    %v8460 = vld [vmem:[#allocation18 + $0x3c0] sm:$0xff]
    %v8461 = vld [vmem:[#allocation18 + $0x3c8] sm:$0xff]
    %v8462 = vld [vmem:[#allocation18 + $0x3d0] sm:$0xff]
    %v8463 = vld [vmem:[#allocation18 + $0x3d8] sm:$0xff]
    %v8464 = vld [vmem:[#allocation18 + $0x3e0] sm:$0xff]
    %v8465 = vld [vmem:[#allocation18 + $0x3e8] sm:$0xff]
    %v8466 = vld [vmem:[#allocation18 + $0x3f0] sm:$0xff]
    %v8467 = vld [vmem:[#allocation18 + $0x3f8] sm:$0xff]
    %v8468 = vld [vmem:[#allocation19] sm:$0xf]
    %v8470 = vlaneseq
    %v8471 = vshrl.u32 %v8470, 7
    %v8472 = vsub.s32 0, %v8471
    %v8473 = vrot.slane %v8468, %v8472
    %v8474 = vlaneseq
    %v8475 = vshrl.u32 %v8474, 7
    %v8476 = vsub.s32 1, %v8475
    %v8477 = vrot.slane %v8468, %v8476
    %v8478 = vlaneseq
    %v8479 = vshrl.u32 %v8478, 7
    %v8480 = vsub.s32 2, %v8479
    %v8481 = vrot.slane %v8468, %v8480
    %v8482 = vlaneseq
    %v8483 = vshrl.u32 %v8482, 7
    %v8484 = vsub.s32 3, %v8483
    %v8485 = vrot.slane %v8468, %v8484
    %v8618 = vunpack.c.l.b16 %v8340
    %v8619 = vunpack.c.h.b16 %v8340
    %v8620 = vunpack.c.l.b16 %v8341
    %v8621 = vunpack.c.h.b16 %v8341
    %v8622 = vunpack.c.l.b16 %v8342
    %v8623 = vunpack.c.h.b16 %v8342
    %v8624 = vunpack.c.l.b16 %v8343
    %v8625 = vunpack.c.h.b16 %v8343
    %v8626 = vunpack.c.l.b16 %v8344
    %v8627 = vunpack.c.h.b16 %v8344
    %v8628 = vunpack.c.l.b16 %v8345
    %v8629 = vunpack.c.h.b16 %v8345
    %v8630 = vunpack.c.l.b16 %v8346
    %v8631 = vunpack.c.h.b16 %v8346
    %v8632 = vunpack.c.l.b16 %v8347
    %v8633 = vunpack.c.h.b16 %v8347
    %v8634 = vunpack.c.l.b16 %v8348
    %v8635 = vunpack.c.h.b16 %v8348
    %v8636 = vunpack.c.l.b16 %v8349
    %v8637 = vunpack.c.h.b16 %v8349
    %v8638 = vunpack.c.l.b16 %v8350
    %v8639 = vunpack.c.h.b16 %v8350
    %v8640 = vunpack.c.l.b16 %v8351
    %v8641 = vunpack.c.h.b16 %v8351
    %v8642 = vunpack.c.l.b16 %v8352
    %v8643 = vunpack.c.h.b16 %v8352
    %v8644 = vunpack.c.l.b16 %v8353
    %v8645 = vunpack.c.h.b16 %v8353
    %v8646 = vunpack.c.l.b16 %v8354
    %v8647 = vunpack.c.h.b16 %v8354
    %v8648 = vunpack.c.l.b16 %v8355
    %v8649 = vunpack.c.h.b16 %v8355
    %v8650 = vunpack.c.l.b16 %v8356
    %v8651 = vunpack.c.h.b16 %v8356
    %v8652 = vunpack.c.l.b16 %v8357
    %v8653 = vunpack.c.h.b16 %v8357
    %v8654 = vunpack.c.l.b16 %v8358
    %v8655 = vunpack.c.h.b16 %v8358
    %v8656 = vunpack.c.l.b16 %v8359
    %v8657 = vunpack.c.h.b16 %v8359
    %v8658 = vunpack.c.l.b16 %v8360
    %v8659 = vunpack.c.h.b16 %v8360
    %v8660 = vunpack.c.l.b16 %v8361
    %v8661 = vunpack.c.h.b16 %v8361
    %v8662 = vunpack.c.l.b16 %v8362
    %v8663 = vunpack.c.h.b16 %v8362
    %v8664 = vunpack.c.l.b16 %v8363
    %v8665 = vunpack.c.h.b16 %v8363
    %v8666 = vunpack.c.l.b16 %v8364
    %v8667 = vunpack.c.h.b16 %v8364
    %v8668 = vunpack.c.l.b16 %v8365
    %v8669 = vunpack.c.h.b16 %v8365
    %v8670 = vunpack.c.l.b16 %v8366
    %v8671 = vunpack.c.h.b16 %v8366
    %v8672 = vunpack.c.l.b16 %v8367
    %v8673 = vunpack.c.h.b16 %v8367
    %v8674 = vunpack.c.l.b16 %v8368
    %v8675 = vunpack.c.h.b16 %v8368
    %v8676 = vunpack.c.l.b16 %v8369
    %v8677 = vunpack.c.h.b16 %v8369
    %v8678 = vunpack.c.l.b16 %v8370
    %v8679 = vunpack.c.h.b16 %v8370
    %v8680 = vunpack.c.l.b16 %v8371
    %v8681 = vunpack.c.h.b16 %v8371
    %v8682 = vunpack.c.l.b16 %v8372
    %v8683 = vunpack.c.h.b16 %v8372
    %v8684 = vunpack.c.l.b16 %v8373
    %v8685 = vunpack.c.h.b16 %v8373
    %v8686 = vunpack.c.l.b16 %v8374
    %v8687 = vunpack.c.h.b16 %v8374
    %v8688 = vunpack.c.l.b16 %v8375
    %v8689 = vunpack.c.h.b16 %v8375
    %v8690 = vunpack.c.l.b16 %v8376
    %v8691 = vunpack.c.h.b16 %v8376
    %v8692 = vunpack.c.l.b16 %v8377
    %v8693 = vunpack.c.h.b16 %v8377
    %v8694 = vunpack.c.l.b16 %v8378
    %v8695 = vunpack.c.h.b16 %v8378
    %v8696 = vunpack.c.l.b16 %v8379
    %v8697 = vunpack.c.h.b16 %v8379
    %v8698 = vunpack.c.l.b16 %v8380
    %v8699 = vunpack.c.h.b16 %v8380
    %v8700 = vunpack.c.l.b16 %v8381
    %v8701 = vunpack.c.h.b16 %v8381
    %v8702 = vunpack.c.l.b16 %v8382
    %v8703 = vunpack.c.h.b16 %v8382
    %v8704 = vunpack.c.l.b16 %v8383
    %v8705 = vunpack.c.h.b16 %v8383
    %v8706 = vunpack.c.l.b16 %v8384
    %v8707 = vunpack.c.h.b16 %v8384
    %v8708 = vunpack.c.l.b16 %v8385
    %v8709 = vunpack.c.h.b16 %v8385
    %v8710 = vunpack.c.l.b16 %v8386
    %v8711 = vunpack.c.h.b16 %v8386
    %v8712 = vunpack.c.l.b16 %v8387
    %v8713 = vunpack.c.h.b16 %v8387
    %v8714 = vunpack.c.l.b16 %v8388
    %v8715 = vunpack.c.h.b16 %v8388
    %v8716 = vunpack.c.l.b16 %v8389
    %v8717 = vunpack.c.h.b16 %v8389
    %v8718 = vunpack.c.l.b16 %v8390
    %v8719 = vunpack.c.h.b16 %v8390
    %v8720 = vunpack.c.l.b16 %v8391
    %v8721 = vunpack.c.h.b16 %v8391
    %v8722 = vunpack.c.l.b16 %v8392
    %v8723 = vunpack.c.h.b16 %v8392
    %v8724 = vunpack.c.l.b16 %v8393
    %v8725 = vunpack.c.h.b16 %v8393
    %v8726 = vunpack.c.l.b16 %v8394
    %v8727 = vunpack.c.h.b16 %v8394
    %v8728 = vunpack.c.l.b16 %v8395
    %v8729 = vunpack.c.h.b16 %v8395
    %v8730 = vunpack.c.l.b16 %v8396
    %v8731 = vunpack.c.h.b16 %v8396
    %v8732 = vunpack.c.l.b16 %v8397
    %v8733 = vunpack.c.h.b16 %v8397
    %v8734 = vunpack.c.l.b16 %v8398
    %v8735 = vunpack.c.h.b16 %v8398
    %v8736 = vunpack.c.l.b16 %v8399
    %v8737 = vunpack.c.h.b16 %v8399
    %v8738 = vunpack.c.l.b16 %v8400
    %v8739 = vunpack.c.h.b16 %v8400
    %v8740 = vunpack.c.l.b16 %v8401
    %v8741 = vunpack.c.h.b16 %v8401
    %v8742 = vunpack.c.l.b16 %v8402
    %v8743 = vunpack.c.h.b16 %v8402
    %v8744 = vunpack.c.l.b16 %v8403
    %v8745 = vunpack.c.h.b16 %v8403
    %v8746 = vunpack.c.l.b16 %v8404
    %v8747 = vunpack.c.h.b16 %v8404
    %v8748 = vunpack.c.l.b16 %v8405
    %v8749 = vunpack.c.h.b16 %v8405
    %v8750 = vunpack.c.l.b16 %v8406
    %v8751 = vunpack.c.h.b16 %v8406
    %v8752 = vunpack.c.l.b16 %v8407
    %v8753 = vunpack.c.h.b16 %v8407
    %v8754 = vunpack.c.l.b16 %v8408
    %v8755 = vunpack.c.h.b16 %v8408
    %v8756 = vunpack.c.l.b16 %v8409
    %v8757 = vunpack.c.h.b16 %v8409
    %v8758 = vunpack.c.l.b16 %v8410
    %v8759 = vunpack.c.h.b16 %v8410
    %v8760 = vunpack.c.l.b16 %v8411
    %v8761 = vunpack.c.h.b16 %v8411
    %v8762 = vunpack.c.l.b16 %v8412
    %v8763 = vunpack.c.h.b16 %v8412
    %v8764 = vunpack.c.l.b16 %v8413
    %v8765 = vunpack.c.h.b16 %v8413
    %v8766 = vunpack.c.l.b16 %v8414
    %v8767 = vunpack.c.h.b16 %v8414
    %v8768 = vunpack.c.l.b16 %v8415
    %v8769 = vunpack.c.h.b16 %v8415
    %v8770 = vunpack.c.l.b16 %v8416
    %v8771 = vunpack.c.h.b16 %v8416
    %v8772 = vunpack.c.l.b16 %v8417
    %v8773 = vunpack.c.h.b16 %v8417
    %v8774 = vunpack.c.l.b16 %v8418
    %v8775 = vunpack.c.h.b16 %v8418
    %v8776 = vunpack.c.l.b16 %v8419
    %v8777 = vunpack.c.h.b16 %v8419
    %v8778 = vunpack.c.l.b16 %v8420
    %v8779 = vunpack.c.h.b16 %v8420
    %v8780 = vunpack.c.l.b16 %v8421
    %v8781 = vunpack.c.h.b16 %v8421
    %v8782 = vunpack.c.l.b16 %v8422
    %v8783 = vunpack.c.h.b16 %v8422
    %v8784 = vunpack.c.l.b16 %v8423
    %v8785 = vunpack.c.h.b16 %v8423
    %v8786 = vunpack.c.l.b16 %v8424
    %v8787 = vunpack.c.h.b16 %v8424
    %v8788 = vunpack.c.l.b16 %v8425
    %v8789 = vunpack.c.h.b16 %v8425
    %v8790 = vunpack.c.l.b16 %v8426
    %v8791 = vunpack.c.h.b16 %v8426
    %v8792 = vunpack.c.l.b16 %v8427
    %v8793 = vunpack.c.h.b16 %v8427
    %v8794 = vunpack.c.l.b16 %v8428
    %v8795 = vunpack.c.h.b16 %v8428
    %v8796 = vunpack.c.l.b16 %v8429
    %v8797 = vunpack.c.h.b16 %v8429
    %v8798 = vunpack.c.l.b16 %v8430
    %v8799 = vunpack.c.h.b16 %v8430
    %v8800 = vunpack.c.l.b16 %v8431
    %v8801 = vunpack.c.h.b16 %v8431
    %v8802 = vunpack.c.l.b16 %v8432
    %v8803 = vunpack.c.h.b16 %v8432
    %v8804 = vunpack.c.l.b16 %v8433
    %v8805 = vunpack.c.h.b16 %v8433
    %v8806 = vunpack.c.l.b16 %v8434
    %v8807 = vunpack.c.h.b16 %v8434
    %v8808 = vunpack.c.l.b16 %v8435
    %v8809 = vunpack.c.h.b16 %v8435
    %v8810 = vunpack.c.l.b16 %v8436
    %v8811 = vunpack.c.h.b16 %v8436
    %v8812 = vunpack.c.l.b16 %v8437
    %v8813 = vunpack.c.h.b16 %v8437
    %v8814 = vunpack.c.l.b16 %v8438
    %v8815 = vunpack.c.h.b16 %v8438
    %v8816 = vunpack.c.l.b16 %v8439
    %v8817 = vunpack.c.h.b16 %v8439
    %v8818 = vunpack.c.l.b16 %v8440
    %v8819 = vunpack.c.h.b16 %v8440
    %v8820 = vunpack.c.l.b16 %v8441
    %v8821 = vunpack.c.h.b16 %v8441
    %v8822 = vunpack.c.l.b16 %v8442
    %v8823 = vunpack.c.h.b16 %v8442
    %v8824 = vunpack.c.l.b16 %v8443
    %v8825 = vunpack.c.h.b16 %v8443
    %v8826 = vunpack.c.l.b16 %v8444
    %v8827 = vunpack.c.h.b16 %v8444
    %v8828 = vunpack.c.l.b16 %v8445
    %v8829 = vunpack.c.h.b16 %v8445
    %v8830 = vunpack.c.l.b16 %v8446
    %v8831 = vunpack.c.h.b16 %v8446
    %v8832 = vunpack.c.l.b16 %v8447
    %v8833 = vunpack.c.h.b16 %v8447
    %v8834 = vunpack.c.l.b16 %v8448
    %v8835 = vunpack.c.h.b16 %v8448
    %v8836 = vunpack.c.l.b16 %v8449
    %v8837 = vunpack.c.h.b16 %v8449
    %v8838 = vunpack.c.l.b16 %v8450
    %v8839 = vunpack.c.h.b16 %v8450
    %v8840 = vunpack.c.l.b16 %v8451
    %v8841 = vunpack.c.h.b16 %v8451
    %v8842 = vunpack.c.l.b16 %v8452
    %v8843 = vunpack.c.h.b16 %v8452
    %v8844 = vunpack.c.l.b16 %v8453
    %v8845 = vunpack.c.h.b16 %v8453
    %v8846 = vunpack.c.l.b16 %v8454
    %v8847 = vunpack.c.h.b16 %v8454
    %v8848 = vunpack.c.l.b16 %v8455
    %v8849 = vunpack.c.h.b16 %v8455
    %v8850 = vunpack.c.l.b16 %v8456
    %v8851 = vunpack.c.h.b16 %v8456
    %v8852 = vunpack.c.l.b16 %v8457
    %v8853 = vunpack.c.h.b16 %v8457
    %v8854 = vunpack.c.l.b16 %v8458
    %v8855 = vunpack.c.h.b16 %v8458
    %v8856 = vunpack.c.l.b16 %v8459
    %v8857 = vunpack.c.h.b16 %v8459
    %v8858 = vunpack.c.l.b16 %v8460
    %v8859 = vunpack.c.h.b16 %v8460
    %v8860 = vunpack.c.l.b16 %v8461
    %v8861 = vunpack.c.h.b16 %v8461
    %v8862 = vunpack.c.l.b16 %v8462
    %v8863 = vunpack.c.h.b16 %v8462
    %v8864 = vunpack.c.l.b16 %v8463
    %v8865 = vunpack.c.h.b16 %v8463
    %v8866 = vunpack.c.l.b16 %v8464
    %v8867 = vunpack.c.h.b16 %v8464
    %v8868 = vunpack.c.l.b16 %v8465
    %v8869 = vunpack.c.h.b16 %v8465
    %v8870 = vunpack.c.l.b16 %v8466
    %v8871 = vunpack.c.h.b16 %v8466
    %v8872 = vunpack.c.l.b16 %v8467
    %v8873 = vunpack.c.h.b16 %v8467
    %v8874 = vpack.c.b16 %v8622, %v8618
    %v8875 = vpack.c.b16 %v8623, %v8619
    %v8876 = vpack.c.b16 %v8624, %v8620
    %v8877 = vpack.c.b16 %v8625, %v8621
    %v8878 = vpack.c.b16 %v8630, %v8626
    %v8879 = vpack.c.b16 %v8631, %v8627
    %v8880 = vpack.c.b16 %v8632, %v8628
    %v8881 = vpack.c.b16 %v8633, %v8629
    %v8882 = vpack.c.b16 %v8638, %v8634
    %v8883 = vpack.c.b16 %v8639, %v8635
    %v8884 = vpack.c.b16 %v8640, %v8636
    %v8885 = vpack.c.b16 %v8641, %v8637
    %v8886 = vpack.c.b16 %v8646, %v8642
    %v8887 = vpack.c.b16 %v8647, %v8643
    %v8888 = vpack.c.b16 %v8648, %v8644
    %v8889 = vpack.c.b16 %v8649, %v8645
    %v8890 = vpack.c.b16 %v8654, %v8650
    %v8891 = vpack.c.b16 %v8655, %v8651
    %v8892 = vpack.c.b16 %v8656, %v8652
    %v8893 = vpack.c.b16 %v8657, %v8653
    %v8894 = vpack.c.b16 %v8662, %v8658
    %v8895 = vpack.c.b16 %v8663, %v8659
    %v8896 = vpack.c.b16 %v8664, %v8660
    %v8897 = vpack.c.b16 %v8665, %v8661
    %v8898 = vpack.c.b16 %v8670, %v8666
    %v8899 = vpack.c.b16 %v8671, %v8667
    %v8900 = vpack.c.b16 %v8672, %v8668
    %v8901 = vpack.c.b16 %v8673, %v8669
    %v8902 = vpack.c.b16 %v8678, %v8674
    %v8903 = vpack.c.b16 %v8679, %v8675
    %v8904 = vpack.c.b16 %v8680, %v8676
    %v8905 = vpack.c.b16 %v8681, %v8677
    %v8906 = vpack.c.b16 %v8686, %v8682
    %v8907 = vpack.c.b16 %v8687, %v8683
    %v8908 = vpack.c.b16 %v8688, %v8684
    %v8909 = vpack.c.b16 %v8689, %v8685
    %v8910 = vpack.c.b16 %v8694, %v8690
    %v8911 = vpack.c.b16 %v8695, %v8691
    %v8912 = vpack.c.b16 %v8696, %v8692
    %v8913 = vpack.c.b16 %v8697, %v8693
    %v8914 = vpack.c.b16 %v8702, %v8698
    %v8915 = vpack.c.b16 %v8703, %v8699
    %v8916 = vpack.c.b16 %v8704, %v8700
    %v8917 = vpack.c.b16 %v8705, %v8701
    %v8918 = vpack.c.b16 %v8710, %v8706
    %v8919 = vpack.c.b16 %v8711, %v8707
    %v8920 = vpack.c.b16 %v8712, %v8708
    %v8921 = vpack.c.b16 %v8713, %v8709
    %v8922 = vpack.c.b16 %v8718, %v8714
    %v8923 = vpack.c.b16 %v8719, %v8715
    %v8924 = vpack.c.b16 %v8720, %v8716
    %v8925 = vpack.c.b16 %v8721, %v8717
    %v8926 = vpack.c.b16 %v8726, %v8722
    %v8927 = vpack.c.b16 %v8727, %v8723
    %v8928 = vpack.c.b16 %v8728, %v8724
    %v8929 = vpack.c.b16 %v8729, %v8725
    %v8930 = vpack.c.b16 %v8734, %v8730
    %v8931 = vpack.c.b16 %v8735, %v8731
    %v8932 = vpack.c.b16 %v8736, %v8732
    %v8933 = vpack.c.b16 %v8737, %v8733
    %v8934 = vpack.c.b16 %v8742, %v8738
    %v8935 = vpack.c.b16 %v8743, %v8739
    %v8936 = vpack.c.b16 %v8744, %v8740
    %v8937 = vpack.c.b16 %v8745, %v8741
    %v8938 = vpack.c.b16 %v8750, %v8746
    %v8939 = vpack.c.b16 %v8751, %v8747
    %v8940 = vpack.c.b16 %v8752, %v8748
    %v8941 = vpack.c.b16 %v8753, %v8749
    %v8942 = vpack.c.b16 %v8758, %v8754
    %v8943 = vpack.c.b16 %v8759, %v8755
    %v8944 = vpack.c.b16 %v8760, %v8756
    %v8945 = vpack.c.b16 %v8761, %v8757
    %v8946 = vpack.c.b16 %v8766, %v8762
    %v8947 = vpack.c.b16 %v8767, %v8763
    %v8948 = vpack.c.b16 %v8768, %v8764
    %v8949 = vpack.c.b16 %v8769, %v8765
    %v8950 = vpack.c.b16 %v8774, %v8770
    %v8951 = vpack.c.b16 %v8775, %v8771
    %v8952 = vpack.c.b16 %v8776, %v8772
    %v8953 = vpack.c.b16 %v8777, %v8773
    %v8954 = vpack.c.b16 %v8782, %v8778
    %v8955 = vpack.c.b16 %v8783, %v8779
    %v8956 = vpack.c.b16 %v8784, %v8780
    %v8957 = vpack.c.b16 %v8785, %v8781
    %v8958 = vpack.c.b16 %v8790, %v8786
    %v8959 = vpack.c.b16 %v8791, %v8787
    %v8960 = vpack.c.b16 %v8792, %v8788
    %v8961 = vpack.c.b16 %v8793, %v8789
    %v8962 = vpack.c.b16 %v8798, %v8794
    %v8963 = vpack.c.b16 %v8799, %v8795
    %v8964 = vpack.c.b16 %v8800, %v8796
    %v8965 = vpack.c.b16 %v8801, %v8797
    %v8966 = vpack.c.b16 %v8806, %v8802
    %v8967 = vpack.c.b16 %v8807, %v8803
    %v8968 = vpack.c.b16 %v8808, %v8804
    %v8969 = vpack.c.b16 %v8809, %v8805
    %v8970 = vpack.c.b16 %v8814, %v8810
    %v8971 = vpack.c.b16 %v8815, %v8811
    %v8972 = vpack.c.b16 %v8816, %v8812
    %v8973 = vpack.c.b16 %v8817, %v8813
    %v8974 = vpack.c.b16 %v8822, %v8818
    %v8975 = vpack.c.b16 %v8823, %v8819
    %v8976 = vpack.c.b16 %v8824, %v8820
    %v8977 = vpack.c.b16 %v8825, %v8821
    %v8978 = vpack.c.b16 %v8830, %v8826
    %v8979 = vpack.c.b16 %v8831, %v8827
    %v8980 = vpack.c.b16 %v8832, %v8828
    %v8981 = vpack.c.b16 %v8833, %v8829
    %v8982 = vpack.c.b16 %v8838, %v8834
    %v8983 = vpack.c.b16 %v8839, %v8835
    %v8984 = vpack.c.b16 %v8840, %v8836
    %v8985 = vpack.c.b16 %v8841, %v8837
    %v8986 = vpack.c.b16 %v8846, %v8842
    %v8987 = vpack.c.b16 %v8847, %v8843
    %v8988 = vpack.c.b16 %v8848, %v8844
    %v8989 = vpack.c.b16 %v8849, %v8845
    %v8990 = vpack.c.b16 %v8854, %v8850
    %v8991 = vpack.c.b16 %v8855, %v8851
    %v8992 = vpack.c.b16 %v8856, %v8852
    %v8993 = vpack.c.b16 %v8857, %v8853
    %v8994 = vpack.c.b16 %v8862, %v8858
    %v8995 = vpack.c.b16 %v8863, %v8859
    %v8996 = vpack.c.b16 %v8864, %v8860
    %v8997 = vpack.c.b16 %v8865, %v8861
    %v8998 = vpack.c.b16 %v8870, %v8866
    %v8999 = vpack.c.b16 %v8871, %v8867
    %v9000 = vpack.c.b16 %v8872, %v8868
    %v9001 = vpack.c.b16 %v8873, %v8869
    %9130 = vmatprep.subr.bf16.mxu0 %v8875
    %9131 = vmatpush1.bf16.msra.mxu0 %v8874
    %9132 = vmatprep.subr.bf16.mxu0 %v8879
    %9133 = vmatpush1.bf16.msra.mxu0 %v8878
    %9134 = vmatprep.subr.bf16.mxu0 %v8883
    %9135 = vmatpush1.bf16.msra.mxu0 %v8882
    %9136 = vmatprep.subr.bf16.mxu0 %v8887
    %9137 = vmatpush1.bf16.msra.mxu0 %v8886
    %9138 = vmatprep.subr.bf16.mxu0 %v8891
    %9139 = vmatpush1.bf16.msra.mxu0 %v8890
    %9140 = vmatprep.subr.bf16.mxu0 %v8895
    %9141 = vmatpush1.bf16.msra.mxu0 %v8894
    %9142 = vmatprep.subr.bf16.mxu0 %v8899
    %9143 = vmatpush1.bf16.msra.mxu0 %v8898
    %9144 = vmatprep.subr.bf16.mxu0 %v8903
    %9145 = vmatpush1.bf16.msra.mxu0 %v8902
    %9146 = vmatprep.subr.bf16.mxu0 %v8907
    %9147 = vmatpush1.bf16.msra.mxu0 %v8906
    %9148 = vmatprep.subr.bf16.mxu0 %v8911
    %9149 = vmatpush1.bf16.msra.mxu0 %v8910
    %9150 = vmatprep.subr.bf16.mxu0 %v8915
    %9151 = vmatpush1.bf16.msra.mxu0 %v8914
    %9152 = vmatprep.subr.bf16.mxu0 %v8919
    %9153 = vmatpush1.bf16.msra.mxu0 %v8918
    %9154 = vmatprep.subr.bf16.mxu0 %v8923
    %9155 = vmatpush1.bf16.msra.mxu0 %v8922
    %9156 = vmatprep.subr.bf16.mxu0 %v8927
    %9157 = vmatpush1.bf16.msra.mxu0 %v8926
    %9158 = vmatprep.subr.bf16.mxu0 %v8931
    %9159 = vmatpush1.bf16.msra.mxu0 %v8930
    %9160 = vmatprep.subr.bf16.mxu0 %v8935
    %9161 = vmatpush1.bf16.msra.mxu0 %v8934
    %9162 = vmatprep.mubr.bf16.mxu0 %v8337
    %9163 = vmatmul.mubr.bf16.gmra.mrb[0].mxu0 %v8336
    %v9164 = vpop.f32.mrb[0].mxu0
    %v9165 = vadd.f32 %v8473, %v9164
    %v9166 = vpop.f32.mrb[0].mxu0
    %v9167 = vadd.f32 %v8477, %v9166
    %v9168 = vpop.f32.mrb[0].mxu0
    %v9169 = vpop.f32.mrb[0].mxu0
    %9170 = vdwg.mxu0
    %9171 = vmatprep.subr.bf16.mxu0 %v8939
    %9172 = vmatpush1.bf16.msra.mxu0 %v8938
    %9173 = vmatprep.subr.bf16.mxu0 %v8943
    %9174 = vmatpush1.bf16.msra.mxu0 %v8942
    %9175 = vmatprep.subr.bf16.mxu0 %v8947
    %9176 = vmatpush1.bf16.msra.mxu0 %v8946
    %9177 = vmatprep.subr.bf16.mxu0 %v8951
    %9178 = vmatpush1.bf16.msra.mxu0 %v8950
    %9179 = vmatprep.subr.bf16.mxu0 %v8955
    %9180 = vmatpush1.bf16.msra.mxu0 %v8954
    %9181 = vmatprep.subr.bf16.mxu0 %v8959
    %9182 = vmatpush1.bf16.msra.mxu0 %v8958
    %9183 = vmatprep.subr.bf16.mxu0 %v8963
    %9184 = vmatpush1.bf16.msra.mxu0 %v8962
    %9185 = vmatprep.subr.bf16.mxu0 %v8967
    %9186 = vmatpush1.bf16.msra.mxu0 %v8966
    %9187 = vmatprep.subr.bf16.mxu0 %v8971
    %9188 = vmatpush1.bf16.msra.mxu0 %v8970
    %9189 = vmatprep.subr.bf16.mxu0 %v8975
    %9190 = vmatpush1.bf16.msra.mxu0 %v8974
    %9191 = vmatprep.subr.bf16.mxu0 %v8979
    %9192 = vmatpush1.bf16.msra.mxu0 %v8978
    %9193 = vmatprep.subr.bf16.mxu0 %v8983
    %9194 = vmatpush1.bf16.msra.mxu0 %v8982
    %9195 = vmatprep.subr.bf16.mxu0 %v8987
    %9196 = vmatpush1.bf16.msra.mxu0 %v8986
    %9197 = vmatprep.subr.bf16.mxu0 %v8991
    %9198 = vmatpush1.bf16.msra.mxu0 %v8990
    %9199 = vmatprep.subr.bf16.mxu0 %v8995
    %9200 = vmatpush1.bf16.msra.mxu0 %v8994
    %9201 = vmatprep.subr.bf16.mxu0 %v8999
    %9202 = vmatpush1.bf16.msra.mxu0 %v8998
    %9203 = vmatprep.mubr.bf16.mxu0 %v8339
    %9204 = vmatmul.mubr.bf16.gmra.mrb[0].mxu0 %v8338
    %v9205 = vpop.f32.mrb[0].mxu0
    %v9206 = vadd.f32 %v9165, %v9205
    %v9207 = vpop.f32.mrb[0].mxu0
    %v9208 = vadd.f32 %v9167, %v9207
    %v9209 = vpop.f32.mrb[0].mxu0
    %v9210 = vpop.f32.mrb[0].mxu0
    %9211 = vdwg.mxu0
    %9212 = vmatprep.subr.bf16.mxu0 %v8877
    %9213 = vmatpush1.bf16.msra.mxu0 %v8876
    %9214 = vmatprep.subr.bf16.mxu0 %v8881
    %9215 = vmatpush1.bf16.msra.mxu0 %v8880
    %9216 = vmatprep.subr.bf16.mxu0 %v8885
    %9217 = vmatpush1.bf16.msra.mxu0 %v8884
    %9218 = vmatprep.subr.bf16.mxu0 %v8889
    %9219 = vmatpush1.bf16.msra.mxu0 %v8888
    %9220 = vmatprep.subr.bf16.mxu0 %v8893
    %9221 = vmatpush1.bf16.msra.mxu0 %v8892
    %9222 = vmatprep.subr.bf16.mxu0 %v8897
    %9223 = vmatpush1.bf16.msra.mxu0 %v8896
    %9224 = vmatprep.subr.bf16.mxu0 %v8901
    %9225 = vmatpush1.bf16.msra.mxu0 %v8900
    %9226 = vmatprep.subr.bf16.mxu0 %v8905
    %9227 = vmatpush1.bf16.msra.mxu0 %v8904
    %9228 = vmatprep.subr.bf16.mxu0 %v8909
    %9229 = vmatpush1.bf16.msra.mxu0 %v8908
    %9230 = vmatprep.subr.bf16.mxu0 %v8913
    %9231 = vmatpush1.bf16.msra.mxu0 %v8912
    %9232 = vmatprep.subr.bf16.mxu0 %v8917
    %9233 = vmatpush1.bf16.msra.mxu0 %v8916
    %9234 = vmatprep.subr.bf16.mxu0 %v8921
    %9235 = vmatpush1.bf16.msra.mxu0 %v8920
    %9236 = vmatprep.subr.bf16.mxu0 %v8925
    %9237 = vmatpush1.bf16.msra.mxu0 %v8924
    %9238 = vmatprep.subr.bf16.mxu0 %v8929
    %9239 = vmatpush1.bf16.msra.mxu0 %v8928
    %9240 = vmatprep.subr.bf16.mxu0 %v8933
    %9241 = vmatpush1.bf16.msra.mxu0 %v8932
    %9242 = vmatprep.subr.bf16.mxu0 %v8937
    %9243 = vmatpush1.bf16.msra.mxu0 %v8936
    %9244 = vmatprep.mubr.bf16.mxu0 %v8337
    %9245 = vmatmul.mubr.bf16.gmra.mrb[0].mxu0 %v8336
    %v9246 = vpop.f32.mrb[0].mxu0
    %v9247 = vadd.f32 %v8481, %v9246
    %v9248 = vpop.f32.mrb[0].mxu0
    %v9249 = vadd.f32 %v8485, %v9248
    %v9250 = vpop.f32.mrb[0].mxu0
    %v9251 = vpop.f32.mrb[0].mxu0
    %9252 = vdwg.mxu0
    %9253 = vmatprep.subr.bf16.mxu0 %v8941
    %9254 = vmatpush1.bf16.msra.mxu0 %v8940
    %9255 = vmatprep.subr.bf16.mxu0 %v8945
    %9256 = vmatpush1.bf16.msra.mxu0 %v8944
    %9257 = vmatprep.subr.bf16.mxu0 %v8949
    %9258 = vmatpush1.bf16.msra.mxu0 %v8948
    %9259 = vmatprep.subr.bf16.mxu0 %v8953
    %9260 = vmatpush1.bf16.msra.mxu0 %v8952
    %9261 = vmatprep.subr.bf16.mxu0 %v8957
    %9262 = vmatpush1.bf16.msra.mxu0 %v8956
    %9263 = vmatprep.subr.bf16.mxu0 %v8961
    %9264 = vmatpush1.bf16.msra.mxu0 %v8960
    %9265 = vmatprep.subr.bf16.mxu0 %v8965
    %9266 = vmatpush1.bf16.msra.mxu0 %v8964
    %9267 = vmatprep.subr.bf16.mxu0 %v8969
    %9268 = vmatpush1.bf16.msra.mxu0 %v8968
    %9269 = vmatprep.subr.bf16.mxu0 %v8973
    %9270 = vmatpush1.bf16.msra.mxu0 %v8972
    %9271 = vmatprep.subr.bf16.mxu0 %v8977
    %9272 = vmatpush1.bf16.msra.mxu0 %v8976
    %9273 = vmatprep.subr.bf16.mxu0 %v8981
    %9274 = vmatpush1.bf16.msra.mxu0 %v8980
    %9275 = vmatprep.subr.bf16.mxu0 %v8985
    %9276 = vmatpush1.bf16.msra.mxu0 %v8984
    %9277 = vmatprep.subr.bf16.mxu0 %v8989
    %9278 = vmatpush1.bf16.msra.mxu0 %v8988
    %9279 = vmatprep.subr.bf16.mxu0 %v8993
    %9280 = vmatpush1.bf16.msra.mxu0 %v8992
    %9281 = vmatprep.subr.bf16.mxu0 %v8997
    %9282 = vmatpush1.bf16.msra.mxu0 %v8996
    %9283 = vmatprep.subr.bf16.mxu0 %v9001
    %9284 = vmatpush1.bf16.msra.mxu0 %v9000
    %9285 = vmatprep.mubr.bf16.mxu0 %v8339
    %9286 = vmatmul.mubr.bf16.gmra.mrb[0].mxu0 %v8338
    %v9287 = vpop.f32.mrb[0].mxu0
    %v9288 = vadd.f32 %v9247, %v9287
    %v9289 = vpop.f32.mrb[0].mxu0
    %v9290 = vadd.f32 %v9249, %v9289
    %v9291 = vpop.f32.mrb[0].mxu0
    %v9292 = vpop.f32.mrb[0].mxu0
    %9293 = vdwg.mxu0
    %v9294 = vmax.f32 %v9206, 0.0
    %v9295 = vmax.f32 %v9208, 0.0
    %v9296 = vmax.f32 %v9288, 0.0
    %v9297 = vmax.f32 %v9290, 0.0
    %v9298 = vpack.c.bf16 %v9294, %v9294
    %v9299 = vpack.c.bf16 %v9295, %v9295
    %v9300 = vpack.c.bf16 %v9296, %v9296
    %v9301 = vpack.c.bf16 %v9297, %v9297
    %v9302 = vld [vmem:[#allocation21] sm:$0xff]
    %v9303 = vld [vmem:[#allocation21 + $0x8] sm:$0xff]
    %v9304 = vld [vmem:[#allocation21 + $0x10] sm:$0xff]
    %v9305 = vld [vmem:[#allocation21 + $0x18] sm:$0xff]
    %v9306 = vld [vmem:[#allocation21 + $0x20] sm:$0xff]
    %v9307 = vld [vmem:[#allocation21 + $0x28] sm:$0xff]
    %v9308 = vld [vmem:[#allocation21 + $0x30] sm:$0xff]
    %v9309 = vld [vmem:[#allocation21 + $0x38] sm:$0xff]
    %v9310 = vld [vmem:[#allocation21 + $0x40] sm:$0xff]
    %v9311 = vld [vmem:[#allocation21 + $0x48] sm:$0xff]
    %v9312 = vld [vmem:[#allocation21 + $0x50] sm:$0xff]
    %v9313 = vld [vmem:[#allocation21 + $0x58] sm:$0xff]
    %v9314 = vld [vmem:[#allocation21 + $0x60] sm:$0xff]
    %v9315 = vld [vmem:[#allocation21 + $0x68] sm:$0xff]
    %v9316 = vld [vmem:[#allocation21 + $0x70] sm:$0xff]
    %v9317 = vld [vmem:[#allocation21 + $0x78] sm:$0xff]
    %v9318 = vld [vmem:[#allocation21 + $0x80] sm:$0xff]
    %v9319 = vld [vmem:[#allocation21 + $0x88] sm:$0xff]
    %v9320 = vld [vmem:[#allocation21 + $0x90] sm:$0xff]
    %v9321 = vld [vmem:[#allocation21 + $0x98] sm:$0xff]
    %v9322 = vld [vmem:[#allocation21 + $0xa0] sm:$0xff]
    %v9323 = vld [vmem:[#allocation21 + $0xa8] sm:$0xff]
    %v9324 = vld [vmem:[#allocation21 + $0xb0] sm:$0xff]
    %v9325 = vld [vmem:[#allocation21 + $0xb8] sm:$0xff]
    %v9326 = vld [vmem:[#allocation21 + $0xc0] sm:$0xff]
    %v9327 = vld [vmem:[#allocation21 + $0xc8] sm:$0xff]
    %v9328 = vld [vmem:[#allocation21 + $0xd0] sm:$0xff]
    %v9329 = vld [vmem:[#allocation21 + $0xd8] sm:$0xff]
    %v9330 = vld [vmem:[#allocation21 + $0xe0] sm:$0xff]
    %v9331 = vld [vmem:[#allocation21 + $0xe8] sm:$0xff]
    %v9332 = vld [vmem:[#allocation21 + $0xf0] sm:$0xff]
    %v9333 = vld [vmem:[#allocation21 + $0xf8] sm:$0xff]
    %v9334 = vld [vmem:[#allocation21 + $0x100] sm:$0xff]
    %v9335 = vld [vmem:[#allocation21 + $0x108] sm:$0xff]
    %v9336 = vld [vmem:[#allocation21 + $0x110] sm:$0xff]
    %v9337 = vld [vmem:[#allocation21 + $0x118] sm:$0xff]
    %v9338 = vld [vmem:[#allocation21 + $0x120] sm:$0xff]
    %v9339 = vld [vmem:[#allocation21 + $0x128] sm:$0xff]
    %v9340 = vld [vmem:[#allocation21 + $0x130] sm:$0xff]
    %v9341 = vld [vmem:[#allocation21 + $0x138] sm:$0xff]
    %v9342 = vld [vmem:[#allocation21 + $0x140] sm:$0xff]
    %v9343 = vld [vmem:[#allocation21 + $0x148] sm:$0xff]
    %v9344 = vld [vmem:[#allocation21 + $0x150] sm:$0xff]
    %v9345 = vld [vmem:[#allocation21 + $0x158] sm:$0xff]
    %v9346 = vld [vmem:[#allocation21 + $0x160] sm:$0xff]
    %v9347 = vld [vmem:[#allocation21 + $0x168] sm:$0xff]
    %v9348 = vld [vmem:[#allocation21 + $0x170] sm:$0xff]
    %v9349 = vld [vmem:[#allocation21 + $0x178] sm:$0xff]
    %v9350 = vld [vmem:[#allocation21 + $0x180] sm:$0xff]
    %v9351 = vld [vmem:[#allocation21 + $0x188] sm:$0xff]
    %v9352 = vld [vmem:[#allocation21 + $0x190] sm:$0xff]
    %v9353 = vld [vmem:[#allocation21 + $0x198] sm:$0xff]
    %v9354 = vld [vmem:[#allocation21 + $0x1a0] sm:$0xff]
    %v9355 = vld [vmem:[#allocation21 + $0x1a8] sm:$0xff]
    %v9356 = vld [vmem:[#allocation21 + $0x1b0] sm:$0xff]
    %v9357 = vld [vmem:[#allocation21 + $0x1b8] sm:$0xff]
    %v9358 = vld [vmem:[#allocation21 + $0x1c0] sm:$0xff]
    %v9359 = vld [vmem:[#allocation21 + $0x1c8] sm:$0xff]
    %v9360 = vld [vmem:[#allocation21 + $0x1d0] sm:$0xff]
    %v9361 = vld [vmem:[#allocation21 + $0x1d8] sm:$0xff]
    %v9362 = vld [vmem:[#allocation21 + $0x1e0] sm:$0xff]
    %v9363 = vld [vmem:[#allocation21 + $0x1e8] sm:$0xff]
    %v9364 = vld [vmem:[#allocation21 + $0x1f0] sm:$0xff]
    %v9365 = vld [vmem:[#allocation21 + $0x1f8] sm:$0xff]
    %v9366 = vld [vmem:[#allocation21 + $0x200] sm:$0xff]
    %v9367 = vld [vmem:[#allocation21 + $0x208] sm:$0xff]
    %v9368 = vld [vmem:[#allocation21 + $0x210] sm:$0xff]
    %v9369 = vld [vmem:[#allocation21 + $0x218] sm:$0xff]
    %v9370 = vld [vmem:[#allocation21 + $0x220] sm:$0xff]
    %v9371 = vld [vmem:[#allocation21 + $0x228] sm:$0xff]
    %v9372 = vld [vmem:[#allocation21 + $0x230] sm:$0xff]
    %v9373 = vld [vmem:[#allocation21 + $0x238] sm:$0xff]
    %v9374 = vld [vmem:[#allocation21 + $0x240] sm:$0xff]
    %v9375 = vld [vmem:[#allocation21 + $0x248] sm:$0xff]
    %v9376 = vld [vmem:[#allocation21 + $0x250] sm:$0xff]
    %v9377 = vld [vmem:[#allocation21 + $0x258] sm:$0xff]
    %v9378 = vld [vmem:[#allocation21 + $0x260] sm:$0xff]
    %v9379 = vld [vmem:[#allocation21 + $0x268] sm:$0xff]
    %v9380 = vld [vmem:[#allocation21 + $0x270] sm:$0xff]
    %v9381 = vld [vmem:[#allocation21 + $0x278] sm:$0xff]
    %v9382 = vld [vmem:[#allocation21 + $0x280] sm:$0xff]
    %v9383 = vld [vmem:[#allocation21 + $0x288] sm:$0xff]
    %v9384 = vld [vmem:[#allocation21 + $0x290] sm:$0xff]
    %v9385 = vld [vmem:[#allocation21 + $0x298] sm:$0xff]
    %v9386 = vld [vmem:[#allocation21 + $0x2a0] sm:$0xff]
    %v9387 = vld [vmem:[#allocation21 + $0x2a8] sm:$0xff]
    %v9388 = vld [vmem:[#allocation21 + $0x2b0] sm:$0xff]
    %v9389 = vld [vmem:[#allocation21 + $0x2b8] sm:$0xff]
    %v9390 = vld [vmem:[#allocation21 + $0x2c0] sm:$0xff]
    %v9391 = vld [vmem:[#allocation21 + $0x2c8] sm:$0xff]
    %v9392 = vld [vmem:[#allocation21 + $0x2d0] sm:$0xff]
    %v9393 = vld [vmem:[#allocation21 + $0x2d8] sm:$0xff]
    %v9394 = vld [vmem:[#allocation21 + $0x2e0] sm:$0xff]
    %v9395 = vld [vmem:[#allocation21 + $0x2e8] sm:$0xff]
    %v9396 = vld [vmem:[#allocation21 + $0x2f0] sm:$0xff]
    %v9397 = vld [vmem:[#allocation21 + $0x2f8] sm:$0xff]
    %v9398 = vld [vmem:[#allocation21 + $0x300] sm:$0xff]
    %v9399 = vld [vmem:[#allocation21 + $0x308] sm:$0xff]
    %v9400 = vld [vmem:[#allocation21 + $0x310] sm:$0xff]
    %v9401 = vld [vmem:[#allocation21 + $0x318] sm:$0xff]
    %v9402 = vld [vmem:[#allocation21 + $0x320] sm:$0xff]
    %v9403 = vld [vmem:[#allocation21 + $0x328] sm:$0xff]
    %v9404 = vld [vmem:[#allocation21 + $0x330] sm:$0xff]
    %v9405 = vld [vmem:[#allocation21 + $0x338] sm:$0xff]
    %v9406 = vld [vmem:[#allocation21 + $0x340] sm:$0xff]
    %v9407 = vld [vmem:[#allocation21 + $0x348] sm:$0xff]
    %v9408 = vld [vmem:[#allocation21 + $0x350] sm:$0xff]
    %v9409 = vld [vmem:[#allocation21 + $0x358] sm:$0xff]
    %v9410 = vld [vmem:[#allocation21 + $0x360] sm:$0xff]
    %v9411 = vld [vmem:[#allocation21 + $0x368] sm:$0xff]
    %v9412 = vld [vmem:[#allocation21 + $0x370] sm:$0xff]
    %v9413 = vld [vmem:[#allocation21 + $0x378] sm:$0xff]
    %v9414 = vld [vmem:[#allocation21 + $0x380] sm:$0xff]
    %v9415 = vld [vmem:[#allocation21 + $0x388] sm:$0xff]
    %v9416 = vld [vmem:[#allocation21 + $0x390] sm:$0xff]
    %v9417 = vld [vmem:[#allocation21 + $0x398] sm:$0xff]
    %v9418 = vld [vmem:[#allocation21 + $0x3a0] sm:$0xff]
    %v9419 = vld [vmem:[#allocation21 + $0x3a8] sm:$0xff]
    %v9420 = vld [vmem:[#allocation21 + $0x3b0] sm:$0xff]
    %v9421 = vld [vmem:[#allocation21 + $0x3b8] sm:$0xff]
    %v9422 = vld [vmem:[#allocation21 + $0x3c0] sm:$0xff]
    %v9423 = vld [vmem:[#allocation21 + $0x3c8] sm:$0xff]
    %v9424 = vld [vmem:[#allocation21 + $0x3d0] sm:$0xff]
    %v9425 = vld [vmem:[#allocation21 + $0x3d8] sm:$0xff]
    %v9426 = vld [vmem:[#allocation21 + $0x3e0] sm:$0xff]
    %v9427 = vld [vmem:[#allocation21 + $0x3e8] sm:$0xff]
    %v9428 = vld [vmem:[#allocation21 + $0x3f0] sm:$0xff]
    %v9429 = vld [vmem:[#allocation21 + $0x3f8] sm:$0xff]
    %v9430 = vld [vmem:[#allocation22] sm:$0xf]
    %v9432 = vlaneseq
    %v9433 = vshrl.u32 %v9432, 7
    %v9434 = vsub.s32 0, %v9433
    %v9435 = vrot.slane %v9430, %v9434
    %v9436 = vlaneseq
    %v9437 = vshrl.u32 %v9436, 7
    %v9438 = vsub.s32 1, %v9437
    %v9439 = vrot.slane %v9430, %v9438
    %v9440 = vlaneseq
    %v9441 = vshrl.u32 %v9440, 7
    %v9442 = vsub.s32 2, %v9441
    %v9443 = vrot.slane %v9430, %v9442
    %v9444 = vlaneseq
    %v9445 = vshrl.u32 %v9444, 7
    %v9446 = vsub.s32 3, %v9445
    %v9447 = vrot.slane %v9430, %v9446
    %v9580 = vunpack.c.l.b16 %v9302
    %v9581 = vunpack.c.h.b16 %v9302
    %v9582 = vunpack.c.l.b16 %v9303
    %v9583 = vunpack.c.h.b16 %v9303
    %v9584 = vunpack.c.l.b16 %v9304
    %v9585 = vunpack.c.h.b16 %v9304
    %v9586 = vunpack.c.l.b16 %v9305
    %v9587 = vunpack.c.h.b16 %v9305
    %v9588 = vunpack.c.l.b16 %v9306
    %v9589 = vunpack.c.h.b16 %v9306
    %v9590 = vunpack.c.l.b16 %v9307
    %v9591 = vunpack.c.h.b16 %v9307
    %v9592 = vunpack.c.l.b16 %v9308
    %v9593 = vunpack.c.h.b16 %v9308
    %v9594 = vunpack.c.l.b16 %v9309
    %v9595 = vunpack.c.h.b16 %v9309
    %v9596 = vunpack.c.l.b16 %v9310
    %v9597 = vunpack.c.h.b16 %v9310
    %v9598 = vunpack.c.l.b16 %v9311
    %v9599 = vunpack.c.h.b16 %v9311
    %v9600 = vunpack.c.l.b16 %v9312
    %v9601 = vunpack.c.h.b16 %v9312
    %v9602 = vunpack.c.l.b16 %v9313
    %v9603 = vunpack.c.h.b16 %v9313
    %v9604 = vunpack.c.l.b16 %v9314
    %v9605 = vunpack.c.h.b16 %v9314
    %v9606 = vunpack.c.l.b16 %v9315
    %v9607 = vunpack.c.h.b16 %v9315
    %v9608 = vunpack.c.l.b16 %v9316
    %v9609 = vunpack.c.h.b16 %v9316
    %v9610 = vunpack.c.l.b16 %v9317
    %v9611 = vunpack.c.h.b16 %v9317
    %v9612 = vunpack.c.l.b16 %v9318
    %v9613 = vunpack.c.h.b16 %v9318
    %v9614 = vunpack.c.l.b16 %v9319
    %v9615 = vunpack.c.h.b16 %v9319
    %v9616 = vunpack.c.l.b16 %v9320
    %v9617 = vunpack.c.h.b16 %v9320
    %v9618 = vunpack.c.l.b16 %v9321
    %v9619 = vunpack.c.h.b16 %v9321
    %v9620 = vunpack.c.l.b16 %v9322
    %v9621 = vunpack.c.h.b16 %v9322
    %v9622 = vunpack.c.l.b16 %v9323
    %v9623 = vunpack.c.h.b16 %v9323
    %v9624 = vunpack.c.l.b16 %v9324
    %v9625 = vunpack.c.h.b16 %v9324
    %v9626 = vunpack.c.l.b16 %v9325
    %v9627 = vunpack.c.h.b16 %v9325
    %v9628 = vunpack.c.l.b16 %v9326
    %v9629 = vunpack.c.h.b16 %v9326
    %v9630 = vunpack.c.l.b16 %v9327
    %v9631 = vunpack.c.h.b16 %v9327
    %v9632 = vunpack.c.l.b16 %v9328
    %v9633 = vunpack.c.h.b16 %v9328
    %v9634 = vunpack.c.l.b16 %v9329
    %v9635 = vunpack.c.h.b16 %v9329
    %v9636 = vunpack.c.l.b16 %v9330
    %v9637 = vunpack.c.h.b16 %v9330
    %v9638 = vunpack.c.l.b16 %v9331
    %v9639 = vunpack.c.h.b16 %v9331
    %v9640 = vunpack.c.l.b16 %v9332
    %v9641 = vunpack.c.h.b16 %v9332
    %v9642 = vunpack.c.l.b16 %v9333
    %v9643 = vunpack.c.h.b16 %v9333
    %v9644 = vunpack.c.l.b16 %v9334
    %v9645 = vunpack.c.h.b16 %v9334
    %v9646 = vunpack.c.l.b16 %v9335
    %v9647 = vunpack.c.h.b16 %v9335
    %v9648 = vunpack.c.l.b16 %v9336
    %v9649 = vunpack.c.h.b16 %v9336
    %v9650 = vunpack.c.l.b16 %v9337
    %v9651 = vunpack.c.h.b16 %v9337
    %v9652 = vunpack.c.l.b16 %v9338
    %v9653 = vunpack.c.h.b16 %v9338
    %v9654 = vunpack.c.l.b16 %v9339
    %v9655 = vunpack.c.h.b16 %v9339
    %v9656 = vunpack.c.l.b16 %v9340
    %v9657 = vunpack.c.h.b16 %v9340
    %v9658 = vunpack.c.l.b16 %v9341
    %v9659 = vunpack.c.h.b16 %v9341
    %v9660 = vunpack.c.l.b16 %v9342
    %v9661 = vunpack.c.h.b16 %v9342
    %v9662 = vunpack.c.l.b16 %v9343
    %v9663 = vunpack.c.h.b16 %v9343
    %v9664 = vunpack.c.l.b16 %v9344
    %v9665 = vunpack.c.h.b16 %v9344
    %v9666 = vunpack.c.l.b16 %v9345
    %v9667 = vunpack.c.h.b16 %v9345
    %v9668 = vunpack.c.l.b16 %v9346
    %v9669 = vunpack.c.h.b16 %v9346
    %v9670 = vunpack.c.l.b16 %v9347
    %v9671 = vunpack.c.h.b16 %v9347
    %v9672 = vunpack.c.l.b16 %v9348
    %v9673 = vunpack.c.h.b16 %v9348
    %v9674 = vunpack.c.l.b16 %v9349
    %v9675 = vunpack.c.h.b16 %v9349
    %v9676 = vunpack.c.l.b16 %v9350
    %v9677 = vunpack.c.h.b16 %v9350
    %v9678 = vunpack.c.l.b16 %v9351
    %v9679 = vunpack.c.h.b16 %v9351
    %v9680 = vunpack.c.l.b16 %v9352
    %v9681 = vunpack.c.h.b16 %v9352
    %v9682 = vunpack.c.l.b16 %v9353
    %v9683 = vunpack.c.h.b16 %v9353
    %v9684 = vunpack.c.l.b16 %v9354
    %v9685 = vunpack.c.h.b16 %v9354
    %v9686 = vunpack.c.l.b16 %v9355
    %v9687 = vunpack.c.h.b16 %v9355
    %v9688 = vunpack.c.l.b16 %v9356
    %v9689 = vunpack.c.h.b16 %v9356
    %v9690 = vunpack.c.l.b16 %v9357
    %v9691 = vunpack.c.h.b16 %v9357
    %v9692 = vunpack.c.l.b16 %v9358
    %v9693 = vunpack.c.h.b16 %v9358
    %v9694 = vunpack.c.l.b16 %v9359
    %v9695 = vunpack.c.h.b16 %v9359
    %v9696 = vunpack.c.l.b16 %v9360
    %v9697 = vunpack.c.h.b16 %v9360
    %v9698 = vunpack.c.l.b16 %v9361
    %v9699 = vunpack.c.h.b16 %v9361
    %v9700 = vunpack.c.l.b16 %v9362
    %v9701 = vunpack.c.h.b16 %v9362
    %v9702 = vunpack.c.l.b16 %v9363
    %v9703 = vunpack.c.h.b16 %v9363
    %v9704 = vunpack.c.l.b16 %v9364
    %v9705 = vunpack.c.h.b16 %v9364
    %v9706 = vunpack.c.l.b16 %v9365
    %v9707 = vunpack.c.h.b16 %v9365
    %v9708 = vunpack.c.l.b16 %v9366
    %v9709 = vunpack.c.h.b16 %v9366
    %v9710 = vunpack.c.l.b16 %v9367
    %v9711 = vunpack.c.h.b16 %v9367
    %v9712 = vunpack.c.l.b16 %v9368
    %v9713 = vunpack.c.h.b16 %v9368
    %v9714 = vunpack.c.l.b16 %v9369
    %v9715 = vunpack.c.h.b16 %v9369
    %v9716 = vunpack.c.l.b16 %v9370
    %v9717 = vunpack.c.h.b16 %v9370
    %v9718 = vunpack.c.l.b16 %v9371
    %v9719 = vunpack.c.h.b16 %v9371
    %v9720 = vunpack.c.l.b16 %v9372
    %v9721 = vunpack.c.h.b16 %v9372
    %v9722 = vunpack.c.l.b16 %v9373
    %v9723 = vunpack.c.h.b16 %v9373
    %v9724 = vunpack.c.l.b16 %v9374
    %v9725 = vunpack.c.h.b16 %v9374
    %v9726 = vunpack.c.l.b16 %v9375
    %v9727 = vunpack.c.h.b16 %v9375
    %v9728 = vunpack.c.l.b16 %v9376
    %v9729 = vunpack.c.h.b16 %v9376
    %v9730 = vunpack.c.l.b16 %v9377
    %v9731 = vunpack.c.h.b16 %v9377
    %v9732 = vunpack.c.l.b16 %v9378
    %v9733 = vunpack.c.h.b16 %v9378
    %v9734 = vunpack.c.l.b16 %v9379
    %v9735 = vunpack.c.h.b16 %v9379
    %v9736 = vunpack.c.l.b16 %v9380
    %v9737 = vunpack.c.h.b16 %v9380
    %v9738 = vunpack.c.l.b16 %v9381
    %v9739 = vunpack.c.h.b16 %v9381
    %v9740 = vunpack.c.l.b16 %v9382
    %v9741 = vunpack.c.h.b16 %v9382
    %v9742 = vunpack.c.l.b16 %v9383
    %v9743 = vunpack.c.h.b16 %v9383
    %v9744 = vunpack.c.l.b16 %v9384
    %v9745 = vunpack.c.h.b16 %v9384
    %v9746 = vunpack.c.l.b16 %v9385
    %v9747 = vunpack.c.h.b16 %v9385
    %v9748 = vunpack.c.l.b16 %v9386
    %v9749 = vunpack.c.h.b16 %v9386
    %v9750 = vunpack.c.l.b16 %v9387
    %v9751 = vunpack.c.h.b16 %v9387
    %v9752 = vunpack.c.l.b16 %v9388
    %v9753 = vunpack.c.h.b16 %v9388
    %v9754 = vunpack.c.l.b16 %v9389
    %v9755 = vunpack.c.h.b16 %v9389
    %v9756 = vunpack.c.l.b16 %v9390
    %v9757 = vunpack.c.h.b16 %v9390
    %v9758 = vunpack.c.l.b16 %v9391
    %v9759 = vunpack.c.h.b16 %v9391
    %v9760 = vunpack.c.l.b16 %v9392
    %v9761 = vunpack.c.h.b16 %v9392
    %v9762 = vunpack.c.l.b16 %v9393
    %v9763 = vunpack.c.h.b16 %v9393
    %v9764 = vunpack.c.l.b16 %v9394
    %v9765 = vunpack.c.h.b16 %v9394
    %v9766 = vunpack.c.l.b16 %v9395
    %v9767 = vunpack.c.h.b16 %v9395
    %v9768 = vunpack.c.l.b16 %v9396
    %v9769 = vunpack.c.h.b16 %v9396
    %v9770 = vunpack.c.l.b16 %v9397
    %v9771 = vunpack.c.h.b16 %v9397
    %v9772 = vunpack.c.l.b16 %v9398
    %v9773 = vunpack.c.h.b16 %v9398
    %v9774 = vunpack.c.l.b16 %v9399
    %v9775 = vunpack.c.h.b16 %v9399
    %v9776 = vunpack.c.l.b16 %v9400
    %v9777 = vunpack.c.h.b16 %v9400
    %v9778 = vunpack.c.l.b16 %v9401
    %v9779 = vunpack.c.h.b16 %v9401
    %v9780 = vunpack.c.l.b16 %v9402
    %v9781 = vunpack.c.h.b16 %v9402
    %v9782 = vunpack.c.l.b16 %v9403
    %v9783 = vunpack.c.h.b16 %v9403
    %v9784 = vunpack.c.l.b16 %v9404
    %v9785 = vunpack.c.h.b16 %v9404
    %v9786 = vunpack.c.l.b16 %v9405
    %v9787 = vunpack.c.h.b16 %v9405
    %v9788 = vunpack.c.l.b16 %v9406
    %v9789 = vunpack.c.h.b16 %v9406
    %v9790 = vunpack.c.l.b16 %v9407
    %v9791 = vunpack.c.h.b16 %v9407
    %v9792 = vunpack.c.l.b16 %v9408
    %v9793 = vunpack.c.h.b16 %v9408
    %v9794 = vunpack.c.l.b16 %v9409
    %v9795 = vunpack.c.h.b16 %v9409
    %v9796 = vunpack.c.l.b16 %v9410
    %v9797 = vunpack.c.h.b16 %v9410
    %v9798 = vunpack.c.l.b16 %v9411
    %v9799 = vunpack.c.h.b16 %v9411
    %v9800 = vunpack.c.l.b16 %v9412
    %v9801 = vunpack.c.h.b16 %v9412
    %v9802 = vunpack.c.l.b16 %v9413
    %v9803 = vunpack.c.h.b16 %v9413
    %v9804 = vunpack.c.l.b16 %v9414
    %v9805 = vunpack.c.h.b16 %v9414
    %v9806 = vunpack.c.l.b16 %v9415
    %v9807 = vunpack.c.h.b16 %v9415
    %v9808 = vunpack.c.l.b16 %v9416
    %v9809 = vunpack.c.h.b16 %v9416
    %v9810 = vunpack.c.l.b16 %v9417
    %v9811 = vunpack.c.h.b16 %v9417
    %v9812 = vunpack.c.l.b16 %v9418
    %v9813 = vunpack.c.h.b16 %v9418
    %v9814 = vunpack.c.l.b16 %v9419
    %v9815 = vunpack.c.h.b16 %v9419
    %v9816 = vunpack.c.l.b16 %v9420
    %v9817 = vunpack.c.h.b16 %v9420
    %v9818 = vunpack.c.l.b16 %v9421
    %v9819 = vunpack.c.h.b16 %v9421
    %v9820 = vunpack.c.l.b16 %v9422
    %v9821 = vunpack.c.h.b16 %v9422
    %v9822 = vunpack.c.l.b16 %v9423
    %v9823 = vunpack.c.h.b16 %v9423
    %v9824 = vunpack.c.l.b16 %v9424
    %v9825 = vunpack.c.h.b16 %v9424
    %v9826 = vunpack.c.l.b16 %v9425
    %v9827 = vunpack.c.h.b16 %v9425
    %v9828 = vunpack.c.l.b16 %v9426
    %v9829 = vunpack.c.h.b16 %v9426
    %v9830 = vunpack.c.l.b16 %v9427
    %v9831 = vunpack.c.h.b16 %v9427
    %v9832 = vunpack.c.l.b16 %v9428
    %v9833 = vunpack.c.h.b16 %v9428
    %v9834 = vunpack.c.l.b16 %v9429
    %v9835 = vunpack.c.h.b16 %v9429
    %v9836 = vpack.c.b16 %v9584, %v9580
    %v9837 = vpack.c.b16 %v9585, %v9581
    %v9838 = vpack.c.b16 %v9586, %v9582
    %v9839 = vpack.c.b16 %v9587, %v9583
    %v9840 = vpack.c.b16 %v9592, %v9588
    %v9841 = vpack.c.b16 %v9593, %v9589
    %v9842 = vpack.c.b16 %v9594, %v9590
    %v9843 = vpack.c.b16 %v9595, %v9591
    %v9844 = vpack.c.b16 %v9600, %v9596
    %v9845 = vpack.c.b16 %v9601, %v9597
    %v9846 = vpack.c.b16 %v9602, %v9598
    %v9847 = vpack.c.b16 %v9603, %v9599
    %v9848 = vpack.c.b16 %v9608, %v9604
    %v9849 = vpack.c.b16 %v9609, %v9605
    %v9850 = vpack.c.b16 %v9610, %v9606
    %v9851 = vpack.c.b16 %v9611, %v9607
    %v9852 = vpack.c.b16 %v9616, %v9612
    %v9853 = vpack.c.b16 %v9617, %v9613
    %v9854 = vpack.c.b16 %v9618, %v9614
    %v9855 = vpack.c.b16 %v9619, %v9615
    %v9856 = vpack.c.b16 %v9624, %v9620
    %v9857 = vpack.c.b16 %v9625, %v9621
    %v9858 = vpack.c.b16 %v9626, %v9622
    %v9859 = vpack.c.b16 %v9627, %v9623
    %v9860 = vpack.c.b16 %v9632, %v9628
    %v9861 = vpack.c.b16 %v9633, %v9629
    %v9862 = vpack.c.b16 %v9634, %v9630
    %v9863 = vpack.c.b16 %v9635, %v9631
    %v9864 = vpack.c.b16 %v9640, %v9636
    %v9865 = vpack.c.b16 %v9641, %v9637
    %v9866 = vpack.c.b16 %v9642, %v9638
    %v9867 = vpack.c.b16 %v9643, %v9639
    %v9868 = vpack.c.b16 %v9648, %v9644
    %v9869 = vpack.c.b16 %v9649, %v9645
    %v9870 = vpack.c.b16 %v9650, %v9646
    %v9871 = vpack.c.b16 %v9651, %v9647
    %v9872 = vpack.c.b16 %v9656, %v9652
    %v9873 = vpack.c.b16 %v9657, %v9653
    %v9874 = vpack.c.b16 %v9658, %v9654
    %v9875 = vpack.c.b16 %v9659, %v9655
    %v9876 = vpack.c.b16 %v9664, %v9660
    %v9877 = vpack.c.b16 %v9665, %v9661
    %v9878 = vpack.c.b16 %v9666, %v9662
    %v9879 = vpack.c.b16 %v9667, %v9663
    %v9880 = vpack.c.b16 %v9672, %v9668
    %v9881 = vpack.c.b16 %v9673, %v9669
    %v9882 = vpack.c.b16 %v9674, %v9670
    %v9883 = vpack.c.b16 %v9675, %v9671
    %v9884 = vpack.c.b16 %v9680, %v9676
    %v9885 = vpack.c.b16 %v9681, %v9677
    %v9886 = vpack.c.b16 %v9682, %v9678
    %v9887 = vpack.c.b16 %v9683, %v9679
    %v9888 = vpack.c.b16 %v9688, %v9684
    %v9889 = vpack.c.b16 %v9689, %v9685
    %v9890 = vpack.c.b16 %v9690, %v9686
    %v9891 = vpack.c.b16 %v9691, %v9687
    %v9892 = vpack.c.b16 %v9696, %v9692
    %v9893 = vpack.c.b16 %v9697, %v9693
    %v9894 = vpack.c.b16 %v9698, %v9694
    %v9895 = vpack.c.b16 %v9699, %v9695
    %v9896 = vpack.c.b16 %v9704, %v9700
    %v9897 = vpack.c.b16 %v9705, %v9701
    %v9898 = vpack.c.b16 %v9706, %v9702
    %v9899 = vpack.c.b16 %v9707, %v9703
    %v9900 = vpack.c.b16 %v9712, %v9708
    %v9901 = vpack.c.b16 %v9713, %v9709
    %v9902 = vpack.c.b16 %v9714, %v9710
    %v9903 = vpack.c.b16 %v9715, %v9711
    %v9904 = vpack.c.b16 %v9720, %v9716
    %v9905 = vpack.c.b16 %v9721, %v9717
    %v9906 = vpack.c.b16 %v9722, %v9718
    %v9907 = vpack.c.b16 %v9723, %v9719
    %v9908 = vpack.c.b16 %v9728, %v9724
    %v9909 = vpack.c.b16 %v9729, %v9725
    %v9910 = vpack.c.b16 %v9730, %v9726
    %v9911 = vpack.c.b16 %v9731, %v9727
    %v9912 = vpack.c.b16 %v9736, %v9732
    %v9913 = vpack.c.b16 %v9737, %v9733
    %v9914 = vpack.c.b16 %v9738, %v9734
    %v9915 = vpack.c.b16 %v9739, %v9735
    %v9916 = vpack.c.b16 %v9744, %v9740
    %v9917 = vpack.c.b16 %v9745, %v9741
    %v9918 = vpack.c.b16 %v9746, %v9742
    %v9919 = vpack.c.b16 %v9747, %v9743
    %v9920 = vpack.c.b16 %v9752, %v9748
    %v9921 = vpack.c.b16 %v9753, %v9749
    %v9922 = vpack.c.b16 %v9754, %v9750
    %v9923 = vpack.c.b16 %v9755, %v9751
    %v9924 = vpack.c.b16 %v9760, %v9756
    %v9925 = vpack.c.b16 %v9761, %v9757
    %v9926 = vpack.c.b16 %v9762, %v9758
    %v9927 = vpack.c.b16 %v9763, %v9759
    %v9928 = vpack.c.b16 %v9768, %v9764
    %v9929 = vpack.c.b16 %v9769, %v9765
    %v9930 = vpack.c.b16 %v9770, %v9766
    %v9931 = vpack.c.b16 %v9771, %v9767
    %v9932 = vpack.c.b16 %v9776, %v9772
    %v9933 = vpack.c.b16 %v9777, %v9773
    %v9934 = vpack.c.b16 %v9778, %v9774
    %v9935 = vpack.c.b16 %v9779, %v9775
    %v9936 = vpack.c.b16 %v9784, %v9780
    %v9937 = vpack.c.b16 %v9785, %v9781
    %v9938 = vpack.c.b16 %v9786, %v9782
    %v9939 = vpack.c.b16 %v9787, %v9783
    %v9940 = vpack.c.b16 %v9792, %v9788
    %v9941 = vpack.c.b16 %v9793, %v9789
    %v9942 = vpack.c.b16 %v9794, %v9790
    %v9943 = vpack.c.b16 %v9795, %v9791
    %v9944 = vpack.c.b16 %v9800, %v9796
    %v9945 = vpack.c.b16 %v9801, %v9797
    %v9946 = vpack.c.b16 %v9802, %v9798
    %v9947 = vpack.c.b16 %v9803, %v9799
    %v9948 = vpack.c.b16 %v9808, %v9804
    %v9949 = vpack.c.b16 %v9809, %v9805
    %v9950 = vpack.c.b16 %v9810, %v9806
    %v9951 = vpack.c.b16 %v9811, %v9807
    %v9952 = vpack.c.b16 %v9816, %v9812
    %v9953 = vpack.c.b16 %v9817, %v9813
    %v9954 = vpack.c.b16 %v9818, %v9814
    %v9955 = vpack.c.b16 %v9819, %v9815
    %v9956 = vpack.c.b16 %v9824, %v9820
    %v9957 = vpack.c.b16 %v9825, %v9821
    %v9958 = vpack.c.b16 %v9826, %v9822
    %v9959 = vpack.c.b16 %v9827, %v9823
    %v9960 = vpack.c.b16 %v9832, %v9828
    %v9961 = vpack.c.b16 %v9833, %v9829
    %v9962 = vpack.c.b16 %v9834, %v9830
    %v9963 = vpack.c.b16 %v9835, %v9831
    %10092 = vmatprep.subr.bf16.mxu0 %v9837
    %10093 = vmatpush1.bf16.msra.mxu0 %v9836
    %10094 = vmatprep.subr.bf16.mxu0 %v9841
    %10095 = vmatpush1.bf16.msra.mxu0 %v9840
    %10096 = vmatprep.subr.bf16.mxu0 %v9845
    %10097 = vmatpush1.bf16.msra.mxu0 %v9844
    %10098 = vmatprep.subr.bf16.mxu0 %v9849
    %10099 = vmatpush1.bf16.msra.mxu0 %v9848
    %10100 = vmatprep.subr.bf16.mxu0 %v9853
    %10101 = vmatpush1.bf16.msra.mxu0 %v9852
    %10102 = vmatprep.subr.bf16.mxu0 %v9857
    %10103 = vmatpush1.bf16.msra.mxu0 %v9856
    %10104 = vmatprep.subr.bf16.mxu0 %v9861
    %10105 = vmatpush1.bf16.msra.mxu0 %v9860
    %10106 = vmatprep.subr.bf16.mxu0 %v9865
    %10107 = vmatpush1.bf16.msra.mxu0 %v9864
    %10108 = vmatprep.subr.bf16.mxu0 %v9869
    %10109 = vmatpush1.bf16.msra.mxu0 %v9868
    %10110 = vmatprep.subr.bf16.mxu0 %v9873
    %10111 = vmatpush1.bf16.msra.mxu0 %v9872
    %10112 = vmatprep.subr.bf16.mxu0 %v9877
    %10113 = vmatpush1.bf16.msra.mxu0 %v9876
    %10114 = vmatprep.subr.bf16.mxu0 %v9881
    %10115 = vmatpush1.bf16.msra.mxu0 %v9880
    %10116 = vmatprep.subr.bf16.mxu0 %v9885
    %10117 = vmatpush1.bf16.msra.mxu0 %v9884
    %10118 = vmatprep.subr.bf16.mxu0 %v9889
    %10119 = vmatpush1.bf16.msra.mxu0 %v9888
    %10120 = vmatprep.subr.bf16.mxu0 %v9893
    %10121 = vmatpush1.bf16.msra.mxu0 %v9892
    %10122 = vmatprep.subr.bf16.mxu0 %v9897
    %10123 = vmatpush1.bf16.msra.mxu0 %v9896
    %10124 = vmatprep.mubr.bf16.mxu0 %v9299
    %10125 = vmatmul.mubr.bf16.gmra.mrb[0].mxu0 %v9298
    %v10126 = vpop.f32.mrb[0].mxu0
    %v10127 = vadd.f32 %v9435, %v10126
    %v10128 = vpop.f32.mrb[0].mxu0
    %v10129 = vadd.f32 %v9439, %v10128
    %v10130 = vpop.f32.mrb[0].mxu0
    %v10131 = vpop.f32.mrb[0].mxu0
    %10132 = vdwg.mxu0
    %10133 = vmatprep.subr.bf16.mxu0 %v9901
    %10134 = vmatpush1.bf16.msra.mxu0 %v9900
    %10135 = vmatprep.subr.bf16.mxu0 %v9905
    %10136 = vmatpush1.bf16.msra.mxu0 %v9904
    %10137 = vmatprep.subr.bf16.mxu0 %v9909
    %10138 = vmatpush1.bf16.msra.mxu0 %v9908
    %10139 = vmatprep.subr.bf16.mxu0 %v9913
    %10140 = vmatpush1.bf16.msra.mxu0 %v9912
    %10141 = vmatprep.subr.bf16.mxu0 %v9917
    %10142 = vmatpush1.bf16.msra.mxu0 %v9916
    %10143 = vmatprep.subr.bf16.mxu0 %v9921
    %10144 = vmatpush1.bf16.msra.mxu0 %v9920
    %10145 = vmatprep.subr.bf16.mxu0 %v9925
    %10146 = vmatpush1.bf16.msra.mxu0 %v9924
    %10147 = vmatprep.subr.bf16.mxu0 %v9929
    %10148 = vmatpush1.bf16.msra.mxu0 %v9928
    %10149 = vmatprep.subr.bf16.mxu0 %v9933
    %10150 = vmatpush1.bf16.msra.mxu0 %v9932
    %10151 = vmatprep.subr.bf16.mxu0 %v9937
    %10152 = vmatpush1.bf16.msra.mxu0 %v9936
    %10153 = vmatprep.subr.bf16.mxu0 %v9941
    %10154 = vmatpush1.bf16.msra.mxu0 %v9940
    %10155 = vmatprep.subr.bf16.mxu0 %v9945
    %10156 = vmatpush1.bf16.msra.mxu0 %v9944
    %10157 = vmatprep.subr.bf16.mxu0 %v9949
    %10158 = vmatpush1.bf16.msra.mxu0 %v9948
    %10159 = vmatprep.subr.bf16.mxu0 %v9953
    %10160 = vmatpush1.bf16.msra.mxu0 %v9952
    %10161 = vmatprep.subr.bf16.mxu0 %v9957
    %10162 = vmatpush1.bf16.msra.mxu0 %v9956
    %10163 = vmatprep.subr.bf16.mxu0 %v9961
    %10164 = vmatpush1.bf16.msra.mxu0 %v9960
    %10165 = vmatprep.mubr.bf16.mxu0 %v9301
    %10166 = vmatmul.mubr.bf16.gmra.mrb[0].mxu0 %v9300
    %v10167 = vpop.f32.mrb[0].mxu0
    %v10168 = vadd.f32 %v10127, %v10167
    %v10169 = vpop.f32.mrb[0].mxu0
    %v10170 = vadd.f32 %v10129, %v10169
    %v10171 = vpop.f32.mrb[0].mxu0
    %v10172 = vpop.f32.mrb[0].mxu0
    %10173 = vdwg.mxu0
    %10174 = vmatprep.subr.bf16.mxu0 %v9839
    %10175 = vmatpush1.bf16.msra.mxu0 %v9838
    %10176 = vmatprep.subr.bf16.mxu0 %v9843
    %10177 = vmatpush1.bf16.msra.mxu0 %v9842
    %10178 = vmatprep.subr.bf16.mxu0 %v9847
    %10179 = vmatpush1.bf16.msra.mxu0 %v9846
    %10180 = vmatprep.subr.bf16.mxu0 %v9851
    %10181 = vmatpush1.bf16.msra.mxu0 %v9850
    %10182 = vmatprep.subr.bf16.mxu0 %v9855
    %10183 = vmatpush1.bf16.msra.mxu0 %v9854
    %10184 = vmatprep.subr.bf16.mxu0 %v9859
    %10185 = vmatpush1.bf16.msra.mxu0 %v9858
    %10186 = vmatprep.subr.bf16.mxu0 %v9863
    %10187 = vmatpush1.bf16.msra.mxu0 %v9862
    %10188 = vmatprep.subr.bf16.mxu0 %v9867
    %10189 = vmatpush1.bf16.msra.mxu0 %v9866
    %10190 = vmatprep.subr.bf16.mxu0 %v9871
    %10191 = vmatpush1.bf16.msra.mxu0 %v9870
    %10192 = vmatprep.subr.bf16.mxu0 %v9875
    %10193 = vmatpush1.bf16.msra.mxu0 %v9874
    %10194 = vmatprep.subr.bf16.mxu0 %v9879
    %10195 = vmatpush1.bf16.msra.mxu0 %v9878
    %10196 = vmatprep.subr.bf16.mxu0 %v9883
    %10197 = vmatpush1.bf16.msra.mxu0 %v9882
    %10198 = vmatprep.subr.bf16.mxu0 %v9887
    %10199 = vmatpush1.bf16.msra.mxu0 %v9886
    %10200 = vmatprep.subr.bf16.mxu0 %v9891
    %10201 = vmatpush1.bf16.msra.mxu0 %v9890
    %10202 = vmatprep.subr.bf16.mxu0 %v9895
    %10203 = vmatpush1.bf16.msra.mxu0 %v9894
    %10204 = vmatprep.subr.bf16.mxu0 %v9899
    %10205 = vmatpush1.bf16.msra.mxu0 %v9898
    %10206 = vmatprep.mubr.bf16.mxu0 %v9299
    %10207 = vmatmul.mubr.bf16.gmra.mrb[0].mxu0 %v9298
    %v10208 = vpop.f32.mrb[0].mxu0
    %v10209 = vadd.f32 %v9443, %v10208
    %v10210 = vpop.f32.mrb[0].mxu0
    %v10211 = vadd.f32 %v9447, %v10210
    %v10212 = vpop.f32.mrb[0].mxu0
    %v10213 = vpop.f32.mrb[0].mxu0
    %10214 = vdwg.mxu0
    %10215 = vmatprep.subr.bf16.mxu0 %v9903
    %10216 = vmatpush1.bf16.msra.mxu0 %v9902
    %10217 = vmatprep.subr.bf16.mxu0 %v9907
    %10218 = vmatpush1.bf16.msra.mxu0 %v9906
    %10219 = vmatprep.subr.bf16.mxu0 %v9911
    %10220 = vmatpush1.bf16.msra.mxu0 %v9910
    %10221 = vmatprep.subr.bf16.mxu0 %v9915
    %10222 = vmatpush1.bf16.msra.mxu0 %v9914
    %10223 = vmatprep.subr.bf16.mxu0 %v9919
    %10224 = vmatpush1.bf16.msra.mxu0 %v9918
    %10225 = vmatprep.subr.bf16.mxu0 %v9923
    %10226 = vmatpush1.bf16.msra.mxu0 %v9922
    %10227 = vmatprep.subr.bf16.mxu0 %v9927
    %10228 = vmatpush1.bf16.msra.mxu0 %v9926
    %10229 = vmatprep.subr.bf16.mxu0 %v9931
    %10230 = vmatpush1.bf16.msra.mxu0 %v9930
    %10231 = vmatprep.subr.bf16.mxu0 %v9935
    %10232 = vmatpush1.bf16.msra.mxu0 %v9934
    %10233 = vmatprep.subr.bf16.mxu0 %v9939
    %10234 = vmatpush1.bf16.msra.mxu0 %v9938
    %10235 = vmatprep.subr.bf16.mxu0 %v9943
    %10236 = vmatpush1.bf16.msra.mxu0 %v9942
    %10237 = vmatprep.subr.bf16.mxu0 %v9947
    %10238 = vmatpush1.bf16.msra.mxu0 %v9946
    %10239 = vmatprep.subr.bf16.mxu0 %v9951
    %10240 = vmatpush1.bf16.msra.mxu0 %v9950
    %10241 = vmatprep.subr.bf16.mxu0 %v9955
    %10242 = vmatpush1.bf16.msra.mxu0 %v9954
    %10243 = vmatprep.subr.bf16.mxu0 %v9959
    %10244 = vmatpush1.bf16.msra.mxu0 %v9958
    %10245 = vmatprep.subr.bf16.mxu0 %v9963
    %10246 = vmatpush1.bf16.msra.mxu0 %v9962
    %10247 = vmatprep.mubr.bf16.mxu0 %v9301
    %10248 = vmatmul.mubr.bf16.gmra.mrb[0].mxu0 %v9300
    %v10249 = vpop.f32.mrb[0].mxu0
    %v10250 = vadd.f32 %v10209, %v10249
    %v10251 = vpop.f32.mrb[0].mxu0
    %v10252 = vadd.f32 %v10211, %v10251
    %v10253 = vpop.f32.mrb[0].mxu0
    %v10254 = vpop.f32.mrb[0].mxu0
    %10255 = vdwg.mxu0
    %v10256 = vmax.f32 %v10168, 0.0
    %v10257 = vmax.f32 %v10170, 0.0
    %v10258 = vmax.f32 %v10250, 0.0
    %v10259 = vmax.f32 %v10252, 0.0
    %v10260 = vpack.c.bf16 %v10256, %v10256
    %v10261 = vpack.c.bf16 %v10257, %v10257
    %v10262 = vpack.c.bf16 %v10258, %v10258
    %v10263 = vpack.c.bf16 %v10259, %v10259
    %v10264 = vld [vmem:[#allocation24] sm:$0xff]
    %v10265 = vld [vmem:[#allocation24 + $0x8] sm:$0xff]
    %v10266 = vld [vmem:[#allocation24 + $0x10] sm:$0xff]
    %v10267 = vld [vmem:[#allocation24 + $0x18] sm:$0xff]
    %v10268 = vld [vmem:[#allocation24 + $0x20] sm:$0xff]
    %v10269 = vld [vmem:[#allocation24 + $0x28] sm:$0xff]
    %v10270 = vld [vmem:[#allocation24 + $0x30] sm:$0xff]
    %v10271 = vld [vmem:[#allocation24 + $0x38] sm:$0xff]
    %v10272 = vld [vmem:[#allocation24 + $0x40] sm:$0xff]
    %v10273 = vld [vmem:[#allocation24 + $0x48] sm:$0xff]
    %v10274 = vld [vmem:[#allocation24 + $0x50] sm:$0xff]
    %v10275 = vld [vmem:[#allocation24 + $0x58] sm:$0xff]
    %v10276 = vld [vmem:[#allocation24 + $0x60] sm:$0xff]
    %v10277 = vld [vmem:[#allocation24 + $0x68] sm:$0xff]
    %v10278 = vld [vmem:[#allocation24 + $0x70] sm:$0xff]
    %v10279 = vld [vmem:[#allocation24 + $0x78] sm:$0xff]
    %v10280 = vld [vmem:[#allocation24 + $0x80] sm:$0xff]
    %v10281 = vld [vmem:[#allocation24 + $0x88] sm:$0xff]
    %v10282 = vld [vmem:[#allocation24 + $0x90] sm:$0xff]
    %v10283 = vld [vmem:[#allocation24 + $0x98] sm:$0xff]
    %v10284 = vld [vmem:[#allocation24 + $0xa0] sm:$0xff]
    %v10285 = vld [vmem:[#allocation24 + $0xa8] sm:$0xff]
    %v10286 = vld [vmem:[#allocation24 + $0xb0] sm:$0xff]
    %v10287 = vld [vmem:[#allocation24 + $0xb8] sm:$0xff]
    %v10288 = vld [vmem:[#allocation24 + $0xc0] sm:$0xff]
    %v10289 = vld [vmem:[#allocation24 + $0xc8] sm:$0xff]
    %v10290 = vld [vmem:[#allocation24 + $0xd0] sm:$0xff]
    %v10291 = vld [vmem:[#allocation24 + $0xd8] sm:$0xff]
    %v10292 = vld [vmem:[#allocation24 + $0xe0] sm:$0xff]
    %v10293 = vld [vmem:[#allocation24 + $0xe8] sm:$0xff]
    %v10294 = vld [vmem:[#allocation24 + $0xf0] sm:$0xff]
    %v10295 = vld [vmem:[#allocation24 + $0xf8] sm:$0xff]
    %v10296 = vld [vmem:[#allocation24 + $0x100] sm:$0xff]
    %v10297 = vld [vmem:[#allocation24 + $0x108] sm:$0xff]
    %v10298 = vld [vmem:[#allocation24 + $0x110] sm:$0xff]
    %v10299 = vld [vmem:[#allocation24 + $0x118] sm:$0xff]
    %v10300 = vld [vmem:[#allocation24 + $0x120] sm:$0xff]
    %v10301 = vld [vmem:[#allocation24 + $0x128] sm:$0xff]
    %v10302 = vld [vmem:[#allocation24 + $0x130] sm:$0xff]
    %v10303 = vld [vmem:[#allocation24 + $0x138] sm:$0xff]
    %v10304 = vld [vmem:[#allocation24 + $0x140] sm:$0xff]
    %v10305 = vld [vmem:[#allocation24 + $0x148] sm:$0xff]
    %v10306 = vld [vmem:[#allocation24 + $0x150] sm:$0xff]
    %v10307 = vld [vmem:[#allocation24 + $0x158] sm:$0xff]
    %v10308 = vld [vmem:[#allocation24 + $0x160] sm:$0xff]
    %v10309 = vld [vmem:[#allocation24 + $0x168] sm:$0xff]
    %v10310 = vld [vmem:[#allocation24 + $0x170] sm:$0xff]
    %v10311 = vld [vmem:[#allocation24 + $0x178] sm:$0xff]
    %v10312 = vld [vmem:[#allocation24 + $0x180] sm:$0xff]
    %v10313 = vld [vmem:[#allocation24 + $0x188] sm:$0xff]
    %v10314 = vld [vmem:[#allocation24 + $0x190] sm:$0xff]
    %v10315 = vld [vmem:[#allocation24 + $0x198] sm:$0xff]
    %v10316 = vld [vmem:[#allocation24 + $0x1a0] sm:$0xff]
    %v10317 = vld [vmem:[#allocation24 + $0x1a8] sm:$0xff]
    %v10318 = vld [vmem:[#allocation24 + $0x1b0] sm:$0xff]
    %v10319 = vld [vmem:[#allocation24 + $0x1b8] sm:$0xff]
    %v10320 = vld [vmem:[#allocation24 + $0x1c0] sm:$0xff]
    %v10321 = vld [vmem:[#allocation24 + $0x1c8] sm:$0xff]
    %v10322 = vld [vmem:[#allocation24 + $0x1d0] sm:$0xff]
    %v10323 = vld [vmem:[#allocation24 + $0x1d8] sm:$0xff]
    %v10324 = vld [vmem:[#allocation24 + $0x1e0] sm:$0xff]
    %v10325 = vld [vmem:[#allocation24 + $0x1e8] sm:$0xff]
    %v10326 = vld [vmem:[#allocation24 + $0x1f0] sm:$0xff]
    %v10327 = vld [vmem:[#allocation24 + $0x1f8] sm:$0xff]
    %v10328 = vld [vmem:[#allocation24 + $0x200] sm:$0xff]
    %v10329 = vld [vmem:[#allocation24 + $0x208] sm:$0xff]
    %v10330 = vld [vmem:[#allocation24 + $0x210] sm:$0xff]
    %v10331 = vld [vmem:[#allocation24 + $0x218] sm:$0xff]
    %v10332 = vld [vmem:[#allocation24 + $0x220] sm:$0xff]
    %v10333 = vld [vmem:[#allocation24 + $0x228] sm:$0xff]
    %v10334 = vld [vmem:[#allocation24 + $0x230] sm:$0xff]
    %v10335 = vld [vmem:[#allocation24 + $0x238] sm:$0xff]
    %v10336 = vld [vmem:[#allocation24 + $0x240] sm:$0xff]
    %v10337 = vld [vmem:[#allocation24 + $0x248] sm:$0xff]
    %v10338 = vld [vmem:[#allocation24 + $0x250] sm:$0xff]
    %v10339 = vld [vmem:[#allocation24 + $0x258] sm:$0xff]
    %v10340 = vld [vmem:[#allocation24 + $0x260] sm:$0xff]
    %v10341 = vld [vmem:[#allocation24 + $0x268] sm:$0xff]
    %v10342 = vld [vmem:[#allocation24 + $0x270] sm:$0xff]
    %v10343 = vld [vmem:[#allocation24 + $0x278] sm:$0xff]
    %v10344 = vld [vmem:[#allocation24 + $0x280] sm:$0xff]
    %v10345 = vld [vmem:[#allocation24 + $0x288] sm:$0xff]
    %v10346 = vld [vmem:[#allocation24 + $0x290] sm:$0xff]
    %v10347 = vld [vmem:[#allocation24 + $0x298] sm:$0xff]
    %v10348 = vld [vmem:[#allocation24 + $0x2a0] sm:$0xff]
    %v10349 = vld [vmem:[#allocation24 + $0x2a8] sm:$0xff]
    %v10350 = vld [vmem:[#allocation24 + $0x2b0] sm:$0xff]
    %v10351 = vld [vmem:[#allocation24 + $0x2b8] sm:$0xff]
    %v10352 = vld [vmem:[#allocation24 + $0x2c0] sm:$0xff]
    %v10353 = vld [vmem:[#allocation24 + $0x2c8] sm:$0xff]
    %v10354 = vld [vmem:[#allocation24 + $0x2d0] sm:$0xff]
    %v10355 = vld [vmem:[#allocation24 + $0x2d8] sm:$0xff]
    %v10356 = vld [vmem:[#allocation24 + $0x2e0] sm:$0xff]
    %v10357 = vld [vmem:[#allocation24 + $0x2e8] sm:$0xff]
    %v10358 = vld [vmem:[#allocation24 + $0x2f0] sm:$0xff]
    %v10359 = vld [vmem:[#allocation24 + $0x2f8] sm:$0xff]
    %v10360 = vld [vmem:[#allocation24 + $0x300] sm:$0xff]
    %v10361 = vld [vmem:[#allocation24 + $0x308] sm:$0xff]
    %v10362 = vld [vmem:[#allocation24 + $0x310] sm:$0xff]
    %v10363 = vld [vmem:[#allocation24 + $0x318] sm:$0xff]
    %v10364 = vld [vmem:[#allocation24 + $0x320] sm:$0xff]
    %v10365 = vld [vmem:[#allocation24 + $0x328] sm:$0xff]
    %v10366 = vld [vmem:[#allocation24 + $0x330] sm:$0xff]
    %v10367 = vld [vmem:[#allocation24 + $0x338] sm:$0xff]
    %v10368 = vld [vmem:[#allocation24 + $0x340] sm:$0xff]
    %v10369 = vld [vmem:[#allocation24 + $0x348] sm:$0xff]
    %v10370 = vld [vmem:[#allocation24 + $0x350] sm:$0xff]
    %v10371 = vld [vmem:[#allocation24 + $0x358] sm:$0xff]
    %v10372 = vld [vmem:[#allocation24 + $0x360] sm:$0xff]
    %v10373 = vld [vmem:[#allocation24 + $0x368] sm:$0xff]
    %v10374 = vld [vmem:[#allocation24 + $0x370] sm:$0xff]
    %v10375 = vld [vmem:[#allocation24 + $0x378] sm:$0xff]
    %v10376 = vld [vmem:[#allocation24 + $0x380] sm:$0xff]
    %v10377 = vld [vmem:[#allocation24 + $0x388] sm:$0xff]
    %v10378 = vld [vmem:[#allocation24 + $0x390] sm:$0xff]
    %v10379 = vld [vmem:[#allocation24 + $0x398] sm:$0xff]
    %v10380 = vld [vmem:[#allocation24 + $0x3a0] sm:$0xff]
    %v10381 = vld [vmem:[#allocation24 + $0x3a8] sm:$0xff]
    %v10382 = vld [vmem:[#allocation24 + $0x3b0] sm:$0xff]
    %v10383 = vld [vmem:[#allocation24 + $0x3b8] sm:$0xff]
    %v10384 = vld [vmem:[#allocation24 + $0x3c0] sm:$0xff]
    %v10385 = vld [vmem:[#allocation24 + $0x3c8] sm:$0xff]
    %v10386 = vld [vmem:[#allocation24 + $0x3d0] sm:$0xff]
    %v10387 = vld [vmem:[#allocation24 + $0x3d8] sm:$0xff]
    %v10388 = vld [vmem:[#allocation24 + $0x3e0] sm:$0xff]
    %v10389 = vld [vmem:[#allocation24 + $0x3e8] sm:$0xff]
    %v10390 = vld [vmem:[#allocation24 + $0x3f0] sm:$0xff]
    %v10391 = vld [vmem:[#allocation24 + $0x3f8] sm:$0xff]
    %v10392 = vld [vmem:[#allocation25] sm:$0xf]
    %v10394 = vlaneseq
    %v10395 = vshrl.u32 %v10394, 7
    %v10396 = vsub.s32 0, %v10395
    %v10397 = vrot.slane %v10392, %v10396
    %v10398 = vlaneseq
    %v10399 = vshrl.u32 %v10398, 7
    %v10400 = vsub.s32 1, %v10399
    %v10401 = vrot.slane %v10392, %v10400
    %v10402 = vlaneseq
    %v10403 = vshrl.u32 %v10402, 7
    %v10404 = vsub.s32 2, %v10403
    %v10405 = vrot.slane %v10392, %v10404
    %v10406 = vlaneseq
    %v10407 = vshrl.u32 %v10406, 7
    %v10408 = vsub.s32 3, %v10407
    %v10409 = vrot.slane %v10392, %v10408
    %v10542 = vunpack.c.l.b16 %v10264
    %v10543 = vunpack.c.h.b16 %v10264
    %v10544 = vunpack.c.l.b16 %v10265
    %v10545 = vunpack.c.h.b16 %v10265
    %v10546 = vunpack.c.l.b16 %v10266
    %v10547 = vunpack.c.h.b16 %v10266
    %v10548 = vunpack.c.l.b16 %v10267
    %v10549 = vunpack.c.h.b16 %v10267
    %v10550 = vunpack.c.l.b16 %v10268
    %v10551 = vunpack.c.h.b16 %v10268
    %v10552 = vunpack.c.l.b16 %v10269
    %v10553 = vunpack.c.h.b16 %v10269
    %v10554 = vunpack.c.l.b16 %v10270
    %v10555 = vunpack.c.h.b16 %v10270
    %v10556 = vunpack.c.l.b16 %v10271
    %v10557 = vunpack.c.h.b16 %v10271
    %v10558 = vunpack.c.l.b16 %v10272
    %v10559 = vunpack.c.h.b16 %v10272
    %v10560 = vunpack.c.l.b16 %v10273
    %v10561 = vunpack.c.h.b16 %v10273
    %v10562 = vunpack.c.l.b16 %v10274
    %v10563 = vunpack.c.h.b16 %v10274
    %v10564 = vunpack.c.l.b16 %v10275
    %v10565 = vunpack.c.h.b16 %v10275
    %v10566 = vunpack.c.l.b16 %v10276
    %v10567 = vunpack.c.h.b16 %v10276
    %v10568 = vunpack.c.l.b16 %v10277
    %v10569 = vunpack.c.h.b16 %v10277
    %v10570 = vunpack.c.l.b16 %v10278
    %v10571 = vunpack.c.h.b16 %v10278
    %v10572 = vunpack.c.l.b16 %v10279
    %v10573 = vunpack.c.h.b16 %v10279
    %v10574 = vunpack.c.l.b16 %v10280
    %v10575 = vunpack.c.h.b16 %v10280
    %v10576 = vunpack.c.l.b16 %v10281
    %v10577 = vunpack.c.h.b16 %v10281
    %v10578 = vunpack.c.l.b16 %v10282
    %v10579 = vunpack.c.h.b16 %v10282
    %v10580 = vunpack.c.l.b16 %v10283
    %v10581 = vunpack.c.h.b16 %v10283
    %v10582 = vunpack.c.l.b16 %v10284
    %v10583 = vunpack.c.h.b16 %v10284
    %v10584 = vunpack.c.l.b16 %v10285
    %v10585 = vunpack.c.h.b16 %v10285
    %v10586 = vunpack.c.l.b16 %v10286
    %v10587 = vunpack.c.h.b16 %v10286
    %v10588 = vunpack.c.l.b16 %v10287
    %v10589 = vunpack.c.h.b16 %v10287
    %v10590 = vunpack.c.l.b16 %v10288
    %v10591 = vunpack.c.h.b16 %v10288
    %v10592 = vunpack.c.l.b16 %v10289
    %v10593 = vunpack.c.h.b16 %v10289
    %v10594 = vunpack.c.l.b16 %v10290
    %v10595 = vunpack.c.h.b16 %v10290
    %v10596 = vunpack.c.l.b16 %v10291
    %v10597 = vunpack.c.h.b16 %v10291
    %v10598 = vunpack.c.l.b16 %v10292
    %v10599 = vunpack.c.h.b16 %v10292
    %v10600 = vunpack.c.l.b16 %v10293
    %v10601 = vunpack.c.h.b16 %v10293
    %v10602 = vunpack.c.l.b16 %v10294
    %v10603 = vunpack.c.h.b16 %v10294
    %v10604 = vunpack.c.l.b16 %v10295
    %v10605 = vunpack.c.h.b16 %v10295
    %v10606 = vunpack.c.l.b16 %v10296
    %v10607 = vunpack.c.h.b16 %v10296
    %v10608 = vunpack.c.l.b16 %v10297
    %v10609 = vunpack.c.h.b16 %v10297
    %v10610 = vunpack.c.l.b16 %v10298
    %v10611 = vunpack.c.h.b16 %v10298
    %v10612 = vunpack.c.l.b16 %v10299
    %v10613 = vunpack.c.h.b16 %v10299
    %v10614 = vunpack.c.l.b16 %v10300
    %v10615 = vunpack.c.h.b16 %v10300
    %v10616 = vunpack.c.l.b16 %v10301
    %v10617 = vunpack.c.h.b16 %v10301
    %v10618 = vunpack.c.l.b16 %v10302
    %v10619 = vunpack.c.h.b16 %v10302
    %v10620 = vunpack.c.l.b16 %v10303
    %v10621 = vunpack.c.h.b16 %v10303
    %v10622 = vunpack.c.l.b16 %v10304
    %v10623 = vunpack.c.h.b16 %v10304
    %v10624 = vunpack.c.l.b16 %v10305
    %v10625 = vunpack.c.h.b16 %v10305
    %v10626 = vunpack.c.l.b16 %v10306
    %v10627 = vunpack.c.h.b16 %v10306
    %v10628 = vunpack.c.l.b16 %v10307
    %v10629 = vunpack.c.h.b16 %v10307
    %v10630 = vunpack.c.l.b16 %v10308
    %v10631 = vunpack.c.h.b16 %v10308
    %v10632 = vunpack.c.l.b16 %v10309
    %v10633 = vunpack.c.h.b16 %v10309
    %v10634 = vunpack.c.l.b16 %v10310
    %v10635 = vunpack.c.h.b16 %v10310
    %v10636 = vunpack.c.l.b16 %v10311
    %v10637 = vunpack.c.h.b16 %v10311
    %v10638 = vunpack.c.l.b16 %v10312
    %v10639 = vunpack.c.h.b16 %v10312
    %v10640 = vunpack.c.l.b16 %v10313
    %v10641 = vunpack.c.h.b16 %v10313
    %v10642 = vunpack.c.l.b16 %v10314
    %v10643 = vunpack.c.h.b16 %v10314
    %v10644 = vunpack.c.l.b16 %v10315
    %v10645 = vunpack.c.h.b16 %v10315
    %v10646 = vunpack.c.l.b16 %v10316
    %v10647 = vunpack.c.h.b16 %v10316
    %v10648 = vunpack.c.l.b16 %v10317
    %v10649 = vunpack.c.h.b16 %v10317
    %v10650 = vunpack.c.l.b16 %v10318
    %v10651 = vunpack.c.h.b16 %v10318
    %v10652 = vunpack.c.l.b16 %v10319
    %v10653 = vunpack.c.h.b16 %v10319
    %v10654 = vunpack.c.l.b16 %v10320
    %v10655 = vunpack.c.h.b16 %v10320
    %v10656 = vunpack.c.l.b16 %v10321
    %v10657 = vunpack.c.h.b16 %v10321
    %v10658 = vunpack.c.l.b16 %v10322
    %v10659 = vunpack.c.h.b16 %v10322
    %v10660 = vunpack.c.l.b16 %v10323
    %v10661 = vunpack.c.h.b16 %v10323
    %v10662 = vunpack.c.l.b16 %v10324
    %v10663 = vunpack.c.h.b16 %v10324
    %v10664 = vunpack.c.l.b16 %v10325
    %v10665 = vunpack.c.h.b16 %v10325
    %v10666 = vunpack.c.l.b16 %v10326
    %v10667 = vunpack.c.h.b16 %v10326
    %v10668 = vunpack.c.l.b16 %v10327
    %v10669 = vunpack.c.h.b16 %v10327
    %v10670 = vunpack.c.l.b16 %v10328
    %v10671 = vunpack.c.h.b16 %v10328
    %v10672 = vunpack.c.l.b16 %v10329
    %v10673 = vunpack.c.h.b16 %v10329
    %v10674 = vunpack.c.l.b16 %v10330
    %v10675 = vunpack.c.h.b16 %v10330
    %v10676 = vunpack.c.l.b16 %v10331
    %v10677 = vunpack.c.h.b16 %v10331
    %v10678 = vunpack.c.l.b16 %v10332
    %v10679 = vunpack.c.h.b16 %v10332
    %v10680 = vunpack.c.l.b16 %v10333
    %v10681 = vunpack.c.h.b16 %v10333
    %v10682 = vunpack.c.l.b16 %v10334
    %v10683 = vunpack.c.h.b16 %v10334
    %v10684 = vunpack.c.l.b16 %v10335
    %v10685 = vunpack.c.h.b16 %v10335
    %v10686 = vunpack.c.l.b16 %v10336
    %v10687 = vunpack.c.h.b16 %v10336
    %v10688 = vunpack.c.l.b16 %v10337
    %v10689 = vunpack.c.h.b16 %v10337
    %v10690 = vunpack.c.l.b16 %v10338
    %v10691 = vunpack.c.h.b16 %v10338
    %v10692 = vunpack.c.l.b16 %v10339
    %v10693 = vunpack.c.h.b16 %v10339
    %v10694 = vunpack.c.l.b16 %v10340
    %v10695 = vunpack.c.h.b16 %v10340
    %v10696 = vunpack.c.l.b16 %v10341
    %v10697 = vunpack.c.h.b16 %v10341
    %v10698 = vunpack.c.l.b16 %v10342
    %v10699 = vunpack.c.h.b16 %v10342
    %v10700 = vunpack.c.l.b16 %v10343
    %v10701 = vunpack.c.h.b16 %v10343
    %v10702 = vunpack.c.l.b16 %v10344
    %v10703 = vunpack.c.h.b16 %v10344
    %v10704 = vunpack.c.l.b16 %v10345
    %v10705 = vunpack.c.h.b16 %v10345
    %v10706 = vunpack.c.l.b16 %v10346
    %v10707 = vunpack.c.h.b16 %v10346
    %v10708 = vunpack.c.l.b16 %v10347
    %v10709 = vunpack.c.h.b16 %v10347
    %v10710 = vunpack.c.l.b16 %v10348
    %v10711 = vunpack.c.h.b16 %v10348
    %v10712 = vunpack.c.l.b16 %v10349
    %v10713 = vunpack.c.h.b16 %v10349
    %v10714 = vunpack.c.l.b16 %v10350
    %v10715 = vunpack.c.h.b16 %v10350
    %v10716 = vunpack.c.l.b16 %v10351
    %v10717 = vunpack.c.h.b16 %v10351
    %v10718 = vunpack.c.l.b16 %v10352
    %v10719 = vunpack.c.h.b16 %v10352
    %v10720 = vunpack.c.l.b16 %v10353
    %v10721 = vunpack.c.h.b16 %v10353
    %v10722 = vunpack.c.l.b16 %v10354
    %v10723 = vunpack.c.h.b16 %v10354
    %v10724 = vunpack.c.l.b16 %v10355
    %v10725 = vunpack.c.h.b16 %v10355
    %v10726 = vunpack.c.l.b16 %v10356
    %v10727 = vunpack.c.h.b16 %v10356
    %v10728 = vunpack.c.l.b16 %v10357
    %v10729 = vunpack.c.h.b16 %v10357
    %v10730 = vunpack.c.l.b16 %v10358
    %v10731 = vunpack.c.h.b16 %v10358
    %v10732 = vunpack.c.l.b16 %v10359
    %v10733 = vunpack.c.h.b16 %v10359
    %v10734 = vunpack.c.l.b16 %v10360
    %v10735 = vunpack.c.h.b16 %v10360
    %v10736 = vunpack.c.l.b16 %v10361
    %v10737 = vunpack.c.h.b16 %v10361
    %v10738 = vunpack.c.l.b16 %v10362
    %v10739 = vunpack.c.h.b16 %v10362
    %v10740 = vunpack.c.l.b16 %v10363
    %v10741 = vunpack.c.h.b16 %v10363
    %v10742 = vunpack.c.l.b16 %v10364
    %v10743 = vunpack.c.h.b16 %v10364
    %v10744 = vunpack.c.l.b16 %v10365
    %v10745 = vunpack.c.h.b16 %v10365
    %v10746 = vunpack.c.l.b16 %v10366
    %v10747 = vunpack.c.h.b16 %v10366
    %v10748 = vunpack.c.l.b16 %v10367
    %v10749 = vunpack.c.h.b16 %v10367
    %v10750 = vunpack.c.l.b16 %v10368
    %v10751 = vunpack.c.h.b16 %v10368
    %v10752 = vunpack.c.l.b16 %v10369
    %v10753 = vunpack.c.h.b16 %v10369
    %v10754 = vunpack.c.l.b16 %v10370
    %v10755 = vunpack.c.h.b16 %v10370
    %v10756 = vunpack.c.l.b16 %v10371
    %v10757 = vunpack.c.h.b16 %v10371
    %v10758 = vunpack.c.l.b16 %v10372
    %v10759 = vunpack.c.h.b16 %v10372
    %v10760 = vunpack.c.l.b16 %v10373
    %v10761 = vunpack.c.h.b16 %v10373
    %v10762 = vunpack.c.l.b16 %v10374
    %v10763 = vunpack.c.h.b16 %v10374
    %v10764 = vunpack.c.l.b16 %v10375
    %v10765 = vunpack.c.h.b16 %v10375
    %v10766 = vunpack.c.l.b16 %v10376
    %v10767 = vunpack.c.h.b16 %v10376
    %v10768 = vunpack.c.l.b16 %v10377
    %v10769 = vunpack.c.h.b16 %v10377
    %v10770 = vunpack.c.l.b16 %v10378
    %v10771 = vunpack.c.h.b16 %v10378
    %v10772 = vunpack.c.l.b16 %v10379
    %v10773 = vunpack.c.h.b16 %v10379
    %v10774 = vunpack.c.l.b16 %v10380
    %v10775 = vunpack.c.h.b16 %v10380
    %v10776 = vunpack.c.l.b16 %v10381
    %v10777 = vunpack.c.h.b16 %v10381
    %v10778 = vunpack.c.l.b16 %v10382
    %v10779 = vunpack.c.h.b16 %v10382
    %v10780 = vunpack.c.l.b16 %v10383
    %v10781 = vunpack.c.h.b16 %v10383
    %v10782 = vunpack.c.l.b16 %v10384
    %v10783 = vunpack.c.h.b16 %v10384
    %v10784 = vunpack.c.l.b16 %v10385
    %v10785 = vunpack.c.h.b16 %v10385
    %v10786 = vunpack.c.l.b16 %v10386
    %v10787 = vunpack.c.h.b16 %v10386
    %v10788 = vunpack.c.l.b16 %v10387
    %v10789 = vunpack.c.h.b16 %v10387
    %v10790 = vunpack.c.l.b16 %v10388
    %v10791 = vunpack.c.h.b16 %v10388
    %v10792 = vunpack.c.l.b16 %v10389
    %v10793 = vunpack.c.h.b16 %v10389
    %v10794 = vunpack.c.l.b16 %v10390
    %v10795 = vunpack.c.h.b16 %v10390
    %v10796 = vunpack.c.l.b16 %v10391
    %v10797 = vunpack.c.h.b16 %v10391
    %v10798 = vpack.c.b16 %v10546, %v10542
    %v10799 = vpack.c.b16 %v10547, %v10543
    %v10800 = vpack.c.b16 %v10548, %v10544
    %v10801 = vpack.c.b16 %v10549, %v10545
    %v10802 = vpack.c.b16 %v10554, %v10550
    %v10803 = vpack.c.b16 %v10555, %v10551
    %v10804 = vpack.c.b16 %v10556, %v10552
    %v10805 = vpack.c.b16 %v10557, %v10553
    %v10806 = vpack.c.b16 %v10562, %v10558
    %v10807 = vpack.c.b16 %v10563, %v10559
    %v10808 = vpack.c.b16 %v10564, %v10560
    %v10809 = vpack.c.b16 %v10565, %v10561
    %v10810 = vpack.c.b16 %v10570, %v10566
    %v10811 = vpack.c.b16 %v10571, %v10567
    %v10812 = vpack.c.b16 %v10572, %v10568
    %v10813 = vpack.c.b16 %v10573, %v10569
    %v10814 = vpack.c.b16 %v10578, %v10574
    %v10815 = vpack.c.b16 %v10579, %v10575
    %v10816 = vpack.c.b16 %v10580, %v10576
    %v10817 = vpack.c.b16 %v10581, %v10577
    %v10818 = vpack.c.b16 %v10586, %v10582
    %v10819 = vpack.c.b16 %v10587, %v10583
    %v10820 = vpack.c.b16 %v10588, %v10584
    %v10821 = vpack.c.b16 %v10589, %v10585
    %v10822 = vpack.c.b16 %v10594, %v10590
    %v10823 = vpack.c.b16 %v10595, %v10591
    %v10824 = vpack.c.b16 %v10596, %v10592
    %v10825 = vpack.c.b16 %v10597, %v10593
    %v10826 = vpack.c.b16 %v10602, %v10598
    %v10827 = vpack.c.b16 %v10603, %v10599
    %v10828 = vpack.c.b16 %v10604, %v10600
    %v10829 = vpack.c.b16 %v10605, %v10601
    %v10830 = vpack.c.b16 %v10610, %v10606
    %v10831 = vpack.c.b16 %v10611, %v10607
    %v10832 = vpack.c.b16 %v10612, %v10608
    %v10833 = vpack.c.b16 %v10613, %v10609
    %v10834 = vpack.c.b16 %v10618, %v10614
    %v10835 = vpack.c.b16 %v10619, %v10615
    %v10836 = vpack.c.b16 %v10620, %v10616
    %v10837 = vpack.c.b16 %v10621, %v10617
    %v10838 = vpack.c.b16 %v10626, %v10622
    %v10839 = vpack.c.b16 %v10627, %v10623
    %v10840 = vpack.c.b16 %v10628, %v10624
    %v10841 = vpack.c.b16 %v10629, %v10625
    %v10842 = vpack.c.b16 %v10634, %v10630
    %v10843 = vpack.c.b16 %v10635, %v10631
    %v10844 = vpack.c.b16 %v10636, %v10632
    %v10845 = vpack.c.b16 %v10637, %v10633
    %v10846 = vpack.c.b16 %v10642, %v10638
    %v10847 = vpack.c.b16 %v10643, %v10639
    %v10848 = vpack.c.b16 %v10644, %v10640
    %v10849 = vpack.c.b16 %v10645, %v10641
    %v10850 = vpack.c.b16 %v10650, %v10646
    %v10851 = vpack.c.b16 %v10651, %v10647
    %v10852 = vpack.c.b16 %v10652, %v10648
    %v10853 = vpack.c.b16 %v10653, %v10649
    %v10854 = vpack.c.b16 %v10658, %v10654
    %v10855 = vpack.c.b16 %v10659, %v10655
    %v10856 = vpack.c.b16 %v10660, %v10656
    %v10857 = vpack.c.b16 %v10661, %v10657
    %v10858 = vpack.c.b16 %v10666, %v10662
    %v10859 = vpack.c.b16 %v10667, %v10663
    %v10860 = vpack.c.b16 %v10668, %v10664
    %v10861 = vpack.c.b16 %v10669, %v10665
    %v10862 = vpack.c.b16 %v10674, %v10670
    %v10863 = vpack.c.b16 %v10675, %v10671
    %v10864 = vpack.c.b16 %v10676, %v10672
    %v10865 = vpack.c.b16 %v10677, %v10673
    %v10866 = vpack.c.b16 %v10682, %v10678
    %v10867 = vpack.c.b16 %v10683, %v10679
    %v10868 = vpack.c.b16 %v10684, %v10680
    %v10869 = vpack.c.b16 %v10685, %v10681
    %v10870 = vpack.c.b16 %v10690, %v10686
    %v10871 = vpack.c.b16 %v10691, %v10687
    %v10872 = vpack.c.b16 %v10692, %v10688
    %v10873 = vpack.c.b16 %v10693, %v10689
    %v10874 = vpack.c.b16 %v10698, %v10694
    %v10875 = vpack.c.b16 %v10699, %v10695
    %v10876 = vpack.c.b16 %v10700, %v10696
    %v10877 = vpack.c.b16 %v10701, %v10697
    %v10878 = vpack.c.b16 %v10706, %v10702
    %v10879 = vpack.c.b16 %v10707, %v10703
    %v10880 = vpack.c.b16 %v10708, %v10704
    %v10881 = vpack.c.b16 %v10709, %v10705
    %v10882 = vpack.c.b16 %v10714, %v10710
    %v10883 = vpack.c.b16 %v10715, %v10711
    %v10884 = vpack.c.b16 %v10716, %v10712
    %v10885 = vpack.c.b16 %v10717, %v10713
    %v10886 = vpack.c.b16 %v10722, %v10718
    %v10887 = vpack.c.b16 %v10723, %v10719
    %v10888 = vpack.c.b16 %v10724, %v10720
    %v10889 = vpack.c.b16 %v10725, %v10721
    %v10890 = vpack.c.b16 %v10730, %v10726
    %v10891 = vpack.c.b16 %v10731, %v10727
    %v10892 = vpack.c.b16 %v10732, %v10728
    %v10893 = vpack.c.b16 %v10733, %v10729
    %v10894 = vpack.c.b16 %v10738, %v10734
    %v10895 = vpack.c.b16 %v10739, %v10735
    %v10896 = vpack.c.b16 %v10740, %v10736
    %v10897 = vpack.c.b16 %v10741, %v10737
    %v10898 = vpack.c.b16 %v10746, %v10742
    %v10899 = vpack.c.b16 %v10747, %v10743
    %v10900 = vpack.c.b16 %v10748, %v10744
    %v10901 = vpack.c.b16 %v10749, %v10745
    %v10902 = vpack.c.b16 %v10754, %v10750
    %v10903 = vpack.c.b16 %v10755, %v10751
    %v10904 = vpack.c.b16 %v10756, %v10752
    %v10905 = vpack.c.b16 %v10757, %v10753
    %v10906 = vpack.c.b16 %v10762, %v10758
    %v10907 = vpack.c.b16 %v10763, %v10759
    %v10908 = vpack.c.b16 %v10764, %v10760
    %v10909 = vpack.c.b16 %v10765, %v10761
    %v10910 = vpack.c.b16 %v10770, %v10766
    %v10911 = vpack.c.b16 %v10771, %v10767
    %v10912 = vpack.c.b16 %v10772, %v10768
    %v10913 = vpack.c.b16 %v10773, %v10769
    %v10914 = vpack.c.b16 %v10778, %v10774
    %v10915 = vpack.c.b16 %v10779, %v10775
    %v10916 = vpack.c.b16 %v10780, %v10776
    %v10917 = vpack.c.b16 %v10781, %v10777
    %v10918 = vpack.c.b16 %v10786, %v10782
    %v10919 = vpack.c.b16 %v10787, %v10783
    %v10920 = vpack.c.b16 %v10788, %v10784
    %v10921 = vpack.c.b16 %v10789, %v10785
    %v10922 = vpack.c.b16 %v10794, %v10790
    %v10923 = vpack.c.b16 %v10795, %v10791
    %v10924 = vpack.c.b16 %v10796, %v10792
    %v10925 = vpack.c.b16 %v10797, %v10793
    %11054 = vmatprep.subr.bf16.mxu0 %v10799
    %11055 = vmatpush1.bf16.msra.mxu0 %v10798
    %11056 = vmatprep.subr.bf16.mxu0 %v10803
    %11057 = vmatpush1.bf16.msra.mxu0 %v10802
    %11058 = vmatprep.subr.bf16.mxu0 %v10807
    %11059 = vmatpush1.bf16.msra.mxu0 %v10806
    %11060 = vmatprep.subr.bf16.mxu0 %v10811
    %11061 = vmatpush1.bf16.msra.mxu0 %v10810
    %11062 = vmatprep.subr.bf16.mxu0 %v10815
    %11063 = vmatpush1.bf16.msra.mxu0 %v10814
    %11064 = vmatprep.subr.bf16.mxu0 %v10819
    %11065 = vmatpush1.bf16.msra.mxu0 %v10818
    %11066 = vmatprep.subr.bf16.mxu0 %v10823
    %11067 = vmatpush1.bf16.msra.mxu0 %v10822
    %11068 = vmatprep.subr.bf16.mxu0 %v10827
    %11069 = vmatpush1.bf16.msra.mxu0 %v10826
    %11070 = vmatprep.subr.bf16.mxu0 %v10831
    %11071 = vmatpush1.bf16.msra.mxu0 %v10830
    %11072 = vmatprep.subr.bf16.mxu0 %v10835
    %11073 = vmatpush1.bf16.msra.mxu0 %v10834
    %11074 = vmatprep.subr.bf16.mxu0 %v10839
    %11075 = vmatpush1.bf16.msra.mxu0 %v10838
    %11076 = vmatprep.subr.bf16.mxu0 %v10843
    %11077 = vmatpush1.bf16.msra.mxu0 %v10842
    %11078 = vmatprep.subr.bf16.mxu0 %v10847
    %11079 = vmatpush1.bf16.msra.mxu0 %v10846
    %11080 = vmatprep.subr.bf16.mxu0 %v10851
    %11081 = vmatpush1.bf16.msra.mxu0 %v10850
    %11082 = vmatprep.subr.bf16.mxu0 %v10855
    %11083 = vmatpush1.bf16.msra.mxu0 %v10854
    %11084 = vmatprep.subr.bf16.mxu0 %v10859
    %11085 = vmatpush1.bf16.msra.mxu0 %v10858
    %11086 = vmatprep.mubr.bf16.mxu0 %v10261
    %11087 = vmatmul.mubr.bf16.gmra.mrb[0].mxu0 %v10260
    %v11088 = vpop.f32.mrb[0].mxu0
    %v11089 = vadd.f32 %v10397, %v11088
    %v11090 = vpop.f32.mrb[0].mxu0
    %v11091 = vadd.f32 %v10401, %v11090
    %v11092 = vpop.f32.mrb[0].mxu0
    %v11093 = vpop.f32.mrb[0].mxu0
    %11094 = vdwg.mxu0
    %11095 = vmatprep.subr.bf16.mxu0 %v10863
    %11096 = vmatpush1.bf16.msra.mxu0 %v10862
    %11097 = vmatprep.subr.bf16.mxu0 %v10867
    %11098 = vmatpush1.bf16.msra.mxu0 %v10866
    %11099 = vmatprep.subr.bf16.mxu0 %v10871
    %11100 = vmatpush1.bf16.msra.mxu0 %v10870
    %11101 = vmatprep.subr.bf16.mxu0 %v10875
    %11102 = vmatpush1.bf16.msra.mxu0 %v10874
    %11103 = vmatprep.subr.bf16.mxu0 %v10879
    %11104 = vmatpush1.bf16.msra.mxu0 %v10878
    %11105 = vmatprep.subr.bf16.mxu0 %v10883
    %11106 = vmatpush1.bf16.msra.mxu0 %v10882
    %11107 = vmatprep.subr.bf16.mxu0 %v10887
    %11108 = vmatpush1.bf16.msra.mxu0 %v10886
    %11109 = vmatprep.subr.bf16.mxu0 %v10891
    %11110 = vmatpush1.bf16.msra.mxu0 %v10890
    %11111 = vmatprep.subr.bf16.mxu0 %v10895
    %11112 = vmatpush1.bf16.msra.mxu0 %v10894
    %11113 = vmatprep.subr.bf16.mxu0 %v10899
    %11114 = vmatpush1.bf16.msra.mxu0 %v10898
    %11115 = vmatprep.subr.bf16.mxu0 %v10903
    %11116 = vmatpush1.bf16.msra.mxu0 %v10902
    %11117 = vmatprep.subr.bf16.mxu0 %v10907
    %11118 = vmatpush1.bf16.msra.mxu0 %v10906
    %11119 = vmatprep.subr.bf16.mxu0 %v10911
    %11120 = vmatpush1.bf16.msra.mxu0 %v10910
    %11121 = vmatprep.subr.bf16.mxu0 %v10915
    %11122 = vmatpush1.bf16.msra.mxu0 %v10914
    %11123 = vmatprep.subr.bf16.mxu0 %v10919
    %11124 = vmatpush1.bf16.msra.mxu0 %v10918
    %11125 = vmatprep.subr.bf16.mxu0 %v10923
    %11126 = vmatpush1.bf16.msra.mxu0 %v10922
    %11127 = vmatprep.mubr.bf16.mxu0 %v10263
    %11128 = vmatmul.mubr.bf16.gmra.mrb[0].mxu0 %v10262
    %v11129 = vpop.f32.mrb[0].mxu0
    %v11130 = vadd.f32 %v11089, %v11129
    %v11131 = vpop.f32.mrb[0].mxu0
    %v11132 = vadd.f32 %v11091, %v11131
    %v11133 = vpop.f32.mrb[0].mxu0
    %v11134 = vpop.f32.mrb[0].mxu0
    %11135 = vdwg.mxu0
    %11136 = vmatprep.subr.bf16.mxu0 %v10801
    %11137 = vmatpush1.bf16.msra.mxu0 %v10800
    %11138 = vmatprep.subr.bf16.mxu0 %v10805
    %11139 = vmatpush1.bf16.msra.mxu0 %v10804
    %11140 = vmatprep.subr.bf16.mxu0 %v10809
    %11141 = vmatpush1.bf16.msra.mxu0 %v10808
    %11142 = vmatprep.subr.bf16.mxu0 %v10813
    %11143 = vmatpush1.bf16.msra.mxu0 %v10812
    %11144 = vmatprep.subr.bf16.mxu0 %v10817
    %11145 = vmatpush1.bf16.msra.mxu0 %v10816
    %11146 = vmatprep.subr.bf16.mxu0 %v10821
    %11147 = vmatpush1.bf16.msra.mxu0 %v10820
    %11148 = vmatprep.subr.bf16.mxu0 %v10825
    %11149 = vmatpush1.bf16.msra.mxu0 %v10824
    %11150 = vmatprep.subr.bf16.mxu0 %v10829
    %11151 = vmatpush1.bf16.msra.mxu0 %v10828
    %11152 = vmatprep.subr.bf16.mxu0 %v10833
    %11153 = vmatpush1.bf16.msra.mxu0 %v10832
    %11154 = vmatprep.subr.bf16.mxu0 %v10837
    %11155 = vmatpush1.bf16.msra.mxu0 %v10836
    %11156 = vmatprep.subr.bf16.mxu0 %v10841
    %11157 = vmatpush1.bf16.msra.mxu0 %v10840
    %11158 = vmatprep.subr.bf16.mxu0 %v10845
    %11159 = vmatpush1.bf16.msra.mxu0 %v10844
    %11160 = vmatprep.subr.bf16.mxu0 %v10849
    %11161 = vmatpush1.bf16.msra.mxu0 %v10848
    %11162 = vmatprep.subr.bf16.mxu0 %v10853
    %11163 = vmatpush1.bf16.msra.mxu0 %v10852
    %11164 = vmatprep.subr.bf16.mxu0 %v10857
    %11165 = vmatpush1.bf16.msra.mxu0 %v10856
    %11166 = vmatprep.subr.bf16.mxu0 %v10861
    %11167 = vmatpush1.bf16.msra.mxu0 %v10860
    %11168 = vmatprep.mubr.bf16.mxu0 %v10261
    %11169 = vmatmul.mubr.bf16.gmra.mrb[0].mxu0 %v10260
    %v11170 = vpop.f32.mrb[0].mxu0
    %v11171 = vadd.f32 %v10405, %v11170
    %v11172 = vpop.f32.mrb[0].mxu0
    %v11173 = vadd.f32 %v10409, %v11172
    %v11174 = vpop.f32.mrb[0].mxu0
    %v11175 = vpop.f32.mrb[0].mxu0
    %11176 = vdwg.mxu0
    %11177 = vmatprep.subr.bf16.mxu0 %v10865
    %11178 = vmatpush1.bf16.msra.mxu0 %v10864
    %11179 = vmatprep.subr.bf16.mxu0 %v10869
    %11180 = vmatpush1.bf16.msra.mxu0 %v10868
    %11181 = vmatprep.subr.bf16.mxu0 %v10873
    %11182 = vmatpush1.bf16.msra.mxu0 %v10872
    %11183 = vmatprep.subr.bf16.mxu0 %v10877
    %11184 = vmatpush1.bf16.msra.mxu0 %v10876
    %11185 = vmatprep.subr.bf16.mxu0 %v10881
    %11186 = vmatpush1.bf16.msra.mxu0 %v10880
    %11187 = vmatprep.subr.bf16.mxu0 %v10885
    %11188 = vmatpush1.bf16.msra.mxu0 %v10884
    %11189 = vmatprep.subr.bf16.mxu0 %v10889
    %11190 = vmatpush1.bf16.msra.mxu0 %v10888
    %11191 = vmatprep.subr.bf16.mxu0 %v10893
    %11192 = vmatpush1.bf16.msra.mxu0 %v10892
    %11193 = vmatprep.subr.bf16.mxu0 %v10897
    %11194 = vmatpush1.bf16.msra.mxu0 %v10896
    %11195 = vmatprep.subr.bf16.mxu0 %v10901
    %11196 = vmatpush1.bf16.msra.mxu0 %v10900
    %11197 = vmatprep.subr.bf16.mxu0 %v10905
    %11198 = vmatpush1.bf16.msra.mxu0 %v10904
    %11199 = vmatprep.subr.bf16.mxu0 %v10909
    %11200 = vmatpush1.bf16.msra.mxu0 %v10908
    %11201 = vmatprep.subr.bf16.mxu0 %v10913
    %11202 = vmatpush1.bf16.msra.mxu0 %v10912
    %11203 = vmatprep.subr.bf16.mxu0 %v10917
    %11204 = vmatpush1.bf16.msra.mxu0 %v10916
    %11205 = vmatprep.subr.bf16.mxu0 %v10921
    %11206 = vmatpush1.bf16.msra.mxu0 %v10920
    %11207 = vmatprep.subr.bf16.mxu0 %v10925
    %11208 = vmatpush1.bf16.msra.mxu0 %v10924
    %11209 = vmatprep.mubr.bf16.mxu0 %v10263
    %11210 = vmatmul.mubr.bf16.gmra.mrb[0].mxu0 %v10262
    %v11211 = vpop.f32.mrb[0].mxu0
    %v11212 = vadd.f32 %v11171, %v11211
    %v11213 = vpop.f32.mrb[0].mxu0
    %v11214 = vadd.f32 %v11173, %v11213
    %v11215 = vpop.f32.mrb[0].mxu0
    %v11216 = vpop.f32.mrb[0].mxu0
    %11217 = vdwg.mxu0
    %v11218 = vmax.f32 %v11130, 0.0
    %v11219 = vmax.f32 %v11132, 0.0
    %v11220 = vmax.f32 %v11212, 0.0
    %v11221 = vmax.f32 %v11214, 0.0
    %v11222 = vpack.c.bf16 %v11218, %v11218
    %v11223 = vpack.c.bf16 %v11219, %v11219
    %v11224 = vpack.c.bf16 %v11220, %v11220
    %v11225 = vpack.c.bf16 %v11221, %v11221
    %v11226 = vld [vmem:[#allocation27] sm:$0xf]
    %v11227 = vld [vmem:[#allocation27 + $0x4] sm:$0xf]
    %v11228 = vld [vmem:[#allocation27 + $0x8] sm:$0xf]
    %v11229 = vld [vmem:[#allocation27 + $0xc] sm:$0xf]
    %v11230 = vld [vmem:[#allocation27 + $0x10] sm:$0xf]
    %v11231 = vld [vmem:[#allocation27 + $0x14] sm:$0xf]
    %v11232 = vld [vmem:[#allocation27 + $0x18] sm:$0xf]
    %v11233 = vld [vmem:[#allocation27 + $0x1c] sm:$0xf]
    %v11234 = vld [vmem:[#allocation27 + $0x20] sm:$0xf]
    %v11235 = vld [vmem:[#allocation27 + $0x24] sm:$0xf]
    %v11236 = vld [vmem:[#allocation27 + $0x28] sm:$0xf]
    %v11237 = vld [vmem:[#allocation27 + $0x2c] sm:$0xf]
    %v11238 = vld [vmem:[#allocation27 + $0x30] sm:$0xf]
    %v11239 = vld [vmem:[#allocation27 + $0x34] sm:$0xf]
    %v11240 = vld [vmem:[#allocation27 + $0x38] sm:$0xf]
    %v11241 = vld [vmem:[#allocation27 + $0x3c] sm:$0xf]
    %v11242 = vld [vmem:[#allocation27 + $0x40] sm:$0xf]
    %v11243 = vld [vmem:[#allocation27 + $0x44] sm:$0xf]
    %v11244 = vld [vmem:[#allocation27 + $0x48] sm:$0xf]
    %v11245 = vld [vmem:[#allocation27 + $0x4c] sm:$0xf]
    %v11246 = vld [vmem:[#allocation27 + $0x50] sm:$0xf]
    %v11247 = vld [vmem:[#allocation27 + $0x54] sm:$0xf]
    %v11248 = vld [vmem:[#allocation27 + $0x58] sm:$0xf]
    %v11249 = vld [vmem:[#allocation27 + $0x5c] sm:$0xf]
    %v11250 = vld [vmem:[#allocation27 + $0x60] sm:$0xf]
    %v11251 = vld [vmem:[#allocation27 + $0x64] sm:$0xf]
    %v11252 = vld [vmem:[#allocation27 + $0x68] sm:$0xf]
    %v11253 = vld [vmem:[#allocation27 + $0x6c] sm:$0xf]
    %v11254 = vld [vmem:[#allocation27 + $0x70] sm:$0xf]
    %v11255 = vld [vmem:[#allocation27 + $0x74] sm:$0xf]
    %v11256 = vld [vmem:[#allocation27 + $0x78] sm:$0xf]
    %v11257 = vld [vmem:[#allocation27 + $0x7c] sm:$0xf]
    %v11258 = vld [vmem:[#allocation27 + $0x80] sm:$0xf]
    %v11259 = vld [vmem:[#allocation27 + $0x84] sm:$0xf]
    %v11260 = vld [vmem:[#allocation27 + $0x88] sm:$0xf]
    %v11261 = vld [vmem:[#allocation27 + $0x8c] sm:$0xf]
    %v11262 = vld [vmem:[#allocation27 + $0x90] sm:$0xf]
    %v11263 = vld [vmem:[#allocation27 + $0x94] sm:$0xf]
    %v11264 = vld [vmem:[#allocation27 + $0x98] sm:$0xf]
    %v11265 = vld [vmem:[#allocation27 + $0x9c] sm:$0xf]
    %v11266 = vld [vmem:[#allocation27 + $0xa0] sm:$0xf]
    %v11267 = vld [vmem:[#allocation27 + $0xa4] sm:$0xf]
    %v11268 = vld [vmem:[#allocation27 + $0xa8] sm:$0xf]
    %v11269 = vld [vmem:[#allocation27 + $0xac] sm:$0xf]
    %v11270 = vld [vmem:[#allocation27 + $0xb0] sm:$0xf]
    %v11271 = vld [vmem:[#allocation27 + $0xb4] sm:$0xf]
    %v11272 = vld [vmem:[#allocation27 + $0xb8] sm:$0xf]
    %v11273 = vld [vmem:[#allocation27 + $0xbc] sm:$0xf]
    %v11274 = vld [vmem:[#allocation27 + $0xc0] sm:$0xf]
    %v11275 = vld [vmem:[#allocation27 + $0xc4] sm:$0xf]
    %v11276 = vld [vmem:[#allocation27 + $0xc8] sm:$0xf]
    %v11277 = vld [vmem:[#allocation27 + $0xcc] sm:$0xf]
    %v11278 = vld [vmem:[#allocation27 + $0xd0] sm:$0xf]
    %v11279 = vld [vmem:[#allocation27 + $0xd4] sm:$0xf]
    %v11280 = vld [vmem:[#allocation27 + $0xd8] sm:$0xf]
    %v11281 = vld [vmem:[#allocation27 + $0xdc] sm:$0xf]
    %v11282 = vld [vmem:[#allocation27 + $0xe0] sm:$0xf]
    %v11283 = vld [vmem:[#allocation27 + $0xe4] sm:$0xf]
    %v11284 = vld [vmem:[#allocation27 + $0xe8] sm:$0xf]
    %v11285 = vld [vmem:[#allocation27 + $0xec] sm:$0xf]
    %v11286 = vld [vmem:[#allocation27 + $0xf0] sm:$0xf]
    %v11287 = vld [vmem:[#allocation27 + $0xf4] sm:$0xf]
    %v11288 = vld [vmem:[#allocation27 + $0xf8] sm:$0xf]
    %v11289 = vld [vmem:[#allocation27 + $0xfc] sm:$0xf]
    %v11290 = vld [vmem:[#allocation28] sm:$0x1]
    %v11292 = vlaneseq
    %v11293 = vshrl.u32 %v11292, 7
    %v11294 = vsub.s32 0, %v11293
    %v11295 = vrot.slane %v11290, %v11294
    %v11361 = vunpack.c.l.b16 %v11226
    %v11362 = vunpack.c.l.b16 %v11227
    %v11363 = vunpack.c.l.b16 %v11228
    %v11364 = vunpack.c.l.b16 %v11229
    %v11365 = vunpack.c.l.b16 %v11230
    %v11366 = vunpack.c.l.b16 %v11231
    %v11367 = vunpack.c.l.b16 %v11232
    %v11368 = vunpack.c.l.b16 %v11233
    %v11369 = vunpack.c.l.b16 %v11234
    %v11370 = vunpack.c.l.b16 %v11235
    %v11371 = vunpack.c.l.b16 %v11236
    %v11372 = vunpack.c.l.b16 %v11237
    %v11373 = vunpack.c.l.b16 %v11238
    %v11374 = vunpack.c.l.b16 %v11239
    %v11375 = vunpack.c.l.b16 %v11240
    %v11376 = vunpack.c.l.b16 %v11241
    %v11377 = vunpack.c.l.b16 %v11242
    %v11378 = vunpack.c.l.b16 %v11243
    %v11379 = vunpack.c.l.b16 %v11244
    %v11380 = vunpack.c.l.b16 %v11245
    %v11381 = vunpack.c.l.b16 %v11246
    %v11382 = vunpack.c.l.b16 %v11247
    %v11383 = vunpack.c.l.b16 %v11248
    %v11384 = vunpack.c.l.b16 %v11249
    %v11385 = vunpack.c.l.b16 %v11250
    %v11386 = vunpack.c.l.b16 %v11251
    %v11387 = vunpack.c.l.b16 %v11252
    %v11388 = vunpack.c.l.b16 %v11253
    %v11389 = vunpack.c.l.b16 %v11254
    %v11390 = vunpack.c.l.b16 %v11255
    %v11391 = vunpack.c.l.b16 %v11256
    %v11392 = vunpack.c.l.b16 %v11257
    %v11393 = vunpack.c.l.b16 %v11258
    %v11394 = vunpack.c.l.b16 %v11259
    %v11395 = vunpack.c.l.b16 %v11260
    %v11396 = vunpack.c.l.b16 %v11261
    %v11397 = vunpack.c.l.b16 %v11262
    %v11398 = vunpack.c.l.b16 %v11263
    %v11399 = vunpack.c.l.b16 %v11264
    %v11400 = vunpack.c.l.b16 %v11265
    %v11401 = vunpack.c.l.b16 %v11266
    %v11402 = vunpack.c.l.b16 %v11267
    %v11403 = vunpack.c.l.b16 %v11268
    %v11404 = vunpack.c.l.b16 %v11269
    %v11405 = vunpack.c.l.b16 %v11270
    %v11406 = vunpack.c.l.b16 %v11271
    %v11407 = vunpack.c.l.b16 %v11272
    %v11408 = vunpack.c.l.b16 %v11273
    %v11409 = vunpack.c.l.b16 %v11274
    %v11410 = vunpack.c.l.b16 %v11275
    %v11411 = vunpack.c.l.b16 %v11276
    %v11412 = vunpack.c.l.b16 %v11277
    %v11413 = vunpack.c.l.b16 %v11278
    %v11414 = vunpack.c.l.b16 %v11279
    %v11415 = vunpack.c.l.b16 %v11280
    %v11416 = vunpack.c.l.b16 %v11281
    %v11417 = vunpack.c.l.b16 %v11282
    %v11418 = vunpack.c.l.b16 %v11283
    %v11419 = vunpack.c.l.b16 %v11284
    %v11420 = vunpack.c.l.b16 %v11285
    %v11421 = vunpack.c.l.b16 %v11286
    %v11422 = vunpack.c.l.b16 %v11287
    %v11423 = vunpack.c.l.b16 %v11288
    %v11424 = vunpack.c.l.b16 %v11289
    %v11425 = vpack.c.b16 %v11362, %v11361
    %v11426 = vpack.c.b16 %v11364, %v11363
    %v11427 = vpack.c.b16 %v11366, %v11365
    %v11428 = vpack.c.b16 %v11368, %v11367
    %v11429 = vpack.c.b16 %v11370, %v11369
    %v11430 = vpack.c.b16 %v11372, %v11371
    %v11431 = vpack.c.b16 %v11374, %v11373
    %v11432 = vpack.c.b16 %v11376, %v11375
    %v11433 = vpack.c.b16 %v11378, %v11377
    %v11434 = vpack.c.b16 %v11380, %v11379
    %v11435 = vpack.c.b16 %v11382, %v11381
    %v11436 = vpack.c.b16 %v11384, %v11383
    %v11437 = vpack.c.b16 %v11386, %v11385
    %v11438 = vpack.c.b16 %v11388, %v11387
    %v11439 = vpack.c.b16 %v11390, %v11389
    %v11440 = vpack.c.b16 %v11392, %v11391
    %v11441 = vpack.c.b16 %v11394, %v11393
    %v11442 = vpack.c.b16 %v11396, %v11395
    %v11443 = vpack.c.b16 %v11398, %v11397
    %v11444 = vpack.c.b16 %v11400, %v11399
    %v11445 = vpack.c.b16 %v11402, %v11401
    %v11446 = vpack.c.b16 %v11404, %v11403
    %v11447 = vpack.c.b16 %v11406, %v11405
    %v11448 = vpack.c.b16 %v11408, %v11407
    %v11449 = vpack.c.b16 %v11410, %v11409
    %v11450 = vpack.c.b16 %v11412, %v11411
    %v11451 = vpack.c.b16 %v11414, %v11413
    %v11452 = vpack.c.b16 %v11416, %v11415
    %v11453 = vpack.c.b16 %v11418, %v11417
    %v11454 = vpack.c.b16 %v11420, %v11419
    %v11455 = vpack.c.b16 %v11422, %v11421
    %v11456 = vpack.c.b16 %v11424, %v11423
    %11489 = vmatprep.subr.bf16.mxu0 0
    %11490 = vmatpush1.bf16.msra.mxu0 %v11425
    %11491 = vmatprep.subr.bf16.mxu0 0
    %11492 = vmatpush1.bf16.msra.mxu0 %v11426
    %11493 = vmatprep.subr.bf16.mxu0 0
    %11494 = vmatpush1.bf16.msra.mxu0 %v11427
    %11495 = vmatprep.subr.bf16.mxu0 0
    %11496 = vmatpush1.bf16.msra.mxu0 %v11428
    %11497 = vmatprep.subr.bf16.mxu0 0
    %11498 = vmatpush1.bf16.msra.mxu0 %v11429
    %11499 = vmatprep.subr.bf16.mxu0 0
    %11500 = vmatpush1.bf16.msra.mxu0 %v11430
    %11501 = vmatprep.subr.bf16.mxu0 0
    %11502 = vmatpush1.bf16.msra.mxu0 %v11431
    %11503 = vmatprep.subr.bf16.mxu0 0
    %11504 = vmatpush1.bf16.msra.mxu0 %v11432
    %11505 = vmatprep.subr.bf16.mxu0 0
    %11506 = vmatpush1.bf16.msra.mxu0 %v11433
    %11507 = vmatprep.subr.bf16.mxu0 0
    %11508 = vmatpush1.bf16.msra.mxu0 %v11434
    %11509 = vmatprep.subr.bf16.mxu0 0
    %11510 = vmatpush1.bf16.msra.mxu0 %v11435
    %11511 = vmatprep.subr.bf16.mxu0 0
    %11512 = vmatpush1.bf16.msra.mxu0 %v11436
    %11513 = vmatprep.subr.bf16.mxu0 0
    %11514 = vmatpush1.bf16.msra.mxu0 %v11437
    %11515 = vmatprep.subr.bf16.mxu0 0
    %11516 = vmatpush1.bf16.msra.mxu0 %v11438
    %11517 = vmatprep.subr.bf16.mxu0 0
    %11518 = vmatpush1.bf16.msra.mxu0 %v11439
    %11519 = vmatprep.subr.bf16.mxu0 0
    %11520 = vmatpush1.bf16.msra.mxu0 %v11440
    %11521 = vmatprep.mubr.bf16.mxu0 %v11223
    %11522 = vmatmul.mubr.bf16.gmra.mrb[0].mxu0 %v11222
    %v11523 = vpop.f32.mrb[0].mxu0
    %v11524 = vadd.f32 %v11295, %v11523
    %v11525 = vpop.f32.mrb[0].mxu0
    %v11526 = vpop.f32.mrb[0].mxu0
    %v11527 = vpop.f32.mrb[0].mxu0
    %11528 = vdwg.mxu0
    %11529 = vmatprep.subr.bf16.mxu0 0
    %11530 = vmatpush1.bf16.msra.mxu0 %v11441
    %11531 = vmatprep.subr.bf16.mxu0 0
    %11532 = vmatpush1.bf16.msra.mxu0 %v11442
    %11533 = vmatprep.subr.bf16.mxu0 0
    %11534 = vmatpush1.bf16.msra.mxu0 %v11443
    %11535 = vmatprep.subr.bf16.mxu0 0
    %11536 = vmatpush1.bf16.msra.mxu0 %v11444
    %11537 = vmatprep.subr.bf16.mxu0 0
    %11538 = vmatpush1.bf16.msra.mxu0 %v11445
    %11539 = vmatprep.subr.bf16.mxu0 0
    %11540 = vmatpush1.bf16.msra.mxu0 %v11446
    %11541 = vmatprep.subr.bf16.mxu0 0
    %11542 = vmatpush1.bf16.msra.mxu0 %v11447
    %11543 = vmatprep.subr.bf16.mxu0 0
    %11544 = vmatpush1.bf16.msra.mxu0 %v11448
    %11545 = vmatprep.subr.bf16.mxu0 0
    %11546 = vmatpush1.bf16.msra.mxu0 %v11449
    %11547 = vmatprep.subr.bf16.mxu0 0
    %11548 = vmatpush1.bf16.msra.mxu0 %v11450
    %11549 = vmatprep.subr.bf16.mxu0 0
    %11550 = vmatpush1.bf16.msra.mxu0 %v11451
    %11551 = vmatprep.subr.bf16.mxu0 0
    %11552 = vmatpush1.bf16.msra.mxu0 %v11452
    %11553 = vmatprep.subr.bf16.mxu0 0
    %11554 = vmatpush1.bf16.msra.mxu0 %v11453
    %11555 = vmatprep.subr.bf16.mxu0 0
    %11556 = vmatpush1.bf16.msra.mxu0 %v11454
    %11557 = vmatprep.subr.bf16.mxu0 0
    %11558 = vmatpush1.bf16.msra.mxu0 %v11455
    %11559 = vmatprep.subr.bf16.mxu0 0
    %11560 = vmatpush1.bf16.msra.mxu0 %v11456
    %11561 = vmatprep.mubr.bf16.mxu0 %v11225
    %11562 = vmatmul.mubr.bf16.gmra.mrb[0].mxu0 %v11224
    %v11563 = vpop.f32.mrb[0].mxu0
    %v11564 = vadd.f32 %v11524, %v11563
    %v11565 = vpop.f32.mrb[0].mxu0
    %v11566 = vpop.f32.mrb[0].mxu0
    %v11567 = vpop.f32.mrb[0].mxu0
    %11568 = vdwg.mxu0
    %v11569 = vmax.f32 %v11564, 0.0
    %v11570 = vpack.c.bf16 %v11569, %v11569
    %v11571 = vld [vmem:[#allocation30] sm:$0xf]
    %v11572 = vld [vmem:[#allocation30 + $0x4] sm:$0xf]
    %v11573 = vld [vmem:[#allocation30 + $0x8] sm:$0xf]
    %v11574 = vld [vmem:[#allocation30 + $0xc] sm:$0xf]
    %v11575 = vld [vmem:[#allocation30 + $0x10] sm:$0xf]
    %v11576 = vld [vmem:[#allocation30 + $0x14] sm:$0xf]
    %v11577 = vld [vmem:[#allocation30 + $0x18] sm:$0xf]
    %v11578 = vld [vmem:[#allocation30 + $0x1c] sm:$0xf]
    %v11579 = vld [vmem:[#allocation30 + $0x20] sm:$0xf]
    %v11580 = vld [vmem:[#allocation30 + $0x24] sm:$0xf]
    %v11581 = vld [vmem:[#allocation30 + $0x28] sm:$0xf]
    %v11582 = vld [vmem:[#allocation30 + $0x2c] sm:$0xf]
    %v11583 = vld [vmem:[#allocation30 + $0x30] sm:$0xf]
    %v11584 = vld [vmem:[#allocation30 + $0x34] sm:$0xf]
    %v11585 = vld [vmem:[#allocation30 + $0x38] sm:$0xf]
    %v11586 = vld [vmem:[#allocation30 + $0x3c] sm:$0xf]
    %v11587 = vld [vmem:[#allocation31] sm:$0x1]
    %v11589 = vlaneseq
    %v11590 = vshrl.u32 %v11589, 7
    %v11591 = vsub.s32 0, %v11590
    %v11592 = vrot.slane %v11587, %v11591
    %v11610 = vunpack.c.l.b16 %v11571
    %v11611 = vunpack.c.l.b16 %v11572
    %v11612 = vunpack.c.l.b16 %v11573
    %v11613 = vunpack.c.l.b16 %v11574
    %v11614 = vunpack.c.l.b16 %v11575
    %v11615 = vunpack.c.l.b16 %v11576
    %v11616 = vunpack.c.l.b16 %v11577
    %v11617 = vunpack.c.l.b16 %v11578
    %v11618 = vunpack.c.l.b16 %v11579
    %v11619 = vunpack.c.l.b16 %v11580
    %v11620 = vunpack.c.l.b16 %v11581
    %v11621 = vunpack.c.l.b16 %v11582
    %v11622 = vunpack.c.l.b16 %v11583
    %v11623 = vunpack.c.l.b16 %v11584
    %v11624 = vunpack.c.l.b16 %v11585
    %v11625 = vunpack.c.l.b16 %v11586
    %v11626 = vpack.c.b16 %v11611, %v11610
    %v11627 = vpack.c.b16 %v11613, %v11612
    %v11628 = vpack.c.b16 %v11615, %v11614
    %v11629 = vpack.c.b16 %v11617, %v11616
    %v11630 = vpack.c.b16 %v11619, %v11618
    %v11631 = vpack.c.b16 %v11621, %v11620
    %v11632 = vpack.c.b16 %v11623, %v11622
    %v11633 = vpack.c.b16 %v11625, %v11624
    %11642 = vmatprep.subr.bf16.mxu0 0
    %11643 = vmatpush1.bf16.msra.mxu0 %v11626
    %11644 = vmatprep.subr.bf16.mxu0 0
    %11645 = vmatpush1.bf16.msra.mxu0 %v11627
    %11646 = vmatprep.subr.bf16.mxu0 0
    %11647 = vmatpush1.bf16.msra.mxu0 %v11628
    %11648 = vmatprep.subr.bf16.mxu0 0
    %11649 = vmatpush1.bf16.msra.mxu0 %v11629
    %11650 = vmatprep.subr.bf16.mxu0 0
    %11651 = vmatpush1.bf16.msra.mxu0 %v11630
    %11652 = vmatprep.subr.bf16.mxu0 0
    %11653 = vmatpush1.bf16.msra.mxu0 %v11631
    %11654 = vmatprep.subr.bf16.mxu0 0
    %11655 = vmatpush1.bf16.msra.mxu0 %v11632
    %11656 = vmatprep.subr.bf16.mxu0 0
    %11657 = vmatpush1.bf16.msra.mxu0 %v11633
    %11658 = vmatprep.subr.bf16.mxu0 0
    %11659 = vmatpush1.bf16.msra.mxu0 0
    %11660 = vmatprep.subr.bf16.mxu0 0
    %11661 = vmatpush1.bf16.msra.mxu0 0
    %11662 = vmatprep.subr.bf16.mxu0 0
    %11663 = vmatpush1.bf16.msra.mxu0 0
    %11664 = vmatprep.subr.bf16.mxu0 0
    %11665 = vmatpush1.bf16.msra.mxu0 0
    %11666 = vmatprep.subr.bf16.mxu0 0
    %11667 = vmatpush1.bf16.msra.mxu0 0
    %11668 = vmatprep.subr.bf16.mxu0 0
    %11669 = vmatpush1.bf16.msra.mxu0 0
    %11670 = vmatprep.subr.bf16.mxu0 0
    %11671 = vmatpush1.bf16.msra.mxu0 0
    %11672 = vmatprep.subr.bf16.mxu0 0
    %11673 = vmatpush1.bf16.msra.mxu0 0
    %11674 = vmatprep.mubr.bf16.mxu0 0
    %11675 = vmatmul.mubr.bf16.gmra.mrb[0].mxu0 %v11570
    %v11676 = vpop.f32.mrb[0].mxu0
    %v11677 = vadd.f32 %v11592, %v11676
    %v11678 = vpop.f32.mrb[0].mxu0
    %v11679 = vpop.f32.mrb[0].mxu0
    %v11680 = vpop.f32.mrb[0].mxu0
    %11681 = vdwg.mxu0
    %v11682 = vtanh.pop %v11677
    %11683 = vst [vmem:[%s21] sm:$0xff] %v11682
    // Predicated region
    $region166: #{tonenet_forward.1} parent=1 // pred_check
      _
    $region167: #{tonenet_forward.1} parent=1 // pred_check_branch
      %11685 = sbr.rel (0) target = $region169
    $region168: #{tonenet_forward.1} parent=1 // pred_region
      _
    $region169: #{tonenet_forward.1} parent=1 // pred_fallthru
      _
    // Predicated region
    $region170: #{tonenet_forward.1} parent=1 // pred_check
      _
    $region171: #{tonenet_forward.1} parent=1 // pred_check_branch
      %11687 = sbr.rel (0) target = $region173
    $region172: #{tonenet_forward.1} parent=1 // pred_region
      _
    $region173: #{tonenet_forward.1} parent=1 // pred_fallthru
      _
    %11688 = vsyncpa [#allocation3], 1
    %11689 = vsyncpa [#allocation5], 1
    %11690 = vsyncpa [#allocation8], 1
    %11691 = vsyncpa [#allocation11], 1
    %11692 = vsyncpa [#allocation14], 1
    %11693 = vsyncpa [#allocation17], 1
    %11694 = vsyncpa [#allocation20], 1
    %11695 = vsyncpa [#allocation23], 1
    %11696 = vsyncpa [#allocation26], 1
    %11697 = vsyncpa [#allocation29], 1
    %11698 = vsyncpa [#allocation32], 1

</llo_original>
